<compile_context>
chip_gen: v5e
topology: v5e:2x2
jax: 0.10.0
libtpu: 0.0.40
codegen_flags: <defaults>
</compile_context>

<pallas_src>
import functools

import jax
import jax.numpy as jnp
from jax.experimental import pallas as pl
from jax.experimental.pallas import tpu as pltpu


# --------------------------------------------------------------------------
# Pallas kernel: one batch element per grid step.
# --------------------------------------------------------------------------
def _sa_convlstm_kernel(
    comb_ref, c_ref, m_ref,
    w_conv_ref, b_conv_ref, gamma_ref, beta_ref,
    wqkv_ref, bqkv_ref, wkv2_ref, bkv2_ref,
    wzh_ref, wzm_ref, bz_ref, wmz_ref, wmh_ref, bm_ref,
    h_out_ref, c_out_ref, m_out_ref,
    *, hidden_dim, ksize, height, width, eps):
  Hd = hidden_dim
  H, W = height, width
  HW = H * W
  pad = ksize // 2
  Hp = H + 2 * pad
  Cc = comb_ref.shape[-1]                       # Cin + Hd

  c_prev = c_ref[...]                           # (HW, Hd) f32
  m_prev = m_ref[...]                           # (HW, Hd) f32

  # ---- KxK conv as K*K shifted (HW, Cc) @ (Cc, 4Hd) bf16 MXU matmuls ----
  comb = comb_ref[...]                          # (Hp, Wp, Cc) bf16, zero-padded
  acc = jnp.zeros((HW, 4 * Hd), jnp.float32)
  for kx in range(ksize):
    # Band trick: after slicing the x-window to exactly W columns, flattening
    # (Hp, W) makes every (ky, kx) tap a contiguous, sublane-tile-aligned
    # block of HW rows starting at ky*W.
    band = comb[:, kx:kx + W, :].reshape(Hp * W, Cc)         # (Hp*W, Cc) bf16
    for ky in range(ksize):
      tap = band[ky * W: ky * W + HW, :]                     # (HW, Cc)
      w_tap = w_conv_ref[(ky * ksize + kx) * Cc:(ky * ksize + kx + 1) * Cc, :]
      acc = acc + jnp.dot(tap, w_tap, preferred_element_type=jnp.float32)
  conv = acc + b_conv_ref[...]                               # (HW, 4*Hd) f32

  # ---- GroupNorm(4*Hd, 4*Hd) == per-channel instance norm over H*W ----
  mean = jnp.mean(conv, axis=0, keepdims=True)
  var = jnp.mean((conv - mean) ** 2, axis=0, keepdims=True)
  conv = (conv - mean) * jax.lax.rsqrt(var + eps)
  conv = conv * gamma_ref[...] + beta_ref[...]

  # ---- ConvLSTM gates (full-lane-width activation, then slice) ----
  lane = jax.lax.broadcasted_iota(jnp.int32, conv.shape, 1)
  act = jnp.where(lane < 3 * Hd, jax.nn.sigmoid(conv), jnp.tanh(conv))
  i_g = act[:, 0 * Hd:1 * Hd]
  f_g = act[:, 1 * Hd:2 * Hd]
  o_g = act[:, 2 * Hd:3 * Hd]
  g_g = act[:, 3 * Hd:4 * Hd]

  c_next = f_g * c_prev + i_g * g_g
  h_mid = o_g * jnp.tanh(c_next)                             # (HW, Hd) f32

  # ---- self-attention memory module (1x1 convs == matmuls, all fused) ----
  h_bf = h_mid.astype(jnp.bfloat16)
  m_bf = m_prev.astype(jnp.bfloat16)

  qkv = jnp.dot(h_bf, wqkv_ref[...],
                preferred_element_type=jnp.float32) + bqkv_ref[...]   # (HW, 3Hd)
  kv_m = jnp.dot(m_bf, wkv2_ref[...],
                 preferred_element_type=jnp.float32) + bkv2_ref[...]  # (HW, 2Hd)

  q = qkv[:, 0 * Hd:1 * Hd].astype(jnp.bfloat16)
  k_h = qkv[:, 1 * Hd:2 * Hd].astype(jnp.bfloat16)
  v_h = qkv[:, 2 * Hd:3 * Hd].astype(jnp.bfloat16)
  k_m = kv_m[:, 0 * Hd:1 * Hd].astype(jnp.bfloat16)
  v_m = kv_m[:, 1 * Hd:2 * Hd].astype(jnp.bfloat16)

  # Fused score matmul: (HW, Hd) x (2*HW, Hd)^T -> (HW, 2*HW); the HW-boundary
  # slice for the two softmaxes is a multiple of 128 lanes (free).
  k_all = jnp.concatenate([k_h, k_m], axis=0)                # (2*HW, Hd) bf16
  dn = (((1,), (1,)), ((), ()))
  s_all = jax.lax.dot_general(q, k_all, dn,
                              preferred_element_type=jnp.float32)     # (HW, 2*HW)

  def softmax_rows(s):
    e = jnp.exp(s - jnp.max(s, axis=-1, keepdims=True))
    return e * pl.reciprocal(jnp.sum(e, axis=-1, keepdims=True), approx=True)

  a_h = softmax_rows(s_all[:, :HW]).astype(jnp.bfloat16)     # (HW, HW)
  a_m = softmax_rows(s_all[:, HW:]).astype(jnp.bfloat16)     # (HW, HW)

  z_h = jnp.dot(a_h, v_h, preferred_element_type=jnp.float32)   # (HW, Hd)
  z_m = jnp.dot(a_m, v_m, preferred_element_type=jnp.float32)   # (HW, Hd)

  # layer_z on cat([z_h, z_m]) == split-weight accumulating matmuls.
  z = (jnp.dot(z_h.astype(jnp.bfloat16), wzh_ref[...],
               preferred_element_type=jnp.float32)
       + jnp.dot(z_m.astype(jnp.bfloat16), wzm_ref[...],
                 preferred_element_type=jnp.float32)
       + bz_ref[...])                                        # (HW, 2*Hd)

  # layer_m on cat([z, h_mid]) == split-weight accumulating matmuls.
  comb2 = (jnp.dot(z.astype(jnp.bfloat16), wmz_ref[...],
                   preferred_element_type=jnp.float32)
           + jnp.dot(h_bf, wmh_ref[...],
                     preferred_element_type=jnp.float32)
           + bm_ref[...])                                    # (HW, 3*Hd)

  lane2 = jax.lax.broadcasted_iota(jnp.int32, comb2.shape, 1)
  is_tanh = (lane2 >= Hd) & (lane2 < 2 * Hd)
  act2 = jnp.where(is_tanh, jnp.tanh(comb2), jax.nn.sigmoid(comb2))
  sig_mo = act2[:, 0 * Hd:1 * Hd]
  tanh_mg = act2[:, 1 * Hd:2 * Hd]
  sig_mi = act2[:, 2 * Hd:3 * Hd]

  m_next = (1.0 - sig_mi) * m_prev + sig_mi * tanh_mg
  h_next = sig_mo * m_next

  h_out_ref[...] = h_next
  c_out_ref[...] = c_next
  m_out_ref[...] = m_next


# --------------------------------------------------------------------------
# Host-side glue.
# --------------------------------------------------------------------------
def _pack_weights(params, hd):
  """Fuse / split the per-layer parameters into the kernel's weight layout."""
  p = params
  bf = lambda a: a.astype(jnp.bfloat16)
  return [
      bf(p["w_conv"]),                                             # (K*K*Cc, 4Hd)
      p["b_conv"], p["gamma"], p["beta"],                          # (1, 4Hd) f32
      bf(jnp.concatenate([p["wq"], p["wk"], p["wv"]], axis=1)),    # (Hd, 3Hd)
      jnp.concatenate([p["bq"], p["bk"], p["bv"]], axis=1),        # (1, 3Hd)
      bf(jnp.concatenate([p["wk2"], p["wv2"]], axis=1)),           # (Hd, 2Hd)
      jnp.concatenate([p["bk2"], p["bv2"]], axis=1),               # (1, 2Hd)
      bf(p["wz"][:hd]), bf(p["wz"][hd:]), p["bz"],                 # wz split
      bf(p["wm"][:2 * hd]), bf(p["wm"][2 * hd:]), p["bm"],         # wm split
  ]


def sa_convlstm_cell_pallas(x, h, c, m, params, *, filter_size):
  B, Cin, H, W = x.shape
  Hd = h.shape[1]
  pad = filter_size // 2
  Cc = Cin + Hd
  HW = H * W
  Hp, Wp = H + 2 * pad, W + 2 * pad

  nhwc = lambda t: jnp.transpose(t, (0, 2, 3, 1))
  comb = jnp.concatenate([nhwc(x), nhwc(h)], axis=-1)          # (B, H, W, Cc)
  comb_p = jnp.pad(comb, ((0, 0), (pad, pad), (pad, pad), (0, 0)))
  comb_p = comb_p.astype(jnp.bfloat16)                         # (B, Hp, Wp, Cc)
  c_f = nhwc(c).reshape(B, HW, Hd)
  m_f = nhwc(m).reshape(B, HW, Hd)

  weight_args = _pack_weights(params, Hd)

  comb_spec = pl.BlockSpec((None, Hp, Wp, Cc), lambda b: (b, 0, 0, 0))
  state_spec = pl.BlockSpec((None, HW, Hd), lambda b: (b, 0, 0))

  def full_spec(arr):
    nd = arr.ndim
    return pl.BlockSpec(arr.shape, lambda b, _n=nd: (0,) * _n)

  in_specs = ([comb_spec, state_spec, state_spec]
              + [full_spec(w) for w in weight_args])
  out_specs = (state_spec, state_spec, state_spec)
  out_shape = tuple(jax.ShapeDtypeStruct((B, HW, Hd), jnp.float32)
                    for _ in range(3))

  # Advisory cost estimate for the XLA scheduler.
  kk = filter_size * filter_size
  matmul_flops = 2 * HW * (kk * Cc * 4 * Hd            # conv
                           + Hd * 3 * Hd               # qkv projection
                           + Hd * 2 * Hd               # k_m / v_m projection
                           + Hd * 2 * HW               # fused scores
                           + 2 * HW * Hd               # a_h@v_h + a_m@v_m
                           + 2 * Hd * 2 * Hd           # layer_z (split)
                           + 3 * Hd * 3 * Hd)          # layer_m (split)
  transcendentals = HW * (2 * 4 * Hd + 2 * HW + 2 * 3 * Hd + Hd)
  bytes_accessed = int(comb_p.nbytes + c_f.nbytes + m_f.nbytes
                       + 3 * B * HW * Hd * 4
                       + sum(int(w.size) * w.dtype.itemsize for w in weight_args))
  cost = pl.CostEstimate(flops=int(B * matmul_flops),
                         transcendentals=int(B * transcendentals),
                         bytes_accessed=bytes_accessed)

  kernel = functools.partial(_sa_convlstm_kernel, hidden_dim=Hd,
                             ksize=filter_size, height=H, width=W, eps=1e-5)

  h_n, c_n, m_n = pl.pallas_call(
      kernel,
      grid=(B,),
      in_specs=in_specs,
      out_specs=out_specs,
      out_shape=out_shape,
      compiler_params=pltpu.CompilerParams(dimension_semantics=("parallel",)),
      cost_estimate=cost,
  )(comb_p, c_f, m_f, *weight_args)

  def back(t):  # (B, HW, Hd) -> NCHW
    return jnp.transpose(t.reshape(B, H, W, Hd), (0, 3, 1, 2))

  return back(h_n), back(c_n), back(m_n)


# --------------------------------------------------------------------------
# Pure-JAX reference (f32, host im2col) for validation only.
# --------------------------------------------------------------------------
def _reference_prepare(x, h, c, m, filter_size):
  B, Cin, H, W = x.shape
  Hd = h.shape[1]
  pad = filter_size // 2
  nhwc = lambda t: jnp.transpose(t, (0, 2, 3, 1))
  comb = jnp.concatenate([nhwc(x), nhwc(h)], axis=-1)
  comb_p = jnp.pad(comb, ((0, 0), (pad, pad), (pad, pad), (0, 0)))
  patch_list = []
  for ky in range(filter_size):
    for kx in range(filter_size):
      patch_list.append(comb_p[:, ky:ky + H, kx:kx + W, :])
  patches = jnp.concatenate(patch_list, axis=-1).reshape(
      B, H * W, filter_size * filter_size * (Cin + Hd))
  c_f = nhwc(c).reshape(B, H * W, Hd)
  m_f = nhwc(m).reshape(B, H * W, Hd)
  return patches, c_f, m_f, (B, H, W, Hd)


def reference_forward(x, h, c, m, params, filter_size):
  patches, c_f, m_f, (B, H, W, Hd) = _reference_prepare(x, h, c, m, filter_size)
  p = params
  conv = jnp.einsum('bpk,kc->bpc', patches, p["w_conv"]) + p["b_conv"]
  mean = conv.mean(axis=1, keepdims=True)
  var = ((conv - mean) ** 2).mean(axis=1, keepdims=True)
  conv = (conv - mean) / jnp.sqrt(var + 1e-5) * p["gamma"] + p["beta"]
  i = jax.nn.sigmoid(conv[..., :Hd])
  f = jax.nn.sigmoid(conv[..., Hd:2 * Hd])
  o = jax.nn.sigmoid(conv[..., 2 * Hd:3 * Hd])
  g = jnp.tanh(conv[..., 3 * Hd:])
  c_next = f * c_f + i * g
  h_mid = o * jnp.tanh(c_next)

  lin = lambda t, w, b: jnp.einsum('bpc,cd->bpd', t, w) + b
  q = lin(h_mid, p["wq"], p["bq"])
  kh = lin(h_mid, p["wk"], p["bk"])
  vh = lin(h_mid, p["wv"], p["bv"])
  km = lin(m_f, p["wk2"], p["bk2"])
  vm = lin(m_f, p["wv2"], p["bv2"])
  ah = jax.nn.softmax(jnp.einsum('bpd,bqd->bpq', q, kh), axis=-1)
  am = jax.nn.softmax(jnp.einsum('bpd,bqd->bpq', q, km), axis=-1)
  zh = jnp.einsum('bpq,bqd->bpd', ah, vh)
  zm = jnp.einsum('bpq,bqd->bpd', am, vm)
  z = lin(jnp.concatenate([zh, zm], -1), p["wz"], p["bz"])
  comb = lin(jnp.concatenate([z, h_mid], -1), p["wm"], p["bm"])
  mo, mg, mi = comb[..., :Hd], comb[..., Hd:2 * Hd], comb[..., 2 * Hd:]
  mi = jax.nn.sigmoid(mi)
  m_next = (1.0 - mi) * m_f + mi * jnp.tanh(mg)
  h_next = jax.nn.sigmoid(mo) * m_next

  def back(t):
    return jnp.transpose(t.reshape(B, H, W, Hd), (0, 3, 1, 2))
  return back(h_next), back(c_next), back(m_next)


# --------------------------------------------------------------------------
# Deterministic synthetic parameters (channels-last weight layout:
# w[..., ci, co] so that y = x @ w + b matches the PyTorch conv semantics).
# --------------------------------------------------------------------------
def init_params(key, in_ch, hd, ksize):
  K = ksize * ksize * (in_ch + hd)
  shapes = {
      "w_conv": (K, 4 * hd), "b_conv": (1, 4 * hd),
      "gamma": (1, 4 * hd), "beta": (1, 4 * hd),
      "wq": (hd, hd), "bq": (1, hd),
      "wk": (hd, hd), "bk": (1, hd),
      "wk2": (hd, hd), "bk2": (1, hd),
      "wv": (hd, hd), "bv": (1, hd),
      "wv2": (hd, hd), "bv2": (1, hd),
      "wz": (2 * hd, 2 * hd), "bz": (1, 2 * hd),
      "wm": (3 * hd, 3 * hd), "bm": (1, 3 * hd),
  }
  params = {}
  keys = jax.random.split(key, len(shapes))
  for k_, (name, shp) in zip(keys, shapes.items()):
    params[name] = jax.random.normal(k_, shp, jnp.float32) * 0.1
  params["gamma"] = 1.0 + params["gamma"]   # GroupNorm scale around 1
  return params


if __name__ == "__main__":
  B, Cin, Hd, H, W, ksize = 2, 4, 32, 16, 16, 3

  root = jax.random.PRNGKey(0)
  k_data, k_param = jax.random.split(root)
  kx, kh, kc, km = jax.random.split(k_data, 4)
  x = jax.random.normal(kx, (B, Cin, H, W), jnp.float32)
  h = jax.random.normal(kh, (B, Hd, H, W), jnp.float32) * 0.5
  c = jax.random.normal(kc, (B, Hd, H, W), jnp.float32) * 0.5
  m = jax.random.normal(km, (B, Hd, H, W), jnp.float32) * 0.5
  params = init_params(k_param, Cin, Hd, ksize)

  h_n, c_n, m_n = sa_convlstm_cell_pallas(x, h, c, m, params, filter_size=ksize)
  jax.block_until_ready((h_n, c_n, m_n))

  h_r, c_r, m_r = reference_forward(x, h, c, m, params, ksize)
  for got, ref in ((h_n, h_r), (c_n, c_r), (m_n, m_r)):
    err = float(jnp.max(jnp.abs(got - ref)))
    assert jnp.allclose(got, ref, atol=1e-2, rtol=1e-2), f"max abs err {err}"

  print("KERNEL_OK")
</pallas_src>

<mosaic_0001>
module attributes {stable_mosaic.version = 11 : i64} {
  func.func @_sa_convlstm_kernel(%arg0: i32, %arg1: memref<1x18x18x36xbf16, #tpu.memory_space<vmem>>, %arg2: memref<1x256x32xf32, #tpu.memory_space<vmem>>, %arg3: memref<1x256x32xf32, #tpu.memory_space<vmem>>, %arg4: memref<324x128xbf16, #tpu.memory_space<vmem>>, %arg5: memref<1x128xf32, #tpu.memory_space<vmem>>, %arg6: memref<1x128xf32, #tpu.memory_space<vmem>>, %arg7: memref<1x128xf32, #tpu.memory_space<vmem>>, %arg8: memref<32x96xbf16, #tpu.memory_space<vmem>>, %arg9: memref<1x96xf32, #tpu.memory_space<vmem>>, %arg10: memref<32x64xbf16, #tpu.memory_space<vmem>>, %arg11: memref<1x64xf32, #tpu.memory_space<vmem>>, %arg12: memref<32x64xbf16, #tpu.memory_space<vmem>>, %arg13: memref<32x64xbf16, #tpu.memory_space<vmem>>, %arg14: memref<1x64xf32, #tpu.memory_space<vmem>>, %arg15: memref<64x96xbf16, #tpu.memory_space<vmem>>, %arg16: memref<32x96xbf16, #tpu.memory_space<vmem>>, %arg17: memref<1x96xf32, #tpu.memory_space<vmem>>, %arg18: memref<1x256x32xf32, #tpu.memory_space<vmem>>, %arg19: memref<1x256x32xf32, #tpu.memory_space<vmem>>, %arg20: memref<1x256x32xf32, #tpu.memory_space<vmem>>) attributes {dimension_semantics = [#tpu.dimension_semantics<parallel>], iteration_bounds = array<i64: 2>, scalar_prefetch = 0 : i64, scratch_operands = 0 : i64, tpu.core_type = #tpu.core_type<tc>, window_params = [{transform_indices = @transform_0, window_bounds = array<i64: 1, 18, 18, 36>}, {transform_indices = @transform_1, window_bounds = array<i64: 1, 256, 32>}, {transform_indices = @transform_2, window_bounds = array<i64: 1, 256, 32>}, {pipeline_mode = #tpu.pipeline_mode<synchronous>, transform_indices = @transform_3, window_bounds = array<i64: 324, 128>}, {pipeline_mode = #tpu.pipeline_mode<synchronous>, transform_indices = @transform_4, window_bounds = array<i64: 1, 128>}, {pipeline_mode = #tpu.pipeline_mode<synchronous>, transform_indices = @transform_5, window_bounds = array<i64: 1, 128>}, {pipeline_mode = #tpu.pipeline_mode<synchronous>, transform_indices = @transform_6, window_bounds = array<i64: 1, 128>}, {pipeline_mode = #tpu.pipeline_mode<synchronous>, transform_indices = @transform_7, window_bounds = array<i64: 32, 96>}, {pipeline_mode = #tpu.pipeline_mode<synchronous>, transform_indices = @transform_8, window_bounds = array<i64: 1, 96>}, {pipeline_mode = #tpu.pipeline_mode<synchronous>, transform_indices = @transform_9, window_bounds = array<i64: 32, 64>}, {pipeline_mode = #tpu.pipeline_mode<synchronous>, transform_indices = @transform_10, window_bounds = array<i64: 1, 64>}, {pipeline_mode = #tpu.pipeline_mode<synchronous>, transform_indices = @transform_11, window_bounds = array<i64: 32, 64>}, {pipeline_mode = #tpu.pipeline_mode<synchronous>, transform_indices = @transform_12, window_bounds = array<i64: 32, 64>}, {pipeline_mode = #tpu.pipeline_mode<synchronous>, transform_indices = @transform_13, window_bounds = array<i64: 1, 64>}, {pipeline_mode = #tpu.pipeline_mode<synchronous>, transform_indices = @transform_14, window_bounds = array<i64: 64, 96>}, {pipeline_mode = #tpu.pipeline_mode<synchronous>, transform_indices = @transform_15, window_bounds = array<i64: 32, 96>}, {pipeline_mode = #tpu.pipeline_mode<synchronous>, transform_indices = @transform_16, window_bounds = array<i64: 1, 96>}, {transform_indices = @transform_17, window_bounds = array<i64: 1, 256, 32>}, {transform_indices = @transform_18, window_bounds = array<i64: 1, 256, 32>}, {transform_indices = @transform_19, window_bounds = array<i64: 1, 256, 32>}]} {
    %c0 = arith.constant 0 : index
    %c0_0 = arith.constant 0 : index
    %c0_1 = arith.constant 0 : index
    %0 = vector.load %arg2[%c0, %c0_0, %c0_1] : memref<1x256x32xf32, #tpu.memory_space<vmem>>, vector<1x256x32xf32>
    %1 = vector.shape_cast %0 : vector<1x256x32xf32> to vector<256x32xf32>
    %c0_2 = arith.constant 0 : index
    %c0_3 = arith.constant 0 : index
    %c0_4 = arith.constant 0 : index
    %2 = vector.load %arg3[%c0_2, %c0_3, %c0_4] : memref<1x256x32xf32, #tpu.memory_space<vmem>>, vector<1x256x32xf32>
    %3 = vector.shape_cast %2 : vector<1x256x32xf32> to vector<256x32xf32>
    %c0_5 = arith.constant 0 : index
    %c0_6 = arith.constant 0 : index
    %c0_7 = arith.constant 0 : index
    %c0_8 = arith.constant 0 : index
    %4 = vector.load %arg1[%c0_5, %c0_6, %c0_7, %c0_8] : memref<1x18x18x36xbf16, #tpu.memory_space<vmem>>, vector<1x18x18x36xbf16>
    %5 = vector.shape_cast %4 : vector<1x18x18x36xbf16> to vector<18x18x36xbf16>
    %cst = arith.constant 0.000000e+00 : f32
    %6 = vector.broadcast %cst : f32 to vector<256x128xf32>
    %7 = vector.extract_strided_slice %5 {offsets = [0, 0, 0], sizes = [18, 16, 36], strides = [1, 1, 1]} : vector<18x18x36xbf16> to vector<18x16x36xbf16>
    %8 = vector.shape_cast %7 : vector<18x16x36xbf16> to vector<288x36xbf16>
    %9 = vector.extract_strided_slice %8 {offsets = [0, 0], sizes = [256, 36], strides = [1, 1]} : vector<288x36xbf16> to vector<256x36xbf16>
    %c0_9 = arith.constant 0 : index
    %c0_10 = arith.constant 0 : index
    %10 = vector.load %arg4[%c0_9, %c0_10] : memref<324x128xbf16, #tpu.memory_space<vmem>>, vector<36x128xbf16>
    %cst_11 = arith.constant dense<0.000000e+00> : vector<256x128xf32>
    %11 = tpu.matmul %9, %10, %cst_11 {dimension_numbers = #tpu.dot_dimension_numbers<[1], [0], [0], [1], [0, 0, 1, 1], [], []>} : vector<256x36xbf16>, vector<36x128xbf16>, vector<256x128xf32> -> vector<256x128xf32>
    %12 = arith.addf %6, %11 : vector<256x128xf32>
    %13 = vector.extract_strided_slice %8 {offsets = [16, 0], sizes = [256, 36], strides = [1, 1]} : vector<288x36xbf16> to vector<256x36xbf16>
    %c108 = arith.constant 108 : index
    %c0_12 = arith.constant 0 : index
    %14 = vector.load %arg4[%c108, %c0_12] : memref<324x128xbf16, #tpu.memory_space<vmem>>, vector<36x128xbf16>
    %cst_13 = arith.constant dense<0.000000e+00> : vector<256x128xf32>
    %15 = tpu.matmul %13, %14, %cst_13 {dimension_numbers = #tpu.dot_dimension_numbers<[1], [0], [0], [1], [0, 0, 1, 1], [], []>} : vector<256x36xbf16>, vector<36x128xbf16>, vector<256x128xf32> -> vector<256x128xf32>
    %16 = arith.addf %12, %15 : vector<256x128xf32>
    %17 = vector.extract_strided_slice %8 {offsets = [32, 0], sizes = [256, 36], strides = [1, 1]} : vector<288x36xbf16> to vector<256x36xbf16>
    %c216 = arith.constant 216 : index
    %c0_14 = arith.constant 0 : index
    %18 = vector.load %arg4[%c216, %c0_14] : memref<324x128xbf16, #tpu.memory_space<vmem>>, vector<36x128xbf16>
    %cst_15 = arith.constant dense<0.000000e+00> : vector<256x128xf32>
    %19 = tpu.matmul %17, %18, %cst_15 {dimension_numbers = #tpu.dot_dimension_numbers<[1], [0], [0], [1], [0, 0, 1, 1], [], []>} : vector<256x36xbf16>, vector<36x128xbf16>, vector<256x128xf32> -> vector<256x128xf32>
    %20 = arith.addf %16, %19 : vector<256x128xf32>
    %21 = vector.extract_strided_slice %5 {offsets = [0, 1, 0], sizes = [18, 16, 36], strides = [1, 1, 1]} : vector<18x18x36xbf16> to vector<18x16x36xbf16>
    %22 = vector.shape_cast %21 : vector<18x16x36xbf16> to vector<288x36xbf16>
    %23 = vector.extract_strided_slice %22 {offsets = [0, 0], sizes = [256, 36], strides = [1, 1]} : vector<288x36xbf16> to vector<256x36xbf16>
    %c36 = arith.constant 36 : index
    %c0_16 = arith.constant 0 : index
    %24 = vector.load %arg4[%c36, %c0_16] : memref<324x128xbf16, #tpu.memory_space<vmem>>, vector<36x128xbf16>
    %cst_17 = arith.constant dense<0.000000e+00> : vector<256x128xf32>
    %25 = tpu.matmul %23, %24, %cst_17 {dimension_numbers = #tpu.dot_dimension_numbers<[1], [0], [0], [1], [0, 0, 1, 1], [], []>} : vector<256x36xbf16>, vector<36x128xbf16>, vector<256x128xf32> -> vector<256x128xf32>
    %26 = arith.addf %20, %25 : vector<256x128xf32>
    %27 = vector.extract_strided_slice %22 {offsets = [16, 0], sizes = [256, 36], strides = [1, 1]} : vector<288x36xbf16> to vector<256x36xbf16>
    %c144 = arith.constant 144 : index
    %c0_18 = arith.constant 0 : index
    %28 = vector.load %arg4[%c144, %c0_18] : memref<324x128xbf16, #tpu.memory_space<vmem>>, vector<36x128xbf16>
    %cst_19 = arith.constant dense<0.000000e+00> : vector<256x128xf32>
    %29 = tpu.matmul %27, %28, %cst_19 {dimension_numbers = #tpu.dot_dimension_numbers<[1], [0], [0], [1], [0, 0, 1, 1], [], []>} : vector<256x36xbf16>, vector<36x128xbf16>, vector<256x128xf32> -> vector<256x128xf32>
    %30 = arith.addf %26, %29 : vector<256x128xf32>
    %31 = vector.extract_strided_slice %22 {offsets = [32, 0], sizes = [256, 36], strides = [1, 1]} : vector<288x36xbf16> to vector<256x36xbf16>
    %c252 = arith.constant 252 : index
    %c0_20 = arith.constant 0 : index
    %32 = vector.load %arg4[%c252, %c0_20] : memref<324x128xbf16, #tpu.memory_space<vmem>>, vector<36x128xbf16>
    %cst_21 = arith.constant dense<0.000000e+00> : vector<256x128xf32>
    %33 = tpu.matmul %31, %32, %cst_21 {dimension_numbers = #tpu.dot_dimension_numbers<[1], [0], [0], [1], [0, 0, 1, 1], [], []>} : vector<256x36xbf16>, vector<36x128xbf16>, vector<256x128xf32> -> vector<256x128xf32>
    %34 = arith.addf %30, %33 : vector<256x128xf32>
    %35 = vector.extract_strided_slice %5 {offsets = [0, 2, 0], sizes = [18, 16, 36], strides = [1, 1, 1]} : vector<18x18x36xbf16> to vector<18x16x36xbf16>
    %36 = vector.shape_cast %35 : vector<18x16x36xbf16> to vector<288x36xbf16>
    %37 = vector.extract_strided_slice %36 {offsets = [0, 0], sizes = [256, 36], strides = [1, 1]} : vector<288x36xbf16> to vector<256x36xbf16>
    %c72 = arith.constant 72 : index
    %c0_22 = arith.constant 0 : index
    %38 = vector.load %arg4[%c72, %c0_22] : memref<324x128xbf16, #tpu.memory_space<vmem>>, vector<36x128xbf16>
    %cst_23 = arith.constant dense<0.000000e+00> : vector<256x128xf32>
    %39 = tpu.matmul %37, %38, %cst_23 {dimension_numbers = #tpu.dot_dimension_numbers<[1], [0], [0], [1], [0, 0, 1, 1], [], []>} : vector<256x36xbf16>, vector<36x128xbf16>, vector<256x128xf32> -> vector<256x128xf32>
    %40 = arith.addf %34, %39 : vector<256x128xf32>
    %41 = vector.extract_strided_slice %36 {offsets = [16, 0], sizes = [256, 36], strides = [1, 1]} : vector<288x36xbf16> to vector<256x36xbf16>
    %c180 = arith.constant 180 : index
    %c0_24 = arith.constant 0 : index
    %42 = vector.load %arg4[%c180, %c0_24] : memref<324x128xbf16, #tpu.memory_space<vmem>>, vector<36x128xbf16>
    %cst_25 = arith.constant dense<0.000000e+00> : vector<256x128xf32>
    %43 = tpu.matmul %41, %42, %cst_25 {dimension_numbers = #tpu.dot_dimension_numbers<[1], [0], [0], [1], [0, 0, 1, 1], [], []>} : vector<256x36xbf16>, vector<36x128xbf16>, vector<256x128xf32> -> vector<256x128xf32>
    %44 = arith.addf %40, %43 : vector<256x128xf32>
    %45 = vector.extract_strided_slice %36 {offsets = [32, 0], sizes = [256, 36], strides = [1, 1]} : vector<288x36xbf16> to vector<256x36xbf16>
    %c288 = arith.constant 288 : index
    %c0_26 = arith.constant 0 : index
    %46 = vector.load %arg4[%c288, %c0_26] : memref<324x128xbf16, #tpu.memory_space<vmem>>, vector<36x128xbf16>
    %cst_27 = arith.constant dense<0.000000e+00> : vector<256x128xf32>
    %47 = tpu.matmul %45, %46, %cst_27 {dimension_numbers = #tpu.dot_dimension_numbers<[1], [0], [0], [1], [0, 0, 1, 1], [], []>} : vector<256x36xbf16>, vector<36x128xbf16>, vector<256x128xf32> -> vector<256x128xf32>
    %48 = arith.addf %44, %47 : vector<256x128xf32>
    %c0_28 = arith.constant 0 : index
    %c0_29 = arith.constant 0 : index
    %49 = vector.load %arg5[%c0_28, %c0_29] : memref<1x128xf32, #tpu.memory_space<vmem>>, vector<1x128xf32>
    %50 = vector.broadcast %49 : vector<1x128xf32> to vector<256x128xf32>
    %51 = arith.addf %48, %50 : vector<256x128xf32>
    %cst_30 = arith.constant dense<0.000000e+00> : vector<128xf32>
    %52 = vector.multi_reduction <add>, %51, %cst_30 [0] : vector<256x128xf32> to vector<128xf32>
    %53 = vector.shape_cast %52 : vector<128xf32> to vector<1x128xf32>
    %cst_31 = arith.constant 2.560000e+02 : f32
    %54 = vector.broadcast %cst_31 : f32 to vector<1x128xf32>
    %55 = arith.divf %53, %54 : vector<1x128xf32>
    %56 = vector.broadcast %55 : vector<1x128xf32> to vector<256x128xf32>
    %57 = arith.subf %51, %56 : vector<256x128xf32>
    %58 = arith.mulf %57, %57 : vector<256x128xf32>
    %cst_32 = arith.constant dense<0.000000e+00> : vector<128xf32>
    %59 = vector.multi_reduction <add>, %58, %cst_32 [0] : vector<256x128xf32> to vector<128xf32>
    %60 = vector.shape_cast %59 : vector<128xf32> to vector<1x128xf32>
    %cst_33 = arith.constant 2.560000e+02 : f32
    %61 = vector.broadcast %cst_33 : f32 to vector<1x128xf32>
    %62 = arith.divf %60, %61 : vector<1x128xf32>
    %63 = vector.broadcast %55 : vector<1x128xf32> to vector<256x128xf32>
    %64 = arith.subf %51, %63 : vector<256x128xf32>
    %cst_34 = arith.constant 9.99999974E-6 : f32
    %65 = vector.broadcast %cst_34 : f32 to vector<1x128xf32>
    %66 = arith.addf %62, %65 : vector<1x128xf32>
    %67 = math.rsqrt %66 : vector<1x128xf32>
    %68 = vector.broadcast %67 : vector<1x128xf32> to vector<256x128xf32>
    %69 = arith.mulf %64, %68 : vector<256x128xf32>
    %c0_35 = arith.constant 0 : index
    %c0_36 = arith.constant 0 : index
    %70 = vector.load %arg6[%c0_35, %c0_36] : memref<1x128xf32, #tpu.memory_space<vmem>>, vector<1x128xf32>
    %71 = vector.broadcast %70 : vector<1x128xf32> to vector<256x128xf32>
    %72 = arith.mulf %69, %71 : vector<256x128xf32>
    %c0_37 = arith.constant 0 : index
    %c0_38 = arith.constant 0 : index
    %73 = vector.load %arg7[%c0_37, %c0_38] : memref<1x128xf32, #tpu.memory_space<vmem>>, vector<1x128xf32>
    %74 = vector.broadcast %73 : vector<1x128xf32> to vector<256x128xf32>
    %75 = arith.addf %72, %74 : vector<256x128xf32>
    %76 = tpu.iota {dimensions = array<i32: 1>} : vector<256x128xi32>
    %c96_i32 = arith.constant 96 : i32
    %77 = vector.broadcast %c96_i32 : i32 to vector<256x128xi32>
    %78 = arith.cmpi slt, %76, %77 : vector<256x128xi32>
    %79 = arith.negf %75 : vector<256x128xf32>
    %80 = math.exp %79 : vector<256x128xf32>
    %cst_39 = arith.constant 1.000000e+00 : f32
    %81 = vector.broadcast %cst_39 : f32 to vector<256x128xf32>
    %82 = arith.addf %81, %80 : vector<256x128xf32>
    %83 = arith.divf %81, %82 : vector<256x128xf32>
    %84 = math.tanh %75 : vector<256x128xf32>
    %85 = arith.select %78, %83, %84 : vector<256x128xi1>, vector<256x128xf32>
    %86 = vector.extract_strided_slice %85 {offsets = [0, 0], sizes = [256, 32], strides = [1, 1]} : vector<256x128xf32> to vector<256x32xf32>
    %87 = vector.extract_strided_slice %85 {offsets = [0, 32], sizes = [256, 32], strides = [1, 1]} : vector<256x128xf32> to vector<256x32xf32>
    %88 = vector.extract_strided_slice %85 {offsets = [0, 64], sizes = [256, 32], strides = [1, 1]} : vector<256x128xf32> to vector<256x32xf32>
    %89 = vector.extract_strided_slice %85 {offsets = [0, 96], sizes = [256, 32], strides = [1, 1]} : vector<256x128xf32> to vector<256x32xf32>
    %90 = arith.mulf %87, %1 : vector<256x32xf32>
    %91 = arith.mulf %86, %89 : vector<256x32xf32>
    %92 = arith.addf %90, %91 : vector<256x32xf32>
    %93 = math.tanh %92 : vector<256x32xf32>
    %94 = arith.mulf %88, %93 : vector<256x32xf32>
    %95 = arith.truncf %94 : vector<256x32xf32> to vector<256x32xbf16>
    %96 = arith.truncf %3 : vector<256x32xf32> to vector<256x32xbf16>
    %c0_40 = arith.constant 0 : index
    %c0_41 = arith.constant 0 : index
    %97 = vector.load %arg8[%c0_40, %c0_41] : memref<32x96xbf16, #tpu.memory_space<vmem>>, vector<32x96xbf16>
    %cst_42 = arith.constant dense<0.000000e+00> : vector<256x96xf32>
    %98 = tpu.matmul %95, %97, %cst_42 {dimension_numbers = #tpu.dot_dimension_numbers<[1], [0], [0], [1], [0, 0, 1, 1], [], []>} : vector<256x32xbf16>, vector<32x96xbf16>, vector<256x96xf32> -> vector<256x96xf32>
    %c0_43 = arith.constant 0 : index
    %c0_44 = arith.constant 0 : index
    %99 = vector.load %arg9[%c0_43, %c0_44] : memref<1x96xf32, #tpu.memory_space<vmem>>, vector<1x96xf32>
    %100 = vector.broadcast %99 : vector<1x96xf32> to vector<256x96xf32>
    %101 = arith.addf %98, %100 : vector<256x96xf32>
    %c0_45 = arith.constant 0 : index
    %c0_46 = arith.constant 0 : index
    %102 = vector.load %arg10[%c0_45, %c0_46] : memref<32x64xbf16, #tpu.memory_space<vmem>>, vector<32x64xbf16>
    %cst_47 = arith.constant dense<0.000000e+00> : vector<256x64xf32>
    %103 = tpu.matmul %96, %102, %cst_47 {dimension_numbers = #tpu.dot_dimension_numbers<[1], [0], [0], [1], [0, 0, 1, 1], [], []>} : vector<256x32xbf16>, vector<32x64xbf16>, vector<256x64xf32> -> vector<256x64xf32>
    %c0_48 = arith.constant 0 : index
    %c0_49 = arith.constant 0 : index
    %104 = vector.load %arg11[%c0_48, %c0_49] : memref<1x64xf32, #tpu.memory_space<vmem>>, vector<1x64xf32>
    %105 = vector.broadcast %104 : vector<1x64xf32> to vector<256x64xf32>
    %106 = arith.addf %103, %105 : vector<256x64xf32>
    %107 = vector.extract_strided_slice %101 {offsets = [0, 0], sizes = [256, 32], strides = [1, 1]} : vector<256x96xf32> to vector<256x32xf32>
    %108 = arith.truncf %107 : vector<256x32xf32> to vector<256x32xbf16>
    %109 = vector.extract_strided_slice %101 {offsets = [0, 32], sizes = [256, 32], strides = [1, 1]} : vector<256x96xf32> to vector<256x32xf32>
    %110 = arith.truncf %109 : vector<256x32xf32> to vector<256x32xbf16>
    %111 = vector.extract_strided_slice %101 {offsets = [0, 64], sizes = [256, 32], strides = [1, 1]} : vector<256x96xf32> to vector<256x32xf32>
    %112 = arith.truncf %111 : vector<256x32xf32> to vector<256x32xbf16>
    %113 = vector.extract_strided_slice %106 {offsets = [0, 0], sizes = [256, 32], strides = [1, 1]} : vector<256x64xf32> to vector<256x32xf32>
    %114 = arith.truncf %113 : vector<256x32xf32> to vector<256x32xbf16>
    %115 = vector.extract_strided_slice %106 {offsets = [0, 32], sizes = [256, 32], strides = [1, 1]} : vector<256x64xf32> to vector<256x32xf32>
    %116 = arith.truncf %115 : vector<256x32xf32> to vector<256x32xbf16>
    %117 = tpu.concatenate %110, %114 in 0 : vector<256x32xbf16>, vector<256x32xbf16> -> vector<512x32xbf16>
    %cst_50 = arith.constant dense<0.000000e+00> : vector<256x512xf32>
    %118 = tpu.matmul %108, %117, %cst_50 {dimension_numbers = #tpu.dot_dimension_numbers<[1], [1], [0], [0], [0, 0, 1, 0], [], []>} : vector<256x32xbf16>, vector<512x32xbf16>, vector<256x512xf32> -> vector<256x512xf32>
    %119 = vector.extract_strided_slice %118 {offsets = [0, 0], sizes = [256, 256], strides = [1, 1]} : vector<256x512xf32> to vector<256x256xf32>
    %cst_51 = arith.constant dense<0xFF800000> : vector<256xf32>
    %120 = vector.multi_reduction <maximumf>, %119, %cst_51 [1] : vector<256x256xf32> to vector<256xf32>
    %121 = vector.shape_cast %120 : vector<256xf32> to vector<256x1xf32>
    %122 = vector.broadcast %121 : vector<256x1xf32> to vector<256x256xf32>
    %123 = arith.subf %119, %122 : vector<256x256xf32>
    %124 = math.exp %123 : vector<256x256xf32>
    %cst_52 = arith.constant dense<0.000000e+00> : vector<256xf32>
    %125 = vector.multi_reduction <add>, %124, %cst_52 [1] : vector<256x256xf32> to vector<256xf32>
    %126 = vector.shape_cast %125 : vector<256xf32> to vector<256x1xf32>
    %127 = tpu.reciprocal %126 {approx = true} : vector<256x1xf32> -> vector<256x1xf32>
    %128 = vector.broadcast %127 : vector<256x1xf32> to vector<256x256xf32>
    %129 = arith.mulf %124, %128 : vector<256x256xf32>
    %130 = arith.truncf %129 : vector<256x256xf32> to vector<256x256xbf16>
    %131 = vector.extract_strided_slice %118 {offsets = [0, 256], sizes = [256, 256], strides = [1, 1]} : vector<256x512xf32> to vector<256x256xf32>
    %cst_53 = arith.constant dense<0xFF800000> : vector<256xf32>
    %132 = vector.multi_reduction <maximumf>, %131, %cst_53 [1] : vector<256x256xf32> to vector<256xf32>
    %133 = vector.shape_cast %132 : vector<256xf32> to vector<256x1xf32>
    %134 = vector.broadcast %133 : vector<256x1xf32> to vector<256x256xf32>
    %135 = arith.subf %131, %134 : vector<256x256xf32>
    %136 = math.exp %135 : vector<256x256xf32>
    %cst_54 = arith.constant dense<0.000000e+00> : vector<256xf32>
    %137 = vector.multi_reduction <add>, %136, %cst_54 [1] : vector<256x256xf32> to vector<256xf32>
    %138 = vector.shape_cast %137 : vector<256xf32> to vector<256x1xf32>
    %139 = tpu.reciprocal %138 {approx = true} : vector<256x1xf32> -> vector<256x1xf32>
    %140 = vector.broadcast %139 : vector<256x1xf32> to vector<256x256xf32>
    %141 = arith.mulf %136, %140 : vector<256x256xf32>
    %142 = arith.truncf %141 : vector<256x256xf32> to vector<256x256xbf16>
    %cst_55 = arith.constant dense<0.000000e+00> : vector<256x32xf32>
    %143 = tpu.matmul %130, %112, %cst_55 {dimension_numbers = #tpu.dot_dimension_numbers<[1], [0], [0], [1], [0, 0, 1, 1], [], []>} : vector<256x256xbf16>, vector<256x32xbf16>, vector<256x32xf32> -> vector<256x32xf32>
    %cst_56 = arith.constant dense<0.000000e+00> : vector<256x32xf32>
    %144 = tpu.matmul %142, %116, %cst_56 {dimension_numbers = #tpu.dot_dimension_numbers<[1], [0], [0], [1], [0, 0, 1, 1], [], []>} : vector<256x256xbf16>, vector<256x32xbf16>, vector<256x32xf32> -> vector<256x32xf32>
    %145 = arith.truncf %143 : vector<256x32xf32> to vector<256x32xbf16>
    %c0_57 = arith.constant 0 : index
    %c0_58 = arith.constant 0 : index
    %146 = vector.load %arg12[%c0_57, %c0_58] : memref<32x64xbf16, #tpu.memory_space<vmem>>, vector<32x64xbf16>
    %cst_59 = arith.constant dense<0.000000e+00> : vector<256x64xf32>
    %147 = tpu.matmul %145, %146, %cst_59 {dimension_numbers = #tpu.dot_dimension_numbers<[1], [0], [0], [1], [0, 0, 1, 1], [], []>} : vector<256x32xbf16>, vector<32x64xbf16>, vector<256x64xf32> -> vector<256x64xf32>
    %148 = arith.truncf %144 : vector<256x32xf32> to vector<256x32xbf16>
    %c0_60 = arith.constant 0 : index
    %c0_61 = arith.constant 0 : index
    %149 = vector.load %arg13[%c0_60, %c0_61] : memref<32x64xbf16, #tpu.memory_space<vmem>>, vector<32x64xbf16>
    %cst_62 = arith.constant dense<0.000000e+00> : vector<256x64xf32>
    %150 = tpu.matmul %148, %149, %cst_62 {dimension_numbers = #tpu.dot_dimension_numbers<[1], [0], [0], [1], [0, 0, 1, 1], [], []>} : vector<256x32xbf16>, vector<32x64xbf16>, vector<256x64xf32> -> vector<256x64xf32>
    %151 = arith.addf %147, %150 : vector<256x64xf32>
    %c0_63 = arith.constant 0 : index
    %c0_64 = arith.constant 0 : index
    %152 = vector.load %arg14[%c0_63, %c0_64] : memref<1x64xf32, #tpu.memory_space<vmem>>, vector<1x64xf32>
    %153 = vector.broadcast %152 : vector<1x64xf32> to vector<256x64xf32>
    %154 = arith.addf %151, %153 : vector<256x64xf32>
    %155 = arith.truncf %154 : vector<256x64xf32> to vector<256x64xbf16>
    %c0_65 = arith.constant 0 : index
    %c0_66 = arith.constant 0 : index
    %156 = vector.load %arg15[%c0_65, %c0_66] : memref<64x96xbf16, #tpu.memory_space<vmem>>, vector<64x96xbf16>
    %cst_67 = arith.constant dense<0.000000e+00> : vector<256x96xf32>
    %157 = tpu.matmul %155, %156, %cst_67 {dimension_numbers = #tpu.dot_dimension_numbers<[1], [0], [0], [1], [0, 0, 1, 1], [], []>} : vector<256x64xbf16>, vector<64x96xbf16>, vector<256x96xf32> -> vector<256x96xf32>
    %c0_68 = arith.constant 0 : index
    %c0_69 = arith.constant 0 : index
    %158 = vector.load %arg16[%c0_68, %c0_69] : memref<32x96xbf16, #tpu.memory_space<vmem>>, vector<32x96xbf16>
    %cst_70 = arith.constant dense<0.000000e+00> : vector<256x96xf32>
    %159 = tpu.matmul %95, %158, %cst_70 {dimension_numbers = #tpu.dot_dimension_numbers<[1], [0], [0], [1], [0, 0, 1, 1], [], []>} : vector<256x32xbf16>, vector<32x96xbf16>, vector<256x96xf32> -> vector<256x96xf32>
    %160 = arith.addf %157, %159 : vector<256x96xf32>
    %c0_71 = arith.constant 0 : index
    %c0_72 = arith.constant 0 : index
    %161 = vector.load %arg17[%c0_71, %c0_72] : memref<1x96xf32, #tpu.memory_space<vmem>>, vector<1x96xf32>
    %162 = vector.broadcast %161 : vector<1x96xf32> to vector<256x96xf32>
    %163 = arith.addf %160, %162 : vector<256x96xf32>
    %164 = tpu.iota {dimensions = array<i32: 1>} : vector<256x96xi32>
    %c32_i32 = arith.constant 32 : i32
    %165 = vector.broadcast %c32_i32 : i32 to vector<256x96xi32>
    %166 = arith.cmpi sge, %164, %165 : vector<256x96xi32>
    %c64_i32 = arith.constant 64 : i32
    %167 = vector.broadcast %c64_i32 : i32 to vector<256x96xi32>
    %168 = arith.cmpi slt, %164, %167 : vector<256x96xi32>
    %169 = arith.andi %166, %168 : vector<256x96xi1>
    %170 = math.tanh %163 : vector<256x96xf32>
    %171 = arith.negf %163 : vector<256x96xf32>
    %172 = math.exp %171 : vector<256x96xf32>
    %cst_73 = arith.constant 1.000000e+00 : f32
    %173 = vector.broadcast %cst_73 : f32 to vector<256x96xf32>
    %174 = arith.addf %173, %172 : vector<256x96xf32>
    %175 = arith.divf %173, %174 : vector<256x96xf32>
    %176 = arith.select %169, %170, %175 : vector<256x96xi1>, vector<256x96xf32>
    %177 = vector.extract_strided_slice %176 {offsets = [0, 0], sizes = [256, 32], strides = [1, 1]} : vector<256x96xf32> to vector<256x32xf32>
    %178 = vector.extract_strided_slice %176 {offsets = [0, 32], sizes = [256, 32], strides = [1, 1]} : vector<256x96xf32> to vector<256x32xf32>
    %179 = vector.extract_strided_slice %176 {offsets = [0, 64], sizes = [256, 32], strides = [1, 1]} : vector<256x96xf32> to vector<256x32xf32>
    %cst_74 = arith.constant 1.000000e+00 : f32
    %180 = vector.broadcast %cst_74 : f32 to vector<256x32xf32>
    %181 = arith.subf %180, %179 : vector<256x32xf32>
    %182 = arith.mulf %181, %3 : vector<256x32xf32>
    %183 = arith.mulf %179, %178 : vector<256x32xf32>
    %184 = arith.addf %182, %183 : vector<256x32xf32>
    %185 = arith.mulf %177, %184 : vector<256x32xf32>
    %c0_75 = arith.constant 0 : index
    %c0_76 = arith.constant 0 : index
    %c0_77 = arith.constant 0 : index
    %186 = vector.load %arg18[%c0_75, %c0_76, %c0_77] : memref<1x256x32xf32, #tpu.memory_space<vmem>>, vector<1x256x32xf32>
    %187 = vector.shape_cast %186 : vector<1x256x32xf32> to vector<256x32xf32>
    %188 = vector.shape_cast %185 : vector<256x32xf32> to vector<1x256x32xf32>
    tpu.vector_store %arg18[%c0_75, %c0_76, %c0_77], %188 {strides = array<i32>} : memref<1x256x32xf32, #tpu.memory_space<vmem>>, vector<1x256x32xf32>,
    %c0_78 = arith.constant 0 : index
    %c0_79 = arith.constant 0 : index
    %c0_80 = arith.constant 0 : index
    %189 = vector.load %arg19[%c0_78, %c0_79, %c0_80] : memref<1x256x32xf32, #tpu.memory_space<vmem>>, vector<1x256x32xf32>
    %190 = vector.shape_cast %189 : vector<1x256x32xf32> to vector<256x32xf32>
    %191 = vector.shape_cast %92 : vector<256x32xf32> to vector<1x256x32xf32>
    tpu.vector_store %arg19[%c0_78, %c0_79, %c0_80], %191 {strides = array<i32>} : memref<1x256x32xf32, #tpu.memory_space<vmem>>, vector<1x256x32xf32>,
    %c0_81 = arith.constant 0 : index
    %c0_82 = arith.constant 0 : index
    %c0_83 = arith.constant 0 : index
    %192 = vector.load %arg20[%c0_81, %c0_82, %c0_83] : memref<1x256x32xf32, #tpu.memory_space<vmem>>, vector<1x256x32xf32>
    %193 = vector.shape_cast %192 : vector<1x256x32xf32> to vector<256x32xf32>
    %194 = vector.shape_cast %184 : vector<256x32xf32> to vector<1x256x32xf32>
    tpu.vector_store %arg20[%c0_81, %c0_82, %c0_83], %194 {strides = array<i32>} : memref<1x256x32xf32, #tpu.memory_space<vmem>>, vector<1x256x32xf32>,
    return
  }
  func.func @transform_0(%arg0: i32) -> (i32, i32, i32, i32) {
    %c0_i32 = arith.constant 0 : i32
    %c0_i32_0 = arith.constant 0 : i32
    %c0_i32_1 = arith.constant 0 : i32
    %c0_i32_2 = arith.constant 0 : i32
    return %arg0, %c0_i32, %c0_i32_0, %c0_i32_1 : i32, i32, i32, i32
  }
  func.func @transform_1(%arg0: i32) -> (i32, i32, i32) {
    %c0_i32 = arith.constant 0 : i32
    %c0_i32_0 = arith.constant 0 : i32
    %c0_i32_1 = arith.constant 0 : i32
    return %arg0, %c0_i32, %c0_i32_0 : i32, i32, i32
  }
  func.func @transform_2(%arg0: i32) -> (i32, i32, i32) {
    %c0_i32 = arith.constant 0 : i32
    %c0_i32_0 = arith.constant 0 : i32
    %c0_i32_1 = arith.constant 0 : i32
    return %arg0, %c0_i32, %c0_i32_0 : i32, i32, i32
  }
  func.func @transform_3(%arg0: i32) -> (i32, i32) {
    %c0_i32 = arith.constant 0 : i32
    %c0_i32_0 = arith.constant 0 : i32
    %c0_i32_1 = arith.constant 0 : i32
    return %c0_i32, %c0_i32_0 : i32, i32
  }
  func.func @transform_4(%arg0: i32) -> (i32, i32) {
    %c0_i32 = arith.constant 0 : i32
    %c0_i32_0 = arith.constant 0 : i32
    %c0_i32_1 = arith.constant 0 : i32
    return %c0_i32, %c0_i32_0 : i32, i32
  }
  func.func @transform_5(%arg0: i32) -> (i32, i32) {
    %c0_i32 = arith.constant 0 : i32
    %c0_i32_0 = arith.constant 0 : i32
    %c0_i32_1 = arith.constant 0 : i32
    return %c0_i32, %c0_i32_0 : i32, i32
  }
  func.func @transform_6(%arg0: i32) -> (i32, i32) {
    %c0_i32 = arith.constant 0 : i32
    %c0_i32_0 = arith.constant 0 : i32
    %c0_i32_1 = arith.constant 0 : i32
    return %c0_i32, %c0_i32_0 : i32, i32
  }
  func.func @transform_7(%arg0: i32) -> (i32, i32) {
    %c0_i32 = arith.constant 0 : i32
    %c0_i32_0 = arith.constant 0 : i32
    %c0_i32_1 = arith.constant 0 : i32
    return %c0_i32, %c0_i32_0 : i32, i32
  }
  func.func @transform_8(%arg0: i32) -> (i32, i32) {
    %c0_i32 = arith.constant 0 : i32
    %c0_i32_0 = arith.constant 0 : i32
    %c0_i32_1 = arith.constant 0 : i32
    return %c0_i32, %c0_i32_0 : i32, i32
  }
  func.func @transform_9(%arg0: i32) -> (i32, i32) {
    %c0_i32 = arith.constant 0 : i32
    %c0_i32_0 = arith.constant 0 : i32
    %c0_i32_1 = arith.constant 0 : i32
    return %c0_i32, %c0_i32_0 : i32, i32
  }
  func.func @transform_10(%arg0: i32) -> (i32, i32) {
    %c0_i32 = arith.constant 0 : i32
    %c0_i32_0 = arith.constant 0 : i32
    %c0_i32_1 = arith.constant 0 : i32
    return %c0_i32, %c0_i32_0 : i32, i32
  }
  func.func @transform_11(%arg0: i32) -> (i32, i32) {
    %c0_i32 = arith.constant 0 : i32
    %c0_i32_0 = arith.constant 0 : i32
    %c0_i32_1 = arith.constant 0 : i32
    return %c0_i32, %c0_i32_0 : i32, i32
  }
  func.func @transform_12(%arg0: i32) -> (i32, i32) {
    %c0_i32 = arith.constant 0 : i32
    %c0_i32_0 = arith.constant 0 : i32
    %c0_i32_1 = arith.constant 0 : i32
    return %c0_i32, %c0_i32_0 : i32, i32
  }
  func.func @transform_13(%arg0: i32) -> (i32, i32) {
    %c0_i32 = arith.constant 0 : i32
    %c0_i32_0 = arith.constant 0 : i32
    %c0_i32_1 = arith.constant 0 : i32
    return %c0_i32, %c0_i32_0 : i32, i32
  }
  func.func @transform_14(%arg0: i32) -> (i32, i32) {
    %c0_i32 = arith.constant 0 : i32
    %c0_i32_0 = arith.constant 0 : i32
    %c0_i32_1 = arith.constant 0 : i32
    return %c0_i32, %c0_i32_0 : i32, i32
  }
  func.func @transform_15(%arg0: i32) -> (i32, i32) {
    %c0_i32 = arith.constant 0 : i32
    %c0_i32_0 = arith.constant 0 : i32
    %c0_i32_1 = arith.constant 0 : i32
    return %c0_i32, %c0_i32_0 : i32, i32
  }
  func.func @transform_16(%arg0: i32) -> (i32, i32) {
    %c0_i32 = arith.constant 0 : i32
    %c0_i32_0 = arith.constant 0 : i32
    %c0_i32_1 = arith.constant 0 : i32
    return %c0_i32, %c0_i32_0 : i32, i32
  }
  func.func @transform_17(%arg0: i32) -> (i32, i32, i32) {
    %c0_i32 = arith.constant 0 : i32
    %c0_i32_0 = arith.constant 0 : i32
    %c0_i32_1 = arith.constant 0 : i32
    return %arg0, %c0_i32, %c0_i32_0 : i32, i32, i32
  }
  func.func @transform_18(%arg0: i32) -> (i32, i32, i32) {
    %c0_i32 = arith.constant 0 : i32
    %c0_i32_0 = arith.constant 0 : i32
    %c0_i32_1 = arith.constant 0 : i32
    return %arg0, %c0_i32, %c0_i32_0 : i32, i32, i32
  }
  func.func @transform_19(%arg0: i32) -> (i32, i32, i32) {
    %c0_i32 = arith.constant 0 : i32
    %c0_i32_0 = arith.constant 0 : i32
    %c0_i32_1 = arith.constant 0 : i32
    return %arg0, %c0_i32, %c0_i32_0 : i32, i32, i32
  }
}

</mosaic_0001>

<llo_original>
// kernel: tpu_custom_call.1
$region0: #{tpu_custom_call.1}
  #allocation0 [shape = 'u32[]', space=smem, size = 0x4, offset = 0x4, fixed_abs, tag = 'smem constant byte address 0x4 - core index']
  #allocation1 [shape = 'u32[72,128]{1,0:T(1,128)}', space=vmem, size = 0x9000, scoped, tag = 'internal scratch']
  %s0 = inlined_call_operand.vmem [shape: bf16[2,18,18,36], index: 0, kind: input, shape index: {}]
  %s1 = inlined_call_operand.vmem [shape: f32[2,256,32], index: 1, kind: input, shape index: {}]
  %s2 = inlined_call_operand.vmem [shape: f32[2,256,32], index: 2, kind: input, shape index: {}]
  %s3 = inlined_call_operand.vmem [shape: bf16[324,128], index: 3, kind: input, shape index: {}]
  %s4 = inlined_call_operand.vmem [shape: f32[1,128], index: 4, kind: input, shape index: {}]
  %s5 = inlined_call_operand.vmem [shape: f32[1,128], index: 5, kind: input, shape index: {}]
  %s6 = inlined_call_operand.vmem [shape: f32[1,128], index: 6, kind: input, shape index: {}]
  %s7 = inlined_call_operand.vmem [shape: bf16[32,96], index: 7, kind: input, shape index: {}]
  %s8 = inlined_call_operand.vmem [shape: f32[1,96], index: 8, kind: input, shape index: {}]
  %s9 = inlined_call_operand.vmem [shape: bf16[32,64], index: 9, kind: input, shape index: {}]
  %s10 = inlined_call_operand.vmem [shape: f32[1,64], index: 10, kind: input, shape index: {}]
  %s11 = inlined_call_operand.vmem [shape: bf16[32,64], index: 11, kind: input, shape index: {}]
  %s12 = inlined_call_operand.vmem [shape: bf16[32,64], index: 12, kind: input, shape index: {}]
  %s13 = inlined_call_operand.vmem [shape: f32[1,64], index: 13, kind: input, shape index: {}]
  %s14 = inlined_call_operand.vmem [shape: bf16[64,96], index: 14, kind: input, shape index: {}]
  %s15 = inlined_call_operand.vmem [shape: bf16[32,96], index: 15, kind: input, shape index: {}]
  %s16 = inlined_call_operand.vmem [shape: f32[1,96], index: 16, kind: input, shape index: {}]
  %s17 = inlined_call_operand.vmem [shape: f32[2,256,32], index: 17, kind: output, shape index: {0}]
  %s18 = inlined_call_operand.vmem [shape: f32[2,256,32], index: 18, kind: output, shape index: {1}]
  %s19 = inlined_call_operand.vmem [shape: f32[2,256,32], index: 19, kind: output, shape index: {2}]
  %20 = xla_tuple %s17, %s18, %s19
  %s21 = sld [smem:[#allocation0]]
  $region117: #{tpu_custom_call.1} parent=0
    _
  %s23 = ssub.s32 1, %s21
  %s24 = scalar_select 0, %s23, %s21
  loop: start=0, step=1, limit=4
  $region2: #{tpu_custom_call.1} parent=0 // loop_pre_header
    _
  $region3: #{tpu_custom_call.1} parent=0 // loop_header
    %s26 = sphi 0, %s30
    %p27 = scmp.ge.s32.totalorder %s26, 4
    %s36 = sphi 0, %s38
    %s39 = sphi 0, %s36
    %s40 = sphi 0, %s39
    %s56 = sphi 0, %s40
    %s62 = sphi 0, %s64
    %s65 = sphi 0, %s62
    %s66 = sphi 0, %s65
    %s82 = sphi 0, %s66
    %s88 = sphi 0, %s90
    %s91 = sphi 0, %s88
    %s92 = sphi 0, %s91
    %s108 = sphi 0, %s92
    %s112 = sphi 0, %s112
    %s114 = sphi 0, %s112
    %s115 = sphi 0, %s114
    %s129 = sphi 0, %s115
    %s133 = sphi 0, %s133
    %s135 = sphi 0, %s133
    %s136 = sphi 0, %s135
    %s150 = sphi 0, %s136
    %s154 = sphi 0, %s154
    %s156 = sphi 0, %s154
    %s157 = sphi 0, %s156
    %s171 = sphi 0, %s157
    %s175 = sphi 0, %s175
    %s177 = sphi 0, %s175
    %s178 = sphi 0, %s177
    %s192 = sphi 0, %s178
    %s196 = sphi 0, %s196
    %s198 = sphi 0, %s196
    %s199 = sphi 0, %s198
    %s213 = sphi 0, %s199
    %s217 = sphi 0, %s217
    %s219 = sphi 0, %s217
    %s220 = sphi 0, %s219
    %s234 = sphi 0, %s220
    %s238 = sphi 0, %s238
    %s240 = sphi 0, %s238
    %s241 = sphi 0, %s240
    %s255 = sphi 0, %s241
    %s259 = sphi 0, %s259
    %s261 = sphi 0, %s259
    %s262 = sphi 0, %s261
    %s276 = sphi 0, %s262
    %s280 = sphi 0, %s280
    %s282 = sphi 0, %s280
    %s283 = sphi 0, %s282
    %s297 = sphi 0, %s283
    %s301 = sphi 0, %s301
    %s303 = sphi 0, %s301
    %s304 = sphi 0, %s303
    %s318 = sphi 0, %s304
    %s322 = sphi 0, %s322
    %s324 = sphi 0, %s322
    %s325 = sphi 0, %s324
    %s339 = sphi 0, %s325
    %s343 = sphi 0, %s343
    %s345 = sphi 0, %s343
    %s346 = sphi 0, %s345
    %s360 = sphi 0, %s346
    %s364 = sphi 0, %s364
    %s366 = sphi 0, %s364
    %s367 = sphi 0, %s366
    %s381 = sphi 0, %s367
    %s385 = sphi 0, %s385
    %s387 = sphi 0, %s385
    %s388 = sphi 0, %s387
    %s402 = sphi 0, %s388
    %s408 = sphi 0, %s410
    %s411 = sphi 0, %s408
    %s412 = sphi 0, %s411
    %s428 = sphi 0, %s412
    %s434 = sphi 0, %s436
    %s437 = sphi 0, %s434
    %s438 = sphi 0, %s437
    %s454 = sphi 0, %s438
    %s460 = sphi 0, %s462
    %s463 = sphi 0, %s460
    %s464 = sphi 0, %s463
    %s480 = sphi 0, %s464
  $region4: #{tpu_custom_call.1} parent=0 // loop_header_branch
    %29 = sbr.rel (%p27) target = $region8
  $region5: #{tpu_custom_call.1} parent=0 // loop_body
    %s31 = ssub.s32 %s26, 1
    %s32 = ssub.s32 %s26, 2
    %s33 = sadd.s32 %s26, 1
    %s34 = ssub.s32 %s26, %s33
    %p35 = scmp.eq.s32.totalorder %s34, 0
    %s37 = sadd.s32 %s36, 1
    %s38 = scalar_select %p35, %s36, %s37
    %p41 = pneg %p35
    %p42 = scmp.eq.s32.totalorder %s26, 1
    %p43 = por %p41, %p42
    %p44 = scmp.ne.s32.totalorder %s36, %s39
    %p45 = scmp.eq.s32.totalorder %s26, 0
    %p46 = por %p44, %p45
    %p47 = scmp.ne.s32.totalorder %s36, %s39
    %p48 = scmp.eq.s32.totalorder %s31, 1
    %p49 = por %p47, %p48
    %p50 = scmp.ne.s32.totalorder %s39, %s40
    %p51 = scmp.eq.s32.totalorder %s31, 0
    %p52 = por %p50, %p51
    %p53 = scmp.ne.s32.totalorder %s39, %s40
    %p54 = scmp.eq.s32.totalorder %s32, 1
    %p55 = por %p53, %p54
    %p57 = scmp.ne.s32.totalorder %s40, %s56
    %p58 = scmp.eq.s32.totalorder %s32, 0
    %p59 = por %p57, %p58
    %s60 = ssub.s32 %s26, %s33
    %p61 = scmp.eq.s32.totalorder %s60, 0
    %s63 = sadd.s32 %s62, 1
    %s64 = scalar_select %p61, %s62, %s63
    %p67 = pneg %p61
    %p68 = scmp.eq.s32.totalorder %s26, 1
    %p69 = por %p67, %p68
    %p70 = scmp.ne.s32.totalorder %s62, %s65
    %p71 = scmp.eq.s32.totalorder %s26, 0
    %p72 = por %p70, %p71
    %p73 = scmp.ne.s32.totalorder %s62, %s65
    %p74 = scmp.eq.s32.totalorder %s31, 1
    %p75 = por %p73, %p74
    %p76 = scmp.ne.s32.totalorder %s65, %s66
    %p77 = scmp.eq.s32.totalorder %s31, 0
    %p78 = por %p76, %p77
    %p79 = scmp.ne.s32.totalorder %s65, %s66
    %p80 = scmp.eq.s32.totalorder %s32, 1
    %p81 = por %p79, %p80
    %p83 = scmp.ne.s32.totalorder %s66, %s82
    %p84 = scmp.eq.s32.totalorder %s32, 0
    %p85 = por %p83, %p84
    %s86 = ssub.s32 %s26, %s33
    %p87 = scmp.eq.s32.totalorder %s86, 0
    %s89 = sadd.s32 %s88, 1
    %s90 = scalar_select %p87, %s88, %s89
    %p93 = pneg %p87
    %p94 = scmp.eq.s32.totalorder %s26, 1
    %p95 = por %p93, %p94
    %p96 = scmp.ne.s32.totalorder %s88, %s91
    %p97 = scmp.eq.s32.totalorder %s26, 0
    %p98 = por %p96, %p97
    %p99 = scmp.ne.s32.totalorder %s88, %s91
    %p100 = scmp.eq.s32.totalorder %s31, 1
    %p101 = por %p99, %p100
    %p102 = scmp.ne.s32.totalorder %s91, %s92
    %p103 = scmp.eq.s32.totalorder %s31, 0
    %p104 = por %p102, %p103
    %p105 = scmp.ne.s32.totalorder %s91, %s92
    %p106 = scmp.eq.s32.totalorder %s32, 1
    %p107 = por %p105, %p106
    %p109 = scmp.ne.s32.totalorder %s92, %s108
    %p110 = scmp.eq.s32.totalorder %s32, 0
    %p111 = por %p109, %p110
    %s113 = sadd.s32 %s112, 1
    %p116 = scmp.eq.s32.totalorder %s26, 1
    %p117 = scmp.ne.s32.totalorder %s112, %s114
    %p118 = scmp.eq.s32.totalorder %s26, 0
    %p119 = por %p117, %p118
    %p120 = scmp.ne.s32.totalorder %s112, %s114
    %p121 = scmp.eq.s32.totalorder %s31, 1
    %p122 = por %p120, %p121
    %p123 = scmp.ne.s32.totalorder %s114, %s115
    %p124 = scmp.eq.s32.totalorder %s31, 0
    %p125 = por %p123, %p124
    %p126 = scmp.ne.s32.totalorder %s114, %s115
    %p127 = scmp.eq.s32.totalorder %s32, 1
    %p128 = por %p126, %p127
    %p130 = scmp.ne.s32.totalorder %s115, %s129
    %p131 = scmp.eq.s32.totalorder %s32, 0
    %p132 = por %p130, %p131
    %s134 = sadd.s32 %s133, 1
    %p137 = scmp.eq.s32.totalorder %s26, 1
    %p138 = scmp.ne.s32.totalorder %s133, %s135
    %p139 = scmp.eq.s32.totalorder %s26, 0
    %p140 = por %p138, %p139
    %p141 = scmp.ne.s32.totalorder %s133, %s135
    %p142 = scmp.eq.s32.totalorder %s31, 1
    %p143 = por %p141, %p142
    %p144 = scmp.ne.s32.totalorder %s135, %s136
    %p145 = scmp.eq.s32.totalorder %s31, 0
    %p146 = por %p144, %p145
    %p147 = scmp.ne.s32.totalorder %s135, %s136
    %p148 = scmp.eq.s32.totalorder %s32, 1
    %p149 = por %p147, %p148
    %p151 = scmp.ne.s32.totalorder %s136, %s150
    %p152 = scmp.eq.s32.totalorder %s32, 0
    %p153 = por %p151, %p152
    %s155 = sadd.s32 %s154, 1
    %p158 = scmp.eq.s32.totalorder %s26, 1
    %p159 = scmp.ne.s32.totalorder %s154, %s156
    %p160 = scmp.eq.s32.totalorder %s26, 0
    %p161 = por %p159, %p160
    %p162 = scmp.ne.s32.totalorder %s154, %s156
    %p163 = scmp.eq.s32.totalorder %s31, 1
    %p164 = por %p162, %p163
    %p165 = scmp.ne.s32.totalorder %s156, %s157
    %p166 = scmp.eq.s32.totalorder %s31, 0
    %p167 = por %p165, %p166
    %p168 = scmp.ne.s32.totalorder %s156, %s157
    %p169 = scmp.eq.s32.totalorder %s32, 1
    %p170 = por %p168, %p169
    %p172 = scmp.ne.s32.totalorder %s157, %s171
    %p173 = scmp.eq.s32.totalorder %s32, 0
    %p174 = por %p172, %p173
    %s176 = sadd.s32 %s175, 1
    %p179 = scmp.eq.s32.totalorder %s26, 1
    %p180 = scmp.ne.s32.totalorder %s175, %s177
    %p181 = scmp.eq.s32.totalorder %s26, 0
    %p182 = por %p180, %p181
    %p183 = scmp.ne.s32.totalorder %s175, %s177
    %p184 = scmp.eq.s32.totalorder %s31, 1
    %p185 = por %p183, %p184
    %p186 = scmp.ne.s32.totalorder %s177, %s178
    %p187 = scmp.eq.s32.totalorder %s31, 0
    %p188 = por %p186, %p187
    %p189 = scmp.ne.s32.totalorder %s177, %s178
    %p190 = scmp.eq.s32.totalorder %s32, 1
    %p191 = por %p189, %p190
    %p193 = scmp.ne.s32.totalorder %s178, %s192
    %p194 = scmp.eq.s32.totalorder %s32, 0
    %p195 = por %p193, %p194
    %s197 = sadd.s32 %s196, 1
    %p200 = scmp.eq.s32.totalorder %s26, 1
    %p201 = scmp.ne.s32.totalorder %s196, %s198
    %p202 = scmp.eq.s32.totalorder %s26, 0
    %p203 = por %p201, %p202
    %p204 = scmp.ne.s32.totalorder %s196, %s198
    %p205 = scmp.eq.s32.totalorder %s31, 1
    %p206 = por %p204, %p205
    %p207 = scmp.ne.s32.totalorder %s198, %s199
    %p208 = scmp.eq.s32.totalorder %s31, 0
    %p209 = por %p207, %p208
    %p210 = scmp.ne.s32.totalorder %s198, %s199
    %p211 = scmp.eq.s32.totalorder %s32, 1
    %p212 = por %p210, %p211
    %p214 = scmp.ne.s32.totalorder %s199, %s213
    %p215 = scmp.eq.s32.totalorder %s32, 0
    %p216 = por %p214, %p215
    %s218 = sadd.s32 %s217, 1
    %p221 = scmp.eq.s32.totalorder %s26, 1
    %p222 = scmp.ne.s32.totalorder %s217, %s219
    %p223 = scmp.eq.s32.totalorder %s26, 0
    %p224 = por %p222, %p223
    %p225 = scmp.ne.s32.totalorder %s217, %s219
    %p226 = scmp.eq.s32.totalorder %s31, 1
    %p227 = por %p225, %p226
    %p228 = scmp.ne.s32.totalorder %s219, %s220
    %p229 = scmp.eq.s32.totalorder %s31, 0
    %p230 = por %p228, %p229
    %p231 = scmp.ne.s32.totalorder %s219, %s220
    %p232 = scmp.eq.s32.totalorder %s32, 1
    %p233 = por %p231, %p232
    %p235 = scmp.ne.s32.totalorder %s220, %s234
    %p236 = scmp.eq.s32.totalorder %s32, 0
    %p237 = por %p235, %p236
    %s239 = sadd.s32 %s238, 1
    %p242 = scmp.eq.s32.totalorder %s26, 1
    %p243 = scmp.ne.s32.totalorder %s238, %s240
    %p244 = scmp.eq.s32.totalorder %s26, 0
    %p245 = por %p243, %p244
    %p246 = scmp.ne.s32.totalorder %s238, %s240
    %p247 = scmp.eq.s32.totalorder %s31, 1
    %p248 = por %p246, %p247
    %p249 = scmp.ne.s32.totalorder %s240, %s241
    %p250 = scmp.eq.s32.totalorder %s31, 0
    %p251 = por %p249, %p250
    %p252 = scmp.ne.s32.totalorder %s240, %s241
    %p253 = scmp.eq.s32.totalorder %s32, 1
    %p254 = por %p252, %p253
    %p256 = scmp.ne.s32.totalorder %s241, %s255
    %p257 = scmp.eq.s32.totalorder %s32, 0
    %p258 = por %p256, %p257
    %s260 = sadd.s32 %s259, 1
    %p263 = scmp.eq.s32.totalorder %s26, 1
    %p264 = scmp.ne.s32.totalorder %s259, %s261
    %p265 = scmp.eq.s32.totalorder %s26, 0
    %p266 = por %p264, %p265
    %p267 = scmp.ne.s32.totalorder %s259, %s261
    %p268 = scmp.eq.s32.totalorder %s31, 1
    %p269 = por %p267, %p268
    %p270 = scmp.ne.s32.totalorder %s261, %s262
    %p271 = scmp.eq.s32.totalorder %s31, 0
    %p272 = por %p270, %p271
    %p273 = scmp.ne.s32.totalorder %s261, %s262
    %p274 = scmp.eq.s32.totalorder %s32, 1
    %p275 = por %p273, %p274
    %p277 = scmp.ne.s32.totalorder %s262, %s276
    %p278 = scmp.eq.s32.totalorder %s32, 0
    %p279 = por %p277, %p278
    %s281 = sadd.s32 %s280, 1
    %p284 = scmp.eq.s32.totalorder %s26, 1
    %p285 = scmp.ne.s32.totalorder %s280, %s282
    %p286 = scmp.eq.s32.totalorder %s26, 0
    %p287 = por %p285, %p286
    %p288 = scmp.ne.s32.totalorder %s280, %s282
    %p289 = scmp.eq.s32.totalorder %s31, 1
    %p290 = por %p288, %p289
    %p291 = scmp.ne.s32.totalorder %s282, %s283
    %p292 = scmp.eq.s32.totalorder %s31, 0
    %p293 = por %p291, %p292
    %p294 = scmp.ne.s32.totalorder %s282, %s283
    %p295 = scmp.eq.s32.totalorder %s32, 1
    %p296 = por %p294, %p295
    %p298 = scmp.ne.s32.totalorder %s283, %s297
    %p299 = scmp.eq.s32.totalorder %s32, 0
    %p300 = por %p298, %p299
    %s302 = sadd.s32 %s301, 1
    %p305 = scmp.eq.s32.totalorder %s26, 1
    %p306 = scmp.ne.s32.totalorder %s301, %s303
    %p307 = scmp.eq.s32.totalorder %s26, 0
    %p308 = por %p306, %p307
    %p309 = scmp.ne.s32.totalorder %s301, %s303
    %p310 = scmp.eq.s32.totalorder %s31, 1
    %p311 = por %p309, %p310
    %p312 = scmp.ne.s32.totalorder %s303, %s304
    %p313 = scmp.eq.s32.totalorder %s31, 0
    %p314 = por %p312, %p313
    %p315 = scmp.ne.s32.totalorder %s303, %s304
    %p316 = scmp.eq.s32.totalorder %s32, 1
    %p317 = por %p315, %p316
    %p319 = scmp.ne.s32.totalorder %s304, %s318
    %p320 = scmp.eq.s32.totalorder %s32, 0
    %p321 = por %p319, %p320
    %s323 = sadd.s32 %s322, 1
    %p326 = scmp.eq.s32.totalorder %s26, 1
    %p327 = scmp.ne.s32.totalorder %s322, %s324
    %p328 = scmp.eq.s32.totalorder %s26, 0
    %p329 = por %p327, %p328
    %p330 = scmp.ne.s32.totalorder %s322, %s324
    %p331 = scmp.eq.s32.totalorder %s31, 1
    %p332 = por %p330, %p331
    %p333 = scmp.ne.s32.totalorder %s324, %s325
    %p334 = scmp.eq.s32.totalorder %s31, 0
    %p335 = por %p333, %p334
    %p336 = scmp.ne.s32.totalorder %s324, %s325
    %p337 = scmp.eq.s32.totalorder %s32, 1
    %p338 = por %p336, %p337
    %p340 = scmp.ne.s32.totalorder %s325, %s339
    %p341 = scmp.eq.s32.totalorder %s32, 0
    %p342 = por %p340, %p341
    %s344 = sadd.s32 %s343, 1
    %p347 = scmp.eq.s32.totalorder %s26, 1
    %p348 = scmp.ne.s32.totalorder %s343, %s345
    %p349 = scmp.eq.s32.totalorder %s26, 0
    %p350 = por %p348, %p349
    %p351 = scmp.ne.s32.totalorder %s343, %s345
    %p352 = scmp.eq.s32.totalorder %s31, 1
    %p353 = por %p351, %p352
    %p354 = scmp.ne.s32.totalorder %s345, %s346
    %p355 = scmp.eq.s32.totalorder %s31, 0
    %p356 = por %p354, %p355
    %p357 = scmp.ne.s32.totalorder %s345, %s346
    %p358 = scmp.eq.s32.totalorder %s32, 1
    %p359 = por %p357, %p358
    %p361 = scmp.ne.s32.totalorder %s346, %s360
    %p362 = scmp.eq.s32.totalorder %s32, 0
    %p363 = por %p361, %p362
    %s365 = sadd.s32 %s364, 1
    %p368 = scmp.eq.s32.totalorder %s26, 1
    %p369 = scmp.ne.s32.totalorder %s364, %s366
    %p370 = scmp.eq.s32.totalorder %s26, 0
    %p371 = por %p369, %p370
    %p372 = scmp.ne.s32.totalorder %s364, %s366
    %p373 = scmp.eq.s32.totalorder %s31, 1
    %p374 = por %p372, %p373
    %p375 = scmp.ne.s32.totalorder %s366, %s367
    %p376 = scmp.eq.s32.totalorder %s31, 0
    %p377 = por %p375, %p376
    %p378 = scmp.ne.s32.totalorder %s366, %s367
    %p379 = scmp.eq.s32.totalorder %s32, 1
    %p380 = por %p378, %p379
    %p382 = scmp.ne.s32.totalorder %s367, %s381
    %p383 = scmp.eq.s32.totalorder %s32, 0
    %p384 = por %p382, %p383
    %s386 = sadd.s32 %s385, 1
    %p389 = scmp.eq.s32.totalorder %s26, 1
    %p390 = scmp.ne.s32.totalorder %s385, %s387
    %p391 = scmp.eq.s32.totalorder %s26, 0
    %p392 = por %p390, %p391
    %p393 = scmp.ne.s32.totalorder %s385, %s387
    %p394 = scmp.eq.s32.totalorder %s31, 1
    %p395 = por %p393, %p394
    %p396 = scmp.ne.s32.totalorder %s387, %s388
    %p397 = scmp.eq.s32.totalorder %s31, 0
    %p398 = por %p396, %p397
    %p399 = scmp.ne.s32.totalorder %s387, %s388
    %p400 = scmp.eq.s32.totalorder %s32, 1
    %p401 = por %p399, %p400
    %p403 = scmp.ne.s32.totalorder %s388, %s402
    %p404 = scmp.eq.s32.totalorder %s32, 0
    %p405 = por %p403, %p404
    %s406 = ssub.s32 %s26, %s33
    %p407 = scmp.eq.s32.totalorder %s406, 0
    %s409 = sadd.s32 %s408, 1
    %s410 = scalar_select %p407, %s408, %s409
    %p413 = pneg %p407
    %p414 = scmp.eq.s32.totalorder %s26, 1
    %p415 = por %p413, %p414
    %p416 = scmp.ne.s32.totalorder %s408, %s411
    %p417 = scmp.eq.s32.totalorder %s26, 0
    %p418 = por %p416, %p417
    %p419 = scmp.ne.s32.totalorder %s408, %s411
    %p420 = scmp.eq.s32.totalorder %s31, 1
    %p421 = por %p419, %p420
    %p422 = scmp.ne.s32.totalorder %s411, %s412
    %p423 = scmp.eq.s32.totalorder %s31, 0
    %p424 = por %p422, %p423
    %p425 = scmp.ne.s32.totalorder %s411, %s412
    %p426 = scmp.eq.s32.totalorder %s32, 1
    %p427 = por %p425, %p426
    %p429 = scmp.ne.s32.totalorder %s412, %s428
    %p430 = scmp.eq.s32.totalorder %s32, 0
    %p431 = por %p429, %p430
    %s432 = ssub.s32 %s26, %s33
    %p433 = scmp.eq.s32.totalorder %s432, 0
    %s435 = sadd.s32 %s434, 1
    %s436 = scalar_select %p433, %s434, %s435
    %p439 = pneg %p433
    %p440 = scmp.eq.s32.totalorder %s26, 1
    %p441 = por %p439, %p440
    %p442 = scmp.ne.s32.totalorder %s434, %s437
    %p443 = scmp.eq.s32.totalorder %s26, 0
    %p444 = por %p442, %p443
    %p445 = scmp.ne.s32.totalorder %s434, %s437
    %p446 = scmp.eq.s32.totalorder %s31, 1
    %p447 = por %p445, %p446
    %p448 = scmp.ne.s32.totalorder %s437, %s438
    %p449 = scmp.eq.s32.totalorder %s31, 0
    %p450 = por %p448, %p449
    %p451 = scmp.ne.s32.totalorder %s437, %s438
    %p452 = scmp.eq.s32.totalorder %s32, 1
    %p453 = por %p451, %p452
    %p455 = scmp.ne.s32.totalorder %s438, %s454
    %p456 = scmp.eq.s32.totalorder %s32, 0
    %p457 = por %p455, %p456
    %s458 = ssub.s32 %s26, %s33
    %p459 = scmp.eq.s32.totalorder %s458, 0
    %s461 = sadd.s32 %s460, 1
    %s462 = scalar_select %p459, %s460, %s461
    %p465 = pneg %p459
    %p466 = scmp.eq.s32.totalorder %s26, 1
    %p467 = por %p465, %p466
    %p468 = scmp.ne.s32.totalorder %s460, %s463
    %p469 = scmp.eq.s32.totalorder %s26, 0
    %p470 = por %p468, %p469
    %p471 = scmp.ne.s32.totalorder %s460, %s463
    %p472 = scmp.eq.s32.totalorder %s31, 1
    %p473 = por %p471, %p472
    %p474 = scmp.ne.s32.totalorder %s463, %s464
    %p475 = scmp.eq.s32.totalorder %s31, 0
    %p476 = por %p474, %p475
    %p477 = scmp.ne.s32.totalorder %s463, %s464
    %p478 = scmp.eq.s32.totalorder %s32, 1
    %p479 = por %p477, %p478
    %p481 = scmp.ne.s32.totalorder %s464, %s480
    %p482 = scmp.eq.s32.totalorder %s32, 0
    %p483 = por %p481, %p482
    %p484 = scmp.le.s32.totalorder 1, %s26
    %p485 = scmp.lt.s32.totalorder %s26, 3
    %p486 = pnand %p484, %p485
    %p487 = pneg %p486
    // Predicated region
    $region9: #{tpu_custom_call.1} parent=5 // pred_check
      _
    $region10: #{tpu_custom_call.1} parent=5 // pred_check_branch
      %489 = sbr.rel (%p486) target = $region12
    $region11: #{tpu_custom_call.1} parent=5 // pred_region
      %s490 = ssub.s32 %s26, 1
      // Predicated region
      $region13: #{tpu_custom_call.1} parent=11 // pred_check
        %p491 = pneg %p125
      $region14: #{tpu_custom_call.1} parent=11 // pred_check_branch
        %493 = sbr.rel (%p491) target = $region16
      $region15: #{tpu_custom_call.1} parent=11 // pred_region
        _
      $region16: #{tpu_custom_call.1} parent=11 // pred_fallthru
        _
      // Predicated region
      $region17: #{tpu_custom_call.1} parent=11 // pred_check
        %p494 = pneg %p146
      $region18: #{tpu_custom_call.1} parent=11 // pred_check_branch
        %496 = sbr.rel (%p494) target = $region20
      $region19: #{tpu_custom_call.1} parent=11 // pred_region
        _
      $region20: #{tpu_custom_call.1} parent=11 // pred_fallthru
        _
      // Predicated region
      $region21: #{tpu_custom_call.1} parent=11 // pred_check
        %p497 = pneg %p167
      $region22: #{tpu_custom_call.1} parent=11 // pred_check_branch
        %499 = sbr.rel (%p497) target = $region24
      $region23: #{tpu_custom_call.1} parent=11 // pred_region
        _
      $region24: #{tpu_custom_call.1} parent=11 // pred_fallthru
        _
      // Predicated region
      $region25: #{tpu_custom_call.1} parent=11 // pred_check
        %p500 = pneg %p188
      $region26: #{tpu_custom_call.1} parent=11 // pred_check_branch
        %502 = sbr.rel (%p500) target = $region28
      $region27: #{tpu_custom_call.1} parent=11 // pred_region
        _
      $region28: #{tpu_custom_call.1} parent=11 // pred_fallthru
        _
      // Predicated region
      $region29: #{tpu_custom_call.1} parent=11 // pred_check
        %p503 = pneg %p209
      $region30: #{tpu_custom_call.1} parent=11 // pred_check_branch
        %505 = sbr.rel (%p503) target = $region32
      $region31: #{tpu_custom_call.1} parent=11 // pred_region
        _
      $region32: #{tpu_custom_call.1} parent=11 // pred_fallthru
        _
      // Predicated region
      $region33: #{tpu_custom_call.1} parent=11 // pred_check
        %p506 = pneg %p230
      $region34: #{tpu_custom_call.1} parent=11 // pred_check_branch
        %508 = sbr.rel (%p506) target = $region36
      $region35: #{tpu_custom_call.1} parent=11 // pred_region
        _
      $region36: #{tpu_custom_call.1} parent=11 // pred_fallthru
        _
      // Predicated region
      $region37: #{tpu_custom_call.1} parent=11 // pred_check
        %p509 = pneg %p251
      $region38: #{tpu_custom_call.1} parent=11 // pred_check_branch
        %511 = sbr.rel (%p509) target = $region40
      $region39: #{tpu_custom_call.1} parent=11 // pred_region
        _
      $region40: #{tpu_custom_call.1} parent=11 // pred_fallthru
        _
      // Predicated region
      $region41: #{tpu_custom_call.1} parent=11 // pred_check
        %p512 = pneg %p272
      $region42: #{tpu_custom_call.1} parent=11 // pred_check_branch
        %514 = sbr.rel (%p512) target = $region44
      $region43: #{tpu_custom_call.1} parent=11 // pred_region
        _
      $region44: #{tpu_custom_call.1} parent=11 // pred_fallthru
        _
      // Predicated region
      $region45: #{tpu_custom_call.1} parent=11 // pred_check
        %p515 = pneg %p293
      $region46: #{tpu_custom_call.1} parent=11 // pred_check_branch
        %517 = sbr.rel (%p515) target = $region48
      $region47: #{tpu_custom_call.1} parent=11 // pred_region
        _
      $region48: #{tpu_custom_call.1} parent=11 // pred_fallthru
        _
      // Predicated region
      $region49: #{tpu_custom_call.1} parent=11 // pred_check
        %p518 = pneg %p314
      $region50: #{tpu_custom_call.1} parent=11 // pred_check_branch
        %520 = sbr.rel (%p518) target = $region52
      $region51: #{tpu_custom_call.1} parent=11 // pred_region
        _
      $region52: #{tpu_custom_call.1} parent=11 // pred_fallthru
        _
      // Predicated region
      $region53: #{tpu_custom_call.1} parent=11 // pred_check
        %p521 = pneg %p335
      $region54: #{tpu_custom_call.1} parent=11 // pred_check_branch
        %523 = sbr.rel (%p521) target = $region56
      $region55: #{tpu_custom_call.1} parent=11 // pred_region
        _
      $region56: #{tpu_custom_call.1} parent=11 // pred_fallthru
        _
      // Predicated region
      $region57: #{tpu_custom_call.1} parent=11 // pred_check
        %p524 = pneg %p356
      $region58: #{tpu_custom_call.1} parent=11 // pred_check_branch
        %526 = sbr.rel (%p524) target = $region60
      $region59: #{tpu_custom_call.1} parent=11 // pred_region
        _
      $region60: #{tpu_custom_call.1} parent=11 // pred_fallthru
        _
      // Predicated region
      $region61: #{tpu_custom_call.1} parent=11 // pred_check
        %p527 = pneg %p377
      $region62: #{tpu_custom_call.1} parent=11 // pred_check_branch
        %529 = sbr.rel (%p527) target = $region64
      $region63: #{tpu_custom_call.1} parent=11 // pred_region
        _
      $region64: #{tpu_custom_call.1} parent=11 // pred_fallthru
        _
      // Predicated region
      $region65: #{tpu_custom_call.1} parent=11 // pred_check
        %p530 = pneg %p398
      $region66: #{tpu_custom_call.1} parent=11 // pred_check_branch
        %532 = sbr.rel (%p530) target = $region68
      $region67: #{tpu_custom_call.1} parent=11 // pred_region
        _
      $region68: #{tpu_custom_call.1} parent=11 // pred_fallthru
        _
    $region12: #{tpu_custom_call.1} parent=5 // pred_fallthru
      _
    %p533 = scmp.lt.s32.totalorder %s26, 2
    // Predicated region
    $region69: #{tpu_custom_call.1} parent=5 // pred_check
      %p534 = pneg %p533
    $region70: #{tpu_custom_call.1} parent=5 // pred_check_branch
      %536 = sbr.rel (%p534) target = $region72
    $region71: #{tpu_custom_call.1} parent=5 // pred_region
      // Predicated region
      $region73: #{tpu_custom_call.1} parent=71 // pred_check
        %p537 = pneg %p46
      $region74: #{tpu_custom_call.1} parent=71 // pred_check_branch
        %539 = sbr.rel (%p537) target = $region76
      $region75: #{tpu_custom_call.1} parent=71 // pred_region
        %p540 = scmp.lt.s32.totalorder %s26, 1
        %s541 = scalar_select %p540, %s26, 1
        %s542 = smul.addr %s541, 54
        %s543 = smul.addr %s542, 4
        %s544 = scalar_lea.vmem %s0, %s543
      $region76: #{tpu_custom_call.1} parent=71 // pred_fallthru
        _
      // Predicated region
      $region77: #{tpu_custom_call.1} parent=71 // pred_check
        %p545 = pneg %p72
      $region78: #{tpu_custom_call.1} parent=71 // pred_check_branch
        %547 = sbr.rel (%p545) target = $region80
      $region79: #{tpu_custom_call.1} parent=71 // pred_region
        %p548 = scmp.lt.s32.totalorder %s26, 1
        %s549 = scalar_select %p548, %s26, 1
        %s550 = smul.addr %s549, 32
        %s551 = smul.addr %s550, 8
        %s552 = scalar_lea.vmem %s1, %s551
      $region80: #{tpu_custom_call.1} parent=71 // pred_fallthru
        _
      // Predicated region
      $region81: #{tpu_custom_call.1} parent=71 // pred_check
        %p553 = pneg %p98
      $region82: #{tpu_custom_call.1} parent=71 // pred_check_branch
        %555 = sbr.rel (%p553) target = $region84
      $region83: #{tpu_custom_call.1} parent=71 // pred_region
        %p556 = scmp.lt.s32.totalorder %s26, 1
        %s557 = scalar_select %p556, %s26, 1
        %s558 = smul.addr %s557, 32
        %s559 = smul.addr %s558, 8
        %s560 = scalar_lea.vmem %s2, %s559
      $region84: #{tpu_custom_call.1} parent=71 // pred_fallthru
        _
    $region72: #{tpu_custom_call.1} parent=5 // pred_fallthru
      _
    %p561 = scmp.le.s32.totalorder 1, %s26
    %p562 = scmp.lt.s32.totalorder %s26, 3
    %p563 = pnand %p561, %p562
    %p564 = pneg %p563
    // Predicated region
    $region85: #{tpu_custom_call.1} parent=5 // pred_check
      _
    $region86: #{tpu_custom_call.1} parent=5 // pred_check_branch
      %566 = sbr.rel (%p563) target = $region88
    $region87: #{tpu_custom_call.1} parent=5 // pred_region
      %s567 = ssub.s32 %s26, 1
      %p568 = scmp.lt.s32.totalorder %s31, 1
      %s569 = scalar_select %p568, %s31, 1
      %s570 = smul.addr %s569, 54
      %s571 = smul.addr %s570, 4
      %s572 = scalar_lea.vmem %s0, %s571
      %p573 = pneg %p52
      %p574 = pneg %p49
      %p575 = scmp.lt.s32.totalorder %s31, 1
      %s576 = scalar_select %p575, %s31, 1
      %s577 = smul.addr %s576, 32
      %s578 = smul.addr %s577, 8
      %s579 = scalar_lea.vmem %s1, %s578
      %p580 = pneg %p78
      %p581 = pneg %p75
      %p582 = scmp.lt.s32.totalorder %s31, 1
      %s583 = scalar_select %p582, %s31, 1
      %s584 = smul.addr %s583, 32
      %s585 = smul.addr %s584, 8
      %s586 = scalar_lea.vmem %s2, %s585
      %p587 = pneg %p104
      %p588 = pneg %p101
      %p589 = pneg %p125
      %p590 = pneg %p122
      %p591 = pneg %p146
      %p592 = pneg %p143
      %p593 = pneg %p167
      %p594 = pneg %p164
      %p595 = pneg %p188
      %p596 = pneg %p185
      %p597 = pneg %p209
      %p598 = pneg %p206
      %p599 = pneg %p230
      %p600 = pneg %p227
      %p601 = pneg %p251
      %p602 = pneg %p248
      %p603 = pneg %p272
      %p604 = pneg %p269
      %p605 = pneg %p293
      %p606 = pneg %p290
      %p607 = pneg %p314
      %p608 = pneg %p311
      %p609 = pneg %p335
      %p610 = pneg %p332
      %p611 = pneg %p356
      %p612 = pneg %p353
      %p613 = pneg %p377
      %p614 = pneg %p374
      %p615 = pneg %p398
      %p616 = pneg %p395
      %p617 = pneg %p424
      %p618 = pneg %p421
      %p619 = scmp.lt.s32.totalorder %s31, 1
      %s620 = scalar_select %p619, %s31, 1
      %s621 = smul.addr %s620, 32
      %s622 = smul.addr %s621, 8
      %s623 = scalar_lea.vmem %s17, %s622
      %p624 = pneg %p450
      %p625 = pneg %p447
      %p626 = scmp.lt.s32.totalorder %s31, 1
      %s627 = scalar_select %p626, %s31, 1
      %s628 = smul.addr %s627, 32
      %s629 = smul.addr %s628, 8
      %s630 = scalar_lea.vmem %s18, %s629
      %p631 = pneg %p476
      %p632 = pneg %p473
      %p633 = scmp.lt.s32.totalorder %s31, 1
      %s634 = scalar_select %p633, %s31, 1
      %s635 = smul.addr %s634, 32
      %s636 = smul.addr %s635, 8
      %s637 = scalar_lea.vmem %s19, %s636
      %p638 = scmp.lt.s32.totalorder %s31, 1
      %s639 = scalar_select %p638, %s31, 1
      %s640 = smul.addr %s639, 54
      %s641 = smul.addr %s640, 4
      %s642 = scalar_lea.vmem %s0, %s641
      %p643 = scmp.lt.s32.totalorder %s31, 1
      %s644 = scalar_select %p643, %s31, 1
      %s645 = smul.addr %s644, 32
      %s646 = smul.addr %s645, 8
      %s647 = scalar_lea.vmem %s1, %s646
      %p648 = scmp.lt.s32.totalorder %s31, 1
      %s649 = scalar_select %p648, %s31, 1
      %s650 = smul.addr %s649, 32
      %s651 = smul.addr %s650, 8
      %s652 = scalar_lea.vmem %s2, %s651
      %p653 = scmp.lt.s32.totalorder %s31, 1
      %s654 = scalar_select %p653, %s31, 1
      %s655 = smul.addr %s654, 32
      %s656 = smul.addr %s655, 8
      %s657 = scalar_lea.vmem %s17, %s656
      %p658 = scmp.lt.s32.totalorder %s31, 1
      %s659 = scalar_select %p658, %s31, 1
      %s660 = smul.addr %s659, 32
      %s661 = smul.addr %s660, 8
      %s662 = scalar_lea.vmem %s18, %s661
      %p663 = scmp.lt.s32.totalorder %s31, 1
      %s664 = scalar_select %p663, %s31, 1
      %s665 = smul.addr %s664, 32
      %s666 = smul.addr %s665, 8
      %s667 = scalar_lea.vmem %s19, %s666
      %v669 = vld [vmem:[%s647] sm:$0xff]
      %v670 = vld [vmem:[%s647 + $0x8] sm:$0xff]
      %v671 = vld [vmem:[%s647 + $0x10] sm:$0xff]
      %v672 = vld [vmem:[%s647 + $0x18] sm:$0xff]
      %v673 = vld [vmem:[%s647 + $0x20] sm:$0xff]
      %v674 = vld [vmem:[%s647 + $0x28] sm:$0xff]
      %v675 = vld [vmem:[%s647 + $0x30] sm:$0xff]
      %v676 = vld [vmem:[%s647 + $0x38] sm:$0xff]
      %v677 = vld [vmem:[%s647 + $0x40] sm:$0xff]
      %v678 = vld [vmem:[%s647 + $0x48] sm:$0xff]
      %v679 = vld [vmem:[%s647 + $0x50] sm:$0xff]
      %v680 = vld [vmem:[%s647 + $0x58] sm:$0xff]
      %v681 = vld [vmem:[%s647 + $0x60] sm:$0xff]
      %v682 = vld [vmem:[%s647 + $0x68] sm:$0xff]
      %v683 = vld [vmem:[%s647 + $0x70] sm:$0xff]
      %v684 = vld [vmem:[%s647 + $0x78] sm:$0xff]
      %v685 = vld [vmem:[%s647 + $0x80] sm:$0xff]
      %v686 = vld [vmem:[%s647 + $0x88] sm:$0xff]
      %v687 = vld [vmem:[%s647 + $0x90] sm:$0xff]
      %v688 = vld [vmem:[%s647 + $0x98] sm:$0xff]
      %v689 = vld [vmem:[%s647 + $0xa0] sm:$0xff]
      %v690 = vld [vmem:[%s647 + $0xa8] sm:$0xff]
      %v691 = vld [vmem:[%s647 + $0xb0] sm:$0xff]
      %v692 = vld [vmem:[%s647 + $0xb8] sm:$0xff]
      %v693 = vld [vmem:[%s647 + $0xc0] sm:$0xff]
      %v694 = vld [vmem:[%s647 + $0xc8] sm:$0xff]
      %v695 = vld [vmem:[%s647 + $0xd0] sm:$0xff]
      %v696 = vld [vmem:[%s647 + $0xd8] sm:$0xff]
      %v697 = vld [vmem:[%s647 + $0xe0] sm:$0xff]
      %v698 = vld [vmem:[%s647 + $0xe8] sm:$0xff]
      %v699 = vld [vmem:[%s647 + $0xf0] sm:$0xff]
      %v700 = vld [vmem:[%s647 + $0xf8] sm:$0xff]
      %v701 = vld [vmem:[%s652] sm:$0xff]
      %v702 = vld [vmem:[%s652 + $0x8] sm:$0xff]
      %v703 = vld [vmem:[%s652 + $0x10] sm:$0xff]
      %v704 = vld [vmem:[%s652 + $0x18] sm:$0xff]
      %v705 = vld [vmem:[%s652 + $0x20] sm:$0xff]
      %v706 = vld [vmem:[%s652 + $0x28] sm:$0xff]
      %v707 = vld [vmem:[%s652 + $0x30] sm:$0xff]
      %v708 = vld [vmem:[%s652 + $0x38] sm:$0xff]
      %v709 = vld [vmem:[%s652 + $0x40] sm:$0xff]
      %v710 = vld [vmem:[%s652 + $0x48] sm:$0xff]
      %v711 = vld [vmem:[%s652 + $0x50] sm:$0xff]
      %v712 = vld [vmem:[%s652 + $0x58] sm:$0xff]
      %v713 = vld [vmem:[%s652 + $0x60] sm:$0xff]
      %v714 = vld [vmem:[%s652 + $0x68] sm:$0xff]
      %v715 = vld [vmem:[%s652 + $0x70] sm:$0xff]
      %v716 = vld [vmem:[%s652 + $0x78] sm:$0xff]
      %v717 = vld [vmem:[%s652 + $0x80] sm:$0xff]
      %v718 = vld [vmem:[%s652 + $0x88] sm:$0xff]
      %v719 = vld [vmem:[%s652 + $0x90] sm:$0xff]
      %v720 = vld [vmem:[%s652 + $0x98] sm:$0xff]
      %v721 = vld [vmem:[%s652 + $0xa0] sm:$0xff]
      %v722 = vld [vmem:[%s652 + $0xa8] sm:$0xff]
      %v723 = vld [vmem:[%s652 + $0xb0] sm:$0xff]
      %v724 = vld [vmem:[%s652 + $0xb8] sm:$0xff]
      %v725 = vld [vmem:[%s652 + $0xc0] sm:$0xff]
      %v726 = vld [vmem:[%s652 + $0xc8] sm:$0xff]
      %v727 = vld [vmem:[%s652 + $0xd0] sm:$0xff]
      %v728 = vld [vmem:[%s652 + $0xd8] sm:$0xff]
      %v729 = vld [vmem:[%s652 + $0xe0] sm:$0xff]
      %v730 = vld [vmem:[%s652 + $0xe8] sm:$0xff]
      %v731 = vld [vmem:[%s652 + $0xf0] sm:$0xff]
      %v732 = vld [vmem:[%s652 + $0xf8] sm:$0xff]
      %v733 = vld [vmem:[%s642] sm:$0xf]
      %v734 = vld [vmem:[%s642 + $0x4] sm:$0xf]
      %v735 = vld [vmem:[%s642 + $0x8] sm:$0x1]
      %v736 = vld [vmem:[%s642 + $0xc] sm:$0xf]
      %v737 = vld [vmem:[%s642 + $0x10] sm:$0xf]
      %v738 = vld [vmem:[%s642 + $0x14] sm:$0x1]
      %v739 = vld [vmem:[%s642 + $0x18] sm:$0xf]
      %v740 = vld [vmem:[%s642 + $0x1c] sm:$0xf]
      %v741 = vld [vmem:[%s642 + $0x20] sm:$0x1]
      %v742 = vld [vmem:[%s642 + $0x24] sm:$0xf]
      %v743 = vld [vmem:[%s642 + $0x28] sm:$0xf]
      %v744 = vld [vmem:[%s642 + $0x2c] sm:$0x1]
      %v745 = vld [vmem:[%s642 + $0x30] sm:$0xf]
      %v746 = vld [vmem:[%s642 + $0x34] sm:$0xf]
      %v747 = vld [vmem:[%s642 + $0x38] sm:$0x1]
      %v748 = vld [vmem:[%s642 + $0x3c] sm:$0xf]
      %v749 = vld [vmem:[%s642 + $0x40] sm:$0xf]
      %v750 = vld [vmem:[%s642 + $0x44] sm:$0x1]
      %v751 = vld [vmem:[%s642 + $0x48] sm:$0xf]
      %v752 = vld [vmem:[%s642 + $0x4c] sm:$0xf]
      %v753 = vld [vmem:[%s642 + $0x50] sm:$0x1]
      %v754 = vld [vmem:[%s642 + $0x54] sm:$0xf]
      %v755 = vld [vmem:[%s642 + $0x58] sm:$0xf]
      %v756 = vld [vmem:[%s642 + $0x5c] sm:$0x1]
      %v757 = vld [vmem:[%s642 + $0x60] sm:$0xf]
      %v758 = vld [vmem:[%s642 + $0x64] sm:$0xf]
      %v759 = vld [vmem:[%s642 + $0x68] sm:$0x1]
      %v760 = vld [vmem:[%s642 + $0x6c] sm:$0xf]
      %v761 = vld [vmem:[%s642 + $0x70] sm:$0xf]
      %v762 = vld [vmem:[%s642 + $0x74] sm:$0x1]
      %v763 = vld [vmem:[%s642 + $0x78] sm:$0xf]
      %v764 = vld [vmem:[%s642 + $0x7c] sm:$0xf]
      %v765 = vld [vmem:[%s642 + $0x80] sm:$0x1]
      %v766 = vld [vmem:[%s642 + $0x84] sm:$0xf]
      %v767 = vld [vmem:[%s642 + $0x88] sm:$0xf]
      %v768 = vld [vmem:[%s642 + $0x8c] sm:$0x1]
      %v769 = vld [vmem:[%s642 + $0x90] sm:$0xf]
      %v770 = vld [vmem:[%s642 + $0x94] sm:$0xf]
      %v771 = vld [vmem:[%s642 + $0x98] sm:$0x1]
      %v772 = vld [vmem:[%s642 + $0x9c] sm:$0xf]
      %v773 = vld [vmem:[%s642 + $0xa0] sm:$0xf]
      %v774 = vld [vmem:[%s642 + $0xa4] sm:$0x1]
      %v775 = vld [vmem:[%s642 + $0xa8] sm:$0xf]
      %v776 = vld [vmem:[%s642 + $0xac] sm:$0xf]
      %v777 = vld [vmem:[%s642 + $0xb0] sm:$0x1]
      %v778 = vld [vmem:[%s642 + $0xb4] sm:$0xf]
      %v779 = vld [vmem:[%s642 + $0xb8] sm:$0xf]
      %v780 = vld [vmem:[%s642 + $0xbc] sm:$0x1]
      %v781 = vld [vmem:[%s642 + $0xc0] sm:$0xf]
      %v782 = vld [vmem:[%s642 + $0xc4] sm:$0xf]
      %v783 = vld [vmem:[%s642 + $0xc8] sm:$0x1]
      %v784 = vld [vmem:[%s642 + $0xcc] sm:$0xf]
      %v785 = vld [vmem:[%s642 + $0xd0] sm:$0xf]
      %v786 = vld [vmem:[%s642 + $0xd4] sm:$0x1]
      %v787 = vld [vmem:[%s3] sm:$0xf]
      %v788 = vld [vmem:[%s3 + $0x4] sm:$0xf]
      %v789 = vld [vmem:[%s3 + $0x8] sm:$0xf]
      %v790 = vld [vmem:[%s3 + $0xc] sm:$0xf]
      %v791 = vld [vmem:[%s3 + $0x10] sm:$0x3]
      %v792 = vld [vmem:[%s3 + $0x34] sm:$0xc]
      %v793 = vld [vmem:[%s3 + $0x38] sm:$0xf]
      %v794 = vld [vmem:[%s3 + $0x3c] sm:$0xf]
      %v795 = vld [vmem:[%s3 + $0x40] sm:$0xf]
      %v796 = vld [vmem:[%s3 + $0x44] sm:$0xf]
      %v829 = vunpack.c.l.b16 %v736
      %v830 = vunpack.c.l.b16 %v737
      %v831 = vunpack.c.l.b16 %v739
      %v832 = vunpack.c.l.b16 %v740
      %v833 = vunpack.c.l.b16 %v742
      %v834 = vunpack.c.l.b16 %v743
      %v835 = vunpack.c.l.b16 %v745
      %v836 = vunpack.c.l.b16 %v746
      %v837 = vunpack.c.l.b16 %v748
      %v838 = vunpack.c.l.b16 %v749
      %v839 = vunpack.c.l.b16 %v751
      %v840 = vunpack.c.l.b16 %v752
      %v841 = vunpack.c.l.b16 %v754
      %v842 = vunpack.c.l.b16 %v755
      %v843 = vunpack.c.l.b16 %v757
      %v844 = vunpack.c.l.b16 %v758
      %v845 = vunpack.c.l.b16 %v760
      %v846 = vunpack.c.l.b16 %v761
      %v847 = vunpack.c.l.b16 %v763
      %v848 = vunpack.c.l.b16 %v764
      %v849 = vunpack.c.l.b16 %v766
      %v850 = vunpack.c.l.b16 %v767
      %v851 = vunpack.c.l.b16 %v769
      %v852 = vunpack.c.l.b16 %v770
      %v853 = vunpack.c.l.b16 %v772
      %v854 = vunpack.c.l.b16 %v773
      %v855 = vunpack.c.l.b16 %v775
      %v856 = vunpack.c.l.b16 %v776
      %v857 = vunpack.c.l.b16 %v778
      %v858 = vunpack.c.l.b16 %v779
      %v859 = vunpack.c.l.b16 %v781
      %v860 = vunpack.c.l.b16 %v782
      %v861 = vpack.c.b16 %v830, %v829
      %v862 = vpack.c.b16 %v832, %v831
      %v863 = vpack.c.b16 %v834, %v833
      %v864 = vpack.c.b16 %v836, %v835
      %v865 = vpack.c.b16 %v838, %v837
      %v866 = vpack.c.b16 %v840, %v839
      %v867 = vpack.c.b16 %v842, %v841
      %v868 = vpack.c.b16 %v844, %v843
      %v869 = vpack.c.b16 %v846, %v845
      %v870 = vpack.c.b16 %v848, %v847
      %v871 = vpack.c.b16 %v850, %v849
      %v872 = vpack.c.b16 %v852, %v851
      %v873 = vpack.c.b16 %v854, %v853
      %v874 = vpack.c.b16 %v856, %v855
      %v875 = vpack.c.b16 %v858, %v857
      %v876 = vpack.c.b16 %v860, %v859
      %v882 = vunpack.c.l.b16 %v792
      %v883 = vunpack.c.l.b16 %v793
      %v884 = vunpack.c.l.b16 %v794
      %v885 = vunpack.c.l.b16 %v795
      %v886 = vunpack.c.l.b16 %v796
      %v887 = vpack.c.b16 %v883, %v882
      %v888 = vpack.c.b16 %v885, %v884
      %v889 = vpack.c.b16 %v886, %v886
      %vm890 = vcmask 1045504
      %v891 = vrot.slane %v887, 2
      %v892 = vrot.slane %v888, 2
      %v893 = vsel %vm890, %v891, %v892
      %v894 = vrot.slane %v889, 2
      %v895 = vsel %vm890, %v892, %v894
      %vm898 = vcmask 293888
      %v900 = vsel %vm898, %v861, 0
      %v903 = vsel %vm898, %v862, 0
      %v906 = vsel %vm898, %v863, 0
      %v909 = vsel %vm898, %v864, 0
      %v912 = vsel %vm898, %v865, 0
      %v915 = vsel %vm898, %v866, 0
      %v918 = vsel %vm898, %v867, 0
      %v921 = vsel %vm898, %v868, 0
      %v924 = vsel %vm898, %v869, 0
      %v927 = vsel %vm898, %v870, 0
      %v930 = vsel %vm898, %v871, 0
      %v933 = vsel %vm898, %v872, 0
      %v936 = vsel %vm898, %v873, 0
      %v939 = vsel %vm898, %v874, 0
      %v942 = vsel %vm898, %v875, 0
      %v945 = vsel %vm898, %v876, 0
      %vm947 = vcmask 1041408
      %v949 = vsel %vm947, %v894, 0
      %951 = vmatpush.bf16.msra.mxu0 0
      %952 = vmatpush.bf16.msra.mxu0 0
      %953 = vmatpush.bf16.msra.mxu0 0
      %954 = vmatpush.bf16.msra.mxu0 0
      %955 = vmatpush.bf16.msra.mxu0 0
      %956 = vmatpush.bf16.msra.mxu0 %v949
      %957 = vmatpush.bf16.msra.mxu0 %v895
      %958 = vmatpush.bf16.msra.mxu0 %v893
      %959 = vmatmul.bf16.gmra.mxu0 %v900
      %v960 = vpop.f32.mrf.mxu0
      %v961 = vadd.f32 0.0, %v960
      %v962 = vpop.f32.mrf.mxu0
      %v963 = vadd.f32 0.0, %v962
      %964 = vmatmul.bf16.gmra.mxu0 %v903
      %v965 = vpop.f32.mrf.mxu0
      %v966 = vadd.f32 0.0, %v965
      %v967 = vpop.f32.mrf.mxu0
      %v968 = vadd.f32 0.0, %v967
      %969 = vmatmul.bf16.gmra.mxu0 %v906
      %v970 = vpop.f32.mrf.mxu0
      %v971 = vadd.f32 0.0, %v970
      %v972 = vpop.f32.mrf.mxu0
      %v973 = vadd.f32 0.0, %v972
      %974 = vmatmul.bf16.gmra.mxu0 %v909
      %v975 = vpop.f32.mrf.mxu0
      %v976 = vadd.f32 0.0, %v975
      %v977 = vpop.f32.mrf.mxu0
      %v978 = vadd.f32 0.0, %v977
      %979 = vmatmul.bf16.gmra.mxu0 %v912
      %v980 = vpop.f32.mrf.mxu0
      %v981 = vadd.f32 0.0, %v980
      %v982 = vpop.f32.mrf.mxu0
      %v983 = vadd.f32 0.0, %v982
      %984 = vmatmul.bf16.gmra.mxu0 %v915
      %v985 = vpop.f32.mrf.mxu0
      %v986 = vadd.f32 0.0, %v985
      %v987 = vpop.f32.mrf.mxu0
      %v988 = vadd.f32 0.0, %v987
      %989 = vmatmul.bf16.gmra.mxu0 %v918
      %v990 = vpop.f32.mrf.mxu0
      %v991 = vadd.f32 0.0, %v990
      %v992 = vpop.f32.mrf.mxu0
      %v993 = vadd.f32 0.0, %v992
      %994 = vmatmul.bf16.gmra.mxu0 %v921
      %v995 = vpop.f32.mrf.mxu0
      %v996 = vadd.f32 0.0, %v995
      %v997 = vpop.f32.mrf.mxu0
      %v998 = vadd.f32 0.0, %v997
      %999 = vmatmul.bf16.gmra.mxu0 %v924
      %v1000 = vpop.f32.mrf.mxu0
      %v1001 = vadd.f32 0.0, %v1000
      %v1002 = vpop.f32.mrf.mxu0
      %v1003 = vadd.f32 0.0, %v1002
      %1004 = vmatmul.bf16.gmra.mxu0 %v927
      %v1005 = vpop.f32.mrf.mxu0
      %v1006 = vadd.f32 0.0, %v1005
      %v1007 = vpop.f32.mrf.mxu0
      %v1008 = vadd.f32 0.0, %v1007
      %1009 = vmatmul.bf16.gmra.mxu0 %v930
      %v1010 = vpop.f32.mrf.mxu0
      %v1011 = vadd.f32 0.0, %v1010
      %v1012 = vpop.f32.mrf.mxu0
      %v1013 = vadd.f32 0.0, %v1012
      %1014 = vmatmul.bf16.gmra.mxu0 %v933
      %v1015 = vpop.f32.mrf.mxu0
      %v1016 = vadd.f32 0.0, %v1015
      %v1017 = vpop.f32.mrf.mxu0
      %v1018 = vadd.f32 0.0, %v1017
      %1019 = vmatmul.bf16.gmra.mxu0 %v936
      %v1020 = vpop.f32.mrf.mxu0
      %v1021 = vadd.f32 0.0, %v1020
      %v1022 = vpop.f32.mrf.mxu0
      %v1023 = vadd.f32 0.0, %v1022
      %1024 = vmatmul.bf16.gmra.mxu0 %v939
      %v1025 = vpop.f32.mrf.mxu0
      %v1026 = vadd.f32 0.0, %v1025
      %v1027 = vpop.f32.mrf.mxu0
      %v1028 = vadd.f32 0.0, %v1027
      %1029 = vmatmul.bf16.gmra.mxu0 %v942
      %v1030 = vpop.f32.mrf.mxu0
      %v1031 = vadd.f32 0.0, %v1030
      %v1032 = vpop.f32.mrf.mxu0
      %v1033 = vadd.f32 0.0, %v1032
      %1034 = vmatmul.bf16.gmra.mxu0 %v945
      %v1035 = vpop.f32.mrf.mxu0
      %v1036 = vadd.f32 0.0, %v1035
      %v1037 = vpop.f32.mrf.mxu0
      %v1038 = vadd.f32 0.0, %v1037
      %1039 = vdwg.mxu0
      %v1042 = vunpack.c.l.b16 %v733
      %v1043 = vunpack.c.l.b16 %v734
      %v1044 = vpack.c.b16 %v1043, %v1042
      %v1050 = vunpack.c.l.b16 %v787
      %v1051 = vunpack.c.l.b16 %v788
      %v1052 = vunpack.c.l.b16 %v789
      %v1053 = vunpack.c.l.b16 %v790
      %v1054 = vunpack.c.l.b16 %v791
      %v1055 = vpack.c.b16 %v1051, %v1050
      %v1056 = vpack.c.b16 %v1053, %v1052
      %v1057 = vpack.c.b16 %v1054, %v1054
      %v1061 = vsel %vm898, %v1044, 0
      %v1064 = vsel %vm947, %v1057, 0
      %1066 = vmatpush.bf16.msra.mxu0 0
      %1067 = vmatpush.bf16.msra.mxu0 0
      %1068 = vmatpush.bf16.msra.mxu0 0
      %1069 = vmatpush.bf16.msra.mxu0 0
      %1070 = vmatpush.bf16.msra.mxu0 0
      %1071 = vmatpush.bf16.msra.mxu0 %v1064
      %1072 = vmatpush.bf16.msra.mxu0 %v1056
      %1073 = vmatpush.bf16.msra.mxu0 %v1055
      %1074 = vmatmul.bf16.gmra.mxu0 %v1061
      %v1075 = vpop.f32.mrf.mxu0
      %v1076 = vadd.f32 %v961, %v1075
      %v1077 = vpop.f32.mrf.mxu0
      %v1078 = vadd.f32 %v963, %v1077
      %1079 = vmatmul.bf16.gmra.mxu0 %v900
      %v1080 = vpop.f32.mrf.mxu0
      %v1081 = vadd.f32 %v966, %v1080
      %v1082 = vpop.f32.mrf.mxu0
      %v1083 = vadd.f32 %v968, %v1082
      %1084 = vmatmul.bf16.gmra.mxu0 %v903
      %v1085 = vpop.f32.mrf.mxu0
      %v1086 = vadd.f32 %v971, %v1085
      %v1087 = vpop.f32.mrf.mxu0
      %v1088 = vadd.f32 %v973, %v1087
      %1089 = vmatmul.bf16.gmra.mxu0 %v906
      %v1090 = vpop.f32.mrf.mxu0
      %v1091 = vadd.f32 %v976, %v1090
      %v1092 = vpop.f32.mrf.mxu0
      %v1093 = vadd.f32 %v978, %v1092
      %1094 = vmatmul.bf16.gmra.mxu0 %v909
      %v1095 = vpop.f32.mrf.mxu0
      %v1096 = vadd.f32 %v981, %v1095
      %v1097 = vpop.f32.mrf.mxu0
      %v1098 = vadd.f32 %v983, %v1097
      %1099 = vmatmul.bf16.gmra.mxu0 %v912
      %v1100 = vpop.f32.mrf.mxu0
      %v1101 = vadd.f32 %v986, %v1100
      %v1102 = vpop.f32.mrf.mxu0
      %v1103 = vadd.f32 %v988, %v1102
      %1104 = vmatmul.bf16.gmra.mxu0 %v915
      %v1105 = vpop.f32.mrf.mxu0
      %v1106 = vadd.f32 %v991, %v1105
      %v1107 = vpop.f32.mrf.mxu0
      %v1108 = vadd.f32 %v993, %v1107
      %1109 = vmatmul.bf16.gmra.mxu0 %v918
      %v1110 = vpop.f32.mrf.mxu0
      %v1111 = vadd.f32 %v996, %v1110
      %v1112 = vpop.f32.mrf.mxu0
      %v1113 = vadd.f32 %v998, %v1112
      %1114 = vmatmul.bf16.gmra.mxu0 %v921
      %v1115 = vpop.f32.mrf.mxu0
      %v1116 = vadd.f32 %v1001, %v1115
      %v1117 = vpop.f32.mrf.mxu0
      %v1118 = vadd.f32 %v1003, %v1117
      %1119 = vmatmul.bf16.gmra.mxu0 %v924
      %v1120 = vpop.f32.mrf.mxu0
      %v1121 = vadd.f32 %v1006, %v1120
      %v1122 = vpop.f32.mrf.mxu0
      %v1123 = vadd.f32 %v1008, %v1122
      %1124 = vmatmul.bf16.gmra.mxu0 %v927
      %v1125 = vpop.f32.mrf.mxu0
      %v1126 = vadd.f32 %v1011, %v1125
      %v1127 = vpop.f32.mrf.mxu0
      %v1128 = vadd.f32 %v1013, %v1127
      %1129 = vmatmul.bf16.gmra.mxu0 %v930
      %v1130 = vpop.f32.mrf.mxu0
      %v1131 = vadd.f32 %v1016, %v1130
      %v1132 = vpop.f32.mrf.mxu0
      %v1133 = vadd.f32 %v1018, %v1132
      %1134 = vmatmul.bf16.gmra.mxu0 %v933
      %v1135 = vpop.f32.mrf.mxu0
      %v1136 = vadd.f32 %v1021, %v1135
      %v1137 = vpop.f32.mrf.mxu0
      %v1138 = vadd.f32 %v1023, %v1137
      %1139 = vmatmul.bf16.gmra.mxu0 %v936
      %v1140 = vpop.f32.mrf.mxu0
      %v1141 = vadd.f32 %v1026, %v1140
      %v1142 = vpop.f32.mrf.mxu0
      %v1143 = vadd.f32 %v1028, %v1142
      %1144 = vmatmul.bf16.gmra.mxu0 %v939
      %v1145 = vpop.f32.mrf.mxu0
      %v1146 = vadd.f32 %v1031, %v1145
      %v1147 = vpop.f32.mrf.mxu0
      %v1148 = vadd.f32 %v1033, %v1147
      %1149 = vmatmul.bf16.gmra.mxu0 %v942
      %v1150 = vpop.f32.mrf.mxu0
      %v1151 = vadd.f32 %v1036, %v1150
      %v1152 = vpop.f32.mrf.mxu0
      %v1153 = vadd.f32 %v1038, %v1152
      %1154 = vdwg.mxu0
      %v1155 = vld [vmem:[%s3 + $0x6c] sm:$0xf]
      %v1156 = vld [vmem:[%s3 + $0x70] sm:$0xf]
      %v1157 = vld [vmem:[%s3 + $0x74] sm:$0xf]
      %v1158 = vld [vmem:[%s3 + $0x78] sm:$0xf]
      %v1159 = vld [vmem:[%s3 + $0x7c] sm:$0x3]
      %v1162 = vunpack.c.l.b16 %v784
      %v1163 = vunpack.c.l.b16 %v785
      %v1164 = vpack.c.b16 %v1163, %v1162
      %v1170 = vunpack.c.l.b16 %v1155
      %v1171 = vunpack.c.l.b16 %v1156
      %v1172 = vunpack.c.l.b16 %v1157
      %v1173 = vunpack.c.l.b16 %v1158
      %v1174 = vunpack.c.l.b16 %v1159
      %v1175 = vpack.c.b16 %v1171, %v1170
      %v1176 = vpack.c.b16 %v1173, %v1172
      %v1177 = vpack.c.b16 %v1174, %v1174
      %v1181 = vsel %vm898, %v1164, 0
      %v1184 = vsel %vm947, %v1177, 0
      %1186 = vmatpush.bf16.msra.mxu0 0
      %1187 = vmatpush.bf16.msra.mxu0 0
      %1188 = vmatpush.bf16.msra.mxu0 0
      %1189 = vmatpush.bf16.msra.mxu0 0
      %1190 = vmatpush.bf16.msra.mxu0 0
      %1191 = vmatpush.bf16.msra.mxu0 %v1184
      %1192 = vmatpush.bf16.msra.mxu0 %v1176
      %1193 = vmatpush.bf16.msra.mxu0 %v1175
      %1194 = vmatmul.bf16.gmra.mxu0 %v903
      %v1195 = vpop.f32.mrf.mxu0
      %v1196 = vadd.f32 0.0, %v1195
      %v1197 = vpop.f32.mrf.mxu0
      %v1198 = vadd.f32 0.0, %v1197
      %1199 = vmatmul.bf16.gmra.mxu0 %v906
      %v1200 = vpop.f32.mrf.mxu0
      %v1201 = vadd.f32 0.0, %v1200
      %v1202 = vpop.f32.mrf.mxu0
      %v1203 = vadd.f32 0.0, %v1202
      %1204 = vmatmul.bf16.gmra.mxu0 %v909
      %v1205 = vpop.f32.mrf.mxu0
      %v1206 = vadd.f32 0.0, %v1205
      %v1207 = vpop.f32.mrf.mxu0
      %v1208 = vadd.f32 0.0, %v1207
      %1209 = vmatmul.bf16.gmra.mxu0 %v912
      %v1210 = vpop.f32.mrf.mxu0
      %v1211 = vadd.f32 0.0, %v1210
      %v1212 = vpop.f32.mrf.mxu0
      %v1213 = vadd.f32 0.0, %v1212
      %1214 = vmatmul.bf16.gmra.mxu0 %v915
      %v1215 = vpop.f32.mrf.mxu0
      %v1216 = vadd.f32 0.0, %v1215
      %v1217 = vpop.f32.mrf.mxu0
      %v1218 = vadd.f32 0.0, %v1217
      %1219 = vmatmul.bf16.gmra.mxu0 %v918
      %v1220 = vpop.f32.mrf.mxu0
      %v1221 = vadd.f32 0.0, %v1220
      %v1222 = vpop.f32.mrf.mxu0
      %v1223 = vadd.f32 0.0, %v1222
      %1224 = vmatmul.bf16.gmra.mxu0 %v921
      %v1225 = vpop.f32.mrf.mxu0
      %v1226 = vadd.f32 0.0, %v1225
      %v1227 = vpop.f32.mrf.mxu0
      %v1228 = vadd.f32 0.0, %v1227
      %1229 = vmatmul.bf16.gmra.mxu0 %v924
      %v1230 = vpop.f32.mrf.mxu0
      %v1231 = vadd.f32 0.0, %v1230
      %v1232 = vpop.f32.mrf.mxu0
      %v1233 = vadd.f32 0.0, %v1232
      %1234 = vmatmul.bf16.gmra.mxu0 %v927
      %v1235 = vpop.f32.mrf.mxu0
      %v1236 = vadd.f32 0.0, %v1235
      %v1237 = vpop.f32.mrf.mxu0
      %v1238 = vadd.f32 0.0, %v1237
      %1239 = vmatmul.bf16.gmra.mxu0 %v930
      %v1240 = vpop.f32.mrf.mxu0
      %v1241 = vadd.f32 0.0, %v1240
      %v1242 = vpop.f32.mrf.mxu0
      %v1243 = vadd.f32 0.0, %v1242
      %1244 = vmatmul.bf16.gmra.mxu0 %v933
      %v1245 = vpop.f32.mrf.mxu0
      %v1246 = vadd.f32 0.0, %v1245
      %v1247 = vpop.f32.mrf.mxu0
      %v1248 = vadd.f32 0.0, %v1247
      %1249 = vmatmul.bf16.gmra.mxu0 %v936
      %v1250 = vpop.f32.mrf.mxu0
      %v1251 = vadd.f32 0.0, %v1250
      %v1252 = vpop.f32.mrf.mxu0
      %v1253 = vadd.f32 0.0, %v1252
      %1254 = vmatmul.bf16.gmra.mxu0 %v939
      %v1255 = vpop.f32.mrf.mxu0
      %v1256 = vadd.f32 0.0, %v1255
      %v1257 = vpop.f32.mrf.mxu0
      %v1258 = vadd.f32 0.0, %v1257
      %1259 = vmatmul.bf16.gmra.mxu0 %v942
      %v1260 = vpop.f32.mrf.mxu0
      %v1261 = vadd.f32 0.0, %v1260
      %v1262 = vpop.f32.mrf.mxu0
      %v1263 = vadd.f32 0.0, %v1262
      %1264 = vmatmul.bf16.gmra.mxu0 %v945
      %v1265 = vpop.f32.mrf.mxu0
      %v1266 = vadd.f32 0.0, %v1265
      %v1267 = vpop.f32.mrf.mxu0
      %v1268 = vadd.f32 0.0, %v1267
      %1269 = vmatmul.bf16.gmra.mxu0 %v1181
      %v1270 = vpop.f32.mrf.mxu0
      %v1271 = vadd.f32 0.0, %v1270
      %v1272 = vpop.f32.mrf.mxu0
      %v1273 = vadd.f32 0.0, %v1272
      %1274 = vdwg.mxu0
      %v1275 = vadd.f32 %v1076, %v1196
      %v1276 = vadd.f32 %v1078, %v1198
      %v1277 = vadd.f32 %v1081, %v1201
      %v1278 = vadd.f32 %v1083, %v1203
      %v1279 = vadd.f32 %v1086, %v1206
      %v1280 = vadd.f32 %v1088, %v1208
      %v1281 = vadd.f32 %v1091, %v1211
      %v1282 = vadd.f32 %v1093, %v1213
      %v1283 = vadd.f32 %v1096, %v1216
      %v1284 = vadd.f32 %v1098, %v1218
      %v1285 = vadd.f32 %v1101, %v1221
      %v1286 = vadd.f32 %v1103, %v1223
      %v1287 = vadd.f32 %v1106, %v1226
      %v1288 = vadd.f32 %v1108, %v1228
      %v1289 = vadd.f32 %v1111, %v1231
      %v1290 = vadd.f32 %v1113, %v1233
      %v1291 = vadd.f32 %v1116, %v1236
      %v1292 = vadd.f32 %v1118, %v1238
      %v1293 = vadd.f32 %v1121, %v1241
      %v1294 = vadd.f32 %v1123, %v1243
      %v1295 = vadd.f32 %v1126, %v1246
      %v1296 = vadd.f32 %v1128, %v1248
      %v1297 = vadd.f32 %v1131, %v1251
      %v1298 = vadd.f32 %v1133, %v1253
      %v1299 = vadd.f32 %v1136, %v1256
      %v1300 = vadd.f32 %v1138, %v1258
      %v1301 = vadd.f32 %v1141, %v1261
      %v1302 = vadd.f32 %v1143, %v1263
      %v1303 = vadd.f32 %v1146, %v1266
      %v1304 = vadd.f32 %v1148, %v1268
      %v1305 = vadd.f32 %v1151, %v1271
      %v1306 = vadd.f32 %v1153, %v1273
      %vm1307 = vsmask.f32 3328
      %vm1308 = vsmask.f32 7440
      %vm1309 = vmor %vm1307, %vm1308
      %v1311 = vshrl.u32 %v733, 16
      %v1313 = vrot.slane %v1311, 4
      %v1314 = vshll.u32 %v733, 16
      %v1316 = vrot.slane %v1314, 5
      %v1317 = vor.u32 %v1313, %v1316
      %v1318 = vrot.slane %v1317, 4
      %v1320 = vshll.u32 %v734, 16
      %v1322 = vrot.slane %v1320, 5
      %v1323 = vsel %vm1309, %v1318, %v1322
      %v1324 = vshrl.u32 %v734, 16
      %v1326 = vrot.slane %v1324, 4
      %v1327 = vor.u32 %v1326, %v1322
      %v1328 = vrot.slane %v1327, 4
      %v1330 = vshll.u32 %v735, 16
      %v1332 = vrot.slane %v1330, 5
      %v1333 = vsel %vm1309, %v1328, %v1332
      %v1335 = vshrl.u32 %v736, 16
      %v1337 = vrot.slane %v1335, 4
      %v1338 = vshll.u32 %v736, 16
      %v1340 = vrot.slane %v1338, 5
      %v1341 = vor.u32 %v1337, %v1340
      %v1342 = vrot.slane %v1341, 4
      %v1344 = vshll.u32 %v737, 16
      %v1346 = vrot.slane %v1344, 5
      %v1347 = vsel %vm1309, %v1342, %v1346
      %v1348 = vshrl.u32 %v737, 16
      %v1350 = vrot.slane %v1348, 4
      %v1351 = vor.u32 %v1350, %v1346
      %v1352 = vrot.slane %v1351, 4
      %v1354 = vshll.u32 %v738, 16
      %v1356 = vrot.slane %v1354, 5
      %v1357 = vsel %vm1309, %v1352, %v1356
      %v1359 = vshrl.u32 %v739, 16
      %v1361 = vrot.slane %v1359, 4
      %v1362 = vshll.u32 %v739, 16
      %v1364 = vrot.slane %v1362, 5
      %v1365 = vor.u32 %v1361, %v1364
      %v1366 = vrot.slane %v1365, 4
      %v1368 = vshll.u32 %v740, 16
      %v1370 = vrot.slane %v1368, 5
      %v1371 = vsel %vm1309, %v1366, %v1370
      %v1372 = vshrl.u32 %v740, 16
      %v1374 = vrot.slane %v1372, 4
      %v1375 = vor.u32 %v1374, %v1370
      %v1376 = vrot.slane %v1375, 4
      %v1378 = vshll.u32 %v741, 16
      %v1380 = vrot.slane %v1378, 5
      %v1381 = vsel %vm1309, %v1376, %v1380
      %v1383 = vshrl.u32 %v742, 16
      %v1385 = vrot.slane %v1383, 4
      %v1386 = vshll.u32 %v742, 16
      %v1388 = vrot.slane %v1386, 5
      %v1389 = vor.u32 %v1385, %v1388
      %v1390 = vrot.slane %v1389, 4
      %v1392 = vshll.u32 %v743, 16
      %v1394 = vrot.slane %v1392, 5
      %v1395 = vsel %vm1309, %v1390, %v1394
      %v1396 = vshrl.u32 %v743, 16
      %v1398 = vrot.slane %v1396, 4
      %v1399 = vor.u32 %v1398, %v1394
      %v1400 = vrot.slane %v1399, 4
      %v1402 = vshll.u32 %v744, 16
      %v1404 = vrot.slane %v1402, 5
      %v1405 = vsel %vm1309, %v1400, %v1404
      %v1407 = vshrl.u32 %v745, 16
      %v1409 = vrot.slane %v1407, 4
      %v1410 = vshll.u32 %v745, 16
      %v1412 = vrot.slane %v1410, 5
      %v1413 = vor.u32 %v1409, %v1412
      %v1414 = vrot.slane %v1413, 4
      %v1416 = vshll.u32 %v746, 16
      %v1418 = vrot.slane %v1416, 5
      %v1419 = vsel %vm1309, %v1414, %v1418
      %v1420 = vshrl.u32 %v746, 16
      %v1422 = vrot.slane %v1420, 4
      %v1423 = vor.u32 %v1422, %v1418
      %v1424 = vrot.slane %v1423, 4
      %v1426 = vshll.u32 %v747, 16
      %v1428 = vrot.slane %v1426, 5
      %v1429 = vsel %vm1309, %v1424, %v1428
      %v1431 = vshrl.u32 %v748, 16
      %v1433 = vrot.slane %v1431, 4
      %v1434 = vshll.u32 %v748, 16
      %v1436 = vrot.slane %v1434, 5
      %v1437 = vor.u32 %v1433, %v1436
      %v1438 = vrot.slane %v1437, 4
      %v1440 = vshll.u32 %v749, 16
      %v1442 = vrot.slane %v1440, 5
      %v1443 = vsel %vm1309, %v1438, %v1442
      %v1444 = vshrl.u32 %v749, 16
      %v1446 = vrot.slane %v1444, 4
      %v1447 = vor.u32 %v1446, %v1442
      %v1448 = vrot.slane %v1447, 4
      %v1450 = vshll.u32 %v750, 16
      %v1452 = vrot.slane %v1450, 5
      %v1453 = vsel %vm1309, %v1448, %v1452
      %v1455 = vshrl.u32 %v751, 16
      %v1457 = vrot.slane %v1455, 4
      %v1458 = vshll.u32 %v751, 16
      %v1460 = vrot.slane %v1458, 5
      %v1461 = vor.u32 %v1457, %v1460
      %v1462 = vrot.slane %v1461, 4
      %v1464 = vshll.u32 %v752, 16
      %v1466 = vrot.slane %v1464, 5
      %v1467 = vsel %vm1309, %v1462, %v1466
      %v1468 = vshrl.u32 %v752, 16
      %v1470 = vrot.slane %v1468, 4
      %v1471 = vor.u32 %v1470, %v1466
      %v1472 = vrot.slane %v1471, 4
      %v1474 = vshll.u32 %v753, 16
      %v1476 = vrot.slane %v1474, 5
      %v1477 = vsel %vm1309, %v1472, %v1476
      %v1479 = vshrl.u32 %v754, 16
      %v1481 = vrot.slane %v1479, 4
      %v1482 = vshll.u32 %v754, 16
      %v1484 = vrot.slane %v1482, 5
      %v1485 = vor.u32 %v1481, %v1484
      %v1486 = vrot.slane %v1485, 4
      %v1488 = vshll.u32 %v755, 16
      %v1490 = vrot.slane %v1488, 5
      %v1491 = vsel %vm1309, %v1486, %v1490
      %v1492 = vshrl.u32 %v755, 16
      %v1494 = vrot.slane %v1492, 4
      %v1495 = vor.u32 %v1494, %v1490
      %v1496 = vrot.slane %v1495, 4
      %v1498 = vshll.u32 %v756, 16
      %v1500 = vrot.slane %v1498, 5
      %v1501 = vsel %vm1309, %v1496, %v1500
      %v1503 = vshrl.u32 %v757, 16
      %v1505 = vrot.slane %v1503, 4
      %v1506 = vshll.u32 %v757, 16
      %v1508 = vrot.slane %v1506, 5
      %v1509 = vor.u32 %v1505, %v1508
      %v1510 = vrot.slane %v1509, 4
      %v1512 = vshll.u32 %v758, 16
      %v1514 = vrot.slane %v1512, 5
      %v1515 = vsel %vm1309, %v1510, %v1514
      %v1516 = vshrl.u32 %v758, 16
      %v1518 = vrot.slane %v1516, 4
      %v1519 = vor.u32 %v1518, %v1514
      %v1520 = vrot.slane %v1519, 4
      %v1522 = vshll.u32 %v759, 16
      %v1524 = vrot.slane %v1522, 5
      %v1525 = vsel %vm1309, %v1520, %v1524
      %v1527 = vshrl.u32 %v760, 16
      %v1529 = vrot.slane %v1527, 4
      %v1530 = vshll.u32 %v760, 16
      %v1532 = vrot.slane %v1530, 5
      %v1533 = vor.u32 %v1529, %v1532
      %v1534 = vrot.slane %v1533, 4
      %v1536 = vshll.u32 %v761, 16
      %v1538 = vrot.slane %v1536, 5
      %v1539 = vsel %vm1309, %v1534, %v1538
      %v1540 = vshrl.u32 %v761, 16
      %v1542 = vrot.slane %v1540, 4
      %v1543 = vor.u32 %v1542, %v1538
      %v1544 = vrot.slane %v1543, 4
      %v1546 = vshll.u32 %v762, 16
      %v1548 = vrot.slane %v1546, 5
      %v1549 = vsel %vm1309, %v1544, %v1548
      %v1551 = vshrl.u32 %v763, 16
      %v1553 = vrot.slane %v1551, 4
      %v1554 = vshll.u32 %v763, 16
      %v1556 = vrot.slane %v1554, 5
      %v1557 = vor.u32 %v1553, %v1556
      %v1558 = vrot.slane %v1557, 4
      %v1560 = vshll.u32 %v764, 16
      %v1562 = vrot.slane %v1560, 5
      %v1563 = vsel %vm1309, %v1558, %v1562
      %v1564 = vshrl.u32 %v764, 16
      %v1566 = vrot.slane %v1564, 4
      %v1567 = vor.u32 %v1566, %v1562
      %v1568 = vrot.slane %v1567, 4
      %v1570 = vshll.u32 %v765, 16
      %v1572 = vrot.slane %v1570, 5
      %v1573 = vsel %vm1309, %v1568, %v1572
      %v1575 = vshrl.u32 %v766, 16
      %v1577 = vrot.slane %v1575, 4
      %v1578 = vshll.u32 %v766, 16
      %v1580 = vrot.slane %v1578, 5
      %v1581 = vor.u32 %v1577, %v1580
      %v1582 = vrot.slane %v1581, 4
      %v1584 = vshll.u32 %v767, 16
      %v1586 = vrot.slane %v1584, 5
      %v1587 = vsel %vm1309, %v1582, %v1586
      %v1588 = vshrl.u32 %v767, 16
      %v1590 = vrot.slane %v1588, 4
      %v1591 = vor.u32 %v1590, %v1586
      %v1592 = vrot.slane %v1591, 4
      %v1594 = vshll.u32 %v768, 16
      %v1596 = vrot.slane %v1594, 5
      %v1597 = vsel %vm1309, %v1592, %v1596
      %v1599 = vshrl.u32 %v769, 16
      %v1601 = vrot.slane %v1599, 4
      %v1602 = vshll.u32 %v769, 16
      %v1604 = vrot.slane %v1602, 5
      %v1605 = vor.u32 %v1601, %v1604
      %v1606 = vrot.slane %v1605, 4
      %v1608 = vshll.u32 %v770, 16
      %v1610 = vrot.slane %v1608, 5
      %v1611 = vsel %vm1309, %v1606, %v1610
      %v1612 = vshrl.u32 %v770, 16
      %v1614 = vrot.slane %v1612, 4
      %v1615 = vor.u32 %v1614, %v1610
      %v1616 = vrot.slane %v1615, 4
      %v1618 = vshll.u32 %v771, 16
      %v1620 = vrot.slane %v1618, 5
      %v1621 = vsel %vm1309, %v1616, %v1620
      %v1623 = vshrl.u32 %v772, 16
      %v1625 = vrot.slane %v1623, 4
      %v1626 = vshll.u32 %v772, 16
      %v1628 = vrot.slane %v1626, 5
      %v1629 = vor.u32 %v1625, %v1628
      %v1630 = vrot.slane %v1629, 4
      %v1632 = vshll.u32 %v773, 16
      %v1634 = vrot.slane %v1632, 5
      %v1635 = vsel %vm1309, %v1630, %v1634
      %v1636 = vshrl.u32 %v773, 16
      %v1638 = vrot.slane %v1636, 4
      %v1639 = vor.u32 %v1638, %v1634
      %v1640 = vrot.slane %v1639, 4
      %v1642 = vshll.u32 %v774, 16
      %v1644 = vrot.slane %v1642, 5
      %v1645 = vsel %vm1309, %v1640, %v1644
      %v1647 = vshrl.u32 %v775, 16
      %v1649 = vrot.slane %v1647, 4
      %v1650 = vshll.u32 %v775, 16
      %v1652 = vrot.slane %v1650, 5
      %v1653 = vor.u32 %v1649, %v1652
      %v1654 = vrot.slane %v1653, 4
      %v1656 = vshll.u32 %v776, 16
      %v1658 = vrot.slane %v1656, 5
      %v1659 = vsel %vm1309, %v1654, %v1658
      %v1660 = vshrl.u32 %v776, 16
      %v1662 = vrot.slane %v1660, 4
      %v1663 = vor.u32 %v1662, %v1658
      %v1664 = vrot.slane %v1663, 4
      %v1666 = vshll.u32 %v777, 16
      %v1668 = vrot.slane %v1666, 5
      %v1669 = vsel %vm1309, %v1664, %v1668
      %v1671 = vshrl.u32 %v778, 16
      %v1673 = vrot.slane %v1671, 4
      %v1674 = vshll.u32 %v778, 16
      %v1676 = vrot.slane %v1674, 5
      %v1677 = vor.u32 %v1673, %v1676
      %v1678 = vrot.slane %v1677, 4
      %v1680 = vshll.u32 %v779, 16
      %v1682 = vrot.slane %v1680, 5
      %v1683 = vsel %vm1309, %v1678, %v1682
      %v1684 = vshrl.u32 %v779, 16
      %v1686 = vrot.slane %v1684, 4
      %v1687 = vor.u32 %v1686, %v1682
      %v1688 = vrot.slane %v1687, 4
      %v1690 = vshll.u32 %v780, 16
      %v1692 = vrot.slane %v1690, 5
      %v1693 = vsel %vm1309, %v1688, %v1692
      %v1695 = vshrl.u32 %v781, 16
      %v1697 = vrot.slane %v1695, 4
      %v1698 = vshll.u32 %v781, 16
      %v1700 = vrot.slane %v1698, 5
      %v1701 = vor.u32 %v1697, %v1700
      %v1702 = vrot.slane %v1701, 4
      %v1704 = vshll.u32 %v782, 16
      %v1706 = vrot.slane %v1704, 5
      %v1707 = vsel %vm1309, %v1702, %v1706
      %v1708 = vshrl.u32 %v782, 16
      %v1710 = vrot.slane %v1708, 4
      %v1711 = vor.u32 %v1710, %v1706
      %v1712 = vrot.slane %v1711, 4
      %v1714 = vshll.u32 %v783, 16
      %v1716 = vrot.slane %v1714, 5
      %v1717 = vsel %vm1309, %v1712, %v1716
      %v1719 = vshrl.u32 %v784, 16
      %v1721 = vrot.slane %v1719, 4
      %v1722 = vshll.u32 %v784, 16
      %v1724 = vrot.slane %v1722, 5
      %v1725 = vor.u32 %v1721, %v1724
      %v1726 = vrot.slane %v1725, 4
      %v1728 = vshll.u32 %v785, 16
      %v1730 = vrot.slane %v1728, 5
      %v1731 = vsel %vm1309, %v1726, %v1730
      %v1732 = vshrl.u32 %v785, 16
      %v1734 = vrot.slane %v1732, 4
      %v1735 = vor.u32 %v1734, %v1730
      %v1736 = vrot.slane %v1735, 4
      %v1738 = vshll.u32 %v786, 16
      %v1740 = vrot.slane %v1738, 5
      %v1741 = vsel %vm1309, %v1736, %v1740
      %v1742 = vld [vmem:[%s3 + $0x10] sm:$0xc]
      %v1743 = vld [vmem:[%s3 + $0x14] sm:$0xf]
      %v1744 = vld [vmem:[%s3 + $0x18] sm:$0xf]
      %v1745 = vld [vmem:[%s3 + $0x1c] sm:$0xf]
      %v1746 = vld [vmem:[%s3 + $0x20] sm:$0xf]
      %v1747 = vunpack.c.l.b16 %v1323
      %v1748 = vunpack.c.l.b16 %v1333
      %v1749 = vunpack.c.l.b16 %v1347
      %v1750 = vunpack.c.l.b16 %v1357
      %v1751 = vunpack.c.l.b16 %v1371
      %v1752 = vunpack.c.l.b16 %v1381
      %v1753 = vunpack.c.l.b16 %v1395
      %v1754 = vunpack.c.l.b16 %v1405
      %v1755 = vunpack.c.l.b16 %v1419
      %v1756 = vunpack.c.l.b16 %v1429
      %v1757 = vunpack.c.l.b16 %v1443
      %v1758 = vunpack.c.l.b16 %v1453
      %v1759 = vunpack.c.l.b16 %v1467
      %v1760 = vunpack.c.l.b16 %v1477
      %v1761 = vunpack.c.l.b16 %v1491
      %v1762 = vunpack.c.l.b16 %v1501
      %v1763 = vunpack.c.l.b16 %v1515
      %v1764 = vunpack.c.l.b16 %v1525
      %v1765 = vunpack.c.l.b16 %v1539
      %v1766 = vunpack.c.l.b16 %v1549
      %v1767 = vunpack.c.l.b16 %v1563
      %v1768 = vunpack.c.l.b16 %v1573
      %v1769 = vunpack.c.l.b16 %v1587
      %v1770 = vunpack.c.l.b16 %v1597
      %v1771 = vunpack.c.l.b16 %v1611
      %v1772 = vunpack.c.l.b16 %v1621
      %v1773 = vunpack.c.l.b16 %v1635
      %v1774 = vunpack.c.l.b16 %v1645
      %v1775 = vunpack.c.l.b16 %v1659
      %v1776 = vunpack.c.l.b16 %v1669
      %v1777 = vunpack.c.l.b16 %v1683
      %v1778 = vunpack.c.l.b16 %v1693
      %v1779 = vpack.c.b16 %v1748, %v1747
      %v1780 = vpack.c.b16 %v1750, %v1749
      %v1781 = vpack.c.b16 %v1752, %v1751
      %v1782 = vpack.c.b16 %v1754, %v1753
      %v1783 = vpack.c.b16 %v1756, %v1755
      %v1784 = vpack.c.b16 %v1758, %v1757
      %v1785 = vpack.c.b16 %v1760, %v1759
      %v1786 = vpack.c.b16 %v1762, %v1761
      %v1787 = vpack.c.b16 %v1764, %v1763
      %v1788 = vpack.c.b16 %v1766, %v1765
      %v1789 = vpack.c.b16 %v1768, %v1767
      %v1790 = vpack.c.b16 %v1770, %v1769
      %v1791 = vpack.c.b16 %v1772, %v1771
      %v1792 = vpack.c.b16 %v1774, %v1773
      %v1793 = vpack.c.b16 %v1776, %v1775
      %v1794 = vpack.c.b16 %v1778, %v1777
      %v1800 = vunpack.c.l.b16 %v1742
      %v1801 = vunpack.c.l.b16 %v1743
      %v1802 = vunpack.c.l.b16 %v1744
      %v1803 = vunpack.c.l.b16 %v1745
      %v1804 = vunpack.c.l.b16 %v1746
      %v1805 = vpack.c.b16 %v1801, %v1800
      %v1806 = vpack.c.b16 %v1803, %v1802
      %v1807 = vpack.c.b16 %v1804, %v1804
      %v1808 = vrot.slane %v1805, 2
      %v1809 = vrot.slane %v1806, 2
      %v1810 = vsel %vm890, %v1808, %v1809
      %v1811 = vrot.slane %v1807, 2
      %v1812 = vsel %vm890, %v1809, %v1811
      %v1816 = vsel %vm898, %v1779, 0
      %v1819 = vsel %vm898, %v1780, 0
      %v1822 = vsel %vm898, %v1781, 0
      %v1825 = vsel %vm898, %v1782, 0
      %v1828 = vsel %vm898, %v1783, 0
      %v1831 = vsel %vm898, %v1784, 0
      %v1834 = vsel %vm898, %v1785, 0
      %v1837 = vsel %vm898, %v1786, 0
      %v1840 = vsel %vm898, %v1787, 0
      %v1843 = vsel %vm898, %v1788, 0
      %v1846 = vsel %vm898, %v1789, 0
      %v1849 = vsel %vm898, %v1790, 0
      %v1852 = vsel %vm898, %v1791, 0
      %v1855 = vsel %vm898, %v1792, 0
      %v1858 = vsel %vm898, %v1793, 0
      %v1861 = vsel %vm898, %v1794, 0
      %v1864 = vsel %vm947, %v1811, 0
      %1866 = vmatpush.bf16.msra.mxu0 0
      %1867 = vmatpush.bf16.msra.mxu0 0
      %1868 = vmatpush.bf16.msra.mxu0 0
      %1869 = vmatpush.bf16.msra.mxu0 0
      %1870 = vmatpush.bf16.msra.mxu0 0
      %1871 = vmatpush.bf16.msra.mxu0 %v1864
      %1872 = vmatpush.bf16.msra.mxu0 %v1812
      %1873 = vmatpush.bf16.msra.mxu0 %v1810
      %1874 = vmatmul.bf16.gmra.mxu0 %v1816
      %v1875 = vpop.f32.mrf.mxu0
      %v1876 = vadd.f32 0.0, %v1875
      %v1877 = vpop.f32.mrf.mxu0
      %v1878 = vadd.f32 0.0, %v1877
      %1879 = vmatmul.bf16.gmra.mxu0 %v1819
      %v1880 = vpop.f32.mrf.mxu0
      %v1881 = vadd.f32 0.0, %v1880
      %v1882 = vpop.f32.mrf.mxu0
      %v1883 = vadd.f32 0.0, %v1882
      %1884 = vmatmul.bf16.gmra.mxu0 %v1822
      %v1885 = vpop.f32.mrf.mxu0
      %v1886 = vadd.f32 0.0, %v1885
      %v1887 = vpop.f32.mrf.mxu0
      %v1888 = vadd.f32 0.0, %v1887
      %1889 = vmatmul.bf16.gmra.mxu0 %v1825
      %v1890 = vpop.f32.mrf.mxu0
      %v1891 = vadd.f32 0.0, %v1890
      %v1892 = vpop.f32.mrf.mxu0
      %v1893 = vadd.f32 0.0, %v1892
      %1894 = vmatmul.bf16.gmra.mxu0 %v1828
      %v1895 = vpop.f32.mrf.mxu0
      %v1896 = vadd.f32 0.0, %v1895
      %v1897 = vpop.f32.mrf.mxu0
      %v1898 = vadd.f32 0.0, %v1897
      %1899 = vmatmul.bf16.gmra.mxu0 %v1831
      %v1900 = vpop.f32.mrf.mxu0
      %v1901 = vadd.f32 0.0, %v1900
      %v1902 = vpop.f32.mrf.mxu0
      %v1903 = vadd.f32 0.0, %v1902
      %1904 = vmatmul.bf16.gmra.mxu0 %v1834
      %v1905 = vpop.f32.mrf.mxu0
      %v1906 = vadd.f32 0.0, %v1905
      %v1907 = vpop.f32.mrf.mxu0
      %v1908 = vadd.f32 0.0, %v1907
      %1909 = vmatmul.bf16.gmra.mxu0 %v1837
      %v1910 = vpop.f32.mrf.mxu0
      %v1911 = vadd.f32 0.0, %v1910
      %v1912 = vpop.f32.mrf.mxu0
      %v1913 = vadd.f32 0.0, %v1912
      %1914 = vmatmul.bf16.gmra.mxu0 %v1840
      %v1915 = vpop.f32.mrf.mxu0
      %v1916 = vadd.f32 0.0, %v1915
      %v1917 = vpop.f32.mrf.mxu0
      %v1918 = vadd.f32 0.0, %v1917
      %1919 = vmatmul.bf16.gmra.mxu0 %v1843
      %v1920 = vpop.f32.mrf.mxu0
      %v1921 = vadd.f32 0.0, %v1920
      %v1922 = vpop.f32.mrf.mxu0
      %v1923 = vadd.f32 0.0, %v1922
      %1924 = vmatmul.bf16.gmra.mxu0 %v1846
      %v1925 = vpop.f32.mrf.mxu0
      %v1926 = vadd.f32 0.0, %v1925
      %v1927 = vpop.f32.mrf.mxu0
      %v1928 = vadd.f32 0.0, %v1927
      %1929 = vmatmul.bf16.gmra.mxu0 %v1849
      %v1930 = vpop.f32.mrf.mxu0
      %v1931 = vadd.f32 0.0, %v1930
      %v1932 = vpop.f32.mrf.mxu0
      %v1933 = vadd.f32 0.0, %v1932
      %1934 = vmatmul.bf16.gmra.mxu0 %v1852
      %v1935 = vpop.f32.mrf.mxu0
      %v1936 = vadd.f32 0.0, %v1935
      %v1937 = vpop.f32.mrf.mxu0
      %v1938 = vadd.f32 0.0, %v1937
      %1939 = vmatmul.bf16.gmra.mxu0 %v1855
      %v1940 = vpop.f32.mrf.mxu0
      %v1941 = vadd.f32 0.0, %v1940
      %v1942 = vpop.f32.mrf.mxu0
      %v1943 = vadd.f32 0.0, %v1942
      %1944 = vmatmul.bf16.gmra.mxu0 %v1858
      %v1945 = vpop.f32.mrf.mxu0
      %v1946 = vadd.f32 0.0, %v1945
      %v1947 = vpop.f32.mrf.mxu0
      %v1948 = vadd.f32 0.0, %v1947
      %1949 = vmatmul.bf16.gmra.mxu0 %v1861
      %v1950 = vpop.f32.mrf.mxu0
      %v1951 = vadd.f32 0.0, %v1950
      %v1952 = vpop.f32.mrf.mxu0
      %v1953 = vadd.f32 0.0, %v1952
      %1954 = vdwg.mxu0
      %v1955 = vadd.f32 %v1275, %v1876
      %v1956 = vadd.f32 %v1276, %v1878
      %v1957 = vadd.f32 %v1277, %v1881
      %v1958 = vadd.f32 %v1278, %v1883
      %v1959 = vadd.f32 %v1279, %v1886
      %v1960 = vadd.f32 %v1280, %v1888
      %v1961 = vadd.f32 %v1281, %v1891
      %v1962 = vadd.f32 %v1282, %v1893
      %v1963 = vadd.f32 %v1283, %v1896
      %v1964 = vadd.f32 %v1284, %v1898
      %v1965 = vadd.f32 %v1285, %v1901
      %v1966 = vadd.f32 %v1286, %v1903
      %v1967 = vadd.f32 %v1287, %v1906
      %v1968 = vadd.f32 %v1288, %v1908
      %v1969 = vadd.f32 %v1289, %v1911
      %v1970 = vadd.f32 %v1290, %v1913
      %v1971 = vadd.f32 %v1291, %v1916
      %v1972 = vadd.f32 %v1292, %v1918
      %v1973 = vadd.f32 %v1293, %v1921
      %v1974 = vadd.f32 %v1294, %v1923
      %v1975 = vadd.f32 %v1295, %v1926
      %v1976 = vadd.f32 %v1296, %v1928
      %v1977 = vadd.f32 %v1297, %v1931
      %v1978 = vadd.f32 %v1298, %v1933
      %v1979 = vadd.f32 %v1299, %v1936
      %v1980 = vadd.f32 %v1300, %v1938
      %v1981 = vadd.f32 %v1301, %v1941
      %v1982 = vadd.f32 %v1302, %v1943
      %v1983 = vadd.f32 %v1303, %v1946
      %v1984 = vadd.f32 %v1304, %v1948
      %v1985 = vadd.f32 %v1305, %v1951
      %v1986 = vadd.f32 %v1306, %v1953
      %v1987 = vld [vmem:[%s3 + $0x48] sm:$0xf]
      %v1988 = vld [vmem:[%s3 + $0x4c] sm:$0xf]
      %v1989 = vld [vmem:[%s3 + $0x50] sm:$0xf]
      %v1990 = vld [vmem:[%s3 + $0x54] sm:$0xf]
      %v1991 = vld [vmem:[%s3 + $0x58] sm:$0x3]
      %v1992 = vunpack.c.l.b16 %v1707
      %v1993 = vunpack.c.l.b16 %v1717
      %v1994 = vpack.c.b16 %v1993, %v1992
      %v2000 = vunpack.c.l.b16 %v1987
      %v2001 = vunpack.c.l.b16 %v1988
      %v2002 = vunpack.c.l.b16 %v1989
      %v2003 = vunpack.c.l.b16 %v1990
      %v2004 = vunpack.c.l.b16 %v1991
      %v2005 = vpack.c.b16 %v2001, %v2000
      %v2006 = vpack.c.b16 %v2003, %v2002
      %v2007 = vpack.c.b16 %v2004, %v2004
      %v2011 = vsel %vm898, %v1994, 0
      %v2014 = vsel %vm947, %v2007, 0
      %2016 = vmatpush.bf16.msra.mxu0 0
      %2017 = vmatpush.bf16.msra.mxu0 0
      %2018 = vmatpush.bf16.msra.mxu0 0
      %2019 = vmatpush.bf16.msra.mxu0 0
      %2020 = vmatpush.bf16.msra.mxu0 0
      %2021 = vmatpush.bf16.msra.mxu0 %v2014
      %2022 = vmatpush.bf16.msra.mxu0 %v2006
      %2023 = vmatpush.bf16.msra.mxu0 %v2005
      %2024 = vmatmul.bf16.gmra.mxu0 %v1819
      %v2025 = vpop.f32.mrf.mxu0
      %v2026 = vadd.f32 0.0, %v2025
      %v2027 = vpop.f32.mrf.mxu0
      %v2028 = vadd.f32 0.0, %v2027
      %2029 = vmatmul.bf16.gmra.mxu0 %v1822
      %v2030 = vpop.f32.mrf.mxu0
      %v2031 = vadd.f32 0.0, %v2030
      %v2032 = vpop.f32.mrf.mxu0
      %v2033 = vadd.f32 0.0, %v2032
      %2034 = vmatmul.bf16.gmra.mxu0 %v1825
      %v2035 = vpop.f32.mrf.mxu0
      %v2036 = vadd.f32 0.0, %v2035
      %v2037 = vpop.f32.mrf.mxu0
      %v2038 = vadd.f32 0.0, %v2037
      %2039 = vmatmul.bf16.gmra.mxu0 %v1828
      %v2040 = vpop.f32.mrf.mxu0
      %v2041 = vadd.f32 0.0, %v2040
      %v2042 = vpop.f32.mrf.mxu0
      %v2043 = vadd.f32 0.0, %v2042
      %2044 = vmatmul.bf16.gmra.mxu0 %v1831
      %v2045 = vpop.f32.mrf.mxu0
      %v2046 = vadd.f32 0.0, %v2045
      %v2047 = vpop.f32.mrf.mxu0
      %v2048 = vadd.f32 0.0, %v2047
      %2049 = vmatmul.bf16.gmra.mxu0 %v1834
      %v2050 = vpop.f32.mrf.mxu0
      %v2051 = vadd.f32 0.0, %v2050
      %v2052 = vpop.f32.mrf.mxu0
      %v2053 = vadd.f32 0.0, %v2052
      %2054 = vmatmul.bf16.gmra.mxu0 %v1837
      %v2055 = vpop.f32.mrf.mxu0
      %v2056 = vadd.f32 0.0, %v2055
      %v2057 = vpop.f32.mrf.mxu0
      %v2058 = vadd.f32 0.0, %v2057
      %2059 = vmatmul.bf16.gmra.mxu0 %v1840
      %v2060 = vpop.f32.mrf.mxu0
      %v2061 = vadd.f32 0.0, %v2060
      %v2062 = vpop.f32.mrf.mxu0
      %v2063 = vadd.f32 0.0, %v2062
      %2064 = vmatmul.bf16.gmra.mxu0 %v1843
      %v2065 = vpop.f32.mrf.mxu0
      %v2066 = vadd.f32 0.0, %v2065
      %v2067 = vpop.f32.mrf.mxu0
      %v2068 = vadd.f32 0.0, %v2067
      %2069 = vmatmul.bf16.gmra.mxu0 %v1846
      %v2070 = vpop.f32.mrf.mxu0
      %v2071 = vadd.f32 0.0, %v2070
      %v2072 = vpop.f32.mrf.mxu0
      %v2073 = vadd.f32 0.0, %v2072
      %2074 = vmatmul.bf16.gmra.mxu0 %v1849
      %v2075 = vpop.f32.mrf.mxu0
      %v2076 = vadd.f32 0.0, %v2075
      %v2077 = vpop.f32.mrf.mxu0
      %v2078 = vadd.f32 0.0, %v2077
      %2079 = vmatmul.bf16.gmra.mxu0 %v1852
      %v2080 = vpop.f32.mrf.mxu0
      %v2081 = vadd.f32 0.0, %v2080
      %v2082 = vpop.f32.mrf.mxu0
      %v2083 = vadd.f32 0.0, %v2082
      %2084 = vmatmul.bf16.gmra.mxu0 %v1855
      %v2085 = vpop.f32.mrf.mxu0
      %v2086 = vadd.f32 0.0, %v2085
      %v2087 = vpop.f32.mrf.mxu0
      %v2088 = vadd.f32 0.0, %v2087
      %2089 = vmatmul.bf16.gmra.mxu0 %v1858
      %v2090 = vpop.f32.mrf.mxu0
      %v2091 = vadd.f32 0.0, %v2090
      %v2092 = vpop.f32.mrf.mxu0
      %v2093 = vadd.f32 0.0, %v2092
      %2094 = vmatmul.bf16.gmra.mxu0 %v1861
      %v2095 = vpop.f32.mrf.mxu0
      %v2096 = vadd.f32 0.0, %v2095
      %v2097 = vpop.f32.mrf.mxu0
      %v2098 = vadd.f32 0.0, %v2097
      %2099 = vmatmul.bf16.gmra.mxu0 %v2011
      %v2100 = vpop.f32.mrf.mxu0
      %v2101 = vadd.f32 0.0, %v2100
      %v2102 = vpop.f32.mrf.mxu0
      %v2103 = vadd.f32 0.0, %v2102
      %2104 = vdwg.mxu0
      %v2105 = vadd.f32 %v1955, %v2026
      %v2106 = vadd.f32 %v1956, %v2028
      %v2107 = vadd.f32 %v1957, %v2031
      %v2108 = vadd.f32 %v1958, %v2033
      %v2109 = vadd.f32 %v1959, %v2036
      %v2110 = vadd.f32 %v1960, %v2038
      %v2111 = vadd.f32 %v1961, %v2041
      %v2112 = vadd.f32 %v1962, %v2043
      %v2113 = vadd.f32 %v1963, %v2046
      %v2114 = vadd.f32 %v1964, %v2048
      %v2115 = vadd.f32 %v1965, %v2051
      %v2116 = vadd.f32 %v1966, %v2053
      %v2117 = vadd.f32 %v1967, %v2056
      %v2118 = vadd.f32 %v1968, %v2058
      %v2119 = vadd.f32 %v1969, %v2061
      %v2120 = vadd.f32 %v1970, %v2063
      %v2121 = vadd.f32 %v1971, %v2066
      %v2122 = vadd.f32 %v1972, %v2068
      %v2123 = vadd.f32 %v1973, %v2071
      %v2124 = vadd.f32 %v1974, %v2073
      %v2125 = vadd.f32 %v1975, %v2076
      %v2126 = vadd.f32 %v1976, %v2078
      %v2127 = vadd.f32 %v1977, %v2081
      %v2128 = vadd.f32 %v1978, %v2083
      %v2129 = vadd.f32 %v1979, %v2086
      %v2130 = vadd.f32 %v1980, %v2088
      %v2131 = vadd.f32 %v1981, %v2091
      %v2132 = vadd.f32 %v1982, %v2093
      %v2133 = vadd.f32 %v1983, %v2096
      %v2134 = vadd.f32 %v1984, %v2098
      %v2135 = vadd.f32 %v1985, %v2101
      %v2136 = vadd.f32 %v1986, %v2103
      %v2137 = vld [vmem:[%s3 + $0x7c] sm:$0xc]
      %v2138 = vld [vmem:[%s3 + $0x80] sm:$0xf]
      %v2139 = vld [vmem:[%s3 + $0x84] sm:$0xf]
      %v2140 = vld [vmem:[%s3 + $0x88] sm:$0xf]
      %v2141 = vld [vmem:[%s3 + $0x8c] sm:$0xf]
      %v2142 = vunpack.c.l.b16 %v1731
      %v2143 = vunpack.c.l.b16 %v1741
      %v2144 = vpack.c.b16 %v2143, %v2142
      %v2150 = vunpack.c.l.b16 %v2137
      %v2151 = vunpack.c.l.b16 %v2138
      %v2152 = vunpack.c.l.b16 %v2139
      %v2153 = vunpack.c.l.b16 %v2140
      %v2154 = vunpack.c.l.b16 %v2141
      %v2155 = vpack.c.b16 %v2151, %v2150
      %v2156 = vpack.c.b16 %v2153, %v2152
      %v2157 = vpack.c.b16 %v2154, %v2154
      %v2158 = vrot.slane %v2155, 2
      %v2159 = vrot.slane %v2156, 2
      %v2160 = vsel %vm890, %v2158, %v2159
      %v2161 = vrot.slane %v2157, 2
      %v2162 = vsel %vm890, %v2159, %v2161
      %v2166 = vsel %vm898, %v2144, 0
      %v2169 = vsel %vm947, %v2161, 0
      %2171 = vmatpush.bf16.msra.mxu0 0
      %2172 = vmatpush.bf16.msra.mxu0 0
      %2173 = vmatpush.bf16.msra.mxu0 0
      %2174 = vmatpush.bf16.msra.mxu0 0
      %2175 = vmatpush.bf16.msra.mxu0 0
      %2176 = vmatpush.bf16.msra.mxu0 %v2169
      %2177 = vmatpush.bf16.msra.mxu0 %v2162
      %2178 = vmatpush.bf16.msra.mxu0 %v2160
      %2179 = vmatmul.bf16.gmra.mxu0 %v1822
      %v2180 = vpop.f32.mrf.mxu0
      %v2181 = vadd.f32 0.0, %v2180
      %v2182 = vpop.f32.mrf.mxu0
      %v2183 = vadd.f32 0.0, %v2182
      %2184 = vmatmul.bf16.gmra.mxu0 %v1825
      %v2185 = vpop.f32.mrf.mxu0
      %v2186 = vadd.f32 0.0, %v2185
      %v2187 = vpop.f32.mrf.mxu0
      %v2188 = vadd.f32 0.0, %v2187
      %2189 = vmatmul.bf16.gmra.mxu0 %v1828
      %v2190 = vpop.f32.mrf.mxu0
      %v2191 = vadd.f32 0.0, %v2190
      %v2192 = vpop.f32.mrf.mxu0
      %v2193 = vadd.f32 0.0, %v2192
      %2194 = vmatmul.bf16.gmra.mxu0 %v1831
      %v2195 = vpop.f32.mrf.mxu0
      %v2196 = vadd.f32 0.0, %v2195
      %v2197 = vpop.f32.mrf.mxu0
      %v2198 = vadd.f32 0.0, %v2197
      %2199 = vmatmul.bf16.gmra.mxu0 %v1834
      %v2200 = vpop.f32.mrf.mxu0
      %v2201 = vadd.f32 0.0, %v2200
      %v2202 = vpop.f32.mrf.mxu0
      %v2203 = vadd.f32 0.0, %v2202
      %2204 = vmatmul.bf16.gmra.mxu0 %v1837
      %v2205 = vpop.f32.mrf.mxu0
      %v2206 = vadd.f32 0.0, %v2205
      %v2207 = vpop.f32.mrf.mxu0
      %v2208 = vadd.f32 0.0, %v2207
      %2209 = vmatmul.bf16.gmra.mxu0 %v1840
      %v2210 = vpop.f32.mrf.mxu0
      %v2211 = vadd.f32 0.0, %v2210
      %v2212 = vpop.f32.mrf.mxu0
      %v2213 = vadd.f32 0.0, %v2212
      %2214 = vmatmul.bf16.gmra.mxu0 %v1843
      %v2215 = vpop.f32.mrf.mxu0
      %v2216 = vadd.f32 0.0, %v2215
      %v2217 = vpop.f32.mrf.mxu0
      %v2218 = vadd.f32 0.0, %v2217
      %2219 = vmatmul.bf16.gmra.mxu0 %v1846
      %v2220 = vpop.f32.mrf.mxu0
      %v2221 = vadd.f32 0.0, %v2220
      %v2222 = vpop.f32.mrf.mxu0
      %v2223 = vadd.f32 0.0, %v2222
      %2224 = vmatmul.bf16.gmra.mxu0 %v1849
      %v2225 = vpop.f32.mrf.mxu0
      %v2226 = vadd.f32 0.0, %v2225
      %v2227 = vpop.f32.mrf.mxu0
      %v2228 = vadd.f32 0.0, %v2227
      %2229 = vmatmul.bf16.gmra.mxu0 %v1852
      %v2230 = vpop.f32.mrf.mxu0
      %v2231 = vadd.f32 0.0, %v2230
      %v2232 = vpop.f32.mrf.mxu0
      %v2233 = vadd.f32 0.0, %v2232
      %2234 = vmatmul.bf16.gmra.mxu0 %v1855
      %v2235 = vpop.f32.mrf.mxu0
      %v2236 = vadd.f32 0.0, %v2235
      %v2237 = vpop.f32.mrf.mxu0
      %v2238 = vadd.f32 0.0, %v2237
      %2239 = vmatmul.bf16.gmra.mxu0 %v1858
      %v2240 = vpop.f32.mrf.mxu0
      %v2241 = vadd.f32 0.0, %v2240
      %v2242 = vpop.f32.mrf.mxu0
      %v2243 = vadd.f32 0.0, %v2242
      %2244 = vmatmul.bf16.gmra.mxu0 %v1861
      %v2245 = vpop.f32.mrf.mxu0
      %v2246 = vadd.f32 0.0, %v2245
      %v2247 = vpop.f32.mrf.mxu0
      %v2248 = vadd.f32 0.0, %v2247
      %2249 = vmatmul.bf16.gmra.mxu0 %v2011
      %v2250 = vpop.f32.mrf.mxu0
      %v2251 = vadd.f32 0.0, %v2250
      %v2252 = vpop.f32.mrf.mxu0
      %v2253 = vadd.f32 0.0, %v2252
      %2254 = vmatmul.bf16.gmra.mxu0 %v2166
      %v2255 = vpop.f32.mrf.mxu0
      %v2256 = vadd.f32 0.0, %v2255
      %v2257 = vpop.f32.mrf.mxu0
      %v2258 = vadd.f32 0.0, %v2257
      %2259 = vdwg.mxu0
      %v2260 = vadd.f32 %v2105, %v2181
      %v2261 = vadd.f32 %v2106, %v2183
      %v2262 = vadd.f32 %v2107, %v2186
      %v2263 = vadd.f32 %v2108, %v2188
      %v2264 = vadd.f32 %v2109, %v2191
      %v2265 = vadd.f32 %v2110, %v2193
      %v2266 = vadd.f32 %v2111, %v2196
      %v2267 = vadd.f32 %v2112, %v2198
      %v2268 = vadd.f32 %v2113, %v2201
      %v2269 = vadd.f32 %v2114, %v2203
      %v2270 = vadd.f32 %v2115, %v2206
      %v2271 = vadd.f32 %v2116, %v2208
      %v2272 = vadd.f32 %v2117, %v2211
      %v2273 = vadd.f32 %v2118, %v2213
      %v2274 = vadd.f32 %v2119, %v2216
      %v2275 = vadd.f32 %v2120, %v2218
      %v2276 = vadd.f32 %v2121, %v2221
      %v2277 = vadd.f32 %v2122, %v2223
      %v2278 = vadd.f32 %v2123, %v2226
      %v2279 = vadd.f32 %v2124, %v2228
      %v2280 = vadd.f32 %v2125, %v2231
      %v2281 = vadd.f32 %v2126, %v2233
      %v2282 = vadd.f32 %v2127, %v2236
      %v2283 = vadd.f32 %v2128, %v2238
      %v2284 = vadd.f32 %v2129, %v2241
      %v2285 = vadd.f32 %v2130, %v2243
      %v2286 = vadd.f32 %v2131, %v2246
      %v2287 = vadd.f32 %v2132, %v2248
      %v2288 = vadd.f32 %v2133, %v2251
      %v2289 = vadd.f32 %v2134, %v2253
      %v2290 = vadd.f32 %v2135, %v2256
      %v2291 = vadd.f32 %v2136, %v2258
      %vm2310 = vcmask 1042432
      %vm2311 = vcmask 1046532
      %vm2312 = vmor %vm2310, %vm2311
      %v2313 = vrot.slane %v733, 5
      %v2314 = vrot.slane %v2313, 4
      %v2315 = vrot.slane %v734, 5
      %v2316 = vsel %vm2312, %v2314, %v2315
      %v2317 = vrot.slane %v2315, 4
      %v2318 = vrot.slane %v735, 5
      %v2319 = vsel %vm2312, %v2317, %v2318
      %v2320 = vrot.slane %v736, 5
      %v2321 = vrot.slane %v2320, 4
      %v2322 = vrot.slane %v737, 5
      %v2323 = vsel %vm2312, %v2321, %v2322
      %v2324 = vrot.slane %v2322, 4
      %v2325 = vrot.slane %v738, 5
      %v2326 = vsel %vm2312, %v2324, %v2325
      %v2327 = vrot.slane %v739, 5
      %v2328 = vrot.slane %v2327, 4
      %v2329 = vrot.slane %v740, 5
      %v2330 = vsel %vm2312, %v2328, %v2329
      %v2331 = vrot.slane %v2329, 4
      %v2332 = vrot.slane %v741, 5
      %v2333 = vsel %vm2312, %v2331, %v2332
      %v2334 = vrot.slane %v742, 5
      %v2335 = vrot.slane %v2334, 4
      %v2336 = vrot.slane %v743, 5
      %v2337 = vsel %vm2312, %v2335, %v2336
      %v2338 = vrot.slane %v2336, 4
      %v2339 = vrot.slane %v744, 5
      %v2340 = vsel %vm2312, %v2338, %v2339
      %v2341 = vrot.slane %v745, 5
      %v2342 = vrot.slane %v2341, 4
      %v2343 = vrot.slane %v746, 5
      %v2344 = vsel %vm2312, %v2342, %v2343
      %v2345 = vrot.slane %v2343, 4
      %v2346 = vrot.slane %v747, 5
      %v2347 = vsel %vm2312, %v2345, %v2346
      %v2348 = vrot.slane %v748, 5
      %v2349 = vrot.slane %v2348, 4
      %v2350 = vrot.slane %v749, 5
      %v2351 = vsel %vm2312, %v2349, %v2350
      %v2352 = vrot.slane %v2350, 4
      %v2353 = vrot.slane %v750, 5
      %v2354 = vsel %vm2312, %v2352, %v2353
      %v2355 = vrot.slane %v751, 5
      %v2356 = vrot.slane %v2355, 4
      %v2357 = vrot.slane %v752, 5
      %v2358 = vsel %vm2312, %v2356, %v2357
      %v2359 = vrot.slane %v2357, 4
      %v2360 = vrot.slane %v753, 5
      %v2361 = vsel %vm2312, %v2359, %v2360
      %v2362 = vrot.slane %v754, 5
      %v2363 = vrot.slane %v2362, 4
      %v2364 = vrot.slane %v755, 5
      %v2365 = vsel %vm2312, %v2363, %v2364
      %v2366 = vrot.slane %v2364, 4
      %v2367 = vrot.slane %v756, 5
      %v2368 = vsel %vm2312, %v2366, %v2367
      %v2369 = vrot.slane %v757, 5
      %v2370 = vrot.slane %v2369, 4
      %v2371 = vrot.slane %v758, 5
      %v2372 = vsel %vm2312, %v2370, %v2371
      %v2373 = vrot.slane %v2371, 4
      %v2374 = vrot.slane %v759, 5
      %v2375 = vsel %vm2312, %v2373, %v2374
      %v2376 = vrot.slane %v760, 5
      %v2377 = vrot.slane %v2376, 4
      %v2378 = vrot.slane %v761, 5
      %v2379 = vsel %vm2312, %v2377, %v2378
      %v2380 = vrot.slane %v2378, 4
      %v2381 = vrot.slane %v762, 5
      %v2382 = vsel %vm2312, %v2380, %v2381
      %v2383 = vrot.slane %v763, 5
      %v2384 = vrot.slane %v2383, 4
      %v2385 = vrot.slane %v764, 5
      %v2386 = vsel %vm2312, %v2384, %v2385
      %v2387 = vrot.slane %v2385, 4
      %v2388 = vrot.slane %v765, 5
      %v2389 = vsel %vm2312, %v2387, %v2388
      %v2390 = vrot.slane %v766, 5
      %v2391 = vrot.slane %v2390, 4
      %v2392 = vrot.slane %v767, 5
      %v2393 = vsel %vm2312, %v2391, %v2392
      %v2394 = vrot.slane %v2392, 4
      %v2395 = vrot.slane %v768, 5
      %v2396 = vsel %vm2312, %v2394, %v2395
      %v2397 = vrot.slane %v769, 5
      %v2398 = vrot.slane %v2397, 4
      %v2399 = vrot.slane %v770, 5
      %v2400 = vsel %vm2312, %v2398, %v2399
      %v2401 = vrot.slane %v2399, 4
      %v2402 = vrot.slane %v771, 5
      %v2403 = vsel %vm2312, %v2401, %v2402
      %v2404 = vrot.slane %v772, 5
      %v2405 = vrot.slane %v2404, 4
      %v2406 = vrot.slane %v773, 5
      %v2407 = vsel %vm2312, %v2405, %v2406
      %v2408 = vrot.slane %v2406, 4
      %v2409 = vrot.slane %v774, 5
      %v2410 = vsel %vm2312, %v2408, %v2409
      %v2411 = vrot.slane %v775, 5
      %v2412 = vrot.slane %v2411, 4
      %v2413 = vrot.slane %v776, 5
      %v2414 = vsel %vm2312, %v2412, %v2413
      %v2415 = vrot.slane %v2413, 4
      %v2416 = vrot.slane %v777, 5
      %v2417 = vsel %vm2312, %v2415, %v2416
      %v2418 = vrot.slane %v778, 5
      %v2419 = vrot.slane %v2418, 4
      %v2420 = vrot.slane %v779, 5
      %v2421 = vsel %vm2312, %v2419, %v2420
      %v2422 = vrot.slane %v2420, 4
      %v2423 = vrot.slane %v780, 5
      %v2424 = vsel %vm2312, %v2422, %v2423
      %v2425 = vrot.slane %v781, 5
      %v2426 = vrot.slane %v2425, 4
      %v2427 = vrot.slane %v782, 5
      %v2428 = vsel %vm2312, %v2426, %v2427
      %v2429 = vrot.slane %v2427, 4
      %v2430 = vrot.slane %v783, 5
      %v2431 = vsel %vm2312, %v2429, %v2430
      %v2432 = vrot.slane %v784, 5
      %v2433 = vrot.slane %v2432, 4
      %v2434 = vrot.slane %v785, 5
      %v2435 = vsel %vm2312, %v2433, %v2434
      %v2436 = vrot.slane %v2434, 4
      %v2437 = vrot.slane %v786, 5
      %v2438 = vsel %vm2312, %v2436, %v2437
      %v2439 = vld [vmem:[%s3 + $0x24] sm:$0xf]
      %v2440 = vld [vmem:[%s3 + $0x28] sm:$0xf]
      %v2441 = vld [vmem:[%s3 + $0x2c] sm:$0xf]
      %v2442 = vld [vmem:[%s3 + $0x30] sm:$0xf]
      %v2443 = vld [vmem:[%s3 + $0x34] sm:$0x3]
      %v2444 = vunpack.c.l.b16 %v2316
      %v2445 = vunpack.c.l.b16 %v2319
      %v2446 = vunpack.c.l.b16 %v2323
      %v2447 = vunpack.c.l.b16 %v2326
      %v2448 = vunpack.c.l.b16 %v2330
      %v2449 = vunpack.c.l.b16 %v2333
      %v2450 = vunpack.c.l.b16 %v2337
      %v2451 = vunpack.c.l.b16 %v2340
      %v2452 = vunpack.c.l.b16 %v2344
      %v2453 = vunpack.c.l.b16 %v2347
      %v2454 = vunpack.c.l.b16 %v2351
      %v2455 = vunpack.c.l.b16 %v2354
      %v2456 = vunpack.c.l.b16 %v2358
      %v2457 = vunpack.c.l.b16 %v2361
      %v2458 = vunpack.c.l.b16 %v2365
      %v2459 = vunpack.c.l.b16 %v2368
      %v2460 = vunpack.c.l.b16 %v2372
      %v2461 = vunpack.c.l.b16 %v2375
      %v2462 = vunpack.c.l.b16 %v2379
      %v2463 = vunpack.c.l.b16 %v2382
      %v2464 = vunpack.c.l.b16 %v2386
      %v2465 = vunpack.c.l.b16 %v2389
      %v2466 = vunpack.c.l.b16 %v2393
      %v2467 = vunpack.c.l.b16 %v2396
      %v2468 = vunpack.c.l.b16 %v2400
      %v2469 = vunpack.c.l.b16 %v2403
      %v2470 = vunpack.c.l.b16 %v2407
      %v2471 = vunpack.c.l.b16 %v2410
      %v2472 = vunpack.c.l.b16 %v2414
      %v2473 = vunpack.c.l.b16 %v2417
      %v2474 = vunpack.c.l.b16 %v2421
      %v2475 = vunpack.c.l.b16 %v2424
      %v2476 = vpack.c.b16 %v2445, %v2444
      %v2477 = vpack.c.b16 %v2447, %v2446
      %v2478 = vpack.c.b16 %v2449, %v2448
      %v2479 = vpack.c.b16 %v2451, %v2450
      %v2480 = vpack.c.b16 %v2453, %v2452
      %v2481 = vpack.c.b16 %v2455, %v2454
      %v2482 = vpack.c.b16 %v2457, %v2456
      %v2483 = vpack.c.b16 %v2459, %v2458
      %v2484 = vpack.c.b16 %v2461, %v2460
      %v2485 = vpack.c.b16 %v2463, %v2462
      %v2486 = vpack.c.b16 %v2465, %v2464
      %v2487 = vpack.c.b16 %v2467, %v2466
      %v2488 = vpack.c.b16 %v2469, %v2468
      %v2489 = vpack.c.b16 %v2471, %v2470
      %v2490 = vpack.c.b16 %v2473, %v2472
      %v2491 = vpack.c.b16 %v2475, %v2474
      %v2497 = vunpack.c.l.b16 %v2439
      %v2498 = vunpack.c.l.b16 %v2440
      %v2499 = vunpack.c.l.b16 %v2441
      %v2500 = vunpack.c.l.b16 %v2442
      %v2501 = vunpack.c.l.b16 %v2443
      %v2502 = vpack.c.b16 %v2498, %v2497
      %v2503 = vpack.c.b16 %v2500, %v2499
      %v2504 = vpack.c.b16 %v2501, %v2501
      %v2508 = vsel %vm898, %v2476, 0
      %v2511 = vsel %vm898, %v2477, 0
      %v2514 = vsel %vm898, %v2478, 0
      %v2517 = vsel %vm898, %v2479, 0
      %v2520 = vsel %vm898, %v2480, 0
      %v2523 = vsel %vm898, %v2481, 0
      %v2526 = vsel %vm898, %v2482, 0
      %v2529 = vsel %vm898, %v2483, 0
      %v2532 = vsel %vm898, %v2484, 0
      %v2535 = vsel %vm898, %v2485, 0
      %v2538 = vsel %vm898, %v2486, 0
      %v2541 = vsel %vm898, %v2487, 0
      %v2544 = vsel %vm898, %v2488, 0
      %v2547 = vsel %vm898, %v2489, 0
      %v2550 = vsel %vm898, %v2490, 0
      %v2553 = vsel %vm898, %v2491, 0
      %v2556 = vsel %vm947, %v2504, 0
      %2558 = vmatpush.bf16.msra.mxu0 0
      %2559 = vmatpush.bf16.msra.mxu0 0
      %2560 = vmatpush.bf16.msra.mxu0 0
      %2561 = vmatpush.bf16.msra.mxu0 0
      %2562 = vmatpush.bf16.msra.mxu0 0
      %2563 = vmatpush.bf16.msra.mxu0 %v2556
      %2564 = vmatpush.bf16.msra.mxu0 %v2503
      %2565 = vmatpush.bf16.msra.mxu0 %v2502
      %2566 = vmatmul.bf16.gmra.mxu0 %v2508
      %v2567 = vpop.f32.mrf.mxu0
      %v2568 = vadd.f32 0.0, %v2567
      %v2569 = vpop.f32.mrf.mxu0
      %v2570 = vadd.f32 0.0, %v2569
      %2571 = vmatmul.bf16.gmra.mxu0 %v2511
      %v2572 = vpop.f32.mrf.mxu0
      %v2573 = vadd.f32 0.0, %v2572
      %v2574 = vpop.f32.mrf.mxu0
      %v2575 = vadd.f32 0.0, %v2574
      %2576 = vmatmul.bf16.gmra.mxu0 %v2514
      %v2577 = vpop.f32.mrf.mxu0
      %v2578 = vadd.f32 0.0, %v2577
      %v2579 = vpop.f32.mrf.mxu0
      %v2580 = vadd.f32 0.0, %v2579
      %2581 = vmatmul.bf16.gmra.mxu0 %v2517
      %v2582 = vpop.f32.mrf.mxu0
      %v2583 = vadd.f32 0.0, %v2582
      %v2584 = vpop.f32.mrf.mxu0
      %v2585 = vadd.f32 0.0, %v2584
      %2586 = vmatmul.bf16.gmra.mxu0 %v2520
      %v2587 = vpop.f32.mrf.mxu0
      %v2588 = vadd.f32 0.0, %v2587
      %v2589 = vpop.f32.mrf.mxu0
      %v2590 = vadd.f32 0.0, %v2589
      %2591 = vmatmul.bf16.gmra.mxu0 %v2523
      %v2592 = vpop.f32.mrf.mxu0
      %v2593 = vadd.f32 0.0, %v2592
      %v2594 = vpop.f32.mrf.mxu0
      %v2595 = vadd.f32 0.0, %v2594
      %2596 = vmatmul.bf16.gmra.mxu0 %v2526
      %v2597 = vpop.f32.mrf.mxu0
      %v2598 = vadd.f32 0.0, %v2597
      %v2599 = vpop.f32.mrf.mxu0
      %v2600 = vadd.f32 0.0, %v2599
      %2601 = vmatmul.bf16.gmra.mxu0 %v2529
      %v2602 = vpop.f32.mrf.mxu0
      %v2603 = vadd.f32 0.0, %v2602
      %v2604 = vpop.f32.mrf.mxu0
      %v2605 = vadd.f32 0.0, %v2604
      %2606 = vmatmul.bf16.gmra.mxu0 %v2532
      %v2607 = vpop.f32.mrf.mxu0
      %v2608 = vadd.f32 0.0, %v2607
      %v2609 = vpop.f32.mrf.mxu0
      %v2610 = vadd.f32 0.0, %v2609
      %2611 = vmatmul.bf16.gmra.mxu0 %v2535
      %v2612 = vpop.f32.mrf.mxu0
      %v2613 = vadd.f32 0.0, %v2612
      %v2614 = vpop.f32.mrf.mxu0
      %v2615 = vadd.f32 0.0, %v2614
      %2616 = vmatmul.bf16.gmra.mxu0 %v2538
      %v2617 = vpop.f32.mrf.mxu0
      %v2618 = vadd.f32 0.0, %v2617
      %v2619 = vpop.f32.mrf.mxu0
      %v2620 = vadd.f32 0.0, %v2619
      %2621 = vmatmul.bf16.gmra.mxu0 %v2541
      %v2622 = vpop.f32.mrf.mxu0
      %v2623 = vadd.f32 0.0, %v2622
      %v2624 = vpop.f32.mrf.mxu0
      %v2625 = vadd.f32 0.0, %v2624
      %2626 = vmatmul.bf16.gmra.mxu0 %v2544
      %v2627 = vpop.f32.mrf.mxu0
      %v2628 = vadd.f32 0.0, %v2627
      %v2629 = vpop.f32.mrf.mxu0
      %v2630 = vadd.f32 0.0, %v2629
      %2631 = vmatmul.bf16.gmra.mxu0 %v2547
      %v2632 = vpop.f32.mrf.mxu0
      %v2633 = vadd.f32 0.0, %v2632
      %v2634 = vpop.f32.mrf.mxu0
      %v2635 = vadd.f32 0.0, %v2634
      %2636 = vmatmul.bf16.gmra.mxu0 %v2550
      %v2637 = vpop.f32.mrf.mxu0
      %v2638 = vadd.f32 0.0, %v2637
      %v2639 = vpop.f32.mrf.mxu0
      %v2640 = vadd.f32 0.0, %v2639
      %2641 = vmatmul.bf16.gmra.mxu0 %v2553
      %v2642 = vpop.f32.mrf.mxu0
      %v2643 = vadd.f32 0.0, %v2642
      %v2644 = vpop.f32.mrf.mxu0
      %v2645 = vadd.f32 0.0, %v2644
      %2646 = vdwg.mxu0
      %v2647 = vadd.f32 %v2260, %v2568
      %v2648 = vadd.f32 %v2261, %v2570
      %v2649 = vadd.f32 %v2262, %v2573
      %v2650 = vadd.f32 %v2263, %v2575
      %v2651 = vadd.f32 %v2264, %v2578
      %v2652 = vadd.f32 %v2265, %v2580
      %v2653 = vadd.f32 %v2266, %v2583
      %v2654 = vadd.f32 %v2267, %v2585
      %v2655 = vadd.f32 %v2268, %v2588
      %v2656 = vadd.f32 %v2269, %v2590
      %v2657 = vadd.f32 %v2270, %v2593
      %v2658 = vadd.f32 %v2271, %v2595
      %v2659 = vadd.f32 %v2272, %v2598
      %v2660 = vadd.f32 %v2273, %v2600
      %v2661 = vadd.f32 %v2274, %v2603
      %v2662 = vadd.f32 %v2275, %v2605
      %v2663 = vadd.f32 %v2276, %v2608
      %v2664 = vadd.f32 %v2277, %v2610
      %v2665 = vadd.f32 %v2278, %v2613
      %v2666 = vadd.f32 %v2279, %v2615
      %v2667 = vadd.f32 %v2280, %v2618
      %v2668 = vadd.f32 %v2281, %v2620
      %v2669 = vadd.f32 %v2282, %v2623
      %v2670 = vadd.f32 %v2283, %v2625
      %v2671 = vadd.f32 %v2284, %v2628
      %v2672 = vadd.f32 %v2285, %v2630
      %v2673 = vadd.f32 %v2286, %v2633
      %v2674 = vadd.f32 %v2287, %v2635
      %v2675 = vadd.f32 %v2288, %v2638
      %v2676 = vadd.f32 %v2289, %v2640
      %v2677 = vadd.f32 %v2290, %v2643
      %v2678 = vadd.f32 %v2291, %v2645
      %v2679 = vld [vmem:[%s3 + $0x58] sm:$0xc]
      %v2680 = vld [vmem:[%s3 + $0x5c] sm:$0xf]
      %v2681 = vld [vmem:[%s3 + $0x60] sm:$0xf]
      %v2682 = vld [vmem:[%s3 + $0x64] sm:$0xf]
      %v2683 = vld [vmem:[%s3 + $0x68] sm:$0xf]
      %v2684 = vunpack.c.l.b16 %v2428
      %v2685 = vunpack.c.l.b16 %v2431
      %v2686 = vpack.c.b16 %v2685, %v2684
      %v2692 = vunpack.c.l.b16 %v2679
      %v2693 = vunpack.c.l.b16 %v2680
      %v2694 = vunpack.c.l.b16 %v2681
      %v2695 = vunpack.c.l.b16 %v2682
      %v2696 = vunpack.c.l.b16 %v2683
      %v2697 = vpack.c.b16 %v2693, %v2692
      %v2698 = vpack.c.b16 %v2695, %v2694
      %v2699 = vpack.c.b16 %v2696, %v2696
      %v2700 = vrot.slane %v2697, 2
      %v2701 = vrot.slane %v2698, 2
      %v2702 = vsel %vm890, %v2700, %v2701
      %v2703 = vrot.slane %v2699, 2
      %v2704 = vsel %vm890, %v2701, %v2703
      %v2708 = vsel %vm898, %v2686, 0
      %v2711 = vsel %vm947, %v2703, 0
      %2713 = vmatpush.bf16.msra.mxu0 0
      %2714 = vmatpush.bf16.msra.mxu0 0
      %2715 = vmatpush.bf16.msra.mxu0 0
      %2716 = vmatpush.bf16.msra.mxu0 0
      %2717 = vmatpush.bf16.msra.mxu0 0
      %2718 = vmatpush.bf16.msra.mxu0 %v2711
      %2719 = vmatpush.bf16.msra.mxu0 %v2704
      %2720 = vmatpush.bf16.msra.mxu0 %v2702
      %2721 = vmatmul.bf16.gmra.mxu0 %v2511
      %v2722 = vpop.f32.mrf.mxu0
      %v2723 = vadd.f32 0.0, %v2722
      %v2724 = vpop.f32.mrf.mxu0
      %v2725 = vadd.f32 0.0, %v2724
      %2726 = vmatmul.bf16.gmra.mxu0 %v2514
      %v2727 = vpop.f32.mrf.mxu0
      %v2728 = vadd.f32 0.0, %v2727
      %v2729 = vpop.f32.mrf.mxu0
      %v2730 = vadd.f32 0.0, %v2729
      %2731 = vmatmul.bf16.gmra.mxu0 %v2517
      %v2732 = vpop.f32.mrf.mxu0
      %v2733 = vadd.f32 0.0, %v2732
      %v2734 = vpop.f32.mrf.mxu0
      %v2735 = vadd.f32 0.0, %v2734
      %2736 = vmatmul.bf16.gmra.mxu0 %v2520
      %v2737 = vpop.f32.mrf.mxu0
      %v2738 = vadd.f32 0.0, %v2737
      %v2739 = vpop.f32.mrf.mxu0
      %v2740 = vadd.f32 0.0, %v2739
      %2741 = vmatmul.bf16.gmra.mxu0 %v2523
      %v2742 = vpop.f32.mrf.mxu0
      %v2743 = vadd.f32 0.0, %v2742
      %v2744 = vpop.f32.mrf.mxu0
      %v2745 = vadd.f32 0.0, %v2744
      %2746 = vmatmul.bf16.gmra.mxu0 %v2526
      %v2747 = vpop.f32.mrf.mxu0
      %v2748 = vadd.f32 0.0, %v2747
      %v2749 = vpop.f32.mrf.mxu0
      %v2750 = vadd.f32 0.0, %v2749
      %2751 = vmatmul.bf16.gmra.mxu0 %v2529
      %v2752 = vpop.f32.mrf.mxu0
      %v2753 = vadd.f32 0.0, %v2752
      %v2754 = vpop.f32.mrf.mxu0
      %v2755 = vadd.f32 0.0, %v2754
      %2756 = vmatmul.bf16.gmra.mxu0 %v2532
      %v2757 = vpop.f32.mrf.mxu0
      %v2758 = vadd.f32 0.0, %v2757
      %v2759 = vpop.f32.mrf.mxu0
      %v2760 = vadd.f32 0.0, %v2759
      %2761 = vmatmul.bf16.gmra.mxu0 %v2535
      %v2762 = vpop.f32.mrf.mxu0
      %v2763 = vadd.f32 0.0, %v2762
      %v2764 = vpop.f32.mrf.mxu0
      %v2765 = vadd.f32 0.0, %v2764
      %2766 = vmatmul.bf16.gmra.mxu0 %v2538
      %v2767 = vpop.f32.mrf.mxu0
      %v2768 = vadd.f32 0.0, %v2767
      %v2769 = vpop.f32.mrf.mxu0
      %v2770 = vadd.f32 0.0, %v2769
      %2771 = vmatmul.bf16.gmra.mxu0 %v2541
      %v2772 = vpop.f32.mrf.mxu0
      %v2773 = vadd.f32 0.0, %v2772
      %v2774 = vpop.f32.mrf.mxu0
      %v2775 = vadd.f32 0.0, %v2774
      %2776 = vmatmul.bf16.gmra.mxu0 %v2544
      %v2777 = vpop.f32.mrf.mxu0
      %v2778 = vadd.f32 0.0, %v2777
      %v2779 = vpop.f32.mrf.mxu0
      %v2780 = vadd.f32 0.0, %v2779
      %2781 = vmatmul.bf16.gmra.mxu0 %v2547
      %v2782 = vpop.f32.mrf.mxu0
      %v2783 = vadd.f32 0.0, %v2782
      %v2784 = vpop.f32.mrf.mxu0
      %v2785 = vadd.f32 0.0, %v2784
      %2786 = vmatmul.bf16.gmra.mxu0 %v2550
      %v2787 = vpop.f32.mrf.mxu0
      %v2788 = vadd.f32 0.0, %v2787
      %v2789 = vpop.f32.mrf.mxu0
      %v2790 = vadd.f32 0.0, %v2789
      %2791 = vmatmul.bf16.gmra.mxu0 %v2553
      %v2792 = vpop.f32.mrf.mxu0
      %v2793 = vadd.f32 0.0, %v2792
      %v2794 = vpop.f32.mrf.mxu0
      %v2795 = vadd.f32 0.0, %v2794
      %2796 = vmatmul.bf16.gmra.mxu0 %v2708
      %v2797 = vpop.f32.mrf.mxu0
      %v2798 = vadd.f32 0.0, %v2797
      %v2799 = vpop.f32.mrf.mxu0
      %v2800 = vadd.f32 0.0, %v2799
      %2801 = vdwg.mxu0
      %v2802 = vadd.f32 %v2647, %v2723
      %v2803 = vadd.f32 %v2648, %v2725
      %v2804 = vadd.f32 %v2649, %v2728
      %v2805 = vadd.f32 %v2650, %v2730
      %v2806 = vadd.f32 %v2651, %v2733
      %v2807 = vadd.f32 %v2652, %v2735
      %v2808 = vadd.f32 %v2653, %v2738
      %v2809 = vadd.f32 %v2654, %v2740
      %v2810 = vadd.f32 %v2655, %v2743
      %v2811 = vadd.f32 %v2656, %v2745
      %v2812 = vadd.f32 %v2657, %v2748
      %v2813 = vadd.f32 %v2658, %v2750
      %v2814 = vadd.f32 %v2659, %v2753
      %v2815 = vadd.f32 %v2660, %v2755
      %v2816 = vadd.f32 %v2661, %v2758
      %v2817 = vadd.f32 %v2662, %v2760
      %v2818 = vadd.f32 %v2663, %v2763
      %v2819 = vadd.f32 %v2664, %v2765
      %v2820 = vadd.f32 %v2665, %v2768
      %v2821 = vadd.f32 %v2666, %v2770
      %v2822 = vadd.f32 %v2667, %v2773
      %v2823 = vadd.f32 %v2668, %v2775
      %v2824 = vadd.f32 %v2669, %v2778
      %v2825 = vadd.f32 %v2670, %v2780
      %v2826 = vadd.f32 %v2671, %v2783
      %v2827 = vadd.f32 %v2672, %v2785
      %v2828 = vadd.f32 %v2673, %v2788
      %v2829 = vadd.f32 %v2674, %v2790
      %v2830 = vadd.f32 %v2675, %v2793
      %v2831 = vadd.f32 %v2676, %v2795
      %v2832 = vadd.f32 %v2677, %v2798
      %v2833 = vadd.f32 %v2678, %v2800
      %v2834 = vld [vmem:[%s3 + $0x90] sm:$0xf]
      %v2835 = vld [vmem:[%s3 + $0x94] sm:$0xf]
      %v2836 = vld [vmem:[%s3 + $0x98] sm:$0xf]
      %v2837 = vld [vmem:[%s3 + $0x9c] sm:$0xf]
      %v2838 = vld [vmem:[%s3 + $0xa0] sm:$0x3]
      %v2839 = vunpack.c.l.b16 %v2435
      %v2840 = vunpack.c.l.b16 %v2438
      %v2841 = vpack.c.b16 %v2840, %v2839
      %v2847 = vunpack.c.l.b16 %v2834
      %v2848 = vunpack.c.l.b16 %v2835
      %v2849 = vunpack.c.l.b16 %v2836
      %v2850 = vunpack.c.l.b16 %v2837
      %v2851 = vunpack.c.l.b16 %v2838
      %v2852 = vpack.c.b16 %v2848, %v2847
      %v2853 = vpack.c.b16 %v2850, %v2849
      %v2854 = vpack.c.b16 %v2851, %v2851
      %v2858 = vsel %vm898, %v2841, 0
      %v2861 = vsel %vm947, %v2854, 0
      %2863 = vmatpush.bf16.msra.mxu0 0
      %2864 = vmatpush.bf16.msra.mxu0 0
      %2865 = vmatpush.bf16.msra.mxu0 0
      %2866 = vmatpush.bf16.msra.mxu0 0
      %2867 = vmatpush.bf16.msra.mxu0 0
      %2868 = vmatpush.bf16.msra.mxu0 %v2861
      %2869 = vmatpush.bf16.msra.mxu0 %v2853
      %2870 = vmatpush.bf16.msra.mxu0 %v2852
      %2871 = vmatmul.bf16.gmra.mxu0 %v2514
      %v2872 = vpop.f32.mrf.mxu0
      %v2873 = vadd.f32 0.0, %v2872
      %v2874 = vpop.f32.mrf.mxu0
      %v2875 = vadd.f32 0.0, %v2874
      %2876 = vmatmul.bf16.gmra.mxu0 %v2517
      %v2877 = vpop.f32.mrf.mxu0
      %v2878 = vadd.f32 0.0, %v2877
      %v2879 = vpop.f32.mrf.mxu0
      %v2880 = vadd.f32 0.0, %v2879
      %2881 = vmatmul.bf16.gmra.mxu0 %v2520
      %v2882 = vpop.f32.mrf.mxu0
      %v2883 = vadd.f32 0.0, %v2882
      %v2884 = vpop.f32.mrf.mxu0
      %v2885 = vadd.f32 0.0, %v2884
      %2886 = vmatmul.bf16.gmra.mxu0 %v2523
      %v2887 = vpop.f32.mrf.mxu0
      %v2888 = vadd.f32 0.0, %v2887
      %v2889 = vpop.f32.mrf.mxu0
      %v2890 = vadd.f32 0.0, %v2889
      %2891 = vmatmul.bf16.gmra.mxu0 %v2526
      %v2892 = vpop.f32.mrf.mxu0
      %v2893 = vadd.f32 0.0, %v2892
      %v2894 = vpop.f32.mrf.mxu0
      %v2895 = vadd.f32 0.0, %v2894
      %2896 = vmatmul.bf16.gmra.mxu0 %v2529
      %v2897 = vpop.f32.mrf.mxu0
      %v2898 = vadd.f32 0.0, %v2897
      %v2899 = vpop.f32.mrf.mxu0
      %v2900 = vadd.f32 0.0, %v2899
      %2901 = vmatmul.bf16.gmra.mxu0 %v2532
      %v2902 = vpop.f32.mrf.mxu0
      %v2903 = vadd.f32 0.0, %v2902
      %v2904 = vpop.f32.mrf.mxu0
      %v2905 = vadd.f32 0.0, %v2904
      %2906 = vmatmul.bf16.gmra.mxu0 %v2535
      %v2907 = vpop.f32.mrf.mxu0
      %v2908 = vadd.f32 0.0, %v2907
      %v2909 = vpop.f32.mrf.mxu0
      %v2910 = vadd.f32 0.0, %v2909
      %2911 = vmatmul.bf16.gmra.mxu0 %v2538
      %v2912 = vpop.f32.mrf.mxu0
      %v2913 = vadd.f32 0.0, %v2912
      %v2914 = vpop.f32.mrf.mxu0
      %v2915 = vadd.f32 0.0, %v2914
      %2916 = vmatmul.bf16.gmra.mxu0 %v2541
      %v2917 = vpop.f32.mrf.mxu0
      %v2918 = vadd.f32 0.0, %v2917
      %v2919 = vpop.f32.mrf.mxu0
      %v2920 = vadd.f32 0.0, %v2919
      %2921 = vmatmul.bf16.gmra.mxu0 %v2544
      %v2922 = vpop.f32.mrf.mxu0
      %v2923 = vadd.f32 0.0, %v2922
      %v2924 = vpop.f32.mrf.mxu0
      %v2925 = vadd.f32 0.0, %v2924
      %2926 = vmatmul.bf16.gmra.mxu0 %v2547
      %v2927 = vpop.f32.mrf.mxu0
      %v2928 = vadd.f32 0.0, %v2927
      %v2929 = vpop.f32.mrf.mxu0
      %v2930 = vadd.f32 0.0, %v2929
      %2931 = vmatmul.bf16.gmra.mxu0 %v2550
      %v2932 = vpop.f32.mrf.mxu0
      %v2933 = vadd.f32 0.0, %v2932
      %v2934 = vpop.f32.mrf.mxu0
      %v2935 = vadd.f32 0.0, %v2934
      %2936 = vmatmul.bf16.gmra.mxu0 %v2553
      %v2937 = vpop.f32.mrf.mxu0
      %v2938 = vadd.f32 0.0, %v2937
      %v2939 = vpop.f32.mrf.mxu0
      %v2940 = vadd.f32 0.0, %v2939
      %2941 = vmatmul.bf16.gmra.mxu0 %v2708
      %v2942 = vpop.f32.mrf.mxu0
      %v2943 = vadd.f32 0.0, %v2942
      %v2944 = vpop.f32.mrf.mxu0
      %v2945 = vadd.f32 0.0, %v2944
      %2946 = vmatmul.bf16.gmra.mxu0 %v2858
      %v2947 = vpop.f32.mrf.mxu0
      %v2948 = vadd.f32 0.0, %v2947
      %v2949 = vpop.f32.mrf.mxu0
      %v2950 = vadd.f32 0.0, %v2949
      %2951 = vdwg.mxu0
      %v2952 = vadd.f32 %v2802, %v2873
      %v2953 = vadd.f32 %v2803, %v2875
      %v2954 = vadd.f32 %v2804, %v2878
      %v2955 = vadd.f32 %v2805, %v2880
      %v2956 = vadd.f32 %v2806, %v2883
      %v2957 = vadd.f32 %v2807, %v2885
      %v2958 = vadd.f32 %v2808, %v2888
      %v2959 = vadd.f32 %v2809, %v2890
      %v2960 = vadd.f32 %v2810, %v2893
      %v2961 = vadd.f32 %v2811, %v2895
      %v2962 = vadd.f32 %v2812, %v2898
      %v2963 = vadd.f32 %v2813, %v2900
      %v2964 = vadd.f32 %v2814, %v2903
      %v2965 = vadd.f32 %v2815, %v2905
      %v2966 = vadd.f32 %v2816, %v2908
      %v2967 = vadd.f32 %v2817, %v2910
      %v2968 = vadd.f32 %v2818, %v2913
      %v2969 = vadd.f32 %v2819, %v2915
      %v2970 = vadd.f32 %v2820, %v2918
      %v2971 = vadd.f32 %v2821, %v2920
      %v2972 = vadd.f32 %v2822, %v2923
      %v2973 = vadd.f32 %v2823, %v2925
      %v2974 = vadd.f32 %v2824, %v2928
      %v2975 = vadd.f32 %v2825, %v2930
      %v2976 = vadd.f32 %v2826, %v2933
      %v2977 = vadd.f32 %v2827, %v2935
      %v2978 = vadd.f32 %v2828, %v2938
      %v2979 = vadd.f32 %v2829, %v2940
      %v2980 = vadd.f32 %v2830, %v2943
      %v2981 = vadd.f32 %v2831, %v2945
      %v2982 = vadd.f32 %v2832, %v2948
      %v2983 = vadd.f32 %v2833, %v2950
      %v2984 = vld [vmem:[%s4] sm:$0x1]
      %v2986 = vperm.slane %v2984, 0
      %v2988 = vadd.f32 %v2952, %v2986
      %v2989 = vadd.f32 %v2953, %v2986
      %v2990 = vadd.f32 %v2954, %v2986
      %v2991 = vadd.f32 %v2955, %v2986
      %v2992 = vadd.f32 %v2956, %v2986
      %v2993 = vadd.f32 %v2957, %v2986
      %v2994 = vadd.f32 %v2958, %v2986
      %v2995 = vadd.f32 %v2959, %v2986
      %v2996 = vadd.f32 %v2960, %v2986
      %v2997 = vadd.f32 %v2961, %v2986
      %v2998 = vadd.f32 %v2962, %v2986
      %v2999 = vadd.f32 %v2963, %v2986
      %v3000 = vadd.f32 %v2964, %v2986
      %v3001 = vadd.f32 %v2965, %v2986
      %v3002 = vadd.f32 %v2966, %v2986
      %v3003 = vadd.f32 %v2967, %v2986
      %v3004 = vadd.f32 %v2968, %v2986
      %v3005 = vadd.f32 %v2969, %v2986
      %v3006 = vadd.f32 %v2970, %v2986
      %v3007 = vadd.f32 %v2971, %v2986
      %v3008 = vadd.f32 %v2972, %v2986
      %v3009 = vadd.f32 %v2973, %v2986
      %v3010 = vadd.f32 %v2974, %v2986
      %v3011 = vadd.f32 %v2975, %v2986
      %v3012 = vadd.f32 %v2976, %v2986
      %v3013 = vadd.f32 %v2977, %v2986
      %v3014 = vadd.f32 %v2978, %v2986
      %v3015 = vadd.f32 %v2979, %v2986
      %v3016 = vadd.f32 %v2980, %v2986
      %v3017 = vadd.f32 %v2981, %v2986
      %v3018 = vadd.f32 %v2982, %v2986
      %v3019 = vadd.f32 %v2983, %v2986
      %v3020 = vadd.f32 %v2988, %v2989
      %v3021 = vadd.f32 %v3020, %v2990
      %v3022 = vadd.f32 %v3021, %v2991
      %v3023 = vadd.f32 %v3022, %v2992
      %v3024 = vadd.f32 %v3023, %v2993
      %v3025 = vadd.f32 %v3024, %v2994
      %v3026 = vadd.f32 %v3025, %v2995
      %v3027 = vadd.f32 %v3026, %v2996
      %v3028 = vadd.f32 %v3027, %v2997
      %v3029 = vadd.f32 %v3028, %v2998
      %v3030 = vadd.f32 %v3029, %v2999
      %v3031 = vadd.f32 %v3030, %v3000
      %v3032 = vadd.f32 %v3031, %v3001
      %v3033 = vadd.f32 %v3032, %v3002
      %v3034 = vadd.f32 %v3033, %v3003
      %v3035 = vadd.f32 %v3034, %v3004
      %v3036 = vadd.f32 %v3035, %v3005
      %v3037 = vadd.f32 %v3036, %v3006
      %v3038 = vadd.f32 %v3037, %v3007
      %v3039 = vadd.f32 %v3038, %v3008
      %v3040 = vadd.f32 %v3039, %v3009
      %v3041 = vadd.f32 %v3040, %v3010
      %v3042 = vadd.f32 %v3041, %v3011
      %v3043 = vadd.f32 %v3042, %v3012
      %v3044 = vadd.f32 %v3043, %v3013
      %v3045 = vadd.f32 %v3044, %v3014
      %v3046 = vadd.f32 %v3045, %v3015
      %v3047 = vadd.f32 %v3046, %v3016
      %v3048 = vadd.f32 %v3047, %v3017
      %v3049 = vadd.f32 %v3048, %v3018
      %v3050 = vadd.f32 %v3049, %v3019
      %v3051 = vrot.slane %v3050, 4
      %v3052 = vadd.f32 %v3050, %v3051
      %v3053 = vrot.slane %v3052, 2
      %v3054 = vadd.f32 %v3052, %v3053
      %v3055 = vrot.slane %v3054, 1
      %v3056 = vadd.f32 %v3054, %v3055
      %v3057 = vrcp.pop 256.0
      %v3058 = vmul.f32 256.0, %v3057
      %v3059 = vsub.f32 1.0, %v3058
      %v3060 = vmul.f32 %v3057, %v3059
      %v3061 = vadd.f32 %v3057, %v3060
      %vm3062 = vweird.f32 %v3057
      %v3063 = vsel %vm3062, %v3057, %v3061
      %v3064 = vmul.f32 %v3056, %v3063
      %v3065 = vsub.f32 %v2988, %v3064
      %v3066 = vsub.f32 %v2989, %v3064
      %v3067 = vsub.f32 %v2990, %v3064
      %v3068 = vsub.f32 %v2991, %v3064
      %v3069 = vsub.f32 %v2992, %v3064
      %v3070 = vsub.f32 %v2993, %v3064
      %v3071 = vsub.f32 %v2994, %v3064
      %v3072 = vsub.f32 %v2995, %v3064
      %v3073 = vsub.f32 %v2996, %v3064
      %v3074 = vsub.f32 %v2997, %v3064
      %v3075 = vsub.f32 %v2998, %v3064
      %v3076 = vsub.f32 %v2999, %v3064
      %v3077 = vsub.f32 %v3000, %v3064
      %v3078 = vsub.f32 %v3001, %v3064
      %v3079 = vsub.f32 %v3002, %v3064
      %v3080 = vsub.f32 %v3003, %v3064
      %v3081 = vsub.f32 %v3004, %v3064
      %v3082 = vsub.f32 %v3005, %v3064
      %v3083 = vsub.f32 %v3006, %v3064
      %v3084 = vsub.f32 %v3007, %v3064
      %v3085 = vsub.f32 %v3008, %v3064
      %v3086 = vsub.f32 %v3009, %v3064
      %v3087 = vsub.f32 %v3010, %v3064
      %v3088 = vsub.f32 %v3011, %v3064
      %v3089 = vsub.f32 %v3012, %v3064
      %v3090 = vsub.f32 %v3013, %v3064
      %v3091 = vsub.f32 %v3014, %v3064
      %v3092 = vsub.f32 %v3015, %v3064
      %v3093 = vsub.f32 %v3016, %v3064
      %v3094 = vsub.f32 %v3017, %v3064
      %v3095 = vsub.f32 %v3018, %v3064
      %v3096 = vsub.f32 %v3019, %v3064
      %v3097 = vmul.f32 %v3065, %v3065
      %v3098 = vmul.f32 %v3066, %v3066
      %v3099 = vmul.f32 %v3067, %v3067
      %v3100 = vmul.f32 %v3068, %v3068
      %v3101 = vmul.f32 %v3069, %v3069
      %v3102 = vmul.f32 %v3070, %v3070
      %v3103 = vmul.f32 %v3071, %v3071
      %v3104 = vmul.f32 %v3072, %v3072
      %v3105 = vmul.f32 %v3073, %v3073
      %v3106 = vmul.f32 %v3074, %v3074
      %v3107 = vmul.f32 %v3075, %v3075
      %v3108 = vmul.f32 %v3076, %v3076
      %v3109 = vmul.f32 %v3077, %v3077
      %v3110 = vmul.f32 %v3078, %v3078
      %v3111 = vmul.f32 %v3079, %v3079
      %v3112 = vmul.f32 %v3080, %v3080
      %v3113 = vmul.f32 %v3081, %v3081
      %v3114 = vmul.f32 %v3082, %v3082
      %v3115 = vmul.f32 %v3083, %v3083
      %v3116 = vmul.f32 %v3084, %v3084
      %v3117 = vmul.f32 %v3085, %v3085
      %v3118 = vmul.f32 %v3086, %v3086
      %v3119 = vmul.f32 %v3087, %v3087
      %v3120 = vmul.f32 %v3088, %v3088
      %v3121 = vmul.f32 %v3089, %v3089
      %v3122 = vmul.f32 %v3090, %v3090
      %v3123 = vmul.f32 %v3091, %v3091
      %v3124 = vmul.f32 %v3092, %v3092
      %v3125 = vmul.f32 %v3093, %v3093
      %v3126 = vmul.f32 %v3094, %v3094
      %v3127 = vmul.f32 %v3095, %v3095
      %v3128 = vmul.f32 %v3096, %v3096
      %v3129 = vadd.f32 %v3097, %v3098
      %v3130 = vadd.f32 %v3129, %v3099
      %v3131 = vadd.f32 %v3130, %v3100
      %v3132 = vadd.f32 %v3131, %v3101
      %v3133 = vadd.f32 %v3132, %v3102
      %v3134 = vadd.f32 %v3133, %v3103
      %v3135 = vadd.f32 %v3134, %v3104
      %v3136 = vadd.f32 %v3135, %v3105
      %v3137 = vadd.f32 %v3136, %v3106
      %v3138 = vadd.f32 %v3137, %v3107
      %v3139 = vadd.f32 %v3138, %v3108
      %v3140 = vadd.f32 %v3139, %v3109
      %v3141 = vadd.f32 %v3140, %v3110
      %v3142 = vadd.f32 %v3141, %v3111
      %v3143 = vadd.f32 %v3142, %v3112
      %v3144 = vadd.f32 %v3143, %v3113
      %v3145 = vadd.f32 %v3144, %v3114
      %v3146 = vadd.f32 %v3145, %v3115
      %v3147 = vadd.f32 %v3146, %v3116
      %v3148 = vadd.f32 %v3147, %v3117
      %v3149 = vadd.f32 %v3148, %v3118
      %v3150 = vadd.f32 %v3149, %v3119
      %v3151 = vadd.f32 %v3150, %v3120
      %v3152 = vadd.f32 %v3151, %v3121
      %v3153 = vadd.f32 %v3152, %v3122
      %v3154 = vadd.f32 %v3153, %v3123
      %v3155 = vadd.f32 %v3154, %v3124
      %v3156 = vadd.f32 %v3155, %v3125
      %v3157 = vadd.f32 %v3156, %v3126
      %v3158 = vadd.f32 %v3157, %v3127
      %v3159 = vadd.f32 %v3158, %v3128
      %v3160 = vrot.slane %v3159, 4
      %v3161 = vadd.f32 %v3159, %v3160
      %v3162 = vrot.slane %v3161, 2
      %v3163 = vadd.f32 %v3161, %v3162
      %v3164 = vrot.slane %v3163, 1
      %v3165 = vadd.f32 %v3163, %v3164
      %v3166 = vmul.f32 %v3165, %v3063
      %v3167 = vadd.f32 %v3166, 1e-05
      %v3168 = vrsqrt.pop %v3167
      %v3169 = vmul.f32 %v3168, %v3167
      %v3170 = vmul.f32 %v3169, %v3168
      %v3171 = vmul.f32 0.5, %v3170
      %v3172 = vsub.f32 1.5, %v3171
      %v3173 = vmul.f32 %v3168, %v3172
      %vm3174 = vweird.f32 %v3167
      %vm3175 = vweird.f32 %v3168
      %vm3176 = vmor %vm3174, %vm3175
      %v3177 = vsel %vm3176, %v3168, %v3173
      %v3178 = vmul.f32 %v3065, %v3177
      %v3179 = vmul.f32 %v3066, %v3177
      %v3180 = vmul.f32 %v3067, %v3177
      %v3181 = vmul.f32 %v3068, %v3177
      %v3182 = vmul.f32 %v3069, %v3177
      %v3183 = vmul.f32 %v3070, %v3177
      %v3184 = vmul.f32 %v3071, %v3177
      %v3185 = vmul.f32 %v3072, %v3177
      %v3186 = vmul.f32 %v3073, %v3177
      %v3187 = vmul.f32 %v3074, %v3177
      %v3188 = vmul.f32 %v3075, %v3177
      %v3189 = vmul.f32 %v3076, %v3177
      %v3190 = vmul.f32 %v3077, %v3177
      %v3191 = vmul.f32 %v3078, %v3177
      %v3192 = vmul.f32 %v3079, %v3177
      %v3193 = vmul.f32 %v3080, %v3177
      %v3194 = vmul.f32 %v3081, %v3177
      %v3195 = vmul.f32 %v3082, %v3177
      %v3196 = vmul.f32 %v3083, %v3177
      %v3197 = vmul.f32 %v3084, %v3177
      %v3198 = vmul.f32 %v3085, %v3177
      %v3199 = vmul.f32 %v3086, %v3177
      %v3200 = vmul.f32 %v3087, %v3177
      %v3201 = vmul.f32 %v3088, %v3177
      %v3202 = vmul.f32 %v3089, %v3177
      %v3203 = vmul.f32 %v3090, %v3177
      %v3204 = vmul.f32 %v3091, %v3177
      %v3205 = vmul.f32 %v3092, %v3177
      %v3206 = vmul.f32 %v3093, %v3177
      %v3207 = vmul.f32 %v3094, %v3177
      %v3208 = vmul.f32 %v3095, %v3177
      %v3209 = vmul.f32 %v3096, %v3177
      %v3210 = vld [vmem:[%s5] sm:$0x1]
      %v3212 = vperm.slane %v3210, 0
      %v3214 = vmul.f32 %v3178, %v3212
      %v3215 = vmul.f32 %v3179, %v3212
      %v3216 = vmul.f32 %v3180, %v3212
      %v3217 = vmul.f32 %v3181, %v3212
      %v3218 = vmul.f32 %v3182, %v3212
      %v3219 = vmul.f32 %v3183, %v3212
      %v3220 = vmul.f32 %v3184, %v3212
      %v3221 = vmul.f32 %v3185, %v3212
      %v3222 = vmul.f32 %v3186, %v3212
      %v3223 = vmul.f32 %v3187, %v3212
      %v3224 = vmul.f32 %v3188, %v3212
      %v3225 = vmul.f32 %v3189, %v3212
      %v3226 = vmul.f32 %v3190, %v3212
      %v3227 = vmul.f32 %v3191, %v3212
      %v3228 = vmul.f32 %v3192, %v3212
      %v3229 = vmul.f32 %v3193, %v3212
      %v3230 = vmul.f32 %v3194, %v3212
      %v3231 = vmul.f32 %v3195, %v3212
      %v3232 = vmul.f32 %v3196, %v3212
      %v3233 = vmul.f32 %v3197, %v3212
      %v3234 = vmul.f32 %v3198, %v3212
      %v3235 = vmul.f32 %v3199, %v3212
      %v3236 = vmul.f32 %v3200, %v3212
      %v3237 = vmul.f32 %v3201, %v3212
      %v3238 = vmul.f32 %v3202, %v3212
      %v3239 = vmul.f32 %v3203, %v3212
      %v3240 = vmul.f32 %v3204, %v3212
      %v3241 = vmul.f32 %v3205, %v3212
      %v3242 = vmul.f32 %v3206, %v3212
      %v3243 = vmul.f32 %v3207, %v3212
      %v3244 = vmul.f32 %v3208, %v3212
      %v3245 = vmul.f32 %v3209, %v3212
      %v3246 = vld [vmem:[%s6] sm:$0x1]
      %v3248 = vperm.slane %v3246, 0
      %v3250 = vadd.f32 %v3214, %v3248
      %v3251 = vadd.f32 %v3215, %v3248
      %v3252 = vadd.f32 %v3216, %v3248
      %v3253 = vadd.f32 %v3217, %v3248
      %v3254 = vadd.f32 %v3218, %v3248
      %v3255 = vadd.f32 %v3219, %v3248
      %v3256 = vadd.f32 %v3220, %v3248
      %v3257 = vadd.f32 %v3221, %v3248
      %v3258 = vadd.f32 %v3222, %v3248
      %v3259 = vadd.f32 %v3223, %v3248
      %v3260 = vadd.f32 %v3224, %v3248
      %v3261 = vadd.f32 %v3225, %v3248
      %v3262 = vadd.f32 %v3226, %v3248
      %v3263 = vadd.f32 %v3227, %v3248
      %v3264 = vadd.f32 %v3228, %v3248
      %v3265 = vadd.f32 %v3229, %v3248
      %v3266 = vadd.f32 %v3230, %v3248
      %v3267 = vadd.f32 %v3231, %v3248
      %v3268 = vadd.f32 %v3232, %v3248
      %v3269 = vadd.f32 %v3233, %v3248
      %v3270 = vadd.f32 %v3234, %v3248
      %v3271 = vadd.f32 %v3235, %v3248
      %v3272 = vadd.f32 %v3236, %v3248
      %v3273 = vadd.f32 %v3237, %v3248
      %v3274 = vadd.f32 %v3238, %v3248
      %v3275 = vadd.f32 %v3239, %v3248
      %v3276 = vadd.f32 %v3240, %v3248
      %v3277 = vadd.f32 %v3241, %v3248
      %v3278 = vadd.f32 %v3242, %v3248
      %v3279 = vadd.f32 %v3243, %v3248
      %v3280 = vadd.f32 %v3244, %v3248
      %v3281 = vadd.f32 %v3245, %v3248
      %v3282 = vlaneseq
      %v3283 = vand.u32 %v3282, 127
      %vm3284 = vcmp.lt.s32.totalorder %v3283, 96
      %v3285 = vxor.u32 %v3250, 2147483648
      %v3286 = vxor.u32 %v3251, 2147483648
      %v3287 = vxor.u32 %v3252, 2147483648
      %v3288 = vxor.u32 %v3253, 2147483648
      %v3289 = vxor.u32 %v3254, 2147483648
      %v3290 = vxor.u32 %v3255, 2147483648
      %v3291 = vxor.u32 %v3256, 2147483648
      %v3292 = vxor.u32 %v3257, 2147483648
      %v3293 = vxor.u32 %v3258, 2147483648
      %v3294 = vxor.u32 %v3259, 2147483648
      %v3295 = vxor.u32 %v3260, 2147483648
      %v3296 = vxor.u32 %v3261, 2147483648
      %v3297 = vxor.u32 %v3262, 2147483648
      %v3298 = vxor.u32 %v3263, 2147483648
      %v3299 = vxor.u32 %v3264, 2147483648
      %v3300 = vxor.u32 %v3265, 2147483648
      %v3301 = vxor.u32 %v3266, 2147483648
      %v3302 = vxor.u32 %v3267, 2147483648
      %v3303 = vxor.u32 %v3268, 2147483648
      %v3304 = vxor.u32 %v3269, 2147483648
      %v3305 = vxor.u32 %v3270, 2147483648
      %v3306 = vxor.u32 %v3271, 2147483648
      %v3307 = vxor.u32 %v3272, 2147483648
      %v3308 = vxor.u32 %v3273, 2147483648
      %v3309 = vxor.u32 %v3274, 2147483648
      %v3310 = vxor.u32 %v3275, 2147483648
      %v3311 = vxor.u32 %v3276, 2147483648
      %v3312 = vxor.u32 %v3277, 2147483648
      %v3313 = vxor.u32 %v3278, 2147483648
      %v3314 = vxor.u32 %v3279, 2147483648
      %v3315 = vxor.u32 %v3280, 2147483648
      %v3316 = vxor.u32 %v3281, 2147483648
      %v3317 = vmul.f32 %v3285, 1.442695
      %v3318 = vpow.pop %v3317
      %v3319 = vmul.f32 %v3286, 1.442695
      %v3320 = vpow.pop %v3319
      %v3321 = vmul.f32 %v3287, 1.442695
      %v3322 = vpow.pop %v3321
      %v3323 = vmul.f32 %v3288, 1.442695
      %v3324 = vpow.pop %v3323
      %v3325 = vmul.f32 %v3289, 1.442695
      %v3326 = vpow.pop %v3325
      %v3327 = vmul.f32 %v3290, 1.442695
      %v3328 = vpow.pop %v3327
      %v3329 = vmul.f32 %v3291, 1.442695
      %v3330 = vpow.pop %v3329
      %v3331 = vmul.f32 %v3292, 1.442695
      %v3332 = vpow.pop %v3331
      %v3333 = vmul.f32 %v3293, 1.442695
      %v3334 = vpow.pop %v3333
      %v3335 = vmul.f32 %v3294, 1.442695
      %v3336 = vpow.pop %v3335
      %v3337 = vmul.f32 %v3295, 1.442695
      %v3338 = vpow.pop %v3337
      %v3339 = vmul.f32 %v3296, 1.442695
      %v3340 = vpow.pop %v3339
      %v3341 = vmul.f32 %v3297, 1.442695
      %v3342 = vpow.pop %v3341
      %v3343 = vmul.f32 %v3298, 1.442695
      %v3344 = vpow.pop %v3343
      %v3345 = vmul.f32 %v3299, 1.442695
      %v3346 = vpow.pop %v3345
      %v3347 = vmul.f32 %v3300, 1.442695
      %v3348 = vpow.pop %v3347
      %v3349 = vmul.f32 %v3301, 1.442695
      %v3350 = vpow.pop %v3349
      %v3351 = vmul.f32 %v3302, 1.442695
      %v3352 = vpow.pop %v3351
      %v3353 = vmul.f32 %v3303, 1.442695
      %v3354 = vpow.pop %v3353
      %v3355 = vmul.f32 %v3304, 1.442695
      %v3356 = vpow.pop %v3355
      %v3357 = vmul.f32 %v3305, 1.442695
      %v3358 = vpow.pop %v3357
      %v3359 = vmul.f32 %v3306, 1.442695
      %v3360 = vpow.pop %v3359
      %v3361 = vmul.f32 %v3307, 1.442695
      %v3362 = vpow.pop %v3361
      %v3363 = vmul.f32 %v3308, 1.442695
      %v3364 = vpow.pop %v3363
      %v3365 = vmul.f32 %v3309, 1.442695
      %v3366 = vpow.pop %v3365
      %v3367 = vmul.f32 %v3310, 1.442695
      %v3368 = vpow.pop %v3367
      %v3369 = vmul.f32 %v3311, 1.442695
      %v3370 = vpow.pop %v3369
      %v3371 = vmul.f32 %v3312, 1.442695
      %v3372 = vpow.pop %v3371
      %v3373 = vmul.f32 %v3313, 1.442695
      %v3374 = vpow.pop %v3373
      %v3375 = vmul.f32 %v3314, 1.442695
      %v3376 = vpow.pop %v3375
      %v3377 = vmul.f32 %v3315, 1.442695
      %v3378 = vpow.pop %v3377
      %v3379 = vmul.f32 %v3316, 1.442695
      %v3380 = vpow.pop %v3379
      %v3381 = vadd.f32 %v3318, 1.0
      %v3382 = vadd.f32 %v3320, 1.0
      %v3383 = vadd.f32 %v3322, 1.0
      %v3384 = vadd.f32 %v3324, 1.0
      %v3385 = vadd.f32 %v3326, 1.0
      %v3386 = vadd.f32 %v3328, 1.0
      %v3387 = vadd.f32 %v3330, 1.0
      %v3388 = vadd.f32 %v3332, 1.0
      %v3389 = vadd.f32 %v3334, 1.0
      %v3390 = vadd.f32 %v3336, 1.0
      %v3391 = vadd.f32 %v3338, 1.0
      %v3392 = vadd.f32 %v3340, 1.0
      %v3393 = vadd.f32 %v3342, 1.0
      %v3394 = vadd.f32 %v3344, 1.0
      %v3395 = vadd.f32 %v3346, 1.0
      %v3396 = vadd.f32 %v3348, 1.0
      %v3397 = vadd.f32 %v3350, 1.0
      %v3398 = vadd.f32 %v3352, 1.0
      %v3399 = vadd.f32 %v3354, 1.0
      %v3400 = vadd.f32 %v3356, 1.0
      %v3401 = vadd.f32 %v3358, 1.0
      %v3402 = vadd.f32 %v3360, 1.0
      %v3403 = vadd.f32 %v3362, 1.0
      %v3404 = vadd.f32 %v3364, 1.0
      %v3405 = vadd.f32 %v3366, 1.0
      %v3406 = vadd.f32 %v3368, 1.0
      %v3407 = vadd.f32 %v3370, 1.0
      %v3408 = vadd.f32 %v3372, 1.0
      %v3409 = vadd.f32 %v3374, 1.0
      %v3410 = vadd.f32 %v3376, 1.0
      %v3411 = vadd.f32 %v3378, 1.0
      %v3412 = vadd.f32 %v3380, 1.0
      %v3413 = vrcp.pop %v3381
      %v3414 = vmul.f32 %v3381, %v3413
      %v3415 = vsub.f32 1.0, %v3414
      %v3416 = vmul.f32 %v3413, %v3415
      %v3417 = vadd.f32 %v3413, %v3416
      %vm3418 = vweird.f32 %v3381
      %vm3419 = vweird.f32 %v3413
      %vm3420 = vmor %vm3418, %vm3419
      %v3421 = vsel %vm3420, %v3413, %v3417
      %v3422 = vand.u32 2147483647, %v3381
      %vm3423 = vcmp.eq.f32.partialorder %v3422, 8.507059e+37
      %v3424 = vand.u32 %v3381, 2147483648
      %v3425 = vor.u32 1.1754944e-38, %v3424
      %v3426 = vsel %vm3423, %v3425, %v3421
      %v3427 = vmul.f32 1.0, %v3426
      %v3428 = vrcp.pop %v3382
      %v3429 = vmul.f32 %v3382, %v3428
      %v3430 = vsub.f32 1.0, %v3429
      %v3431 = vmul.f32 %v3428, %v3430
      %v3432 = vadd.f32 %v3428, %v3431
      %vm3433 = vweird.f32 %v3382
      %vm3434 = vweird.f32 %v3428
      %vm3435 = vmor %vm3433, %vm3434
      %v3436 = vsel %vm3435, %v3428, %v3432
      %v3437 = vand.u32 2147483647, %v3382
      %vm3438 = vcmp.eq.f32.partialorder %v3437, 8.507059e+37
      %v3439 = vand.u32 %v3382, 2147483648
      %v3440 = vor.u32 1.1754944e-38, %v3439
      %v3441 = vsel %vm3438, %v3440, %v3436
      %v3442 = vmul.f32 1.0, %v3441
      %v3443 = vrcp.pop %v3383
      %v3444 = vmul.f32 %v3383, %v3443
      %v3445 = vsub.f32 1.0, %v3444
      %v3446 = vmul.f32 %v3443, %v3445
      %v3447 = vadd.f32 %v3443, %v3446
      %vm3448 = vweird.f32 %v3383
      %vm3449 = vweird.f32 %v3443
      %vm3450 = vmor %vm3448, %vm3449
      %v3451 = vsel %vm3450, %v3443, %v3447
      %v3452 = vand.u32 2147483647, %v3383
      %vm3453 = vcmp.eq.f32.partialorder %v3452, 8.507059e+37
      %v3454 = vand.u32 %v3383, 2147483648
      %v3455 = vor.u32 1.1754944e-38, %v3454
      %v3456 = vsel %vm3453, %v3455, %v3451
      %v3457 = vmul.f32 1.0, %v3456
      %v3458 = vrcp.pop %v3384
      %v3459 = vmul.f32 %v3384, %v3458
      %v3460 = vsub.f32 1.0, %v3459
      %v3461 = vmul.f32 %v3458, %v3460
      %v3462 = vadd.f32 %v3458, %v3461
      %vm3463 = vweird.f32 %v3384
      %vm3464 = vweird.f32 %v3458
      %vm3465 = vmor %vm3463, %vm3464
      %v3466 = vsel %vm3465, %v3458, %v3462
      %v3467 = vand.u32 2147483647, %v3384
      %vm3468 = vcmp.eq.f32.partialorder %v3467, 8.507059e+37
      %v3469 = vand.u32 %v3384, 2147483648
      %v3470 = vor.u32 1.1754944e-38, %v3469
      %v3471 = vsel %vm3468, %v3470, %v3466
      %v3472 = vmul.f32 1.0, %v3471
      %v3473 = vrcp.pop %v3385
      %v3474 = vmul.f32 %v3385, %v3473
      %v3475 = vsub.f32 1.0, %v3474
      %v3476 = vmul.f32 %v3473, %v3475
      %v3477 = vadd.f32 %v3473, %v3476
      %vm3478 = vweird.f32 %v3385
      %vm3479 = vweird.f32 %v3473
      %vm3480 = vmor %vm3478, %vm3479
      %v3481 = vsel %vm3480, %v3473, %v3477
      %v3482 = vand.u32 2147483647, %v3385
      %vm3483 = vcmp.eq.f32.partialorder %v3482, 8.507059e+37
      %v3484 = vand.u32 %v3385, 2147483648
      %v3485 = vor.u32 1.1754944e-38, %v3484
      %v3486 = vsel %vm3483, %v3485, %v3481
      %v3487 = vmul.f32 1.0, %v3486
      %v3488 = vrcp.pop %v3386
      %v3489 = vmul.f32 %v3386, %v3488
      %v3490 = vsub.f32 1.0, %v3489
      %v3491 = vmul.f32 %v3488, %v3490
      %v3492 = vadd.f32 %v3488, %v3491
      %vm3493 = vweird.f32 %v3386
      %vm3494 = vweird.f32 %v3488
      %vm3495 = vmor %vm3493, %vm3494
      %v3496 = vsel %vm3495, %v3488, %v3492
      %v3497 = vand.u32 2147483647, %v3386
      %vm3498 = vcmp.eq.f32.partialorder %v3497, 8.507059e+37
      %v3499 = vand.u32 %v3386, 2147483648
      %v3500 = vor.u32 1.1754944e-38, %v3499
      %v3501 = vsel %vm3498, %v3500, %v3496
      %v3502 = vmul.f32 1.0, %v3501
      %v3503 = vrcp.pop %v3387
      %v3504 = vmul.f32 %v3387, %v3503
      %v3505 = vsub.f32 1.0, %v3504
      %v3506 = vmul.f32 %v3503, %v3505
      %v3507 = vadd.f32 %v3503, %v3506
      %vm3508 = vweird.f32 %v3387
      %vm3509 = vweird.f32 %v3503
      %vm3510 = vmor %vm3508, %vm3509
      %v3511 = vsel %vm3510, %v3503, %v3507
      %v3512 = vand.u32 2147483647, %v3387
      %vm3513 = vcmp.eq.f32.partialorder %v3512, 8.507059e+37
      %v3514 = vand.u32 %v3387, 2147483648
      %v3515 = vor.u32 1.1754944e-38, %v3514
      %v3516 = vsel %vm3513, %v3515, %v3511
      %v3517 = vmul.f32 1.0, %v3516
      %v3518 = vrcp.pop %v3388
      %v3519 = vmul.f32 %v3388, %v3518
      %v3520 = vsub.f32 1.0, %v3519
      %v3521 = vmul.f32 %v3518, %v3520
      %v3522 = vadd.f32 %v3518, %v3521
      %vm3523 = vweird.f32 %v3388
      %vm3524 = vweird.f32 %v3518
      %vm3525 = vmor %vm3523, %vm3524
      %v3526 = vsel %vm3525, %v3518, %v3522
      %v3527 = vand.u32 2147483647, %v3388
      %vm3528 = vcmp.eq.f32.partialorder %v3527, 8.507059e+37
      %v3529 = vand.u32 %v3388, 2147483648
      %v3530 = vor.u32 1.1754944e-38, %v3529
      %v3531 = vsel %vm3528, %v3530, %v3526
      %v3532 = vmul.f32 1.0, %v3531
      %v3533 = vrcp.pop %v3389
      %v3534 = vmul.f32 %v3389, %v3533
      %v3535 = vsub.f32 1.0, %v3534
      %v3536 = vmul.f32 %v3533, %v3535
      %v3537 = vadd.f32 %v3533, %v3536
      %vm3538 = vweird.f32 %v3389
      %vm3539 = vweird.f32 %v3533
      %vm3540 = vmor %vm3538, %vm3539
      %v3541 = vsel %vm3540, %v3533, %v3537
      %v3542 = vand.u32 2147483647, %v3389
      %vm3543 = vcmp.eq.f32.partialorder %v3542, 8.507059e+37
      %v3544 = vand.u32 %v3389, 2147483648
      %v3545 = vor.u32 1.1754944e-38, %v3544
      %v3546 = vsel %vm3543, %v3545, %v3541
      %v3547 = vmul.f32 1.0, %v3546
      %v3548 = vrcp.pop %v3390
      %v3549 = vmul.f32 %v3390, %v3548
      %v3550 = vsub.f32 1.0, %v3549
      %v3551 = vmul.f32 %v3548, %v3550
      %v3552 = vadd.f32 %v3548, %v3551
      %vm3553 = vweird.f32 %v3390
      %vm3554 = vweird.f32 %v3548
      %vm3555 = vmor %vm3553, %vm3554
      %v3556 = vsel %vm3555, %v3548, %v3552
      %v3557 = vand.u32 2147483647, %v3390
      %vm3558 = vcmp.eq.f32.partialorder %v3557, 8.507059e+37
      %v3559 = vand.u32 %v3390, 2147483648
      %v3560 = vor.u32 1.1754944e-38, %v3559
      %v3561 = vsel %vm3558, %v3560, %v3556
      %v3562 = vmul.f32 1.0, %v3561
      %v3563 = vrcp.pop %v3391
      %v3564 = vmul.f32 %v3391, %v3563
      %v3565 = vsub.f32 1.0, %v3564
      %v3566 = vmul.f32 %v3563, %v3565
      %v3567 = vadd.f32 %v3563, %v3566
      %vm3568 = vweird.f32 %v3391
      %vm3569 = vweird.f32 %v3563
      %vm3570 = vmor %vm3568, %vm3569
      %v3571 = vsel %vm3570, %v3563, %v3567
      %v3572 = vand.u32 2147483647, %v3391
      %vm3573 = vcmp.eq.f32.partialorder %v3572, 8.507059e+37
      %v3574 = vand.u32 %v3391, 2147483648
      %v3575 = vor.u32 1.1754944e-38, %v3574
      %v3576 = vsel %vm3573, %v3575, %v3571
      %v3577 = vmul.f32 1.0, %v3576
      %v3578 = vrcp.pop %v3392
      %v3579 = vmul.f32 %v3392, %v3578
      %v3580 = vsub.f32 1.0, %v3579
      %v3581 = vmul.f32 %v3578, %v3580
      %v3582 = vadd.f32 %v3578, %v3581
      %vm3583 = vweird.f32 %v3392
      %vm3584 = vweird.f32 %v3578
      %vm3585 = vmor %vm3583, %vm3584
      %v3586 = vsel %vm3585, %v3578, %v3582
      %v3587 = vand.u32 2147483647, %v3392
      %vm3588 = vcmp.eq.f32.partialorder %v3587, 8.507059e+37
      %v3589 = vand.u32 %v3392, 2147483648
      %v3590 = vor.u32 1.1754944e-38, %v3589
      %v3591 = vsel %vm3588, %v3590, %v3586
      %v3592 = vmul.f32 1.0, %v3591
      %v3593 = vrcp.pop %v3393
      %v3594 = vmul.f32 %v3393, %v3593
      %v3595 = vsub.f32 1.0, %v3594
      %v3596 = vmul.f32 %v3593, %v3595
      %v3597 = vadd.f32 %v3593, %v3596
      %vm3598 = vweird.f32 %v3393
      %vm3599 = vweird.f32 %v3593
      %vm3600 = vmor %vm3598, %vm3599
      %v3601 = vsel %vm3600, %v3593, %v3597
      %v3602 = vand.u32 2147483647, %v3393
      %vm3603 = vcmp.eq.f32.partialorder %v3602, 8.507059e+37
      %v3604 = vand.u32 %v3393, 2147483648
      %v3605 = vor.u32 1.1754944e-38, %v3604
      %v3606 = vsel %vm3603, %v3605, %v3601
      %v3607 = vmul.f32 1.0, %v3606
      %v3608 = vrcp.pop %v3394
      %v3609 = vmul.f32 %v3394, %v3608
      %v3610 = vsub.f32 1.0, %v3609
      %v3611 = vmul.f32 %v3608, %v3610
      %v3612 = vadd.f32 %v3608, %v3611
      %vm3613 = vweird.f32 %v3394
      %vm3614 = vweird.f32 %v3608
      %vm3615 = vmor %vm3613, %vm3614
      %v3616 = vsel %vm3615, %v3608, %v3612
      %v3617 = vand.u32 2147483647, %v3394
      %vm3618 = vcmp.eq.f32.partialorder %v3617, 8.507059e+37
      %v3619 = vand.u32 %v3394, 2147483648
      %v3620 = vor.u32 1.1754944e-38, %v3619
      %v3621 = vsel %vm3618, %v3620, %v3616
      %v3622 = vmul.f32 1.0, %v3621
      %v3623 = vrcp.pop %v3395
      %v3624 = vmul.f32 %v3395, %v3623
      %v3625 = vsub.f32 1.0, %v3624
      %v3626 = vmul.f32 %v3623, %v3625
      %v3627 = vadd.f32 %v3623, %v3626
      %vm3628 = vweird.f32 %v3395
      %vm3629 = vweird.f32 %v3623
      %vm3630 = vmor %vm3628, %vm3629
      %v3631 = vsel %vm3630, %v3623, %v3627
      %v3632 = vand.u32 2147483647, %v3395
      %vm3633 = vcmp.eq.f32.partialorder %v3632, 8.507059e+37
      %v3634 = vand.u32 %v3395, 2147483648
      %v3635 = vor.u32 1.1754944e-38, %v3634
      %v3636 = vsel %vm3633, %v3635, %v3631
      %v3637 = vmul.f32 1.0, %v3636
      %v3638 = vrcp.pop %v3396
      %v3639 = vmul.f32 %v3396, %v3638
      %v3640 = vsub.f32 1.0, %v3639
      %v3641 = vmul.f32 %v3638, %v3640
      %v3642 = vadd.f32 %v3638, %v3641
      %vm3643 = vweird.f32 %v3396
      %vm3644 = vweird.f32 %v3638
      %vm3645 = vmor %vm3643, %vm3644
      %v3646 = vsel %vm3645, %v3638, %v3642
      %v3647 = vand.u32 2147483647, %v3396
      %vm3648 = vcmp.eq.f32.partialorder %v3647, 8.507059e+37
      %v3649 = vand.u32 %v3396, 2147483648
      %v3650 = vor.u32 1.1754944e-38, %v3649
      %v3651 = vsel %vm3648, %v3650, %v3646
      %v3652 = vmul.f32 1.0, %v3651
      %v3653 = vrcp.pop %v3397
      %v3654 = vmul.f32 %v3397, %v3653
      %v3655 = vsub.f32 1.0, %v3654
      %v3656 = vmul.f32 %v3653, %v3655
      %v3657 = vadd.f32 %v3653, %v3656
      %vm3658 = vweird.f32 %v3397
      %vm3659 = vweird.f32 %v3653
      %vm3660 = vmor %vm3658, %vm3659
      %v3661 = vsel %vm3660, %v3653, %v3657
      %v3662 = vand.u32 2147483647, %v3397
      %vm3663 = vcmp.eq.f32.partialorder %v3662, 8.507059e+37
      %v3664 = vand.u32 %v3397, 2147483648
      %v3665 = vor.u32 1.1754944e-38, %v3664
      %v3666 = vsel %vm3663, %v3665, %v3661
      %v3667 = vmul.f32 1.0, %v3666
      %v3668 = vrcp.pop %v3398
      %v3669 = vmul.f32 %v3398, %v3668
      %v3670 = vsub.f32 1.0, %v3669
      %v3671 = vmul.f32 %v3668, %v3670
      %v3672 = vadd.f32 %v3668, %v3671
      %vm3673 = vweird.f32 %v3398
      %vm3674 = vweird.f32 %v3668
      %vm3675 = vmor %vm3673, %vm3674
      %v3676 = vsel %vm3675, %v3668, %v3672
      %v3677 = vand.u32 2147483647, %v3398
      %vm3678 = vcmp.eq.f32.partialorder %v3677, 8.507059e+37
      %v3679 = vand.u32 %v3398, 2147483648
      %v3680 = vor.u32 1.1754944e-38, %v3679
      %v3681 = vsel %vm3678, %v3680, %v3676
      %v3682 = vmul.f32 1.0, %v3681
      %v3683 = vrcp.pop %v3399
      %v3684 = vmul.f32 %v3399, %v3683
      %v3685 = vsub.f32 1.0, %v3684
      %v3686 = vmul.f32 %v3683, %v3685
      %v3687 = vadd.f32 %v3683, %v3686
      %vm3688 = vweird.f32 %v3399
      %vm3689 = vweird.f32 %v3683
      %vm3690 = vmor %vm3688, %vm3689
      %v3691 = vsel %vm3690, %v3683, %v3687
      %v3692 = vand.u32 2147483647, %v3399
      %vm3693 = vcmp.eq.f32.partialorder %v3692, 8.507059e+37
      %v3694 = vand.u32 %v3399, 2147483648
      %v3695 = vor.u32 1.1754944e-38, %v3694
      %v3696 = vsel %vm3693, %v3695, %v3691
      %v3697 = vmul.f32 1.0, %v3696
      %v3698 = vrcp.pop %v3400
      %v3699 = vmul.f32 %v3400, %v3698
      %v3700 = vsub.f32 1.0, %v3699
      %v3701 = vmul.f32 %v3698, %v3700
      %v3702 = vadd.f32 %v3698, %v3701
      %vm3703 = vweird.f32 %v3400
      %vm3704 = vweird.f32 %v3698
      %vm3705 = vmor %vm3703, %vm3704
      %v3706 = vsel %vm3705, %v3698, %v3702
      %v3707 = vand.u32 2147483647, %v3400
      %vm3708 = vcmp.eq.f32.partialorder %v3707, 8.507059e+37
      %v3709 = vand.u32 %v3400, 2147483648
      %v3710 = vor.u32 1.1754944e-38, %v3709
      %v3711 = vsel %vm3708, %v3710, %v3706
      %v3712 = vmul.f32 1.0, %v3711
      %v3713 = vrcp.pop %v3401
      %v3714 = vmul.f32 %v3401, %v3713
      %v3715 = vsub.f32 1.0, %v3714
      %v3716 = vmul.f32 %v3713, %v3715
      %v3717 = vadd.f32 %v3713, %v3716
      %vm3718 = vweird.f32 %v3401
      %vm3719 = vweird.f32 %v3713
      %vm3720 = vmor %vm3718, %vm3719
      %v3721 = vsel %vm3720, %v3713, %v3717
      %v3722 = vand.u32 2147483647, %v3401
      %vm3723 = vcmp.eq.f32.partialorder %v3722, 8.507059e+37
      %v3724 = vand.u32 %v3401, 2147483648
      %v3725 = vor.u32 1.1754944e-38, %v3724
      %v3726 = vsel %vm3723, %v3725, %v3721
      %v3727 = vmul.f32 1.0, %v3726
      %v3728 = vrcp.pop %v3402
      %v3729 = vmul.f32 %v3402, %v3728
      %v3730 = vsub.f32 1.0, %v3729
      %v3731 = vmul.f32 %v3728, %v3730
      %v3732 = vadd.f32 %v3728, %v3731
      %vm3733 = vweird.f32 %v3402
      %vm3734 = vweird.f32 %v3728
      %vm3735 = vmor %vm3733, %vm3734
      %v3736 = vsel %vm3735, %v3728, %v3732
      %v3737 = vand.u32 2147483647, %v3402
      %vm3738 = vcmp.eq.f32.partialorder %v3737, 8.507059e+37
      %v3739 = vand.u32 %v3402, 2147483648
      %v3740 = vor.u32 1.1754944e-38, %v3739
      %v3741 = vsel %vm3738, %v3740, %v3736
      %v3742 = vmul.f32 1.0, %v3741
      %v3743 = vrcp.pop %v3403
      %v3744 = vmul.f32 %v3403, %v3743
      %v3745 = vsub.f32 1.0, %v3744
      %v3746 = vmul.f32 %v3743, %v3745
      %v3747 = vadd.f32 %v3743, %v3746
      %vm3748 = vweird.f32 %v3403
      %vm3749 = vweird.f32 %v3743
      %vm3750 = vmor %vm3748, %vm3749
      %v3751 = vsel %vm3750, %v3743, %v3747
      %v3752 = vand.u32 2147483647, %v3403
      %vm3753 = vcmp.eq.f32.partialorder %v3752, 8.507059e+37
      %v3754 = vand.u32 %v3403, 2147483648
      %v3755 = vor.u32 1.1754944e-38, %v3754
      %v3756 = vsel %vm3753, %v3755, %v3751
      %v3757 = vmul.f32 1.0, %v3756
      %v3758 = vrcp.pop %v3404
      %v3759 = vmul.f32 %v3404, %v3758
      %v3760 = vsub.f32 1.0, %v3759
      %v3761 = vmul.f32 %v3758, %v3760
      %v3762 = vadd.f32 %v3758, %v3761
      %vm3763 = vweird.f32 %v3404
      %vm3764 = vweird.f32 %v3758
      %vm3765 = vmor %vm3763, %vm3764
      %v3766 = vsel %vm3765, %v3758, %v3762
      %v3767 = vand.u32 2147483647, %v3404
      %vm3768 = vcmp.eq.f32.partialorder %v3767, 8.507059e+37
      %v3769 = vand.u32 %v3404, 2147483648
      %v3770 = vor.u32 1.1754944e-38, %v3769
      %v3771 = vsel %vm3768, %v3770, %v3766
      %v3772 = vmul.f32 1.0, %v3771
      %v3773 = vrcp.pop %v3405
      %v3774 = vmul.f32 %v3405, %v3773
      %v3775 = vsub.f32 1.0, %v3774
      %v3776 = vmul.f32 %v3773, %v3775
      %v3777 = vadd.f32 %v3773, %v3776
      %vm3778 = vweird.f32 %v3405
      %vm3779 = vweird.f32 %v3773
      %vm3780 = vmor %vm3778, %vm3779
      %v3781 = vsel %vm3780, %v3773, %v3777
      %v3782 = vand.u32 2147483647, %v3405
      %vm3783 = vcmp.eq.f32.partialorder %v3782, 8.507059e+37
      %v3784 = vand.u32 %v3405, 2147483648
      %v3785 = vor.u32 1.1754944e-38, %v3784
      %v3786 = vsel %vm3783, %v3785, %v3781
      %v3787 = vmul.f32 1.0, %v3786
      %v3788 = vrcp.pop %v3406
      %v3789 = vmul.f32 %v3406, %v3788
      %v3790 = vsub.f32 1.0, %v3789
      %v3791 = vmul.f32 %v3788, %v3790
      %v3792 = vadd.f32 %v3788, %v3791
      %vm3793 = vweird.f32 %v3406
      %vm3794 = vweird.f32 %v3788
      %vm3795 = vmor %vm3793, %vm3794
      %v3796 = vsel %vm3795, %v3788, %v3792
      %v3797 = vand.u32 2147483647, %v3406
      %vm3798 = vcmp.eq.f32.partialorder %v3797, 8.507059e+37
      %v3799 = vand.u32 %v3406, 2147483648
      %v3800 = vor.u32 1.1754944e-38, %v3799
      %v3801 = vsel %vm3798, %v3800, %v3796
      %v3802 = vmul.f32 1.0, %v3801
      %v3803 = vrcp.pop %v3407
      %v3804 = vmul.f32 %v3407, %v3803
      %v3805 = vsub.f32 1.0, %v3804
      %v3806 = vmul.f32 %v3803, %v3805
      %v3807 = vadd.f32 %v3803, %v3806
      %vm3808 = vweird.f32 %v3407
      %vm3809 = vweird.f32 %v3803
      %vm3810 = vmor %vm3808, %vm3809
      %v3811 = vsel %vm3810, %v3803, %v3807
      %v3812 = vand.u32 2147483647, %v3407
      %vm3813 = vcmp.eq.f32.partialorder %v3812, 8.507059e+37
      %v3814 = vand.u32 %v3407, 2147483648
      %v3815 = vor.u32 1.1754944e-38, %v3814
      %v3816 = vsel %vm3813, %v3815, %v3811
      %v3817 = vmul.f32 1.0, %v3816
      %v3818 = vrcp.pop %v3408
      %v3819 = vmul.f32 %v3408, %v3818
      %v3820 = vsub.f32 1.0, %v3819
      %v3821 = vmul.f32 %v3818, %v3820
      %v3822 = vadd.f32 %v3818, %v3821
      %vm3823 = vweird.f32 %v3408
      %vm3824 = vweird.f32 %v3818
      %vm3825 = vmor %vm3823, %vm3824
      %v3826 = vsel %vm3825, %v3818, %v3822
      %v3827 = vand.u32 2147483647, %v3408
      %vm3828 = vcmp.eq.f32.partialorder %v3827, 8.507059e+37
      %v3829 = vand.u32 %v3408, 2147483648
      %v3830 = vor.u32 1.1754944e-38, %v3829
      %v3831 = vsel %vm3828, %v3830, %v3826
      %v3832 = vmul.f32 1.0, %v3831
      %v3833 = vrcp.pop %v3409
      %v3834 = vmul.f32 %v3409, %v3833
      %v3835 = vsub.f32 1.0, %v3834
      %v3836 = vmul.f32 %v3833, %v3835
      %v3837 = vadd.f32 %v3833, %v3836
      %vm3838 = vweird.f32 %v3409
      %vm3839 = vweird.f32 %v3833
      %vm3840 = vmor %vm3838, %vm3839
      %v3841 = vsel %vm3840, %v3833, %v3837
      %v3842 = vand.u32 2147483647, %v3409
      %vm3843 = vcmp.eq.f32.partialorder %v3842, 8.507059e+37
      %v3844 = vand.u32 %v3409, 2147483648
      %v3845 = vor.u32 1.1754944e-38, %v3844
      %v3846 = vsel %vm3843, %v3845, %v3841
      %v3847 = vmul.f32 1.0, %v3846
      %v3848 = vrcp.pop %v3410
      %v3849 = vmul.f32 %v3410, %v3848
      %v3850 = vsub.f32 1.0, %v3849
      %v3851 = vmul.f32 %v3848, %v3850
      %v3852 = vadd.f32 %v3848, %v3851
      %vm3853 = vweird.f32 %v3410
      %vm3854 = vweird.f32 %v3848
      %vm3855 = vmor %vm3853, %vm3854
      %v3856 = vsel %vm3855, %v3848, %v3852
      %v3857 = vand.u32 2147483647, %v3410
      %vm3858 = vcmp.eq.f32.partialorder %v3857, 8.507059e+37
      %v3859 = vand.u32 %v3410, 2147483648
      %v3860 = vor.u32 1.1754944e-38, %v3859
      %v3861 = vsel %vm3858, %v3860, %v3856
      %v3862 = vmul.f32 1.0, %v3861
      %v3863 = vrcp.pop %v3411
      %v3864 = vmul.f32 %v3411, %v3863
      %v3865 = vsub.f32 1.0, %v3864
      %v3866 = vmul.f32 %v3863, %v3865
      %v3867 = vadd.f32 %v3863, %v3866
      %vm3868 = vweird.f32 %v3411
      %vm3869 = vweird.f32 %v3863
      %vm3870 = vmor %vm3868, %vm3869
      %v3871 = vsel %vm3870, %v3863, %v3867
      %v3872 = vand.u32 2147483647, %v3411
      %vm3873 = vcmp.eq.f32.partialorder %v3872, 8.507059e+37
      %v3874 = vand.u32 %v3411, 2147483648
      %v3875 = vor.u32 1.1754944e-38, %v3874
      %v3876 = vsel %vm3873, %v3875, %v3871
      %v3877 = vmul.f32 1.0, %v3876
      %v3878 = vrcp.pop %v3412
      %v3879 = vmul.f32 %v3412, %v3878
      %v3880 = vsub.f32 1.0, %v3879
      %v3881 = vmul.f32 %v3878, %v3880
      %v3882 = vadd.f32 %v3878, %v3881
      %vm3883 = vweird.f32 %v3412
      %vm3884 = vweird.f32 %v3878
      %vm3885 = vmor %vm3883, %vm3884
      %v3886 = vsel %vm3885, %v3878, %v3882
      %v3887 = vand.u32 2147483647, %v3412
      %vm3888 = vcmp.eq.f32.partialorder %v3887, 8.507059e+37
      %v3889 = vand.u32 %v3412, 2147483648
      %v3890 = vor.u32 1.1754944e-38, %v3889
      %v3891 = vsel %vm3888, %v3890, %v3886
      %v3892 = vmul.f32 1.0, %v3891
      %v3893 = vtanh.pop %v3250
      %v3894 = vtanh.pop %v3251
      %v3895 = vtanh.pop %v3252
      %v3896 = vtanh.pop %v3253
      %v3897 = vtanh.pop %v3254
      %v3898 = vtanh.pop %v3255
      %v3899 = vtanh.pop %v3256
      %v3900 = vtanh.pop %v3257
      %v3901 = vtanh.pop %v3258
      %v3902 = vtanh.pop %v3259
      %v3903 = vtanh.pop %v3260
      %v3904 = vtanh.pop %v3261
      %v3905 = vtanh.pop %v3262
      %v3906 = vtanh.pop %v3263
      %v3907 = vtanh.pop %v3264
      %v3908 = vtanh.pop %v3265
      %v3909 = vtanh.pop %v3266
      %v3910 = vtanh.pop %v3267
      %v3911 = vtanh.pop %v3268
      %v3912 = vtanh.pop %v3269
      %v3913 = vtanh.pop %v3270
      %v3914 = vtanh.pop %v3271
      %v3915 = vtanh.pop %v3272
      %v3916 = vtanh.pop %v3273
      %v3917 = vtanh.pop %v3274
      %v3918 = vtanh.pop %v3275
      %v3919 = vtanh.pop %v3276
      %v3920 = vtanh.pop %v3277
      %v3921 = vtanh.pop %v3278
      %v3922 = vtanh.pop %v3279
      %v3923 = vtanh.pop %v3280
      %v3924 = vtanh.pop %v3281
      %v3925 = vsel %vm3284, %v3427, %v3893
      %v3926 = vsel %vm3284, %v3442, %v3894
      %v3927 = vsel %vm3284, %v3457, %v3895
      %v3928 = vsel %vm3284, %v3472, %v3896
      %v3929 = vsel %vm3284, %v3487, %v3897
      %v3930 = vsel %vm3284, %v3502, %v3898
      %v3931 = vsel %vm3284, %v3517, %v3899
      %v3932 = vsel %vm3284, %v3532, %v3900
      %v3933 = vsel %vm3284, %v3547, %v3901
      %v3934 = vsel %vm3284, %v3562, %v3902
      %v3935 = vsel %vm3284, %v3577, %v3903
      %v3936 = vsel %vm3284, %v3592, %v3904
      %v3937 = vsel %vm3284, %v3607, %v3905
      %v3938 = vsel %vm3284, %v3622, %v3906
      %v3939 = vsel %vm3284, %v3637, %v3907
      %v3940 = vsel %vm3284, %v3652, %v3908
      %v3941 = vsel %vm3284, %v3667, %v3909
      %v3942 = vsel %vm3284, %v3682, %v3910
      %v3943 = vsel %vm3284, %v3697, %v3911
      %v3944 = vsel %vm3284, %v3712, %v3912
      %v3945 = vsel %vm3284, %v3727, %v3913
      %v3946 = vsel %vm3284, %v3742, %v3914
      %v3947 = vsel %vm3284, %v3757, %v3915
      %v3948 = vsel %vm3284, %v3772, %v3916
      %v3949 = vsel %vm3284, %v3787, %v3917
      %v3950 = vsel %vm3284, %v3802, %v3918
      %v3951 = vsel %vm3284, %v3817, %v3919
      %v3952 = vsel %vm3284, %v3832, %v3920
      %v3953 = vsel %vm3284, %v3847, %v3921
      %v3954 = vsel %vm3284, %v3862, %v3922
      %v3955 = vsel %vm3284, %v3877, %v3923
      %v3956 = vsel %vm3284, %v3892, %v3924
      %3989 = vrot.lane.b32.xlu0 %v669, 32
      %v3990 = vpop.permute.xlu0 %3989
      %3991 = vrot.lane.b32.xlu0 %v670, 32
      %v3992 = vpop.permute.xlu0 %3991
      %3993 = vrot.lane.b32.xlu0 %v671, 32
      %v3994 = vpop.permute.xlu0 %3993
      %3995 = vrot.lane.b32.xlu0 %v672, 32
      %v3996 = vpop.permute.xlu0 %3995
      %3997 = vrot.lane.b32.xlu0 %v673, 32
      %v3998 = vpop.permute.xlu0 %3997
      %3999 = vrot.lane.b32.xlu0 %v674, 32
      %v4000 = vpop.permute.xlu0 %3999
      %4001 = vrot.lane.b32.xlu0 %v675, 32
      %v4002 = vpop.permute.xlu0 %4001
      %4003 = vrot.lane.b32.xlu0 %v676, 32
      %v4004 = vpop.permute.xlu0 %4003
      %4005 = vrot.lane.b32.xlu0 %v677, 32
      %v4006 = vpop.permute.xlu0 %4005
      %4007 = vrot.lane.b32.xlu0 %v678, 32
      %v4008 = vpop.permute.xlu0 %4007
      %4009 = vrot.lane.b32.xlu0 %v679, 32
      %v4010 = vpop.permute.xlu0 %4009
      %4011 = vrot.lane.b32.xlu0 %v680, 32
      %v4012 = vpop.permute.xlu0 %4011
      %4013 = vrot.lane.b32.xlu0 %v681, 32
      %v4014 = vpop.permute.xlu0 %4013
      %4015 = vrot.lane.b32.xlu0 %v682, 32
      %v4016 = vpop.permute.xlu0 %4015
      %4017 = vrot.lane.b32.xlu0 %v683, 32
      %v4018 = vpop.permute.xlu0 %4017
      %4019 = vrot.lane.b32.xlu0 %v684, 32
      %v4020 = vpop.permute.xlu0 %4019
      %4021 = vrot.lane.b32.xlu0 %v685, 32
      %v4022 = vpop.permute.xlu0 %4021
      %4023 = vrot.lane.b32.xlu0 %v686, 32
      %v4024 = vpop.permute.xlu0 %4023
      %4025 = vrot.lane.b32.xlu0 %v687, 32
      %v4026 = vpop.permute.xlu0 %4025
      %4027 = vrot.lane.b32.xlu0 %v688, 32
      %v4028 = vpop.permute.xlu0 %4027
      %4029 = vrot.lane.b32.xlu0 %v689, 32
      %v4030 = vpop.permute.xlu0 %4029
      %4031 = vrot.lane.b32.xlu0 %v690, 32
      %v4032 = vpop.permute.xlu0 %4031
      %4033 = vrot.lane.b32.xlu0 %v691, 32
      %v4034 = vpop.permute.xlu0 %4033
      %4035 = vrot.lane.b32.xlu0 %v692, 32
      %v4036 = vpop.permute.xlu0 %4035
      %4037 = vrot.lane.b32.xlu0 %v693, 32
      %v4038 = vpop.permute.xlu0 %4037
      %4039 = vrot.lane.b32.xlu0 %v694, 32
      %v4040 = vpop.permute.xlu0 %4039
      %4041 = vrot.lane.b32.xlu0 %v695, 32
      %v4042 = vpop.permute.xlu0 %4041
      %4043 = vrot.lane.b32.xlu0 %v696, 32
      %v4044 = vpop.permute.xlu0 %4043
      %4045 = vrot.lane.b32.xlu0 %v697, 32
      %v4046 = vpop.permute.xlu0 %4045
      %4047 = vrot.lane.b32.xlu0 %v698, 32
      %v4048 = vpop.permute.xlu0 %4047
      %4049 = vrot.lane.b32.xlu0 %v699, 32
      %v4050 = vpop.permute.xlu0 %4049
      %4051 = vrot.lane.b32.xlu0 %v700, 32
      %v4052 = vpop.permute.xlu0 %4051
      %v4085 = vmul.f32 %v3925, %v3990
      %v4086 = vmul.f32 %v3926, %v3992
      %v4087 = vmul.f32 %v3927, %v3994
      %v4088 = vmul.f32 %v3928, %v3996
      %v4089 = vmul.f32 %v3929, %v3998
      %v4090 = vmul.f32 %v3930, %v4000
      %v4091 = vmul.f32 %v3931, %v4002
      %v4092 = vmul.f32 %v3932, %v4004
      %v4093 = vmul.f32 %v3933, %v4006
      %v4094 = vmul.f32 %v3934, %v4008
      %v4095 = vmul.f32 %v3935, %v4010
      %v4096 = vmul.f32 %v3936, %v4012
      %v4097 = vmul.f32 %v3937, %v4014
      %v4098 = vmul.f32 %v3938, %v4016
      %v4099 = vmul.f32 %v3939, %v4018
      %v4100 = vmul.f32 %v3940, %v4020
      %v4101 = vmul.f32 %v3941, %v4022
      %v4102 = vmul.f32 %v3942, %v4024
      %v4103 = vmul.f32 %v3943, %v4026
      %v4104 = vmul.f32 %v3944, %v4028
      %v4105 = vmul.f32 %v3945, %v4030
      %v4106 = vmul.f32 %v3946, %v4032
      %v4107 = vmul.f32 %v3947, %v4034
      %v4108 = vmul.f32 %v3948, %v4036
      %v4109 = vmul.f32 %v3949, %v4038
      %v4110 = vmul.f32 %v3950, %v4040
      %v4111 = vmul.f32 %v3951, %v4042
      %v4112 = vmul.f32 %v3952, %v4044
      %v4113 = vmul.f32 %v3953, %v4046
      %v4114 = vmul.f32 %v3954, %v4048
      %v4115 = vmul.f32 %v3955, %v4050
      %v4116 = vmul.f32 %v3956, %v4052
      %4149 = vrot.lane.b32.xlu0 %v3925, 32
      %v4150 = vpop.permute.xlu0 %4149
      %4151 = vrot.lane.b32.xlu0 %v3926, 32
      %v4152 = vpop.permute.xlu0 %4151
      %4153 = vrot.lane.b32.xlu0 %v3927, 32
      %v4154 = vpop.permute.xlu0 %4153
      %4155 = vrot.lane.b32.xlu0 %v3928, 32
      %v4156 = vpop.permute.xlu0 %4155
      %4157 = vrot.lane.b32.xlu0 %v3929, 32
      %v4158 = vpop.permute.xlu0 %4157
      %4159 = vrot.lane.b32.xlu0 %v3930, 32
      %v4160 = vpop.permute.xlu0 %4159
      %4161 = vrot.lane.b32.xlu0 %v3931, 32
      %v4162 = vpop.permute.xlu0 %4161
      %4163 = vrot.lane.b32.xlu0 %v3932, 32
      %v4164 = vpop.permute.xlu0 %4163
      %4165 = vrot.lane.b32.xlu0 %v3933, 32
      %v4166 = vpop.permute.xlu0 %4165
      %4167 = vrot.lane.b32.xlu0 %v3934, 32
      %v4168 = vpop.permute.xlu0 %4167
      %4169 = vrot.lane.b32.xlu0 %v3935, 32
      %v4170 = vpop.permute.xlu0 %4169
      %4171 = vrot.lane.b32.xlu0 %v3936, 32
      %v4172 = vpop.permute.xlu0 %4171
      %4173 = vrot.lane.b32.xlu0 %v3937, 32
      %v4174 = vpop.permute.xlu0 %4173
      %4175 = vrot.lane.b32.xlu0 %v3938, 32
      %v4176 = vpop.permute.xlu0 %4175
      %4177 = vrot.lane.b32.xlu0 %v3939, 32
      %v4178 = vpop.permute.xlu0 %4177
      %4179 = vrot.lane.b32.xlu0 %v3940, 32
      %v4180 = vpop.permute.xlu0 %4179
      %4181 = vrot.lane.b32.xlu0 %v3941, 32
      %v4182 = vpop.permute.xlu0 %4181
      %4183 = vrot.lane.b32.xlu0 %v3942, 32
      %v4184 = vpop.permute.xlu0 %4183
      %4185 = vrot.lane.b32.xlu0 %v3943, 32
      %v4186 = vpop.permute.xlu0 %4185
      %4187 = vrot.lane.b32.xlu0 %v3944, 32
      %v4188 = vpop.permute.xlu0 %4187
      %4189 = vrot.lane.b32.xlu0 %v3945, 32
      %v4190 = vpop.permute.xlu0 %4189
      %4191 = vrot.lane.b32.xlu0 %v3946, 32
      %v4192 = vpop.permute.xlu0 %4191
      %4193 = vrot.lane.b32.xlu0 %v3947, 32
      %v4194 = vpop.permute.xlu0 %4193
      %4195 = vrot.lane.b32.xlu0 %v3948, 32
      %v4196 = vpop.permute.xlu0 %4195
      %4197 = vrot.lane.b32.xlu0 %v3949, 32
      %v4198 = vpop.permute.xlu0 %4197
      %4199 = vrot.lane.b32.xlu0 %v3950, 32
      %v4200 = vpop.permute.xlu0 %4199
      %4201 = vrot.lane.b32.xlu0 %v3951, 32
      %v4202 = vpop.permute.xlu0 %4201
      %4203 = vrot.lane.b32.xlu0 %v3952, 32
      %v4204 = vpop.permute.xlu0 %4203
      %4205 = vrot.lane.b32.xlu0 %v3953, 32
      %v4206 = vpop.permute.xlu0 %4205
      %4207 = vrot.lane.b32.xlu0 %v3954, 32
      %v4208 = vpop.permute.xlu0 %4207
      %4209 = vrot.lane.b32.xlu0 %v3955, 32
      %v4210 = vpop.permute.xlu0 %4209
      %4211 = vrot.lane.b32.xlu0 %v3956, 32
      %v4212 = vpop.permute.xlu0 %4211
      %v4245 = vmul.f32 %v3925, %v4150
      %v4246 = vmul.f32 %v3926, %v4152
      %v4247 = vmul.f32 %v3927, %v4154
      %v4248 = vmul.f32 %v3928, %v4156
      %v4249 = vmul.f32 %v3929, %v4158
      %v4250 = vmul.f32 %v3930, %v4160
      %v4251 = vmul.f32 %v3931, %v4162
      %v4252 = vmul.f32 %v3932, %v4164
      %v4253 = vmul.f32 %v3933, %v4166
      %v4254 = vmul.f32 %v3934, %v4168
      %v4255 = vmul.f32 %v3935, %v4170
      %v4256 = vmul.f32 %v3936, %v4172
      %v4257 = vmul.f32 %v3937, %v4174
      %v4258 = vmul.f32 %v3938, %v4176
      %v4259 = vmul.f32 %v3939, %v4178
      %v4260 = vmul.f32 %v3940, %v4180
      %v4261 = vmul.f32 %v3941, %v4182
      %v4262 = vmul.f32 %v3942, %v4184
      %v4263 = vmul.f32 %v3943, %v4186
      %v4264 = vmul.f32 %v3944, %v4188
      %v4265 = vmul.f32 %v3945, %v4190
      %v4266 = vmul.f32 %v3946, %v4192
      %v4267 = vmul.f32 %v3947, %v4194
      %v4268 = vmul.f32 %v3948, %v4196
      %v4269 = vmul.f32 %v3949, %v4198
      %v4270 = vmul.f32 %v3950, %v4200
      %v4271 = vmul.f32 %v3951, %v4202
      %v4272 = vmul.f32 %v3952, %v4204
      %v4273 = vmul.f32 %v3953, %v4206
      %v4274 = vmul.f32 %v3954, %v4208
      %v4275 = vmul.f32 %v3955, %v4210
      %v4276 = vmul.f32 %v3956, %v4212
      %4309 = vrot.lane.b32.xlu0 %v4245, 32
      %v4310 = vpop.permute.xlu0 %4309
      %4311 = vrot.lane.b32.xlu0 %v4246, 32
      %v4312 = vpop.permute.xlu0 %4311
      %4313 = vrot.lane.b32.xlu0 %v4247, 32
      %v4314 = vpop.permute.xlu0 %4313
      %4315 = vrot.lane.b32.xlu0 %v4248, 32
      %v4316 = vpop.permute.xlu0 %4315
      %4317 = vrot.lane.b32.xlu0 %v4249, 32
      %v4318 = vpop.permute.xlu0 %4317
      %4319 = vrot.lane.b32.xlu0 %v4250, 32
      %v4320 = vpop.permute.xlu0 %4319
      %4321 = vrot.lane.b32.xlu0 %v4251, 32
      %v4322 = vpop.permute.xlu0 %4321
      %4323 = vrot.lane.b32.xlu0 %v4252, 32
      %v4324 = vpop.permute.xlu0 %4323
      %4325 = vrot.lane.b32.xlu0 %v4253, 32
      %v4326 = vpop.permute.xlu0 %4325
      %4327 = vrot.lane.b32.xlu0 %v4254, 32
      %v4328 = vpop.permute.xlu0 %4327
      %4329 = vrot.lane.b32.xlu0 %v4255, 32
      %v4330 = vpop.permute.xlu0 %4329
      %4331 = vrot.lane.b32.xlu0 %v4256, 32
      %v4332 = vpop.permute.xlu0 %4331
      %4333 = vrot.lane.b32.xlu0 %v4257, 32
      %v4334 = vpop.permute.xlu0 %4333
      %4335 = vrot.lane.b32.xlu0 %v4258, 32
      %v4336 = vpop.permute.xlu0 %4335
      %4337 = vrot.lane.b32.xlu0 %v4259, 32
      %v4338 = vpop.permute.xlu0 %4337
      %4339 = vrot.lane.b32.xlu0 %v4260, 32
      %v4340 = vpop.permute.xlu0 %4339
      %4341 = vrot.lane.b32.xlu0 %v4261, 32
      %v4342 = vpop.permute.xlu0 %4341
      %4343 = vrot.lane.b32.xlu0 %v4262, 32
      %v4344 = vpop.permute.xlu0 %4343
      %4345 = vrot.lane.b32.xlu0 %v4263, 32
      %v4346 = vpop.permute.xlu0 %4345
      %4347 = vrot.lane.b32.xlu0 %v4264, 32
      %v4348 = vpop.permute.xlu0 %4347
      %4349 = vrot.lane.b32.xlu0 %v4265, 32
      %v4350 = vpop.permute.xlu0 %4349
      %4351 = vrot.lane.b32.xlu0 %v4266, 32
      %v4352 = vpop.permute.xlu0 %4351
      %4353 = vrot.lane.b32.xlu0 %v4267, 32
      %v4354 = vpop.permute.xlu0 %4353
      %4355 = vrot.lane.b32.xlu0 %v4268, 32
      %v4356 = vpop.permute.xlu0 %4355
      %4357 = vrot.lane.b32.xlu0 %v4269, 32
      %v4358 = vpop.permute.xlu0 %4357
      %4359 = vrot.lane.b32.xlu0 %v4270, 32
      %v4360 = vpop.permute.xlu0 %4359
      %4361 = vrot.lane.b32.xlu0 %v4271, 32
      %v4362 = vpop.permute.xlu0 %4361
      %4363 = vrot.lane.b32.xlu0 %v4272, 32
      %v4364 = vpop.permute.xlu0 %4363
      %4365 = vrot.lane.b32.xlu0 %v4273, 32
      %v4366 = vpop.permute.xlu0 %4365
      %4367 = vrot.lane.b32.xlu0 %v4274, 32
      %v4368 = vpop.permute.xlu0 %4367
      %4369 = vrot.lane.b32.xlu0 %v4275, 32
      %v4370 = vpop.permute.xlu0 %4369
      %4371 = vrot.lane.b32.xlu0 %v4276, 32
      %v4372 = vpop.permute.xlu0 %4371
      %v4405 = vadd.f32 %v4085, %v4310
      %v4406 = vadd.f32 %v4086, %v4312
      %v4407 = vadd.f32 %v4087, %v4314
      %v4408 = vadd.f32 %v4088, %v4316
      %v4409 = vadd.f32 %v4089, %v4318
      %v4410 = vadd.f32 %v4090, %v4320
      %v4411 = vadd.f32 %v4091, %v4322
      %v4412 = vadd.f32 %v4092, %v4324
      %v4413 = vadd.f32 %v4093, %v4326
      %v4414 = vadd.f32 %v4094, %v4328
      %v4415 = vadd.f32 %v4095, %v4330
      %v4416 = vadd.f32 %v4096, %v4332
      %v4417 = vadd.f32 %v4097, %v4334
      %v4418 = vadd.f32 %v4098, %v4336
      %v4419 = vadd.f32 %v4099, %v4338
      %v4420 = vadd.f32 %v4100, %v4340
      %v4421 = vadd.f32 %v4101, %v4342
      %v4422 = vadd.f32 %v4102, %v4344
      %v4423 = vadd.f32 %v4103, %v4346
      %v4424 = vadd.f32 %v4104, %v4348
      %v4425 = vadd.f32 %v4105, %v4350
      %v4426 = vadd.f32 %v4106, %v4352
      %v4427 = vadd.f32 %v4107, %v4354
      %v4428 = vadd.f32 %v4108, %v4356
      %v4429 = vadd.f32 %v4109, %v4358
      %v4430 = vadd.f32 %v4110, %v4360
      %v4431 = vadd.f32 %v4111, %v4362
      %v4432 = vadd.f32 %v4112, %v4364
      %v4433 = vadd.f32 %v4113, %v4366
      %v4434 = vadd.f32 %v4114, %v4368
      %v4435 = vadd.f32 %v4115, %v4370
      %v4436 = vadd.f32 %v4116, %v4372
      %v4437 = vtanh.pop %v4405
      %v4438 = vtanh.pop %v4406
      %v4439 = vtanh.pop %v4407
      %v4440 = vtanh.pop %v4408
      %v4441 = vtanh.pop %v4409
      %v4442 = vtanh.pop %v4410
      %v4443 = vtanh.pop %v4411
      %v4444 = vtanh.pop %v4412
      %v4445 = vtanh.pop %v4413
      %v4446 = vtanh.pop %v4414
      %v4447 = vtanh.pop %v4415
      %v4448 = vtanh.pop %v4416
      %v4449 = vtanh.pop %v4417
      %v4450 = vtanh.pop %v4418
      %v4451 = vtanh.pop %v4419
      %v4452 = vtanh.pop %v4420
      %v4453 = vtanh.pop %v4421
      %v4454 = vtanh.pop %v4422
      %v4455 = vtanh.pop %v4423
      %v4456 = vtanh.pop %v4424
      %v4457 = vtanh.pop %v4425
      %v4458 = vtanh.pop %v4426
      %v4459 = vtanh.pop %v4427
      %v4460 = vtanh.pop %v4428
      %v4461 = vtanh.pop %v4429
      %v4462 = vtanh.pop %v4430
      %v4463 = vtanh.pop %v4431
      %v4464 = vtanh.pop %v4432
      %v4465 = vtanh.pop %v4433
      %v4466 = vtanh.pop %v4434
      %v4467 = vtanh.pop %v4435
      %v4468 = vtanh.pop %v4436
      %4501 = vrot.lane.b32.xlu0 %v4437, 32
      %v4502 = vpop.permute.xlu0 %4501
      %4503 = vrot.lane.b32.xlu0 %v4438, 32
      %v4504 = vpop.permute.xlu0 %4503
      %4505 = vrot.lane.b32.xlu0 %v4439, 32
      %v4506 = vpop.permute.xlu0 %4505
      %4507 = vrot.lane.b32.xlu0 %v4440, 32
      %v4508 = vpop.permute.xlu0 %4507
      %4509 = vrot.lane.b32.xlu0 %v4441, 32
      %v4510 = vpop.permute.xlu0 %4509
      %4511 = vrot.lane.b32.xlu0 %v4442, 32
      %v4512 = vpop.permute.xlu0 %4511
      %4513 = vrot.lane.b32.xlu0 %v4443, 32
      %v4514 = vpop.permute.xlu0 %4513
      %4515 = vrot.lane.b32.xlu0 %v4444, 32
      %v4516 = vpop.permute.xlu0 %4515
      %4517 = vrot.lane.b32.xlu0 %v4445, 32
      %v4518 = vpop.permute.xlu0 %4517
      %4519 = vrot.lane.b32.xlu0 %v4446, 32
      %v4520 = vpop.permute.xlu0 %4519
      %4521 = vrot.lane.b32.xlu0 %v4447, 32
      %v4522 = vpop.permute.xlu0 %4521
      %4523 = vrot.lane.b32.xlu0 %v4448, 32
      %v4524 = vpop.permute.xlu0 %4523
      %4525 = vrot.lane.b32.xlu0 %v4449, 32
      %v4526 = vpop.permute.xlu0 %4525
      %4527 = vrot.lane.b32.xlu0 %v4450, 32
      %v4528 = vpop.permute.xlu0 %4527
      %4529 = vrot.lane.b32.xlu0 %v4451, 32
      %v4530 = vpop.permute.xlu0 %4529
      %4531 = vrot.lane.b32.xlu0 %v4452, 32
      %v4532 = vpop.permute.xlu0 %4531
      %4533 = vrot.lane.b32.xlu0 %v4453, 32
      %v4534 = vpop.permute.xlu0 %4533
      %4535 = vrot.lane.b32.xlu0 %v4454, 32
      %v4536 = vpop.permute.xlu0 %4535
      %4537 = vrot.lane.b32.xlu0 %v4455, 32
      %v4538 = vpop.permute.xlu0 %4537
      %4539 = vrot.lane.b32.xlu0 %v4456, 32
      %v4540 = vpop.permute.xlu0 %4539
      %4541 = vrot.lane.b32.xlu0 %v4457, 32
      %v4542 = vpop.permute.xlu0 %4541
      %4543 = vrot.lane.b32.xlu0 %v4458, 32
      %v4544 = vpop.permute.xlu0 %4543
      %4545 = vrot.lane.b32.xlu0 %v4459, 32
      %v4546 = vpop.permute.xlu0 %4545
      %4547 = vrot.lane.b32.xlu0 %v4460, 32
      %v4548 = vpop.permute.xlu0 %4547
      %4549 = vrot.lane.b32.xlu0 %v4461, 32
      %v4550 = vpop.permute.xlu0 %4549
      %4551 = vrot.lane.b32.xlu0 %v4462, 32
      %v4552 = vpop.permute.xlu0 %4551
      %4553 = vrot.lane.b32.xlu0 %v4463, 32
      %v4554 = vpop.permute.xlu0 %4553
      %4555 = vrot.lane.b32.xlu0 %v4464, 32
      %v4556 = vpop.permute.xlu0 %4555
      %4557 = vrot.lane.b32.xlu0 %v4465, 32
      %v4558 = vpop.permute.xlu0 %4557
      %4559 = vrot.lane.b32.xlu0 %v4466, 32
      %v4560 = vpop.permute.xlu0 %4559
      %4561 = vrot.lane.b32.xlu0 %v4467, 32
      %v4562 = vpop.permute.xlu0 %4561
      %4563 = vrot.lane.b32.xlu0 %v4468, 32
      %v4564 = vpop.permute.xlu0 %4563
      %v4597 = vmul.f32 %v3925, %v4502
      %v4598 = vmul.f32 %v3926, %v4504
      %v4599 = vmul.f32 %v3927, %v4506
      %v4600 = vmul.f32 %v3928, %v4508
      %v4601 = vmul.f32 %v3929, %v4510
      %v4602 = vmul.f32 %v3930, %v4512
      %v4603 = vmul.f32 %v3931, %v4514
      %v4604 = vmul.f32 %v3932, %v4516
      %v4605 = vmul.f32 %v3933, %v4518
      %v4606 = vmul.f32 %v3934, %v4520
      %v4607 = vmul.f32 %v3935, %v4522
      %v4608 = vmul.f32 %v3936, %v4524
      %v4609 = vmul.f32 %v3937, %v4526
      %v4610 = vmul.f32 %v3938, %v4528
      %v4611 = vmul.f32 %v3939, %v4530
      %v4612 = vmul.f32 %v3940, %v4532
      %v4613 = vmul.f32 %v3941, %v4534
      %v4614 = vmul.f32 %v3942, %v4536
      %v4615 = vmul.f32 %v3943, %v4538
      %v4616 = vmul.f32 %v3944, %v4540
      %v4617 = vmul.f32 %v3945, %v4542
      %v4618 = vmul.f32 %v3946, %v4544
      %v4619 = vmul.f32 %v3947, %v4546
      %v4620 = vmul.f32 %v3948, %v4548
      %v4621 = vmul.f32 %v3949, %v4550
      %v4622 = vmul.f32 %v3950, %v4552
      %v4623 = vmul.f32 %v3951, %v4554
      %v4624 = vmul.f32 %v3952, %v4556
      %v4625 = vmul.f32 %v3953, %v4558
      %v4626 = vmul.f32 %v3954, %v4560
      %v4627 = vmul.f32 %v3955, %v4562
      %v4628 = vmul.f32 %v3956, %v4564
      %v4629 = vpack.c.bf16 %v4598, %v4597
      %v4630 = vpack.c.bf16 %v4600, %v4599
      %v4631 = vpack.c.bf16 %v4602, %v4601
      %v4632 = vpack.c.bf16 %v4604, %v4603
      %v4633 = vpack.c.bf16 %v4606, %v4605
      %v4634 = vpack.c.bf16 %v4608, %v4607
      %v4635 = vpack.c.bf16 %v4610, %v4609
      %v4636 = vpack.c.bf16 %v4612, %v4611
      %v4637 = vpack.c.bf16 %v4614, %v4613
      %v4638 = vpack.c.bf16 %v4616, %v4615
      %v4639 = vpack.c.bf16 %v4618, %v4617
      %v4640 = vpack.c.bf16 %v4620, %v4619
      %v4641 = vpack.c.bf16 %v4622, %v4621
      %v4642 = vpack.c.bf16 %v4624, %v4623
      %v4643 = vpack.c.bf16 %v4626, %v4625
      %v4644 = vpack.c.bf16 %v4628, %v4627
      %v4645 = vpack.c.bf16 %v702, %v701
      %v4646 = vpack.c.bf16 %v704, %v703
      %v4647 = vpack.c.bf16 %v706, %v705
      %v4648 = vpack.c.bf16 %v708, %v707
      %v4649 = vpack.c.bf16 %v710, %v709
      %v4650 = vpack.c.bf16 %v712, %v711
      %v4651 = vpack.c.bf16 %v714, %v713
      %v4652 = vpack.c.bf16 %v716, %v715
      %v4653 = vpack.c.bf16 %v718, %v717
      %v4654 = vpack.c.bf16 %v720, %v719
      %v4655 = vpack.c.bf16 %v722, %v721
      %v4656 = vpack.c.bf16 %v724, %v723
      %v4657 = vpack.c.bf16 %v726, %v725
      %v4658 = vpack.c.bf16 %v728, %v727
      %v4659 = vpack.c.bf16 %v730, %v729
      %v4660 = vpack.c.bf16 %v732, %v731
      %v4661 = vld [vmem:[%s7] sm:$0xf]
      %v4662 = vld [vmem:[%s7 + $0x4] sm:$0xf]
      %v4663 = vld [vmem:[%s7 + $0x8] sm:$0xf]
      %v4664 = vld [vmem:[%s7 + $0xc] sm:$0xf]
      %v4665 = vld [vmem:[%s8] sm:$0x1]
      %v4667 = vperm.slane %v4665, 0
      %4685 = vrot.lane.b32.xlu0 %v4629, 64
      %v4686 = vpop.permute.xlu0 %4685
      %4687 = vrot.lane.b32.xlu0 %v4630, 64
      %v4688 = vpop.permute.xlu0 %4687
      %4689 = vrot.lane.b32.xlu0 %v4631, 64
      %v4690 = vpop.permute.xlu0 %4689
      %4691 = vrot.lane.b32.xlu0 %v4632, 64
      %v4692 = vpop.permute.xlu0 %4691
      %4693 = vrot.lane.b32.xlu0 %v4633, 64
      %v4694 = vpop.permute.xlu0 %4693
      %4695 = vrot.lane.b32.xlu0 %v4634, 64
      %v4696 = vpop.permute.xlu0 %4695
      %4697 = vrot.lane.b32.xlu0 %v4635, 64
      %v4698 = vpop.permute.xlu0 %4697
      %4699 = vrot.lane.b32.xlu0 %v4636, 64
      %v4700 = vpop.permute.xlu0 %4699
      %4701 = vrot.lane.b32.xlu0 %v4637, 64
      %v4702 = vpop.permute.xlu0 %4701
      %4703 = vrot.lane.b32.xlu0 %v4638, 64
      %v4704 = vpop.permute.xlu0 %4703
      %4705 = vrot.lane.b32.xlu0 %v4639, 64
      %v4706 = vpop.permute.xlu0 %4705
      %4707 = vrot.lane.b32.xlu0 %v4640, 64
      %v4708 = vpop.permute.xlu0 %4707
      %4709 = vrot.lane.b32.xlu0 %v4641, 64
      %v4710 = vpop.permute.xlu0 %4709
      %4711 = vrot.lane.b32.xlu0 %v4642, 64
      %v4712 = vpop.permute.xlu0 %4711
      %4713 = vrot.lane.b32.xlu0 %v4643, 64
      %v4714 = vpop.permute.xlu0 %4713
      %4715 = vrot.lane.b32.xlu0 %v4644, 64
      %v4716 = vpop.permute.xlu0 %4715
      %v4721 = vunpack.c.l.b16 %v4661
      %v4722 = vunpack.c.l.b16 %v4662
      %v4723 = vunpack.c.l.b16 %v4663
      %v4724 = vunpack.c.l.b16 %v4664
      %v4725 = vpack.c.b16 %v4722, %v4721
      %v4726 = vpack.c.b16 %v4724, %v4723
      %vm4729 = vcmask 261120
      %v4731 = vsel %vm4729, %v4686, 0
      %v4734 = vsel %vm4729, %v4688, 0
      %v4737 = vsel %vm4729, %v4690, 0
      %v4740 = vsel %vm4729, %v4692, 0
      %v4743 = vsel %vm4729, %v4694, 0
      %v4746 = vsel %vm4729, %v4696, 0
      %v4749 = vsel %vm4729, %v4698, 0
      %v4752 = vsel %vm4729, %v4700, 0
      %v4755 = vsel %vm4729, %v4702, 0
      %v4758 = vsel %vm4729, %v4704, 0
      %v4761 = vsel %vm4729, %v4706, 0
      %v4764 = vsel %vm4729, %v4708, 0
      %v4767 = vsel %vm4729, %v4710, 0
      %v4770 = vsel %vm4729, %v4712, 0
      %v4773 = vsel %vm4729, %v4714, 0
      %v4776 = vsel %vm4729, %v4716, 0
      %4778 = vmatpush.bf16.msra.mxu0 0
      %4779 = vmatpush.bf16.msra.mxu0 0
      %4780 = vmatpush.bf16.msra.mxu0 0
      %4781 = vmatpush.bf16.msra.mxu0 0
      %4782 = vmatpush.bf16.msra.mxu0 0
      %4783 = vmatpush.bf16.msra.mxu0 0
      %4784 = vmatpush.bf16.msra.mxu0 %v4726
      %4785 = vmatpush.bf16.msra.mxu0 %v4725
      %4786 = vmatmul.bf16.gmra.mxu0 %v4731
      %v4787 = vpop.f32.mrf.mxu0
      %v4788 = vadd.f32 %v4667, %v4787
      %v4789 = vpop.f32.mrf.mxu0
      %v4790 = vadd.f32 %v4667, %v4789
      %4791 = vmatmul.bf16.gmra.mxu0 %v4734
      %v4792 = vpop.f32.mrf.mxu0
      %v4793 = vadd.f32 %v4667, %v4792
      %v4794 = vpop.f32.mrf.mxu0
      %v4795 = vadd.f32 %v4667, %v4794
      %4796 = vmatmul.bf16.gmra.mxu0 %v4737
      %v4797 = vpop.f32.mrf.mxu0
      %v4798 = vadd.f32 %v4667, %v4797
      %v4799 = vpop.f32.mrf.mxu0
      %v4800 = vadd.f32 %v4667, %v4799
      %4801 = vmatmul.bf16.gmra.mxu0 %v4740
      %v4802 = vpop.f32.mrf.mxu0
      %v4803 = vadd.f32 %v4667, %v4802
      %v4804 = vpop.f32.mrf.mxu0
      %v4805 = vadd.f32 %v4667, %v4804
      %4806 = vmatmul.bf16.gmra.mxu0 %v4743
      %v4807 = vpop.f32.mrf.mxu0
      %v4808 = vadd.f32 %v4667, %v4807
      %v4809 = vpop.f32.mrf.mxu0
      %v4810 = vadd.f32 %v4667, %v4809
      %4811 = vmatmul.bf16.gmra.mxu0 %v4746
      %v4812 = vpop.f32.mrf.mxu0
      %v4813 = vadd.f32 %v4667, %v4812
      %v4814 = vpop.f32.mrf.mxu0
      %v4815 = vadd.f32 %v4667, %v4814
      %4816 = vmatmul.bf16.gmra.mxu0 %v4749
      %v4817 = vpop.f32.mrf.mxu0
      %v4818 = vadd.f32 %v4667, %v4817
      %v4819 = vpop.f32.mrf.mxu0
      %v4820 = vadd.f32 %v4667, %v4819
      %4821 = vmatmul.bf16.gmra.mxu0 %v4752
      %v4822 = vpop.f32.mrf.mxu0
      %v4823 = vadd.f32 %v4667, %v4822
      %v4824 = vpop.f32.mrf.mxu0
      %v4825 = vadd.f32 %v4667, %v4824
      %4826 = vmatmul.bf16.gmra.mxu0 %v4755
      %v4827 = vpop.f32.mrf.mxu0
      %v4828 = vadd.f32 %v4667, %v4827
      %v4829 = vpop.f32.mrf.mxu0
      %v4830 = vadd.f32 %v4667, %v4829
      %4831 = vmatmul.bf16.gmra.mxu0 %v4758
      %v4832 = vpop.f32.mrf.mxu0
      %v4833 = vadd.f32 %v4667, %v4832
      %v4834 = vpop.f32.mrf.mxu0
      %v4835 = vadd.f32 %v4667, %v4834
      %4836 = vmatmul.bf16.gmra.mxu0 %v4761
      %v4837 = vpop.f32.mrf.mxu0
      %v4838 = vadd.f32 %v4667, %v4837
      %v4839 = vpop.f32.mrf.mxu0
      %v4840 = vadd.f32 %v4667, %v4839
      %4841 = vmatmul.bf16.gmra.mxu0 %v4764
      %v4842 = vpop.f32.mrf.mxu0
      %v4843 = vadd.f32 %v4667, %v4842
      %v4844 = vpop.f32.mrf.mxu0
      %v4845 = vadd.f32 %v4667, %v4844
      %4846 = vmatmul.bf16.gmra.mxu0 %v4767
      %v4847 = vpop.f32.mrf.mxu0
      %v4848 = vadd.f32 %v4667, %v4847
      %v4849 = vpop.f32.mrf.mxu0
      %v4850 = vadd.f32 %v4667, %v4849
      %4851 = vmatmul.bf16.gmra.mxu0 %v4770
      %v4852 = vpop.f32.mrf.mxu0
      %v4853 = vadd.f32 %v4667, %v4852
      %v4854 = vpop.f32.mrf.mxu0
      %v4855 = vadd.f32 %v4667, %v4854
      %4856 = vmatmul.bf16.gmra.mxu0 %v4773
      %v4857 = vpop.f32.mrf.mxu0
      %v4858 = vadd.f32 %v4667, %v4857
      %v4859 = vpop.f32.mrf.mxu0
      %v4860 = vadd.f32 %v4667, %v4859
      %4861 = vmatmul.bf16.gmra.mxu0 %v4776
      %v4862 = vpop.f32.mrf.mxu0
      %v4863 = vadd.f32 %v4667, %v4862
      %v4864 = vpop.f32.mrf.mxu0
      %v4865 = vadd.f32 %v4667, %v4864
      %4866 = vdwg.mxu0
      %v4867 = vld [vmem:[%s9] sm:$0xf]
      %v4868 = vld [vmem:[%s9 + $0x4] sm:$0xf]
      %v4869 = vld [vmem:[%s9 + $0x8] sm:$0xf]
      %v4870 = vld [vmem:[%s9 + $0xc] sm:$0xf]
      %v4871 = vld [vmem:[%s10] sm:$0x1]
      %v4873 = vperm.slane %v4871, 0
      %v4879 = vunpack.c.l.b16 %v4867
      %v4880 = vunpack.c.l.b16 %v4868
      %v4881 = vunpack.c.l.b16 %v4869
      %v4882 = vunpack.c.l.b16 %v4870
      %v4883 = vpack.c.b16 %v4880, %v4879
      %v4884 = vpack.c.b16 %v4882, %v4881
      %v4888 = vsel %vm4729, %v4645, 0
      %v4891 = vsel %vm4729, %v4646, 0
      %v4894 = vsel %vm4729, %v4647, 0
      %v4897 = vsel %vm4729, %v4648, 0
      %v4900 = vsel %vm4729, %v4649, 0
      %v4903 = vsel %vm4729, %v4650, 0
      %v4906 = vsel %vm4729, %v4651, 0
      %v4909 = vsel %vm4729, %v4652, 0
      %v4912 = vsel %vm4729, %v4653, 0
      %v4915 = vsel %vm4729, %v4654, 0
      %v4918 = vsel %vm4729, %v4655, 0
      %v4921 = vsel %vm4729, %v4656, 0
      %v4924 = vsel %vm4729, %v4657, 0
      %v4927 = vsel %vm4729, %v4658, 0
      %v4930 = vsel %vm4729, %v4659, 0
      %v4933 = vsel %vm4729, %v4660, 0
      %4935 = vmatpush.bf16.msra.mxu0 0
      %4936 = vmatpush.bf16.msra.mxu0 0
      %4937 = vmatpush.bf16.msra.mxu0 0
      %4938 = vmatpush.bf16.msra.mxu0 0
      %4939 = vmatpush.bf16.msra.mxu0 0
      %4940 = vmatpush.bf16.msra.mxu0 0
      %4941 = vmatpush.bf16.msra.mxu0 %v4884
      %4942 = vmatpush.bf16.msra.mxu0 %v4883
      %4943 = vmatmul.bf16.gmra.mxu0 %v4888
      %v4944 = vpop.f32.mrf.mxu0
      %v4945 = vadd.f32 %v4873, %v4944
      %v4946 = vpop.f32.mrf.mxu0
      %v4947 = vadd.f32 %v4873, %v4946
      %4948 = vmatmul.bf16.gmra.mxu0 %v4891
      %v4949 = vpop.f32.mrf.mxu0
      %v4950 = vadd.f32 %v4873, %v4949
      %v4951 = vpop.f32.mrf.mxu0
      %v4952 = vadd.f32 %v4873, %v4951
      %4953 = vmatmul.bf16.gmra.mxu0 %v4894
      %v4954 = vpop.f32.mrf.mxu0
      %v4955 = vadd.f32 %v4873, %v4954
      %v4956 = vpop.f32.mrf.mxu0
      %v4957 = vadd.f32 %v4873, %v4956
      %4958 = vmatmul.bf16.gmra.mxu0 %v4897
      %v4959 = vpop.f32.mrf.mxu0
      %v4960 = vadd.f32 %v4873, %v4959
      %v4961 = vpop.f32.mrf.mxu0
      %v4962 = vadd.f32 %v4873, %v4961
      %4963 = vmatmul.bf16.gmra.mxu0 %v4900
      %v4964 = vpop.f32.mrf.mxu0
      %v4965 = vadd.f32 %v4873, %v4964
      %v4966 = vpop.f32.mrf.mxu0
      %v4967 = vadd.f32 %v4873, %v4966
      %4968 = vmatmul.bf16.gmra.mxu0 %v4903
      %v4969 = vpop.f32.mrf.mxu0
      %v4970 = vadd.f32 %v4873, %v4969
      %v4971 = vpop.f32.mrf.mxu0
      %v4972 = vadd.f32 %v4873, %v4971
      %4973 = vmatmul.bf16.gmra.mxu0 %v4906
      %v4974 = vpop.f32.mrf.mxu0
      %v4975 = vadd.f32 %v4873, %v4974
      %v4976 = vpop.f32.mrf.mxu0
      %v4977 = vadd.f32 %v4873, %v4976
      %4978 = vmatmul.bf16.gmra.mxu0 %v4909
      %v4979 = vpop.f32.mrf.mxu0
      %v4980 = vadd.f32 %v4873, %v4979
      %v4981 = vpop.f32.mrf.mxu0
      %v4982 = vadd.f32 %v4873, %v4981
      %4983 = vmatmul.bf16.gmra.mxu0 %v4912
      %v4984 = vpop.f32.mrf.mxu0
      %v4985 = vadd.f32 %v4873, %v4984
      %v4986 = vpop.f32.mrf.mxu0
      %v4987 = vadd.f32 %v4873, %v4986
      %4988 = vmatmul.bf16.gmra.mxu0 %v4915
      %v4989 = vpop.f32.mrf.mxu0
      %v4990 = vadd.f32 %v4873, %v4989
      %v4991 = vpop.f32.mrf.mxu0
      %v4992 = vadd.f32 %v4873, %v4991
      %4993 = vmatmul.bf16.gmra.mxu0 %v4918
      %v4994 = vpop.f32.mrf.mxu0
      %v4995 = vadd.f32 %v4873, %v4994
      %v4996 = vpop.f32.mrf.mxu0
      %v4997 = vadd.f32 %v4873, %v4996
      %4998 = vmatmul.bf16.gmra.mxu0 %v4921
      %v4999 = vpop.f32.mrf.mxu0
      %v5000 = vadd.f32 %v4873, %v4999
      %v5001 = vpop.f32.mrf.mxu0
      %v5002 = vadd.f32 %v4873, %v5001
      %5003 = vmatmul.bf16.gmra.mxu0 %v4924
      %v5004 = vpop.f32.mrf.mxu0
      %v5005 = vadd.f32 %v4873, %v5004
      %v5006 = vpop.f32.mrf.mxu0
      %v5007 = vadd.f32 %v4873, %v5006
      %5008 = vmatmul.bf16.gmra.mxu0 %v4927
      %v5009 = vpop.f32.mrf.mxu0
      %v5010 = vadd.f32 %v4873, %v5009
      %v5011 = vpop.f32.mrf.mxu0
      %v5012 = vadd.f32 %v4873, %v5011
      %5013 = vmatmul.bf16.gmra.mxu0 %v4930
      %v5014 = vpop.f32.mrf.mxu0
      %v5015 = vadd.f32 %v4873, %v5014
      %v5016 = vpop.f32.mrf.mxu0
      %v5017 = vadd.f32 %v4873, %v5016
      %5018 = vmatmul.bf16.gmra.mxu0 %v4933
      %v5019 = vpop.f32.mrf.mxu0
      %v5020 = vadd.f32 %v4873, %v5019
      %v5021 = vpop.f32.mrf.mxu0
      %v5022 = vadd.f32 %v4873, %v5021
      %5023 = vdwg.mxu0
      %v5024 = vpack.c.bf16 %v4790, %v4788
      %v5025 = vpack.c.bf16 %v4795, %v4793
      %v5026 = vpack.c.bf16 %v4800, %v4798
      %v5027 = vpack.c.bf16 %v4805, %v4803
      %v5028 = vpack.c.bf16 %v4810, %v4808
      %v5029 = vpack.c.bf16 %v4815, %v4813
      %v5030 = vpack.c.bf16 %v4820, %v4818
      %v5031 = vpack.c.bf16 %v4825, %v4823
      %v5032 = vpack.c.bf16 %v4830, %v4828
      %v5033 = vpack.c.bf16 %v4835, %v4833
      %v5034 = vpack.c.bf16 %v4840, %v4838
      %v5035 = vpack.c.bf16 %v4845, %v4843
      %v5036 = vpack.c.bf16 %v4850, %v4848
      %v5037 = vpack.c.bf16 %v4855, %v4853
      %v5038 = vpack.c.bf16 %v4860, %v4858
      %v5039 = vpack.c.bf16 %v4865, %v4863
      %v5040 = vpack.c.bf16 %v4788, %v4788
      %v5041 = vpack.c.bf16 %v4790, %v4790
      %v5042 = vpack.c.bf16 %v4793, %v4793
      %v5043 = vpack.c.bf16 %v4795, %v4795
      %v5044 = vpack.c.bf16 %v4798, %v4798
      %v5045 = vpack.c.bf16 %v4800, %v4800
      %v5046 = vpack.c.bf16 %v4803, %v4803
      %v5047 = vpack.c.bf16 %v4805, %v4805
      %v5048 = vpack.c.bf16 %v4808, %v4808
      %v5049 = vpack.c.bf16 %v4810, %v4810
      %v5050 = vpack.c.bf16 %v4813, %v4813
      %v5051 = vpack.c.bf16 %v4815, %v4815
      %v5052 = vpack.c.bf16 %v4818, %v4818
      %v5053 = vpack.c.bf16 %v4820, %v4820
      %v5054 = vpack.c.bf16 %v4823, %v4823
      %v5055 = vpack.c.bf16 %v4825, %v4825
      %v5056 = vpack.c.bf16 %v4828, %v4828
      %v5057 = vpack.c.bf16 %v4830, %v4830
      %v5058 = vpack.c.bf16 %v4833, %v4833
      %v5059 = vpack.c.bf16 %v4835, %v4835
      %v5060 = vpack.c.bf16 %v4838, %v4838
      %v5061 = vpack.c.bf16 %v4840, %v4840
      %v5062 = vpack.c.bf16 %v4843, %v4843
      %v5063 = vpack.c.bf16 %v4845, %v4845
      %v5064 = vpack.c.bf16 %v4848, %v4848
      %v5065 = vpack.c.bf16 %v4850, %v4850
      %v5066 = vpack.c.bf16 %v4853, %v4853
      %v5067 = vpack.c.bf16 %v4855, %v4855
      %v5068 = vpack.c.bf16 %v4858, %v4858
      %v5069 = vpack.c.bf16 %v4860, %v4860
      %v5070 = vpack.c.bf16 %v4863, %v4863
      %v5071 = vpack.c.bf16 %v4865, %v4865
      %v5072 = vpack.c.bf16 %v4945, %v4945
      %v5073 = vpack.c.bf16 %v4947, %v4947
      %v5074 = vpack.c.bf16 %v4950, %v4950
      %v5075 = vpack.c.bf16 %v4952, %v4952
      %v5076 = vpack.c.bf16 %v4955, %v4955
      %v5077 = vpack.c.bf16 %v4957, %v4957
      %v5078 = vpack.c.bf16 %v4960, %v4960
      %v5079 = vpack.c.bf16 %v4962, %v4962
      %v5080 = vpack.c.bf16 %v4965, %v4965
      %v5081 = vpack.c.bf16 %v4967, %v4967
      %v5082 = vpack.c.bf16 %v4970, %v4970
      %v5083 = vpack.c.bf16 %v4972, %v4972
      %v5084 = vpack.c.bf16 %v4975, %v4975
      %v5085 = vpack.c.bf16 %v4977, %v4977
      %v5086 = vpack.c.bf16 %v4980, %v4980
      %v5087 = vpack.c.bf16 %v4982, %v4982
      %v5088 = vpack.c.bf16 %v4985, %v4985
      %v5089 = vpack.c.bf16 %v4987, %v4987
      %v5090 = vpack.c.bf16 %v4990, %v4990
      %v5091 = vpack.c.bf16 %v4992, %v4992
      %v5092 = vpack.c.bf16 %v4995, %v4995
      %v5093 = vpack.c.bf16 %v4997, %v4997
      %v5094 = vpack.c.bf16 %v5000, %v5000
      %v5095 = vpack.c.bf16 %v5002, %v5002
      %v5096 = vpack.c.bf16 %v5005, %v5005
      %v5097 = vpack.c.bf16 %v5007, %v5007
      %v5098 = vpack.c.bf16 %v5010, %v5010
      %v5099 = vpack.c.bf16 %v5012, %v5012
      %v5100 = vpack.c.bf16 %v5015, %v5015
      %v5101 = vpack.c.bf16 %v5017, %v5017
      %v5102 = vpack.c.bf16 %v5020, %v5020
      %v5103 = vpack.c.bf16 %v5022, %v5022
      %v5104 = vpack.c.bf16 %v4947, %v4945
      %v5105 = vpack.c.bf16 %v4952, %v4950
      %v5106 = vpack.c.bf16 %v4957, %v4955
      %v5107 = vpack.c.bf16 %v4962, %v4960
      %v5108 = vpack.c.bf16 %v4967, %v4965
      %v5109 = vpack.c.bf16 %v4972, %v4970
      %v5110 = vpack.c.bf16 %v4977, %v4975
      %v5111 = vpack.c.bf16 %v4982, %v4980
      %v5112 = vpack.c.bf16 %v4987, %v4985
      %v5113 = vpack.c.bf16 %v4992, %v4990
      %v5114 = vpack.c.bf16 %v4997, %v4995
      %v5115 = vpack.c.bf16 %v5002, %v5000
      %v5116 = vpack.c.bf16 %v5007, %v5005
      %v5117 = vpack.c.bf16 %v5012, %v5010
      %v5118 = vpack.c.bf16 %v5017, %v5015
      %v5119 = vpack.c.bf16 %v5022, %v5020
      %v5152 = vunpack.c.l.b16 %v5040
      %v5153 = vunpack.c.l.b16 %v5041
      %v5154 = vunpack.c.l.b16 %v5042
      %v5155 = vunpack.c.l.b16 %v5043
      %v5156 = vunpack.c.l.b16 %v5044
      %v5157 = vunpack.c.l.b16 %v5045
      %v5158 = vunpack.c.l.b16 %v5046
      %v5159 = vunpack.c.l.b16 %v5047
      %v5160 = vunpack.c.l.b16 %v5048
      %v5161 = vunpack.c.l.b16 %v5049
      %v5162 = vunpack.c.l.b16 %v5050
      %v5163 = vunpack.c.l.b16 %v5051
      %v5164 = vunpack.c.l.b16 %v5052
      %v5165 = vunpack.c.l.b16 %v5053
      %v5166 = vunpack.c.l.b16 %v5054
      %v5167 = vunpack.c.l.b16 %v5055
      %v5168 = vunpack.c.l.b16 %v5056
      %v5169 = vunpack.c.l.b16 %v5057
      %v5170 = vunpack.c.l.b16 %v5058
      %v5171 = vunpack.c.l.b16 %v5059
      %v5172 = vunpack.c.l.b16 %v5060
      %v5173 = vunpack.c.l.b16 %v5061
      %v5174 = vunpack.c.l.b16 %v5062
      %v5175 = vunpack.c.l.b16 %v5063
      %v5176 = vunpack.c.l.b16 %v5064
      %v5177 = vunpack.c.l.b16 %v5065
      %v5178 = vunpack.c.l.b16 %v5066
      %v5179 = vunpack.c.l.b16 %v5067
      %v5180 = vunpack.c.l.b16 %v5068
      %v5181 = vunpack.c.l.b16 %v5069
      %v5182 = vunpack.c.l.b16 %v5070
      %v5183 = vunpack.c.l.b16 %v5071
      %v5184 = vpack.c.b16 %v5153, %v5152
      %v5185 = vpack.c.b16 %v5155, %v5154
      %v5186 = vpack.c.b16 %v5157, %v5156
      %v5187 = vpack.c.b16 %v5159, %v5158
      %v5188 = vpack.c.b16 %v5161, %v5160
      %v5189 = vpack.c.b16 %v5163, %v5162
      %v5190 = vpack.c.b16 %v5165, %v5164
      %v5191 = vpack.c.b16 %v5167, %v5166
      %v5192 = vpack.c.b16 %v5169, %v5168
      %v5193 = vpack.c.b16 %v5171, %v5170
      %v5194 = vpack.c.b16 %v5173, %v5172
      %v5195 = vpack.c.b16 %v5175, %v5174
      %v5196 = vpack.c.b16 %v5177, %v5176
      %v5197 = vpack.c.b16 %v5179, %v5178
      %v5198 = vpack.c.b16 %v5181, %v5180
      %v5199 = vpack.c.b16 %v5183, %v5182
      %v5232 = vunpack.c.l.b16 %v5072
      %v5233 = vunpack.c.l.b16 %v5073
      %v5234 = vunpack.c.l.b16 %v5074
      %v5235 = vunpack.c.l.b16 %v5075
      %v5236 = vunpack.c.l.b16 %v5076
      %v5237 = vunpack.c.l.b16 %v5077
      %v5238 = vunpack.c.l.b16 %v5078
      %v5239 = vunpack.c.l.b16 %v5079
      %v5240 = vunpack.c.l.b16 %v5080
      %v5241 = vunpack.c.l.b16 %v5081
      %v5242 = vunpack.c.l.b16 %v5082
      %v5243 = vunpack.c.l.b16 %v5083
      %v5244 = vunpack.c.l.b16 %v5084
      %v5245 = vunpack.c.l.b16 %v5085
      %v5246 = vunpack.c.l.b16 %v5086
      %v5247 = vunpack.c.l.b16 %v5087
      %v5248 = vunpack.c.l.b16 %v5088
      %v5249 = vunpack.c.l.b16 %v5089
      %v5250 = vunpack.c.l.b16 %v5090
      %v5251 = vunpack.c.l.b16 %v5091
      %v5252 = vunpack.c.l.b16 %v5092
      %v5253 = vunpack.c.l.b16 %v5093
      %v5254 = vunpack.c.l.b16 %v5094
      %v5255 = vunpack.c.l.b16 %v5095
      %v5256 = vunpack.c.l.b16 %v5096
      %v5257 = vunpack.c.l.b16 %v5097
      %v5258 = vunpack.c.l.b16 %v5098
      %v5259 = vunpack.c.l.b16 %v5099
      %v5260 = vunpack.c.l.b16 %v5100
      %v5261 = vunpack.c.l.b16 %v5101
      %v5262 = vunpack.c.l.b16 %v5102
      %v5263 = vunpack.c.l.b16 %v5103
      %v5264 = vpack.c.b16 %v5233, %v5232
      %v5265 = vpack.c.b16 %v5235, %v5234
      %v5266 = vpack.c.b16 %v5237, %v5236
      %v5267 = vpack.c.b16 %v5239, %v5238
      %v5268 = vpack.c.b16 %v5241, %v5240
      %v5269 = vpack.c.b16 %v5243, %v5242
      %v5270 = vpack.c.b16 %v5245, %v5244
      %v5271 = vpack.c.b16 %v5247, %v5246
      %v5272 = vpack.c.b16 %v5249, %v5248
      %v5273 = vpack.c.b16 %v5251, %v5250
      %v5274 = vpack.c.b16 %v5253, %v5252
      %v5275 = vpack.c.b16 %v5255, %v5254
      %v5276 = vpack.c.b16 %v5257, %v5256
      %v5277 = vpack.c.b16 %v5259, %v5258
      %v5278 = vpack.c.b16 %v5261, %v5260
      %v5279 = vpack.c.b16 %v5263, %v5262
      %5280 = vrot.lane.b32.xlu0 %v5264, 32
      %v5281 = vpop.permute.xlu0 %5280
      %5282 = vrot.lane.b32.xlu0 %v5265, 32
      %v5283 = vpop.permute.xlu0 %5282
      %5284 = vrot.lane.b32.xlu0 %v5266, 32
      %v5285 = vpop.permute.xlu0 %5284
      %5286 = vrot.lane.b32.xlu0 %v5267, 32
      %v5287 = vpop.permute.xlu0 %5286
      %5288 = vrot.lane.b32.xlu0 %v5268, 32
      %v5289 = vpop.permute.xlu0 %5288
      %5290 = vrot.lane.b32.xlu0 %v5269, 32
      %v5291 = vpop.permute.xlu0 %5290
      %5292 = vrot.lane.b32.xlu0 %v5270, 32
      %v5293 = vpop.permute.xlu0 %5292
      %5294 = vrot.lane.b32.xlu0 %v5271, 32
      %v5295 = vpop.permute.xlu0 %5294
      %5296 = vrot.lane.b32.xlu0 %v5272, 32
      %v5297 = vpop.permute.xlu0 %5296
      %5298 = vrot.lane.b32.xlu0 %v5273, 32
      %v5299 = vpop.permute.xlu0 %5298
      %5300 = vrot.lane.b32.xlu0 %v5274, 32
      %v5301 = vpop.permute.xlu0 %5300
      %5302 = vrot.lane.b32.xlu0 %v5275, 32
      %v5303 = vpop.permute.xlu0 %5302
      %5304 = vrot.lane.b32.xlu0 %v5276, 32
      %v5305 = vpop.permute.xlu0 %5304
      %5306 = vrot.lane.b32.xlu0 %v5277, 32
      %v5307 = vpop.permute.xlu0 %5306
      %5308 = vrot.lane.b32.xlu0 %v5278, 32
      %v5309 = vpop.permute.xlu0 %5308
      %5310 = vrot.lane.b32.xlu0 %v5279, 32
      %v5311 = vpop.permute.xlu0 %5310
      %5312 = vrot.lane.b32.xlu0 %v5184, 96
      %v5313 = vpop.permute.xlu0 %5312
      %5314 = vrot.lane.b32.xlu0 %v5185, 96
      %v5315 = vpop.permute.xlu0 %5314
      %5316 = vrot.lane.b32.xlu0 %v5186, 96
      %v5317 = vpop.permute.xlu0 %5316
      %5318 = vrot.lane.b32.xlu0 %v5187, 96
      %v5319 = vpop.permute.xlu0 %5318
      %5320 = vrot.lane.b32.xlu0 %v5188, 96
      %v5321 = vpop.permute.xlu0 %5320
      %5322 = vrot.lane.b32.xlu0 %v5189, 96
      %v5323 = vpop.permute.xlu0 %5322
      %5324 = vrot.lane.b32.xlu0 %v5190, 96
      %v5325 = vpop.permute.xlu0 %5324
      %5326 = vrot.lane.b32.xlu0 %v5191, 96
      %v5327 = vpop.permute.xlu0 %5326
      %5328 = vrot.lane.b32.xlu0 %v5192, 96
      %v5329 = vpop.permute.xlu0 %5328
      %5330 = vrot.lane.b32.xlu0 %v5193, 96
      %v5331 = vpop.permute.xlu0 %5330
      %5332 = vrot.lane.b32.xlu0 %v5194, 96
      %v5333 = vpop.permute.xlu0 %5332
      %5334 = vrot.lane.b32.xlu0 %v5195, 96
      %v5335 = vpop.permute.xlu0 %5334
      %5336 = vrot.lane.b32.xlu0 %v5196, 96
      %v5337 = vpop.permute.xlu0 %5336
      %5338 = vrot.lane.b32.xlu0 %v5197, 96
      %v5339 = vpop.permute.xlu0 %5338
      %5340 = vrot.lane.b32.xlu0 %v5198, 96
      %v5341 = vpop.permute.xlu0 %5340
      %5342 = vrot.lane.b32.xlu0 %v5199, 96
      %v5343 = vpop.permute.xlu0 %5342
      %5344 = vrot.lane.b32.xlu0 %v5281, 96
      %v5345 = vpop.permute.xlu0 %5344
      %5346 = vrot.lane.b32.xlu0 %v5283, 96
      %v5347 = vpop.permute.xlu0 %5346
      %5348 = vrot.lane.b32.xlu0 %v5285, 96
      %v5349 = vpop.permute.xlu0 %5348
      %5350 = vrot.lane.b32.xlu0 %v5287, 96
      %v5351 = vpop.permute.xlu0 %5350
      %5352 = vrot.lane.b32.xlu0 %v5289, 96
      %v5353 = vpop.permute.xlu0 %5352
      %5354 = vrot.lane.b32.xlu0 %v5291, 96
      %v5355 = vpop.permute.xlu0 %5354
      %5356 = vrot.lane.b32.xlu0 %v5293, 96
      %v5357 = vpop.permute.xlu0 %5356
      %5358 = vrot.lane.b32.xlu0 %v5295, 96
      %v5359 = vpop.permute.xlu0 %5358
      %5360 = vrot.lane.b32.xlu0 %v5297, 96
      %v5361 = vpop.permute.xlu0 %5360
      %5362 = vrot.lane.b32.xlu0 %v5299, 96
      %v5363 = vpop.permute.xlu0 %5362
      %5364 = vrot.lane.b32.xlu0 %v5301, 96
      %v5365 = vpop.permute.xlu0 %5364
      %5366 = vrot.lane.b32.xlu0 %v5303, 96
      %v5367 = vpop.permute.xlu0 %5366
      %5368 = vrot.lane.b32.xlu0 %v5305, 96
      %v5369 = vpop.permute.xlu0 %5368
      %5370 = vrot.lane.b32.xlu0 %v5307, 96
      %v5371 = vpop.permute.xlu0 %5370
      %5372 = vrot.lane.b32.xlu0 %v5309, 96
      %v5373 = vpop.permute.xlu0 %5372
      %5374 = vrot.lane.b32.xlu0 %v5311, 96
      %v5375 = vpop.permute.xlu0 %5374
      %v5377 = vsel %vm4729, %v5024, 0
      %v5380 = vsel %vm4729, %v5025, 0
      %v5383 = vsel %vm4729, %v5026, 0
      %v5386 = vsel %vm4729, %v5027, 0
      %v5389 = vsel %vm4729, %v5028, 0
      %v5392 = vsel %vm4729, %v5029, 0
      %v5395 = vsel %vm4729, %v5030, 0
      %v5398 = vsel %vm4729, %v5031, 0
      %v5401 = vsel %vm4729, %v5032, 0
      %v5404 = vsel %vm4729, %v5033, 0
      %v5407 = vsel %vm4729, %v5034, 0
      %v5410 = vsel %vm4729, %v5035, 0
      %v5413 = vsel %vm4729, %v5036, 0
      %v5416 = vsel %vm4729, %v5037, 0
      %v5419 = vsel %vm4729, %v5038, 0
      %v5422 = vsel %vm4729, %v5039, 0
      %v5425 = vsel %vm4729, %v5313, 0
      %v5428 = vsel %vm4729, %v5315, 0
      %v5431 = vsel %vm4729, %v5317, 0
      %v5434 = vsel %vm4729, %v5319, 0
      %v5437 = vsel %vm4729, %v5321, 0
      %v5440 = vsel %vm4729, %v5323, 0
      %v5443 = vsel %vm4729, %v5325, 0
      %v5446 = vsel %vm4729, %v5327, 0
      %v5449 = vsel %vm4729, %v5329, 0
      %v5452 = vsel %vm4729, %v5331, 0
      %v5455 = vsel %vm4729, %v5333, 0
      %v5458 = vsel %vm4729, %v5335, 0
      %v5461 = vsel %vm4729, %v5337, 0
      %v5464 = vsel %vm4729, %v5339, 0
      %v5467 = vsel %vm4729, %v5341, 0
      %v5470 = vsel %vm4729, %v5343, 0
      %v5473 = vsel %vm4729, %v5345, 0
      %v5476 = vsel %vm4729, %v5347, 0
      %v5479 = vsel %vm4729, %v5349, 0
      %v5482 = vsel %vm4729, %v5351, 0
      %v5485 = vsel %vm4729, %v5353, 0
      %v5488 = vsel %vm4729, %v5355, 0
      %v5491 = vsel %vm4729, %v5357, 0
      %v5494 = vsel %vm4729, %v5359, 0
      %v5497 = vsel %vm4729, %v5361, 0
      %v5500 = vsel %vm4729, %v5363, 0
      %v5503 = vsel %vm4729, %v5365, 0
      %v5506 = vsel %vm4729, %v5367, 0
      %v5509 = vsel %vm4729, %v5369, 0
      %v5512 = vsel %vm4729, %v5371, 0
      %v5515 = vsel %vm4729, %v5373, 0
      %v5518 = vsel %vm4729, %v5375, 0
      %5520 = vmatpush.bf16.xpose.msra.mxu0 %v5446
      %5521 = vmatpush.bf16.xpose.msra.mxu0 %v5443
      %5522 = vmatpush.bf16.xpose.msra.mxu0 %v5440
      %5523 = vmatpush.bf16.xpose.msra.mxu0 %v5437
      %5524 = vmatpush.bf16.xpose.msra.mxu0 %v5434
      %5525 = vmatpush.bf16.xpose.msra.mxu0 %v5431
      %5526 = vmatpush.bf16.xpose.msra.mxu0 %v5428
      %5527 = vmatpush.bf16.xpose.msra.mxu0 %v5425
      %5528 = vmatmul.bf16.gmra.mxu0 %v5377
      %v5529 = vpop.f32.mrf.mxu0
      %v5530 = vadd.f32 0.0, %v5529
      %v5531 = vpop.f32.mrf.mxu0
      %v5532 = vadd.f32 0.0, %v5531
      %5533 = vmatmul.bf16.gmra.mxu0 %v5380
      %v5534 = vpop.f32.mrf.mxu0
      %v5535 = vadd.f32 0.0, %v5534
      %v5536 = vpop.f32.mrf.mxu0
      %v5537 = vadd.f32 0.0, %v5536
      %5538 = vmatmul.bf16.gmra.mxu0 %v5383
      %v5539 = vpop.f32.mrf.mxu0
      %v5540 = vadd.f32 0.0, %v5539
      %v5541 = vpop.f32.mrf.mxu0
      %v5542 = vadd.f32 0.0, %v5541
      %5543 = vmatmul.bf16.gmra.mxu0 %v5386
      %v5544 = vpop.f32.mrf.mxu0
      %v5545 = vadd.f32 0.0, %v5544
      %v5546 = vpop.f32.mrf.mxu0
      %v5547 = vadd.f32 0.0, %v5546
      %5548 = vmatmul.bf16.gmra.mxu0 %v5389
      %v5549 = vpop.f32.mrf.mxu0
      %v5550 = vadd.f32 0.0, %v5549
      %v5551 = vpop.f32.mrf.mxu0
      %v5552 = vadd.f32 0.0, %v5551
      %5553 = vmatmul.bf16.gmra.mxu0 %v5392
      %v5554 = vpop.f32.mrf.mxu0
      %v5555 = vadd.f32 0.0, %v5554
      %v5556 = vpop.f32.mrf.mxu0
      %v5557 = vadd.f32 0.0, %v5556
      %5558 = vmatmul.bf16.gmra.mxu0 %v5395
      %v5559 = vpop.f32.mrf.mxu0
      %v5560 = vadd.f32 0.0, %v5559
      %v5561 = vpop.f32.mrf.mxu0
      %v5562 = vadd.f32 0.0, %v5561
      %5563 = vmatmul.bf16.gmra.mxu0 %v5398
      %v5564 = vpop.f32.mrf.mxu0
      %v5565 = vadd.f32 0.0, %v5564
      %v5566 = vpop.f32.mrf.mxu0
      %v5567 = vadd.f32 0.0, %v5566
      %5568 = vmatmul.bf16.gmra.mxu0 %v5401
      %v5569 = vpop.f32.mrf.mxu0
      %v5570 = vadd.f32 0.0, %v5569
      %v5571 = vpop.f32.mrf.mxu0
      %v5572 = vadd.f32 0.0, %v5571
      %5573 = vmatmul.bf16.gmra.mxu0 %v5404
      %v5574 = vpop.f32.mrf.mxu0
      %v5575 = vadd.f32 0.0, %v5574
      %v5576 = vpop.f32.mrf.mxu0
      %v5577 = vadd.f32 0.0, %v5576
      %5578 = vmatmul.bf16.gmra.mxu0 %v5407
      %v5579 = vpop.f32.mrf.mxu0
      %v5580 = vadd.f32 0.0, %v5579
      %v5581 = vpop.f32.mrf.mxu0
      %v5582 = vadd.f32 0.0, %v5581
      %5583 = vmatmul.bf16.gmra.mxu0 %v5410
      %v5584 = vpop.f32.mrf.mxu0
      %v5585 = vadd.f32 0.0, %v5584
      %v5586 = vpop.f32.mrf.mxu0
      %v5587 = vadd.f32 0.0, %v5586
      %5588 = vmatmul.bf16.gmra.mxu0 %v5413
      %v5589 = vpop.f32.mrf.mxu0
      %v5590 = vadd.f32 0.0, %v5589
      %v5591 = vpop.f32.mrf.mxu0
      %v5592 = vadd.f32 0.0, %v5591
      %5593 = vmatmul.bf16.gmra.mxu0 %v5416
      %v5594 = vpop.f32.mrf.mxu0
      %v5595 = vadd.f32 0.0, %v5594
      %v5596 = vpop.f32.mrf.mxu0
      %v5597 = vadd.f32 0.0, %v5596
      %5598 = vmatmul.bf16.gmra.mxu0 %v5419
      %v5599 = vpop.f32.mrf.mxu0
      %v5600 = vadd.f32 0.0, %v5599
      %v5601 = vpop.f32.mrf.mxu0
      %v5602 = vadd.f32 0.0, %v5601
      %5603 = vmatmul.bf16.gmra.mxu0 %v5422
      %v5604 = vpop.f32.mrf.mxu0
      %v5605 = vadd.f32 0.0, %v5604
      %v5606 = vpop.f32.mrf.mxu0
      %v5607 = vadd.f32 0.0, %v5606
      %5608 = vdwg.mxu0
      %5609 = vmatpush.bf16.xpose.msra.mxu0 %v5470
      %5610 = vmatpush.bf16.xpose.msra.mxu0 %v5467
      %5611 = vmatpush.bf16.xpose.msra.mxu0 %v5464
      %5612 = vmatpush.bf16.xpose.msra.mxu0 %v5461
      %5613 = vmatpush.bf16.xpose.msra.mxu0 %v5458
      %5614 = vmatpush.bf16.xpose.msra.mxu0 %v5455
      %5615 = vmatpush.bf16.xpose.msra.mxu0 %v5452
      %5616 = vmatpush.bf16.xpose.msra.mxu0 %v5449
      %5617 = vmatmul.bf16.gmra.mxu0 %v5377
      %v5618 = vpop.f32.mrf.mxu0
      %v5619 = vadd.f32 0.0, %v5618
      %v5620 = vpop.f32.mrf.mxu0
      %v5621 = vadd.f32 0.0, %v5620
      %5622 = vmatmul.bf16.gmra.mxu0 %v5380
      %v5623 = vpop.f32.mrf.mxu0
      %v5624 = vadd.f32 0.0, %v5623
      %v5625 = vpop.f32.mrf.mxu0
      %v5626 = vadd.f32 0.0, %v5625
      %5627 = vmatmul.bf16.gmra.mxu0 %v5383
      %v5628 = vpop.f32.mrf.mxu0
      %v5629 = vadd.f32 0.0, %v5628
      %v5630 = vpop.f32.mrf.mxu0
      %v5631 = vadd.f32 0.0, %v5630
      %5632 = vmatmul.bf16.gmra.mxu0 %v5386
      %v5633 = vpop.f32.mrf.mxu0
      %v5634 = vadd.f32 0.0, %v5633
      %v5635 = vpop.f32.mrf.mxu0
      %v5636 = vadd.f32 0.0, %v5635
      %5637 = vmatmul.bf16.gmra.mxu0 %v5389
      %v5638 = vpop.f32.mrf.mxu0
      %v5639 = vadd.f32 0.0, %v5638
      %v5640 = vpop.f32.mrf.mxu0
      %v5641 = vadd.f32 0.0, %v5640
      %5642 = vmatmul.bf16.gmra.mxu0 %v5392
      %v5643 = vpop.f32.mrf.mxu0
      %v5644 = vadd.f32 0.0, %v5643
      %v5645 = vpop.f32.mrf.mxu0
      %v5646 = vadd.f32 0.0, %v5645
      %5647 = vmatmul.bf16.gmra.mxu0 %v5395
      %v5648 = vpop.f32.mrf.mxu0
      %v5649 = vadd.f32 0.0, %v5648
      %v5650 = vpop.f32.mrf.mxu0
      %v5651 = vadd.f32 0.0, %v5650
      %5652 = vmatmul.bf16.gmra.mxu0 %v5398
      %v5653 = vpop.f32.mrf.mxu0
      %v5654 = vadd.f32 0.0, %v5653
      %v5655 = vpop.f32.mrf.mxu0
      %v5656 = vadd.f32 0.0, %v5655
      %5657 = vmatmul.bf16.gmra.mxu0 %v5401
      %v5658 = vpop.f32.mrf.mxu0
      %v5659 = vadd.f32 0.0, %v5658
      %v5660 = vpop.f32.mrf.mxu0
      %v5661 = vadd.f32 0.0, %v5660
      %5662 = vmatmul.bf16.gmra.mxu0 %v5404
      %v5663 = vpop.f32.mrf.mxu0
      %v5664 = vadd.f32 0.0, %v5663
      %v5665 = vpop.f32.mrf.mxu0
      %v5666 = vadd.f32 0.0, %v5665
      %5667 = vmatmul.bf16.gmra.mxu0 %v5407
      %v5668 = vpop.f32.mrf.mxu0
      %v5669 = vadd.f32 0.0, %v5668
      %v5670 = vpop.f32.mrf.mxu0
      %v5671 = vadd.f32 0.0, %v5670
      %5672 = vmatmul.bf16.gmra.mxu0 %v5410
      %v5673 = vpop.f32.mrf.mxu0
      %v5674 = vadd.f32 0.0, %v5673
      %v5675 = vpop.f32.mrf.mxu0
      %v5676 = vadd.f32 0.0, %v5675
      %5677 = vmatmul.bf16.gmra.mxu0 %v5413
      %v5678 = vpop.f32.mrf.mxu0
      %v5679 = vadd.f32 0.0, %v5678
      %v5680 = vpop.f32.mrf.mxu0
      %v5681 = vadd.f32 0.0, %v5680
      %5682 = vmatmul.bf16.gmra.mxu0 %v5416
      %v5683 = vpop.f32.mrf.mxu0
      %v5684 = vadd.f32 0.0, %v5683
      %v5685 = vpop.f32.mrf.mxu0
      %v5686 = vadd.f32 0.0, %v5685
      %5687 = vmatmul.bf16.gmra.mxu0 %v5419
      %v5688 = vpop.f32.mrf.mxu0
      %v5689 = vadd.f32 0.0, %v5688
      %v5690 = vpop.f32.mrf.mxu0
      %v5691 = vadd.f32 0.0, %v5690
      %5692 = vmatmul.bf16.gmra.mxu0 %v5422
      %v5693 = vpop.f32.mrf.mxu0
      %v5694 = vadd.f32 0.0, %v5693
      %v5695 = vpop.f32.mrf.mxu0
      %v5696 = vadd.f32 0.0, %v5695
      %5697 = vdwg.mxu0
      %5698 = vmatpush.bf16.xpose.msra.mxu0 %v5494
      %5699 = vmatpush.bf16.xpose.msra.mxu0 %v5491
      %5700 = vmatpush.bf16.xpose.msra.mxu0 %v5488
      %5701 = vmatpush.bf16.xpose.msra.mxu0 %v5485
      %5702 = vmatpush.bf16.xpose.msra.mxu0 %v5482
      %5703 = vmatpush.bf16.xpose.msra.mxu0 %v5479
      %5704 = vmatpush.bf16.xpose.msra.mxu0 %v5476
      %5705 = vmatpush.bf16.xpose.msra.mxu0 %v5473
      %5706 = vmatmul.bf16.gmra.mxu0 %v5377
      %v5707 = vpop.f32.mrf.mxu0
      %v5708 = vadd.f32 0.0, %v5707
      %v5709 = vpop.f32.mrf.mxu0
      %v5710 = vadd.f32 0.0, %v5709
      %5711 = vmatmul.bf16.gmra.mxu0 %v5380
      %v5712 = vpop.f32.mrf.mxu0
      %v5713 = vadd.f32 0.0, %v5712
      %v5714 = vpop.f32.mrf.mxu0
      %v5715 = vadd.f32 0.0, %v5714
      %5716 = vmatmul.bf16.gmra.mxu0 %v5383
      %v5717 = vpop.f32.mrf.mxu0
      %v5718 = vadd.f32 0.0, %v5717
      %v5719 = vpop.f32.mrf.mxu0
      %v5720 = vadd.f32 0.0, %v5719
      %5721 = vmatmul.bf16.gmra.mxu0 %v5386
      %v5722 = vpop.f32.mrf.mxu0
      %v5723 = vadd.f32 0.0, %v5722
      %v5724 = vpop.f32.mrf.mxu0
      %v5725 = vadd.f32 0.0, %v5724
      %5726 = vmatmul.bf16.gmra.mxu0 %v5389
      %v5727 = vpop.f32.mrf.mxu0
      %v5728 = vadd.f32 0.0, %v5727
      %v5729 = vpop.f32.mrf.mxu0
      %v5730 = vadd.f32 0.0, %v5729
      %5731 = vmatmul.bf16.gmra.mxu0 %v5392
      %v5732 = vpop.f32.mrf.mxu0
      %v5733 = vadd.f32 0.0, %v5732
      %v5734 = vpop.f32.mrf.mxu0
      %v5735 = vadd.f32 0.0, %v5734
      %5736 = vmatmul.bf16.gmra.mxu0 %v5395
      %v5737 = vpop.f32.mrf.mxu0
      %v5738 = vadd.f32 0.0, %v5737
      %v5739 = vpop.f32.mrf.mxu0
      %v5740 = vadd.f32 0.0, %v5739
      %5741 = vmatmul.bf16.gmra.mxu0 %v5398
      %v5742 = vpop.f32.mrf.mxu0
      %v5743 = vadd.f32 0.0, %v5742
      %v5744 = vpop.f32.mrf.mxu0
      %v5745 = vadd.f32 0.0, %v5744
      %5746 = vmatmul.bf16.gmra.mxu0 %v5401
      %v5747 = vpop.f32.mrf.mxu0
      %v5748 = vadd.f32 0.0, %v5747
      %v5749 = vpop.f32.mrf.mxu0
      %v5750 = vadd.f32 0.0, %v5749
      %5751 = vmatmul.bf16.gmra.mxu0 %v5404
      %v5752 = vpop.f32.mrf.mxu0
      %v5753 = vadd.f32 0.0, %v5752
      %v5754 = vpop.f32.mrf.mxu0
      %v5755 = vadd.f32 0.0, %v5754
      %5756 = vmatmul.bf16.gmra.mxu0 %v5407
      %v5757 = vpop.f32.mrf.mxu0
      %v5758 = vadd.f32 0.0, %v5757
      %v5759 = vpop.f32.mrf.mxu0
      %v5760 = vadd.f32 0.0, %v5759
      %5761 = vmatmul.bf16.gmra.mxu0 %v5410
      %v5762 = vpop.f32.mrf.mxu0
      %v5763 = vadd.f32 0.0, %v5762
      %v5764 = vpop.f32.mrf.mxu0
      %v5765 = vadd.f32 0.0, %v5764
      %5766 = vmatmul.bf16.gmra.mxu0 %v5413
      %v5767 = vpop.f32.mrf.mxu0
      %v5768 = vadd.f32 0.0, %v5767
      %v5769 = vpop.f32.mrf.mxu0
      %v5770 = vadd.f32 0.0, %v5769
      %5771 = vmatmul.bf16.gmra.mxu0 %v5416
      %v5772 = vpop.f32.mrf.mxu0
      %v5773 = vadd.f32 0.0, %v5772
      %v5774 = vpop.f32.mrf.mxu0
      %v5775 = vadd.f32 0.0, %v5774
      %5776 = vmatmul.bf16.gmra.mxu0 %v5419
      %v5777 = vpop.f32.mrf.mxu0
      %v5778 = vadd.f32 0.0, %v5777
      %v5779 = vpop.f32.mrf.mxu0
      %v5780 = vadd.f32 0.0, %v5779
      %5781 = vmatmul.bf16.gmra.mxu0 %v5422
      %v5782 = vpop.f32.mrf.mxu0
      %v5783 = vadd.f32 0.0, %v5782
      %v5784 = vpop.f32.mrf.mxu0
      %v5785 = vadd.f32 0.0, %v5784
      %5786 = vdwg.mxu0
      %5787 = vmatpush.bf16.xpose.msra.mxu0 %v5518
      %5788 = vmatpush.bf16.xpose.msra.mxu0 %v5515
      %5789 = vmatpush.bf16.xpose.msra.mxu0 %v5512
      %5790 = vmatpush.bf16.xpose.msra.mxu0 %v5509
      %5791 = vmatpush.bf16.xpose.msra.mxu0 %v5506
      %5792 = vmatpush.bf16.xpose.msra.mxu0 %v5503
      %5793 = vmatpush.bf16.xpose.msra.mxu0 %v5500
      %5794 = vmatpush.bf16.xpose.msra.mxu0 %v5497
      %5795 = vmatmul.bf16.gmra.mxu0 %v5377
      %v5796 = vpop.f32.mrf.mxu0
      %v5797 = vadd.f32 0.0, %v5796
      %v5798 = vpop.f32.mrf.mxu0
      %v5799 = vadd.f32 0.0, %v5798
      %5800 = vmatmul.bf16.gmra.mxu0 %v5380
      %v5801 = vpop.f32.mrf.mxu0
      %v5802 = vadd.f32 0.0, %v5801
      %v5803 = vpop.f32.mrf.mxu0
      %v5804 = vadd.f32 0.0, %v5803
      %5805 = vmatmul.bf16.gmra.mxu0 %v5383
      %v5806 = vpop.f32.mrf.mxu0
      %v5807 = vadd.f32 0.0, %v5806
      %v5808 = vpop.f32.mrf.mxu0
      %v5809 = vadd.f32 0.0, %v5808
      %5810 = vmatmul.bf16.gmra.mxu0 %v5386
      %v5811 = vpop.f32.mrf.mxu0
      %v5812 = vadd.f32 0.0, %v5811
      %v5813 = vpop.f32.mrf.mxu0
      %v5814 = vadd.f32 0.0, %v5813
      %5815 = vmatmul.bf16.gmra.mxu0 %v5389
      %v5816 = vpop.f32.mrf.mxu0
      %v5817 = vadd.f32 0.0, %v5816
      %v5818 = vpop.f32.mrf.mxu0
      %v5819 = vadd.f32 0.0, %v5818
      %5820 = vmatmul.bf16.gmra.mxu0 %v5392
      %v5821 = vpop.f32.mrf.mxu0
      %v5822 = vadd.f32 0.0, %v5821
      %v5823 = vpop.f32.mrf.mxu0
      %v5824 = vadd.f32 0.0, %v5823
      %5825 = vmatmul.bf16.gmra.mxu0 %v5395
      %v5826 = vpop.f32.mrf.mxu0
      %v5827 = vadd.f32 0.0, %v5826
      %v5828 = vpop.f32.mrf.mxu0
      %v5829 = vadd.f32 0.0, %v5828
      %5830 = vmatmul.bf16.gmra.mxu0 %v5398
      %v5831 = vpop.f32.mrf.mxu0
      %v5832 = vadd.f32 0.0, %v5831
      %v5833 = vpop.f32.mrf.mxu0
      %v5834 = vadd.f32 0.0, %v5833
      %5835 = vmatmul.bf16.gmra.mxu0 %v5401
      %v5836 = vpop.f32.mrf.mxu0
      %v5837 = vadd.f32 0.0, %v5836
      %v5838 = vpop.f32.mrf.mxu0
      %v5839 = vadd.f32 0.0, %v5838
      %5840 = vmatmul.bf16.gmra.mxu0 %v5404
      %v5841 = vpop.f32.mrf.mxu0
      %v5842 = vadd.f32 0.0, %v5841
      %v5843 = vpop.f32.mrf.mxu0
      %v5844 = vadd.f32 0.0, %v5843
      %5845 = vmatmul.bf16.gmra.mxu0 %v5407
      %v5846 = vpop.f32.mrf.mxu0
      %v5847 = vadd.f32 0.0, %v5846
      %v5848 = vpop.f32.mrf.mxu0
      %v5849 = vadd.f32 0.0, %v5848
      %5850 = vmatmul.bf16.gmra.mxu0 %v5410
      %v5851 = vpop.f32.mrf.mxu0
      %v5852 = vadd.f32 0.0, %v5851
      %v5853 = vpop.f32.mrf.mxu0
      %v5854 = vadd.f32 0.0, %v5853
      %5855 = vmatmul.bf16.gmra.mxu0 %v5413
      %v5856 = vpop.f32.mrf.mxu0
      %v5857 = vadd.f32 0.0, %v5856
      %v5858 = vpop.f32.mrf.mxu0
      %v5859 = vadd.f32 0.0, %v5858
      %5860 = vmatmul.bf16.gmra.mxu0 %v5416
      %v5861 = vpop.f32.mrf.mxu0
      %v5862 = vadd.f32 0.0, %v5861
      %v5863 = vpop.f32.mrf.mxu0
      %v5864 = vadd.f32 0.0, %v5863
      %5865 = vmatmul.bf16.gmra.mxu0 %v5419
      %v5866 = vpop.f32.mrf.mxu0
      %v5867 = vadd.f32 0.0, %v5866
      %v5868 = vpop.f32.mrf.mxu0
      %v5869 = vadd.f32 0.0, %v5868
      %5870 = vmatmul.bf16.gmra.mxu0 %v5422
      %v5871 = vpop.f32.mrf.mxu0
      %v5872 = vadd.f32 0.0, %v5871
      %v5873 = vpop.f32.mrf.mxu0
      %v5874 = vadd.f32 0.0, %v5873
      %5875 = vdwg.mxu0
      %v5876 = vmax.f32 %v5530, %v5619
      %5877 = vmax.xlane.f32.xlu0 %v5876
      %v5878 = vpop.xlane.xlu0 %5877
      %v5879 = vmax.f32 %v5532, %v5621
      %5880 = vmax.xlane.f32.xlu0 %v5879
      %v5881 = vpop.xlane.xlu0 %5880
      %v5882 = vmax.f32 %v5535, %v5624
      %5883 = vmax.xlane.f32.xlu0 %v5882
      %v5884 = vpop.xlane.xlu0 %5883
      %v5885 = vmax.f32 %v5537, %v5626
      %5886 = vmax.xlane.f32.xlu0 %v5885
      %v5887 = vpop.xlane.xlu0 %5886
      %v5888 = vmax.f32 %v5540, %v5629
      %5889 = vmax.xlane.f32.xlu0 %v5888
      %v5890 = vpop.xlane.xlu0 %5889
      %v5891 = vmax.f32 %v5542, %v5631
      %5892 = vmax.xlane.f32.xlu0 %v5891
      %v5893 = vpop.xlane.xlu0 %5892
      %v5894 = vmax.f32 %v5545, %v5634
      %5895 = vmax.xlane.f32.xlu0 %v5894
      %v5896 = vpop.xlane.xlu0 %5895
      %v5897 = vmax.f32 %v5547, %v5636
      %5898 = vmax.xlane.f32.xlu0 %v5897
      %v5899 = vpop.xlane.xlu0 %5898
      %v5900 = vmax.f32 %v5550, %v5639
      %5901 = vmax.xlane.f32.xlu0 %v5900
      %v5902 = vpop.xlane.xlu0 %5901
      %v5903 = vmax.f32 %v5552, %v5641
      %5904 = vmax.xlane.f32.xlu0 %v5903
      %v5905 = vpop.xlane.xlu0 %5904
      %v5906 = vmax.f32 %v5555, %v5644
      %5907 = vmax.xlane.f32.xlu0 %v5906
      %v5908 = vpop.xlane.xlu0 %5907
      %v5909 = vmax.f32 %v5557, %v5646
      %5910 = vmax.xlane.f32.xlu0 %v5909
      %v5911 = vpop.xlane.xlu0 %5910
      %v5912 = vmax.f32 %v5560, %v5649
      %5913 = vmax.xlane.f32.xlu0 %v5912
      %v5914 = vpop.xlane.xlu0 %5913
      %v5915 = vmax.f32 %v5562, %v5651
      %5916 = vmax.xlane.f32.xlu0 %v5915
      %v5917 = vpop.xlane.xlu0 %5916
      %v5918 = vmax.f32 %v5565, %v5654
      %5919 = vmax.xlane.f32.xlu0 %v5918
      %v5920 = vpop.xlane.xlu0 %5919
      %v5921 = vmax.f32 %v5567, %v5656
      %5922 = vmax.xlane.f32.xlu0 %v5921
      %v5923 = vpop.xlane.xlu0 %5922
      %v5924 = vmax.f32 %v5570, %v5659
      %5925 = vmax.xlane.f32.xlu0 %v5924
      %v5926 = vpop.xlane.xlu0 %5925
      %v5927 = vmax.f32 %v5572, %v5661
      %5928 = vmax.xlane.f32.xlu0 %v5927
      %v5929 = vpop.xlane.xlu0 %5928
      %v5930 = vmax.f32 %v5575, %v5664
      %5931 = vmax.xlane.f32.xlu0 %v5930
      %v5932 = vpop.xlane.xlu0 %5931
      %v5933 = vmax.f32 %v5577, %v5666
      %5934 = vmax.xlane.f32.xlu0 %v5933
      %v5935 = vpop.xlane.xlu0 %5934
      %v5936 = vmax.f32 %v5580, %v5669
      %5937 = vmax.xlane.f32.xlu0 %v5936
      %v5938 = vpop.xlane.xlu0 %5937
      %v5939 = vmax.f32 %v5582, %v5671
      %5940 = vmax.xlane.f32.xlu0 %v5939
      %v5941 = vpop.xlane.xlu0 %5940
      %v5942 = vmax.f32 %v5585, %v5674
      %5943 = vmax.xlane.f32.xlu0 %v5942
      %v5944 = vpop.xlane.xlu0 %5943
      %v5945 = vmax.f32 %v5587, %v5676
      %5946 = vmax.xlane.f32.xlu0 %v5945
      %v5947 = vpop.xlane.xlu0 %5946
      %v5948 = vmax.f32 %v5590, %v5679
      %5949 = vmax.xlane.f32.xlu0 %v5948
      %v5950 = vpop.xlane.xlu0 %5949
      %v5951 = vmax.f32 %v5592, %v5681
      %5952 = vmax.xlane.f32.xlu0 %v5951
      %v5953 = vpop.xlane.xlu0 %5952
      %v5954 = vmax.f32 %v5595, %v5684
      %5955 = vmax.xlane.f32.xlu0 %v5954
      %v5956 = vpop.xlane.xlu0 %5955
      %v5957 = vmax.f32 %v5597, %v5686
      %5958 = vmax.xlane.f32.xlu0 %v5957
      %v5959 = vpop.xlane.xlu0 %5958
      %v5960 = vmax.f32 %v5600, %v5689
      %5961 = vmax.xlane.f32.xlu0 %v5960
      %v5962 = vpop.xlane.xlu0 %5961
      %v5963 = vmax.f32 %v5602, %v5691
      %5964 = vmax.xlane.f32.xlu0 %v5963
      %v5965 = vpop.xlane.xlu0 %5964
      %v5966 = vmax.f32 %v5605, %v5694
      %5967 = vmax.xlane.f32.xlu0 %v5966
      %v5968 = vpop.xlane.xlu0 %5967
      %v5969 = vmax.f32 %v5607, %v5696
      %5970 = vmax.xlane.f32.xlu0 %v5969
      %v5971 = vpop.xlane.xlu0 %5970
      %v5972 = vsub.f32 %v5530, %v5878
      %v5973 = vsub.f32 %v5619, %v5878
      %v5974 = vsub.f32 %v5532, %v5881
      %v5975 = vsub.f32 %v5621, %v5881
      %v5976 = vsub.f32 %v5535, %v5884
      %v5977 = vsub.f32 %v5624, %v5884
      %v5978 = vsub.f32 %v5537, %v5887
      %v5979 = vsub.f32 %v5626, %v5887
      %v5980 = vsub.f32 %v5540, %v5890
      %v5981 = vsub.f32 %v5629, %v5890
      %v5982 = vsub.f32 %v5542, %v5893
      %v5983 = vsub.f32 %v5631, %v5893
      %v5984 = vsub.f32 %v5545, %v5896
      %v5985 = vsub.f32 %v5634, %v5896
      %v5986 = vsub.f32 %v5547, %v5899
      %v5987 = vsub.f32 %v5636, %v5899
      %v5988 = vsub.f32 %v5550, %v5902
      %v5989 = vsub.f32 %v5639, %v5902
      %v5990 = vsub.f32 %v5552, %v5905
      %v5991 = vsub.f32 %v5641, %v5905
      %v5992 = vsub.f32 %v5555, %v5908
      %v5993 = vsub.f32 %v5644, %v5908
      %v5994 = vsub.f32 %v5557, %v5911
      %v5995 = vsub.f32 %v5646, %v5911
      %v5996 = vsub.f32 %v5560, %v5914
      %v5997 = vsub.f32 %v5649, %v5914
      %v5998 = vsub.f32 %v5562, %v5917
      %v5999 = vsub.f32 %v5651, %v5917
      %v6000 = vsub.f32 %v5565, %v5920
      %v6001 = vsub.f32 %v5654, %v5920
      %v6002 = vsub.f32 %v5567, %v5923
      %v6003 = vsub.f32 %v5656, %v5923
      %v6004 = vsub.f32 %v5570, %v5926
      %v6005 = vsub.f32 %v5659, %v5926
      %v6006 = vsub.f32 %v5572, %v5929
      %v6007 = vsub.f32 %v5661, %v5929
      %v6008 = vsub.f32 %v5575, %v5932
      %v6009 = vsub.f32 %v5664, %v5932
      %v6010 = vsub.f32 %v5577, %v5935
      %v6011 = vsub.f32 %v5666, %v5935
      %v6012 = vsub.f32 %v5580, %v5938
      %v6013 = vsub.f32 %v5669, %v5938
      %v6014 = vsub.f32 %v5582, %v5941
      %v6015 = vsub.f32 %v5671, %v5941
      %v6016 = vsub.f32 %v5585, %v5944
      %v6017 = vsub.f32 %v5674, %v5944
      %v6018 = vsub.f32 %v5587, %v5947
      %v6019 = vsub.f32 %v5676, %v5947
      %v6020 = vsub.f32 %v5590, %v5950
      %v6021 = vsub.f32 %v5679, %v5950
      %v6022 = vsub.f32 %v5592, %v5953
      %v6023 = vsub.f32 %v5681, %v5953
      %v6024 = vsub.f32 %v5595, %v5956
      %v6025 = vsub.f32 %v5684, %v5956
      %v6026 = vsub.f32 %v5597, %v5959
      %v6027 = vsub.f32 %v5686, %v5959
      %v6028 = vsub.f32 %v5600, %v5962
      %v6029 = vsub.f32 %v5689, %v5962
      %v6030 = vsub.f32 %v5602, %v5965
      %v6031 = vsub.f32 %v5691, %v5965
      %v6032 = vsub.f32 %v5605, %v5968
      %v6033 = vsub.f32 %v5694, %v5968
      %v6034 = vsub.f32 %v5607, %v5971
      %v6035 = vsub.f32 %v5696, %v5971
      %v6036 = vmul.f32 %v5972, 1.442695
      %v6037 = vpow.pop %v6036
      %v6038 = vmul.f32 %v5973, 1.442695
      %v6039 = vpow.pop %v6038
      %v6040 = vmul.f32 %v5974, 1.442695
      %v6041 = vpow.pop %v6040
      %v6042 = vmul.f32 %v5975, 1.442695
      %v6043 = vpow.pop %v6042
      %v6044 = vmul.f32 %v5976, 1.442695
      %v6045 = vpow.pop %v6044
      %v6046 = vmul.f32 %v5977, 1.442695
      %v6047 = vpow.pop %v6046
      %v6048 = vmul.f32 %v5978, 1.442695
      %v6049 = vpow.pop %v6048
      %v6050 = vmul.f32 %v5979, 1.442695
      %v6051 = vpow.pop %v6050
      %v6052 = vmul.f32 %v5980, 1.442695
      %v6053 = vpow.pop %v6052
      %v6054 = vmul.f32 %v5981, 1.442695
      %v6055 = vpow.pop %v6054
      %v6056 = vmul.f32 %v5982, 1.442695
      %v6057 = vpow.pop %v6056
      %v6058 = vmul.f32 %v5983, 1.442695
      %v6059 = vpow.pop %v6058
      %v6060 = vmul.f32 %v5984, 1.442695
      %v6061 = vpow.pop %v6060
      %v6062 = vmul.f32 %v5985, 1.442695
      %v6063 = vpow.pop %v6062
      %v6064 = vmul.f32 %v5986, 1.442695
      %v6065 = vpow.pop %v6064
      %v6066 = vmul.f32 %v5987, 1.442695
      %v6067 = vpow.pop %v6066
      %v6068 = vmul.f32 %v5988, 1.442695
      %v6069 = vpow.pop %v6068
      %v6070 = vmul.f32 %v5989, 1.442695
      %v6071 = vpow.pop %v6070
      %v6072 = vmul.f32 %v5990, 1.442695
      %v6073 = vpow.pop %v6072
      %v6074 = vmul.f32 %v5991, 1.442695
      %v6075 = vpow.pop %v6074
      %v6076 = vmul.f32 %v5992, 1.442695
      %v6077 = vpow.pop %v6076
      %v6078 = vmul.f32 %v5993, 1.442695
      %v6079 = vpow.pop %v6078
      %v6080 = vmul.f32 %v5994, 1.442695
      %v6081 = vpow.pop %v6080
      %v6082 = vmul.f32 %v5995, 1.442695
      %v6083 = vpow.pop %v6082
      %v6084 = vmul.f32 %v5996, 1.442695
      %v6085 = vpow.pop %v6084
      %v6086 = vmul.f32 %v5997, 1.442695
      %v6087 = vpow.pop %v6086
      %v6088 = vmul.f32 %v5998, 1.442695
      %v6089 = vpow.pop %v6088
      %v6090 = vmul.f32 %v5999, 1.442695
      %v6091 = vpow.pop %v6090
      %v6092 = vmul.f32 %v6000, 1.442695
      %v6093 = vpow.pop %v6092
      %v6094 = vmul.f32 %v6001, 1.442695
      %v6095 = vpow.pop %v6094
      %v6096 = vmul.f32 %v6002, 1.442695
      %v6097 = vpow.pop %v6096
      %v6098 = vmul.f32 %v6003, 1.442695
      %v6099 = vpow.pop %v6098
      %v6100 = vmul.f32 %v6004, 1.442695
      %v6101 = vpow.pop %v6100
      %v6102 = vmul.f32 %v6005, 1.442695
      %v6103 = vpow.pop %v6102
      %v6104 = vmul.f32 %v6006, 1.442695
      %v6105 = vpow.pop %v6104
      %v6106 = vmul.f32 %v6007, 1.442695
      %v6107 = vpow.pop %v6106
      %v6108 = vmul.f32 %v6008, 1.442695
      %v6109 = vpow.pop %v6108
      %v6110 = vmul.f32 %v6009, 1.442695
      %v6111 = vpow.pop %v6110
      %v6112 = vmul.f32 %v6010, 1.442695
      %v6113 = vpow.pop %v6112
      %v6114 = vmul.f32 %v6011, 1.442695
      %v6115 = vpow.pop %v6114
      %v6116 = vmul.f32 %v6012, 1.442695
      %v6117 = vpow.pop %v6116
      %v6118 = vmul.f32 %v6013, 1.442695
      %v6119 = vpow.pop %v6118
      %v6120 = vmul.f32 %v6014, 1.442695
      %v6121 = vpow.pop %v6120
      %v6122 = vmul.f32 %v6015, 1.442695
      %v6123 = vpow.pop %v6122
      %v6124 = vmul.f32 %v6016, 1.442695
      %v6125 = vpow.pop %v6124
      %v6126 = vmul.f32 %v6017, 1.442695
      %v6127 = vpow.pop %v6126
      %v6128 = vmul.f32 %v6018, 1.442695
      %v6129 = vpow.pop %v6128
      %v6130 = vmul.f32 %v6019, 1.442695
      %v6131 = vpow.pop %v6130
      %v6132 = vmul.f32 %v6020, 1.442695
      %v6133 = vpow.pop %v6132
      %v6134 = vmul.f32 %v6021, 1.442695
      %v6135 = vpow.pop %v6134
      %v6136 = vmul.f32 %v6022, 1.442695
      %v6137 = vpow.pop %v6136
      %v6138 = vmul.f32 %v6023, 1.442695
      %v6139 = vpow.pop %v6138
      %v6140 = vmul.f32 %v6024, 1.442695
      %v6141 = vpow.pop %v6140
      %v6142 = vmul.f32 %v6025, 1.442695
      %v6143 = vpow.pop %v6142
      %v6144 = vmul.f32 %v6026, 1.442695
      %v6145 = vpow.pop %v6144
      %v6146 = vmul.f32 %v6027, 1.442695
      %v6147 = vpow.pop %v6146
      %v6148 = vmul.f32 %v6028, 1.442695
      %v6149 = vpow.pop %v6148
      %v6150 = vmul.f32 %v6029, 1.442695
      %v6151 = vpow.pop %v6150
      %v6152 = vmul.f32 %v6030, 1.442695
      %v6153 = vpow.pop %v6152
      %v6154 = vmul.f32 %v6031, 1.442695
      %v6155 = vpow.pop %v6154
      %v6156 = vmul.f32 %v6032, 1.442695
      %v6157 = vpow.pop %v6156
      %v6158 = vmul.f32 %v6033, 1.442695
      %v6159 = vpow.pop %v6158
      %v6160 = vmul.f32 %v6034, 1.442695
      %v6161 = vpow.pop %v6160
      %v6162 = vmul.f32 %v6035, 1.442695
      %v6163 = vpow.pop %v6162
      %v6164 = vadd.f32 %v6037, %v6039
      %6165 = vadd.xlane.f32.xlu0 %v6164
      %v6166 = vpop.xlane.xlu0 %6165
      %v6167 = vadd.f32 %v6041, %v6043
      %6168 = vadd.xlane.f32.xlu0 %v6167
      %v6169 = vpop.xlane.xlu0 %6168
      %v6170 = vadd.f32 %v6045, %v6047
      %6171 = vadd.xlane.f32.xlu0 %v6170
      %v6172 = vpop.xlane.xlu0 %6171
      %v6173 = vadd.f32 %v6049, %v6051
      %6174 = vadd.xlane.f32.xlu0 %v6173
      %v6175 = vpop.xlane.xlu0 %6174
      %v6176 = vadd.f32 %v6053, %v6055
      %6177 = vadd.xlane.f32.xlu0 %v6176
      %v6178 = vpop.xlane.xlu0 %6177
      %v6179 = vadd.f32 %v6057, %v6059
      %6180 = vadd.xlane.f32.xlu0 %v6179
      %v6181 = vpop.xlane.xlu0 %6180
      %v6182 = vadd.f32 %v6061, %v6063
      %6183 = vadd.xlane.f32.xlu0 %v6182
      %v6184 = vpop.xlane.xlu0 %6183
      %v6185 = vadd.f32 %v6065, %v6067
      %6186 = vadd.xlane.f32.xlu0 %v6185
      %v6187 = vpop.xlane.xlu0 %6186
      %v6188 = vadd.f32 %v6069, %v6071
      %6189 = vadd.xlane.f32.xlu0 %v6188
      %v6190 = vpop.xlane.xlu0 %6189
      %v6191 = vadd.f32 %v6073, %v6075
      %6192 = vadd.xlane.f32.xlu0 %v6191
      %v6193 = vpop.xlane.xlu0 %6192
      %v6194 = vadd.f32 %v6077, %v6079
      %6195 = vadd.xlane.f32.xlu0 %v6194
      %v6196 = vpop.xlane.xlu0 %6195
      %v6197 = vadd.f32 %v6081, %v6083
      %6198 = vadd.xlane.f32.xlu0 %v6197
      %v6199 = vpop.xlane.xlu0 %6198
      %v6200 = vadd.f32 %v6085, %v6087
      %6201 = vadd.xlane.f32.xlu0 %v6200
      %v6202 = vpop.xlane.xlu0 %6201
      %v6203 = vadd.f32 %v6089, %v6091
      %6204 = vadd.xlane.f32.xlu0 %v6203
      %v6205 = vpop.xlane.xlu0 %6204
      %v6206 = vadd.f32 %v6093, %v6095
      %6207 = vadd.xlane.f32.xlu0 %v6206
      %v6208 = vpop.xlane.xlu0 %6207
      %v6209 = vadd.f32 %v6097, %v6099
      %6210 = vadd.xlane.f32.xlu0 %v6209
      %v6211 = vpop.xlane.xlu0 %6210
      %v6212 = vadd.f32 %v6101, %v6103
      %6213 = vadd.xlane.f32.xlu0 %v6212
      %v6214 = vpop.xlane.xlu0 %6213
      %v6215 = vadd.f32 %v6105, %v6107
      %6216 = vadd.xlane.f32.xlu0 %v6215
      %v6217 = vpop.xlane.xlu0 %6216
      %v6218 = vadd.f32 %v6109, %v6111
      %6219 = vadd.xlane.f32.xlu0 %v6218
      %v6220 = vpop.xlane.xlu0 %6219
      %v6221 = vadd.f32 %v6113, %v6115
      %6222 = vadd.xlane.f32.xlu0 %v6221
      %v6223 = vpop.xlane.xlu0 %6222
      %v6224 = vadd.f32 %v6117, %v6119
      %6225 = vadd.xlane.f32.xlu0 %v6224
      %v6226 = vpop.xlane.xlu0 %6225
      %v6227 = vadd.f32 %v6121, %v6123
      %6228 = vadd.xlane.f32.xlu0 %v6227
      %v6229 = vpop.xlane.xlu0 %6228
      %v6230 = vadd.f32 %v6125, %v6127
      %6231 = vadd.xlane.f32.xlu0 %v6230
      %v6232 = vpop.xlane.xlu0 %6231
      %v6233 = vadd.f32 %v6129, %v6131
      %6234 = vadd.xlane.f32.xlu0 %v6233
      %v6235 = vpop.xlane.xlu0 %6234
      %v6236 = vadd.f32 %v6133, %v6135
      %6237 = vadd.xlane.f32.xlu0 %v6236
      %v6238 = vpop.xlane.xlu0 %6237
      %v6239 = vadd.f32 %v6137, %v6139
      %6240 = vadd.xlane.f32.xlu0 %v6239
      %v6241 = vpop.xlane.xlu0 %6240
      %v6242 = vadd.f32 %v6141, %v6143
      %6243 = vadd.xlane.f32.xlu0 %v6242
      %v6244 = vpop.xlane.xlu0 %6243
      %v6245 = vadd.f32 %v6145, %v6147
      %6246 = vadd.xlane.f32.xlu0 %v6245
      %v6247 = vpop.xlane.xlu0 %6246
      %v6248 = vadd.f32 %v6149, %v6151
      %6249 = vadd.xlane.f32.xlu0 %v6248
      %v6250 = vpop.xlane.xlu0 %6249
      %v6251 = vadd.f32 %v6153, %v6155
      %6252 = vadd.xlane.f32.xlu0 %v6251
      %v6253 = vpop.xlane.xlu0 %6252
      %v6254 = vadd.f32 %v6157, %v6159
      %6255 = vadd.xlane.f32.xlu0 %v6254
      %v6256 = vpop.xlane.xlu0 %6255
      %v6257 = vadd.f32 %v6161, %v6163
      %6258 = vadd.xlane.f32.xlu0 %v6257
      %v6259 = vpop.xlane.xlu0 %6258
      %v6260 = vrcp.pop %v6166
      %v6261 = vrcp.pop %v6169
      %v6262 = vrcp.pop %v6172
      %v6263 = vrcp.pop %v6175
      %v6264 = vrcp.pop %v6178
      %v6265 = vrcp.pop %v6181
      %v6266 = vrcp.pop %v6184
      %v6267 = vrcp.pop %v6187
      %v6268 = vrcp.pop %v6190
      %v6269 = vrcp.pop %v6193
      %v6270 = vrcp.pop %v6196
      %v6271 = vrcp.pop %v6199
      %v6272 = vrcp.pop %v6202
      %v6273 = vrcp.pop %v6205
      %v6274 = vrcp.pop %v6208
      %v6275 = vrcp.pop %v6211
      %v6276 = vrcp.pop %v6214
      %v6277 = vrcp.pop %v6217
      %v6278 = vrcp.pop %v6220
      %v6279 = vrcp.pop %v6223
      %v6280 = vrcp.pop %v6226
      %v6281 = vrcp.pop %v6229
      %v6282 = vrcp.pop %v6232
      %v6283 = vrcp.pop %v6235
      %v6284 = vrcp.pop %v6238
      %v6285 = vrcp.pop %v6241
      %v6286 = vrcp.pop %v6244
      %v6287 = vrcp.pop %v6247
      %v6288 = vrcp.pop %v6250
      %v6289 = vrcp.pop %v6253
      %v6290 = vrcp.pop %v6256
      %v6291 = vrcp.pop %v6259
      %v6292 = vmul.f32 %v6037, %v6260
      %v6293 = vmul.f32 %v6039, %v6260
      %v6294 = vmul.f32 %v6041, %v6261
      %v6295 = vmul.f32 %v6043, %v6261
      %v6296 = vmul.f32 %v6045, %v6262
      %v6297 = vmul.f32 %v6047, %v6262
      %v6298 = vmul.f32 %v6049, %v6263
      %v6299 = vmul.f32 %v6051, %v6263
      %v6300 = vmul.f32 %v6053, %v6264
      %v6301 = vmul.f32 %v6055, %v6264
      %v6302 = vmul.f32 %v6057, %v6265
      %v6303 = vmul.f32 %v6059, %v6265
      %v6304 = vmul.f32 %v6061, %v6266
      %v6305 = vmul.f32 %v6063, %v6266
      %v6306 = vmul.f32 %v6065, %v6267
      %v6307 = vmul.f32 %v6067, %v6267
      %v6308 = vmul.f32 %v6069, %v6268
      %v6309 = vmul.f32 %v6071, %v6268
      %v6310 = vmul.f32 %v6073, %v6269
      %v6311 = vmul.f32 %v6075, %v6269
      %v6312 = vmul.f32 %v6077, %v6270
      %v6313 = vmul.f32 %v6079, %v6270
      %v6314 = vmul.f32 %v6081, %v6271
      %v6315 = vmul.f32 %v6083, %v6271
      %v6316 = vmul.f32 %v6085, %v6272
      %v6317 = vmul.f32 %v6087, %v6272
      %v6318 = vmul.f32 %v6089, %v6273
      %v6319 = vmul.f32 %v6091, %v6273
      %v6320 = vmul.f32 %v6093, %v6274
      %v6321 = vmul.f32 %v6095, %v6274
      %v6322 = vmul.f32 %v6097, %v6275
      %v6323 = vmul.f32 %v6099, %v6275
      %v6324 = vmul.f32 %v6101, %v6276
      %v6325 = vmul.f32 %v6103, %v6276
      %v6326 = vmul.f32 %v6105, %v6277
      %v6327 = vmul.f32 %v6107, %v6277
      %v6328 = vmul.f32 %v6109, %v6278
      %v6329 = vmul.f32 %v6111, %v6278
      %v6330 = vmul.f32 %v6113, %v6279
      %v6331 = vmul.f32 %v6115, %v6279
      %v6332 = vmul.f32 %v6117, %v6280
      %v6333 = vmul.f32 %v6119, %v6280
      %v6334 = vmul.f32 %v6121, %v6281
      %v6335 = vmul.f32 %v6123, %v6281
      %v6336 = vmul.f32 %v6125, %v6282
      %v6337 = vmul.f32 %v6127, %v6282
      %v6338 = vmul.f32 %v6129, %v6283
      %v6339 = vmul.f32 %v6131, %v6283
      %v6340 = vmul.f32 %v6133, %v6284
      %v6341 = vmul.f32 %v6135, %v6284
      %v6342 = vmul.f32 %v6137, %v6285
      %v6343 = vmul.f32 %v6139, %v6285
      %v6344 = vmul.f32 %v6141, %v6286
      %v6345 = vmul.f32 %v6143, %v6286
      %v6346 = vmul.f32 %v6145, %v6287
      %v6347 = vmul.f32 %v6147, %v6287
      %v6348 = vmul.f32 %v6149, %v6288
      %v6349 = vmul.f32 %v6151, %v6288
      %v6350 = vmul.f32 %v6153, %v6289
      %v6351 = vmul.f32 %v6155, %v6289
      %v6352 = vmul.f32 %v6157, %v6290
      %v6353 = vmul.f32 %v6159, %v6290
      %v6354 = vmul.f32 %v6161, %v6291
      %v6355 = vmul.f32 %v6163, %v6291
      %v6356 = vpack.c.bf16 %v6294, %v6292
      %v6357 = vpack.c.bf16 %v6295, %v6293
      %v6358 = vpack.c.bf16 %v6298, %v6296
      %v6359 = vpack.c.bf16 %v6299, %v6297
      %v6360 = vpack.c.bf16 %v6302, %v6300
      %v6361 = vpack.c.bf16 %v6303, %v6301
      %v6362 = vpack.c.bf16 %v6306, %v6304
      %v6363 = vpack.c.bf16 %v6307, %v6305
      %v6364 = vpack.c.bf16 %v6310, %v6308
      %v6365 = vpack.c.bf16 %v6311, %v6309
      %v6366 = vpack.c.bf16 %v6314, %v6312
      %v6367 = vpack.c.bf16 %v6315, %v6313
      %v6368 = vpack.c.bf16 %v6318, %v6316
      %v6369 = vpack.c.bf16 %v6319, %v6317
      %v6370 = vpack.c.bf16 %v6322, %v6320
      %v6371 = vpack.c.bf16 %v6323, %v6321
      %v6372 = vpack.c.bf16 %v6326, %v6324
      %v6373 = vpack.c.bf16 %v6327, %v6325
      %v6374 = vpack.c.bf16 %v6330, %v6328
      %v6375 = vpack.c.bf16 %v6331, %v6329
      %v6376 = vpack.c.bf16 %v6334, %v6332
      %v6377 = vpack.c.bf16 %v6335, %v6333
      %v6378 = vpack.c.bf16 %v6338, %v6336
      %v6379 = vpack.c.bf16 %v6339, %v6337
      %v6380 = vpack.c.bf16 %v6342, %v6340
      %v6381 = vpack.c.bf16 %v6343, %v6341
      %v6382 = vpack.c.bf16 %v6346, %v6344
      %v6383 = vpack.c.bf16 %v6347, %v6345
      %v6384 = vpack.c.bf16 %v6350, %v6348
      %v6385 = vpack.c.bf16 %v6351, %v6349
      %v6386 = vpack.c.bf16 %v6354, %v6352
      %v6387 = vpack.c.bf16 %v6355, %v6353
      %v6388 = vmax.f32 %v5708, %v5797
      %6389 = vmax.xlane.f32.xlu0 %v6388
      %v6390 = vpop.xlane.xlu0 %6389
      %v6391 = vmax.f32 %v5710, %v5799
      %6392 = vmax.xlane.f32.xlu0 %v6391
      %v6393 = vpop.xlane.xlu0 %6392
      %v6394 = vmax.f32 %v5713, %v5802
      %6395 = vmax.xlane.f32.xlu0 %v6394
      %v6396 = vpop.xlane.xlu0 %6395
      %v6397 = vmax.f32 %v5715, %v5804
      %6398 = vmax.xlane.f32.xlu0 %v6397
      %v6399 = vpop.xlane.xlu0 %6398
      %v6400 = vmax.f32 %v5718, %v5807
      %6401 = vmax.xlane.f32.xlu0 %v6400
      %v6402 = vpop.xlane.xlu0 %6401
      %v6403 = vmax.f32 %v5720, %v5809
      %6404 = vmax.xlane.f32.xlu0 %v6403
      %v6405 = vpop.xlane.xlu0 %6404
      %v6406 = vmax.f32 %v5723, %v5812
      %6407 = vmax.xlane.f32.xlu0 %v6406
      %v6408 = vpop.xlane.xlu0 %6407
      %v6409 = vmax.f32 %v5725, %v5814
      %6410 = vmax.xlane.f32.xlu0 %v6409
      %v6411 = vpop.xlane.xlu0 %6410
      %v6412 = vmax.f32 %v5728, %v5817
      %6413 = vmax.xlane.f32.xlu0 %v6412
      %v6414 = vpop.xlane.xlu0 %6413
      %v6415 = vmax.f32 %v5730, %v5819
      %6416 = vmax.xlane.f32.xlu0 %v6415
      %v6417 = vpop.xlane.xlu0 %6416
      %v6418 = vmax.f32 %v5733, %v5822
      %6419 = vmax.xlane.f32.xlu0 %v6418
      %v6420 = vpop.xlane.xlu0 %6419
      %v6421 = vmax.f32 %v5735, %v5824
      %6422 = vmax.xlane.f32.xlu0 %v6421
      %v6423 = vpop.xlane.xlu0 %6422
      %v6424 = vmax.f32 %v5738, %v5827
      %6425 = vmax.xlane.f32.xlu0 %v6424
      %v6426 = vpop.xlane.xlu0 %6425
      %v6427 = vmax.f32 %v5740, %v5829
      %6428 = vmax.xlane.f32.xlu0 %v6427
      %v6429 = vpop.xlane.xlu0 %6428
      %v6430 = vmax.f32 %v5743, %v5832
      %6431 = vmax.xlane.f32.xlu0 %v6430
      %v6432 = vpop.xlane.xlu0 %6431
      %v6433 = vmax.f32 %v5745, %v5834
      %6434 = vmax.xlane.f32.xlu0 %v6433
      %v6435 = vpop.xlane.xlu0 %6434
      %v6436 = vmax.f32 %v5748, %v5837
      %6437 = vmax.xlane.f32.xlu0 %v6436
      %v6438 = vpop.xlane.xlu0 %6437
      %v6439 = vmax.f32 %v5750, %v5839
      %6440 = vmax.xlane.f32.xlu0 %v6439
      %v6441 = vpop.xlane.xlu0 %6440
      %v6442 = vmax.f32 %v5753, %v5842
      %6443 = vmax.xlane.f32.xlu0 %v6442
      %v6444 = vpop.xlane.xlu0 %6443
      %v6445 = vmax.f32 %v5755, %v5844
      %6446 = vmax.xlane.f32.xlu0 %v6445
      %v6447 = vpop.xlane.xlu0 %6446
      %v6448 = vmax.f32 %v5758, %v5847
      %6449 = vmax.xlane.f32.xlu0 %v6448
      %v6450 = vpop.xlane.xlu0 %6449
      %v6451 = vmax.f32 %v5760, %v5849
      %6452 = vmax.xlane.f32.xlu0 %v6451
      %v6453 = vpop.xlane.xlu0 %6452
      %v6454 = vmax.f32 %v5763, %v5852
      %6455 = vmax.xlane.f32.xlu0 %v6454
      %v6456 = vpop.xlane.xlu0 %6455
      %v6457 = vmax.f32 %v5765, %v5854
      %6458 = vmax.xlane.f32.xlu0 %v6457
      %v6459 = vpop.xlane.xlu0 %6458
      %v6460 = vmax.f32 %v5768, %v5857
      %6461 = vmax.xlane.f32.xlu0 %v6460
      %v6462 = vpop.xlane.xlu0 %6461
      %v6463 = vmax.f32 %v5770, %v5859
      %6464 = vmax.xlane.f32.xlu0 %v6463
      %v6465 = vpop.xlane.xlu0 %6464
      %v6466 = vmax.f32 %v5773, %v5862
      %6467 = vmax.xlane.f32.xlu0 %v6466
      %v6468 = vpop.xlane.xlu0 %6467
      %v6469 = vmax.f32 %v5775, %v5864
      %6470 = vmax.xlane.f32.xlu0 %v6469
      %v6471 = vpop.xlane.xlu0 %6470
      %v6472 = vmax.f32 %v5778, %v5867
      %6473 = vmax.xlane.f32.xlu0 %v6472
      %v6474 = vpop.xlane.xlu0 %6473
      %v6475 = vmax.f32 %v5780, %v5869
      %6476 = vmax.xlane.f32.xlu0 %v6475
      %v6477 = vpop.xlane.xlu0 %6476
      %v6478 = vmax.f32 %v5783, %v5872
      %6479 = vmax.xlane.f32.xlu0 %v6478
      %v6480 = vpop.xlane.xlu0 %6479
      %v6481 = vmax.f32 %v5785, %v5874
      %6482 = vmax.xlane.f32.xlu0 %v6481
      %v6483 = vpop.xlane.xlu0 %6482
      %v6484 = vsub.f32 %v5708, %v6390
      %v6485 = vsub.f32 %v5797, %v6390
      %v6486 = vsub.f32 %v5710, %v6393
      %v6487 = vsub.f32 %v5799, %v6393
      %v6488 = vsub.f32 %v5713, %v6396
      %v6489 = vsub.f32 %v5802, %v6396
      %v6490 = vsub.f32 %v5715, %v6399
      %v6491 = vsub.f32 %v5804, %v6399
      %v6492 = vsub.f32 %v5718, %v6402
      %v6493 = vsub.f32 %v5807, %v6402
      %v6494 = vsub.f32 %v5720, %v6405
      %v6495 = vsub.f32 %v5809, %v6405
      %v6496 = vsub.f32 %v5723, %v6408
      %v6497 = vsub.f32 %v5812, %v6408
      %v6498 = vsub.f32 %v5725, %v6411
      %v6499 = vsub.f32 %v5814, %v6411
      %v6500 = vsub.f32 %v5728, %v6414
      %v6501 = vsub.f32 %v5817, %v6414
      %v6502 = vsub.f32 %v5730, %v6417
      %v6503 = vsub.f32 %v5819, %v6417
      %v6504 = vsub.f32 %v5733, %v6420
      %v6505 = vsub.f32 %v5822, %v6420
      %v6506 = vsub.f32 %v5735, %v6423
      %v6507 = vsub.f32 %v5824, %v6423
      %v6508 = vsub.f32 %v5738, %v6426
      %v6509 = vsub.f32 %v5827, %v6426
      %v6510 = vsub.f32 %v5740, %v6429
      %v6511 = vsub.f32 %v5829, %v6429
      %v6512 = vsub.f32 %v5743, %v6432
      %v6513 = vsub.f32 %v5832, %v6432
      %v6514 = vsub.f32 %v5745, %v6435
      %v6515 = vsub.f32 %v5834, %v6435
      %v6516 = vsub.f32 %v5748, %v6438
      %v6517 = vsub.f32 %v5837, %v6438
      %v6518 = vsub.f32 %v5750, %v6441
      %v6519 = vsub.f32 %v5839, %v6441
      %v6520 = vsub.f32 %v5753, %v6444
      %v6521 = vsub.f32 %v5842, %v6444
      %v6522 = vsub.f32 %v5755, %v6447
      %v6523 = vsub.f32 %v5844, %v6447
      %v6524 = vsub.f32 %v5758, %v6450
      %v6525 = vsub.f32 %v5847, %v6450
      %v6526 = vsub.f32 %v5760, %v6453
      %v6527 = vsub.f32 %v5849, %v6453
      %v6528 = vsub.f32 %v5763, %v6456
      %v6529 = vsub.f32 %v5852, %v6456
      %v6530 = vsub.f32 %v5765, %v6459
      %v6531 = vsub.f32 %v5854, %v6459
      %v6532 = vsub.f32 %v5768, %v6462
      %v6533 = vsub.f32 %v5857, %v6462
      %v6534 = vsub.f32 %v5770, %v6465
      %v6535 = vsub.f32 %v5859, %v6465
      %v6536 = vsub.f32 %v5773, %v6468
      %v6537 = vsub.f32 %v5862, %v6468
      %v6538 = vsub.f32 %v5775, %v6471
      %v6539 = vsub.f32 %v5864, %v6471
      %v6540 = vsub.f32 %v5778, %v6474
      %v6541 = vsub.f32 %v5867, %v6474
      %v6542 = vsub.f32 %v5780, %v6477
      %v6543 = vsub.f32 %v5869, %v6477
      %v6544 = vsub.f32 %v5783, %v6480
      %v6545 = vsub.f32 %v5872, %v6480
      %v6546 = vsub.f32 %v5785, %v6483
      %v6547 = vsub.f32 %v5874, %v6483
      %v6548 = vmul.f32 %v6484, 1.442695
      %v6549 = vpow.pop %v6548
      %v6550 = vmul.f32 %v6485, 1.442695
      %v6551 = vpow.pop %v6550
      %v6552 = vmul.f32 %v6486, 1.442695
      %v6553 = vpow.pop %v6552
      %v6554 = vmul.f32 %v6487, 1.442695
      %v6555 = vpow.pop %v6554
      %v6556 = vmul.f32 %v6488, 1.442695
      %v6557 = vpow.pop %v6556
      %v6558 = vmul.f32 %v6489, 1.442695
      %v6559 = vpow.pop %v6558
      %v6560 = vmul.f32 %v6490, 1.442695
      %v6561 = vpow.pop %v6560
      %v6562 = vmul.f32 %v6491, 1.442695
      %v6563 = vpow.pop %v6562
      %v6564 = vmul.f32 %v6492, 1.442695
      %v6565 = vpow.pop %v6564
      %v6566 = vmul.f32 %v6493, 1.442695
      %v6567 = vpow.pop %v6566
      %v6568 = vmul.f32 %v6494, 1.442695
      %v6569 = vpow.pop %v6568
      %v6570 = vmul.f32 %v6495, 1.442695
      %v6571 = vpow.pop %v6570
      %v6572 = vmul.f32 %v6496, 1.442695
      %v6573 = vpow.pop %v6572
      %v6574 = vmul.f32 %v6497, 1.442695
      %v6575 = vpow.pop %v6574
      %v6576 = vmul.f32 %v6498, 1.442695
      %v6577 = vpow.pop %v6576
      %v6578 = vmul.f32 %v6499, 1.442695
      %v6579 = vpow.pop %v6578
      %v6580 = vmul.f32 %v6500, 1.442695
      %v6581 = vpow.pop %v6580
      %v6582 = vmul.f32 %v6501, 1.442695
      %v6583 = vpow.pop %v6582
      %v6584 = vmul.f32 %v6502, 1.442695
      %v6585 = vpow.pop %v6584
      %v6586 = vmul.f32 %v6503, 1.442695
      %v6587 = vpow.pop %v6586
      %v6588 = vmul.f32 %v6504, 1.442695
      %v6589 = vpow.pop %v6588
      %v6590 = vmul.f32 %v6505, 1.442695
      %v6591 = vpow.pop %v6590
      %v6592 = vmul.f32 %v6506, 1.442695
      %v6593 = vpow.pop %v6592
      %v6594 = vmul.f32 %v6507, 1.442695
      %v6595 = vpow.pop %v6594
      %v6596 = vmul.f32 %v6508, 1.442695
      %v6597 = vpow.pop %v6596
      %v6598 = vmul.f32 %v6509, 1.442695
      %v6599 = vpow.pop %v6598
      %v6600 = vmul.f32 %v6510, 1.442695
      %v6601 = vpow.pop %v6600
      %v6602 = vmul.f32 %v6511, 1.442695
      %v6603 = vpow.pop %v6602
      %v6604 = vmul.f32 %v6512, 1.442695
      %v6605 = vpow.pop %v6604
      %v6606 = vmul.f32 %v6513, 1.442695
      %v6607 = vpow.pop %v6606
      %v6608 = vmul.f32 %v6514, 1.442695
      %v6609 = vpow.pop %v6608
      %v6610 = vmul.f32 %v6515, 1.442695
      %v6611 = vpow.pop %v6610
      %v6612 = vmul.f32 %v6516, 1.442695
      %v6613 = vpow.pop %v6612
      %v6614 = vmul.f32 %v6517, 1.442695
      %v6615 = vpow.pop %v6614
      %v6616 = vmul.f32 %v6518, 1.442695
      %v6617 = vpow.pop %v6616
      %v6618 = vmul.f32 %v6519, 1.442695
      %v6619 = vpow.pop %v6618
      %v6620 = vmul.f32 %v6520, 1.442695
      %v6621 = vpow.pop %v6620
      %v6622 = vmul.f32 %v6521, 1.442695
      %v6623 = vpow.pop %v6622
      %v6624 = vmul.f32 %v6522, 1.442695
      %v6625 = vpow.pop %v6624
      %v6626 = vmul.f32 %v6523, 1.442695
      %v6627 = vpow.pop %v6626
      %v6628 = vmul.f32 %v6524, 1.442695
      %v6629 = vpow.pop %v6628
      %v6630 = vmul.f32 %v6525, 1.442695
      %v6631 = vpow.pop %v6630
      %v6632 = vmul.f32 %v6526, 1.442695
      %v6633 = vpow.pop %v6632
      %v6634 = vmul.f32 %v6527, 1.442695
      %v6635 = vpow.pop %v6634
      %v6636 = vmul.f32 %v6528, 1.442695
      %v6637 = vpow.pop %v6636
      %v6638 = vmul.f32 %v6529, 1.442695
      %v6639 = vpow.pop %v6638
      %v6640 = vmul.f32 %v6530, 1.442695
      %v6641 = vpow.pop %v6640
      %v6642 = vmul.f32 %v6531, 1.442695
      %v6643 = vpow.pop %v6642
      %v6644 = vmul.f32 %v6532, 1.442695
      %v6645 = vpow.pop %v6644
      %v6646 = vmul.f32 %v6533, 1.442695
      %v6647 = vpow.pop %v6646
      %v6648 = vmul.f32 %v6534, 1.442695
      %v6649 = vpow.pop %v6648
      %v6650 = vmul.f32 %v6535, 1.442695
      %v6651 = vpow.pop %v6650
      %v6652 = vmul.f32 %v6536, 1.442695
      %v6653 = vpow.pop %v6652
      %v6654 = vmul.f32 %v6537, 1.442695
      %v6655 = vpow.pop %v6654
      %v6656 = vmul.f32 %v6538, 1.442695
      %v6657 = vpow.pop %v6656
      %v6658 = vmul.f32 %v6539, 1.442695
      %v6659 = vpow.pop %v6658
      %v6660 = vmul.f32 %v6540, 1.442695
      %v6661 = vpow.pop %v6660
      %v6662 = vmul.f32 %v6541, 1.442695
      %v6663 = vpow.pop %v6662
      %v6664 = vmul.f32 %v6542, 1.442695
      %v6665 = vpow.pop %v6664
      %v6666 = vmul.f32 %v6543, 1.442695
      %v6667 = vpow.pop %v6666
      %v6668 = vmul.f32 %v6544, 1.442695
      %v6669 = vpow.pop %v6668
      %v6670 = vmul.f32 %v6545, 1.442695
      %v6671 = vpow.pop %v6670
      %v6672 = vmul.f32 %v6546, 1.442695
      %v6673 = vpow.pop %v6672
      %v6674 = vmul.f32 %v6547, 1.442695
      %v6675 = vpow.pop %v6674
      %v6676 = vadd.f32 %v6549, %v6551
      %6677 = vadd.xlane.f32.xlu0 %v6676
      %v6678 = vpop.xlane.xlu0 %6677
      %v6679 = vadd.f32 %v6553, %v6555
      %6680 = vadd.xlane.f32.xlu0 %v6679
      %v6681 = vpop.xlane.xlu0 %6680
      %v6682 = vadd.f32 %v6557, %v6559
      %6683 = vadd.xlane.f32.xlu0 %v6682
      %v6684 = vpop.xlane.xlu0 %6683
      %v6685 = vadd.f32 %v6561, %v6563
      %6686 = vadd.xlane.f32.xlu0 %v6685
      %v6687 = vpop.xlane.xlu0 %6686
      %v6688 = vadd.f32 %v6565, %v6567
      %6689 = vadd.xlane.f32.xlu0 %v6688
      %v6690 = vpop.xlane.xlu0 %6689
      %v6691 = vadd.f32 %v6569, %v6571
      %6692 = vadd.xlane.f32.xlu0 %v6691
      %v6693 = vpop.xlane.xlu0 %6692
      %v6694 = vadd.f32 %v6573, %v6575
      %6695 = vadd.xlane.f32.xlu0 %v6694
      %v6696 = vpop.xlane.xlu0 %6695
      %v6697 = vadd.f32 %v6577, %v6579
      %6698 = vadd.xlane.f32.xlu0 %v6697
      %v6699 = vpop.xlane.xlu0 %6698
      %v6700 = vadd.f32 %v6581, %v6583
      %6701 = vadd.xlane.f32.xlu0 %v6700
      %v6702 = vpop.xlane.xlu0 %6701
      %v6703 = vadd.f32 %v6585, %v6587
      %6704 = vadd.xlane.f32.xlu0 %v6703
      %v6705 = vpop.xlane.xlu0 %6704
      %v6706 = vadd.f32 %v6589, %v6591
      %6707 = vadd.xlane.f32.xlu0 %v6706
      %v6708 = vpop.xlane.xlu0 %6707
      %v6709 = vadd.f32 %v6593, %v6595
      %6710 = vadd.xlane.f32.xlu0 %v6709
      %v6711 = vpop.xlane.xlu0 %6710
      %v6712 = vadd.f32 %v6597, %v6599
      %6713 = vadd.xlane.f32.xlu0 %v6712
      %v6714 = vpop.xlane.xlu0 %6713
      %v6715 = vadd.f32 %v6601, %v6603
      %6716 = vadd.xlane.f32.xlu0 %v6715
      %v6717 = vpop.xlane.xlu0 %6716
      %v6718 = vadd.f32 %v6605, %v6607
      %6719 = vadd.xlane.f32.xlu0 %v6718
      %v6720 = vpop.xlane.xlu0 %6719
      %v6721 = vadd.f32 %v6609, %v6611
      %6722 = vadd.xlane.f32.xlu0 %v6721
      %v6723 = vpop.xlane.xlu0 %6722
      %v6724 = vadd.f32 %v6613, %v6615
      %6725 = vadd.xlane.f32.xlu0 %v6724
      %v6726 = vpop.xlane.xlu0 %6725
      %v6727 = vadd.f32 %v6617, %v6619
      %6728 = vadd.xlane.f32.xlu0 %v6727
      %v6729 = vpop.xlane.xlu0 %6728
      %v6730 = vadd.f32 %v6621, %v6623
      %6731 = vadd.xlane.f32.xlu0 %v6730
      %v6732 = vpop.xlane.xlu0 %6731
      %v6733 = vadd.f32 %v6625, %v6627
      %6734 = vadd.xlane.f32.xlu0 %v6733
      %v6735 = vpop.xlane.xlu0 %6734
      %v6736 = vadd.f32 %v6629, %v6631
      %6737 = vadd.xlane.f32.xlu0 %v6736
      %v6738 = vpop.xlane.xlu0 %6737
      %v6739 = vadd.f32 %v6633, %v6635
      %6740 = vadd.xlane.f32.xlu0 %v6739
      %v6741 = vpop.xlane.xlu0 %6740
      %v6742 = vadd.f32 %v6637, %v6639
      %6743 = vadd.xlane.f32.xlu0 %v6742
      %v6744 = vpop.xlane.xlu0 %6743
      %v6745 = vadd.f32 %v6641, %v6643
      %6746 = vadd.xlane.f32.xlu0 %v6745
      %v6747 = vpop.xlane.xlu0 %6746
      %v6748 = vadd.f32 %v6645, %v6647
      %6749 = vadd.xlane.f32.xlu0 %v6748
      %v6750 = vpop.xlane.xlu0 %6749
      %v6751 = vadd.f32 %v6649, %v6651
      %6752 = vadd.xlane.f32.xlu0 %v6751
      %v6753 = vpop.xlane.xlu0 %6752
      %v6754 = vadd.f32 %v6653, %v6655
      %6755 = vadd.xlane.f32.xlu0 %v6754
      %v6756 = vpop.xlane.xlu0 %6755
      %v6757 = vadd.f32 %v6657, %v6659
      %6758 = vadd.xlane.f32.xlu0 %v6757
      %v6759 = vpop.xlane.xlu0 %6758
      %v6760 = vadd.f32 %v6661, %v6663
      %6761 = vadd.xlane.f32.xlu0 %v6760
      %v6762 = vpop.xlane.xlu0 %6761
      %v6763 = vadd.f32 %v6665, %v6667
      %6764 = vadd.xlane.f32.xlu0 %v6763
      %v6765 = vpop.xlane.xlu0 %6764
      %v6766 = vadd.f32 %v6669, %v6671
      %6767 = vadd.xlane.f32.xlu0 %v6766
      %v6768 = vpop.xlane.xlu0 %6767
      %v6769 = vadd.f32 %v6673, %v6675
      %6770 = vadd.xlane.f32.xlu0 %v6769
      %v6771 = vpop.xlane.xlu0 %6770
      %v6772 = vrcp.pop %v6678
      %v6773 = vrcp.pop %v6681
      %v6774 = vrcp.pop %v6684
      %v6775 = vrcp.pop %v6687
      %v6776 = vrcp.pop %v6690
      %v6777 = vrcp.pop %v6693
      %v6778 = vrcp.pop %v6696
      %v6779 = vrcp.pop %v6699
      %v6780 = vrcp.pop %v6702
      %v6781 = vrcp.pop %v6705
      %v6782 = vrcp.pop %v6708
      %v6783 = vrcp.pop %v6711
      %v6784 = vrcp.pop %v6714
      %v6785 = vrcp.pop %v6717
      %v6786 = vrcp.pop %v6720
      %v6787 = vrcp.pop %v6723
      %v6788 = vrcp.pop %v6726
      %v6789 = vrcp.pop %v6729
      %v6790 = vrcp.pop %v6732
      %v6791 = vrcp.pop %v6735
      %v6792 = vrcp.pop %v6738
      %v6793 = vrcp.pop %v6741
      %v6794 = vrcp.pop %v6744
      %v6795 = vrcp.pop %v6747
      %v6796 = vrcp.pop %v6750
      %v6797 = vrcp.pop %v6753
      %v6798 = vrcp.pop %v6756
      %v6799 = vrcp.pop %v6759
      %v6800 = vrcp.pop %v6762
      %v6801 = vrcp.pop %v6765
      %v6802 = vrcp.pop %v6768
      %v6803 = vrcp.pop %v6771
      %v6804 = vmul.f32 %v6549, %v6772
      %v6805 = vmul.f32 %v6551, %v6772
      %v6806 = vmul.f32 %v6553, %v6773
      %v6807 = vmul.f32 %v6555, %v6773
      %v6808 = vmul.f32 %v6557, %v6774
      %v6809 = vmul.f32 %v6559, %v6774
      %v6810 = vmul.f32 %v6561, %v6775
      %v6811 = vmul.f32 %v6563, %v6775
      %v6812 = vmul.f32 %v6565, %v6776
      %v6813 = vmul.f32 %v6567, %v6776
      %v6814 = vmul.f32 %v6569, %v6777
      %v6815 = vmul.f32 %v6571, %v6777
      %v6816 = vmul.f32 %v6573, %v6778
      %v6817 = vmul.f32 %v6575, %v6778
      %v6818 = vmul.f32 %v6577, %v6779
      %v6819 = vmul.f32 %v6579, %v6779
      %v6820 = vmul.f32 %v6581, %v6780
      %v6821 = vmul.f32 %v6583, %v6780
      %v6822 = vmul.f32 %v6585, %v6781
      %v6823 = vmul.f32 %v6587, %v6781
      %v6824 = vmul.f32 %v6589, %v6782
      %v6825 = vmul.f32 %v6591, %v6782
      %v6826 = vmul.f32 %v6593, %v6783
      %v6827 = vmul.f32 %v6595, %v6783
      %v6828 = vmul.f32 %v6597, %v6784
      %v6829 = vmul.f32 %v6599, %v6784
      %v6830 = vmul.f32 %v6601, %v6785
      %v6831 = vmul.f32 %v6603, %v6785
      %v6832 = vmul.f32 %v6605, %v6786
      %v6833 = vmul.f32 %v6607, %v6786
      %v6834 = vmul.f32 %v6609, %v6787
      %v6835 = vmul.f32 %v6611, %v6787
      %v6836 = vmul.f32 %v6613, %v6788
      %v6837 = vmul.f32 %v6615, %v6788
      %v6838 = vmul.f32 %v6617, %v6789
      %v6839 = vmul.f32 %v6619, %v6789
      %v6840 = vmul.f32 %v6621, %v6790
      %v6841 = vmul.f32 %v6623, %v6790
      %v6842 = vmul.f32 %v6625, %v6791
      %v6843 = vmul.f32 %v6627, %v6791
      %v6844 = vmul.f32 %v6629, %v6792
      %v6845 = vmul.f32 %v6631, %v6792
      %v6846 = vmul.f32 %v6633, %v6793
      %v6847 = vmul.f32 %v6635, %v6793
      %v6848 = vmul.f32 %v6637, %v6794
      %v6849 = vmul.f32 %v6639, %v6794
      %v6850 = vmul.f32 %v6641, %v6795
      %v6851 = vmul.f32 %v6643, %v6795
      %v6852 = vmul.f32 %v6645, %v6796
      %v6853 = vmul.f32 %v6647, %v6796
      %v6854 = vmul.f32 %v6649, %v6797
      %v6855 = vmul.f32 %v6651, %v6797
      %v6856 = vmul.f32 %v6653, %v6798
      %v6857 = vmul.f32 %v6655, %v6798
      %v6858 = vmul.f32 %v6657, %v6799
      %v6859 = vmul.f32 %v6659, %v6799
      %v6860 = vmul.f32 %v6661, %v6800
      %v6861 = vmul.f32 %v6663, %v6800
      %v6862 = vmul.f32 %v6665, %v6801
      %v6863 = vmul.f32 %v6667, %v6801
      %v6864 = vmul.f32 %v6669, %v6802
      %v6865 = vmul.f32 %v6671, %v6802
      %v6866 = vmul.f32 %v6673, %v6803
      %v6867 = vmul.f32 %v6675, %v6803
      %v6868 = vpack.c.bf16 %v6806, %v6804
      %v6869 = vpack.c.bf16 %v6807, %v6805
      %v6870 = vpack.c.bf16 %v6810, %v6808
      %v6871 = vpack.c.bf16 %v6811, %v6809
      %v6872 = vpack.c.bf16 %v6814, %v6812
      %v6873 = vpack.c.bf16 %v6815, %v6813
      %v6874 = vpack.c.bf16 %v6818, %v6816
      %v6875 = vpack.c.bf16 %v6819, %v6817
      %v6876 = vpack.c.bf16 %v6822, %v6820
      %v6877 = vpack.c.bf16 %v6823, %v6821
      %v6878 = vpack.c.bf16 %v6826, %v6824
      %v6879 = vpack.c.bf16 %v6827, %v6825
      %v6880 = vpack.c.bf16 %v6830, %v6828
      %v6881 = vpack.c.bf16 %v6831, %v6829
      %v6882 = vpack.c.bf16 %v6834, %v6832
      %v6883 = vpack.c.bf16 %v6835, %v6833
      %v6884 = vpack.c.bf16 %v6838, %v6836
      %v6885 = vpack.c.bf16 %v6839, %v6837
      %v6886 = vpack.c.bf16 %v6842, %v6840
      %v6887 = vpack.c.bf16 %v6843, %v6841
      %v6888 = vpack.c.bf16 %v6846, %v6844
      %v6889 = vpack.c.bf16 %v6847, %v6845
      %v6890 = vpack.c.bf16 %v6850, %v6848
      %v6891 = vpack.c.bf16 %v6851, %v6849
      %v6892 = vpack.c.bf16 %v6854, %v6852
      %v6893 = vpack.c.bf16 %v6855, %v6853
      %v6894 = vpack.c.bf16 %v6858, %v6856
      %v6895 = vpack.c.bf16 %v6859, %v6857
      %v6896 = vpack.c.bf16 %v6862, %v6860
      %v6897 = vpack.c.bf16 %v6863, %v6861
      %v6898 = vpack.c.bf16 %v6866, %v6864
      %v6899 = vpack.c.bf16 %v6867, %v6865
      %6916 = vrot.lane.b32.xlu0 %v5024, 64
      %v6917 = vpop.permute.xlu0 %6916
      %6918 = vrot.lane.b32.xlu0 %v5025, 64
      %v6919 = vpop.permute.xlu0 %6918
      %6920 = vrot.lane.b32.xlu0 %v5026, 64
      %v6921 = vpop.permute.xlu0 %6920
      %6922 = vrot.lane.b32.xlu0 %v5027, 64
      %v6923 = vpop.permute.xlu0 %6922
      %6924 = vrot.lane.b32.xlu0 %v5028, 64
      %v6925 = vpop.permute.xlu0 %6924
      %6926 = vrot.lane.b32.xlu0 %v5029, 64
      %v6927 = vpop.permute.xlu0 %6926
      %6928 = vrot.lane.b32.xlu0 %v5030, 64
      %v6929 = vpop.permute.xlu0 %6928
      %6930 = vrot.lane.b32.xlu0 %v5031, 64
      %v6931 = vpop.permute.xlu0 %6930
      %6932 = vrot.lane.b32.xlu0 %v5032, 64
      %v6933 = vpop.permute.xlu0 %6932
      %6934 = vrot.lane.b32.xlu0 %v5033, 64
      %v6935 = vpop.permute.xlu0 %6934
      %6936 = vrot.lane.b32.xlu0 %v5034, 64
      %v6937 = vpop.permute.xlu0 %6936
      %6938 = vrot.lane.b32.xlu0 %v5035, 64
      %v6939 = vpop.permute.xlu0 %6938
      %6940 = vrot.lane.b32.xlu0 %v5036, 64
      %v6941 = vpop.permute.xlu0 %6940
      %6942 = vrot.lane.b32.xlu0 %v5037, 64
      %v6943 = vpop.permute.xlu0 %6942
      %6944 = vrot.lane.b32.xlu0 %v5038, 64
      %v6945 = vpop.permute.xlu0 %6944
      %6946 = vrot.lane.b32.xlu0 %v5039, 64
      %v6947 = vpop.permute.xlu0 %6946
      %6964 = vmatpush.bf16.msra.mxu0 %v6931
      %6965 = vmatpush.bf16.msra.mxu0 %v6929
      %6966 = vmatpush.bf16.msra.mxu0 %v6927
      %6967 = vmatpush.bf16.msra.mxu0 %v6925
      %6968 = vmatpush.bf16.msra.mxu0 %v6923
      %6969 = vmatpush.bf16.msra.mxu0 %v6921
      %6970 = vmatpush.bf16.msra.mxu0 %v6919
      %6971 = vmatpush.bf16.msra.mxu0 %v6917
      %6972 = vmatmul.bf16.gmra.mxu0 %v6356
      %v6973 = vpop.f32.mrf.mxu0
      %v6974 = vadd.f32 0.0, %v6973
      %v6975 = vpop.f32.mrf.mxu0
      %v6976 = vadd.f32 0.0, %v6975
      %6977 = vmatmul.bf16.gmra.mxu0 %v6358
      %v6978 = vpop.f32.mrf.mxu0
      %v6979 = vadd.f32 0.0, %v6978
      %v6980 = vpop.f32.mrf.mxu0
      %v6981 = vadd.f32 0.0, %v6980
      %6982 = vmatmul.bf16.gmra.mxu0 %v6360
      %v6983 = vpop.f32.mrf.mxu0
      %v6984 = vadd.f32 0.0, %v6983
      %v6985 = vpop.f32.mrf.mxu0
      %v6986 = vadd.f32 0.0, %v6985
      %6987 = vmatmul.bf16.gmra.mxu0 %v6362
      %v6988 = vpop.f32.mrf.mxu0
      %v6989 = vadd.f32 0.0, %v6988
      %v6990 = vpop.f32.mrf.mxu0
      %v6991 = vadd.f32 0.0, %v6990
      %6992 = vmatmul.bf16.gmra.mxu0 %v6364
      %v6993 = vpop.f32.mrf.mxu0
      %v6994 = vadd.f32 0.0, %v6993
      %v6995 = vpop.f32.mrf.mxu0
      %v6996 = vadd.f32 0.0, %v6995
      %6997 = vmatmul.bf16.gmra.mxu0 %v6366
      %v6998 = vpop.f32.mrf.mxu0
      %v6999 = vadd.f32 0.0, %v6998
      %v7000 = vpop.f32.mrf.mxu0
      %v7001 = vadd.f32 0.0, %v7000
      %7002 = vmatmul.bf16.gmra.mxu0 %v6368
      %v7003 = vpop.f32.mrf.mxu0
      %v7004 = vadd.f32 0.0, %v7003
      %v7005 = vpop.f32.mrf.mxu0
      %v7006 = vadd.f32 0.0, %v7005
      %7007 = vmatmul.bf16.gmra.mxu0 %v6370
      %v7008 = vpop.f32.mrf.mxu0
      %v7009 = vadd.f32 0.0, %v7008
      %v7010 = vpop.f32.mrf.mxu0
      %v7011 = vadd.f32 0.0, %v7010
      %7012 = vmatmul.bf16.gmra.mxu0 %v6372
      %v7013 = vpop.f32.mrf.mxu0
      %v7014 = vadd.f32 0.0, %v7013
      %v7015 = vpop.f32.mrf.mxu0
      %v7016 = vadd.f32 0.0, %v7015
      %7017 = vmatmul.bf16.gmra.mxu0 %v6374
      %v7018 = vpop.f32.mrf.mxu0
      %v7019 = vadd.f32 0.0, %v7018
      %v7020 = vpop.f32.mrf.mxu0
      %v7021 = vadd.f32 0.0, %v7020
      %7022 = vmatmul.bf16.gmra.mxu0 %v6376
      %v7023 = vpop.f32.mrf.mxu0
      %v7024 = vadd.f32 0.0, %v7023
      %v7025 = vpop.f32.mrf.mxu0
      %v7026 = vadd.f32 0.0, %v7025
      %7027 = vmatmul.bf16.gmra.mxu0 %v6378
      %v7028 = vpop.f32.mrf.mxu0
      %v7029 = vadd.f32 0.0, %v7028
      %v7030 = vpop.f32.mrf.mxu0
      %v7031 = vadd.f32 0.0, %v7030
      %7032 = vmatmul.bf16.gmra.mxu0 %v6380
      %v7033 = vpop.f32.mrf.mxu0
      %v7034 = vadd.f32 0.0, %v7033
      %v7035 = vpop.f32.mrf.mxu0
      %v7036 = vadd.f32 0.0, %v7035
      %7037 = vmatmul.bf16.gmra.mxu0 %v6382
      %v7038 = vpop.f32.mrf.mxu0
      %v7039 = vadd.f32 0.0, %v7038
      %v7040 = vpop.f32.mrf.mxu0
      %v7041 = vadd.f32 0.0, %v7040
      %7042 = vmatmul.bf16.gmra.mxu0 %v6384
      %v7043 = vpop.f32.mrf.mxu0
      %v7044 = vadd.f32 0.0, %v7043
      %v7045 = vpop.f32.mrf.mxu0
      %v7046 = vadd.f32 0.0, %v7045
      %7047 = vmatmul.bf16.gmra.mxu0 %v6386
      %v7048 = vpop.f32.mrf.mxu0
      %v7049 = vadd.f32 0.0, %v7048
      %v7050 = vpop.f32.mrf.mxu0
      %v7051 = vadd.f32 0.0, %v7050
      %7052 = vdwg.mxu0
      %7053 = vmatpush.bf16.msra.mxu0 %v6947
      %7054 = vmatpush.bf16.msra.mxu0 %v6945
      %7055 = vmatpush.bf16.msra.mxu0 %v6943
      %7056 = vmatpush.bf16.msra.mxu0 %v6941
      %7057 = vmatpush.bf16.msra.mxu0 %v6939
      %7058 = vmatpush.bf16.msra.mxu0 %v6937
      %7059 = vmatpush.bf16.msra.mxu0 %v6935
      %7060 = vmatpush.bf16.msra.mxu0 %v6933
      %7061 = vmatmul.bf16.gmra.mxu0 %v6357
      %v7062 = vpop.f32.mrf.mxu0
      %v7063 = vadd.f32 %v6974, %v7062
      %v7064 = vpop.f32.mrf.mxu0
      %v7065 = vadd.f32 %v6976, %v7064
      %7066 = vmatmul.bf16.gmra.mxu0 %v6359
      %v7067 = vpop.f32.mrf.mxu0
      %v7068 = vadd.f32 %v6979, %v7067
      %v7069 = vpop.f32.mrf.mxu0
      %v7070 = vadd.f32 %v6981, %v7069
      %7071 = vmatmul.bf16.gmra.mxu0 %v6361
      %v7072 = vpop.f32.mrf.mxu0
      %v7073 = vadd.f32 %v6984, %v7072
      %v7074 = vpop.f32.mrf.mxu0
      %v7075 = vadd.f32 %v6986, %v7074
      %7076 = vmatmul.bf16.gmra.mxu0 %v6363
      %v7077 = vpop.f32.mrf.mxu0
      %v7078 = vadd.f32 %v6989, %v7077
      %v7079 = vpop.f32.mrf.mxu0
      %v7080 = vadd.f32 %v6991, %v7079
      %7081 = vmatmul.bf16.gmra.mxu0 %v6365
      %v7082 = vpop.f32.mrf.mxu0
      %v7083 = vadd.f32 %v6994, %v7082
      %v7084 = vpop.f32.mrf.mxu0
      %v7085 = vadd.f32 %v6996, %v7084
      %7086 = vmatmul.bf16.gmra.mxu0 %v6367
      %v7087 = vpop.f32.mrf.mxu0
      %v7088 = vadd.f32 %v6999, %v7087
      %v7089 = vpop.f32.mrf.mxu0
      %v7090 = vadd.f32 %v7001, %v7089
      %7091 = vmatmul.bf16.gmra.mxu0 %v6369
      %v7092 = vpop.f32.mrf.mxu0
      %v7093 = vadd.f32 %v7004, %v7092
      %v7094 = vpop.f32.mrf.mxu0
      %v7095 = vadd.f32 %v7006, %v7094
      %7096 = vmatmul.bf16.gmra.mxu0 %v6371
      %v7097 = vpop.f32.mrf.mxu0
      %v7098 = vadd.f32 %v7009, %v7097
      %v7099 = vpop.f32.mrf.mxu0
      %v7100 = vadd.f32 %v7011, %v7099
      %7101 = vmatmul.bf16.gmra.mxu0 %v6373
      %v7102 = vpop.f32.mrf.mxu0
      %v7103 = vadd.f32 %v7014, %v7102
      %v7104 = vpop.f32.mrf.mxu0
      %v7105 = vadd.f32 %v7016, %v7104
      %7106 = vmatmul.bf16.gmra.mxu0 %v6375
      %v7107 = vpop.f32.mrf.mxu0
      %v7108 = vadd.f32 %v7019, %v7107
      %v7109 = vpop.f32.mrf.mxu0
      %v7110 = vadd.f32 %v7021, %v7109
      %7111 = vmatmul.bf16.gmra.mxu0 %v6377
      %v7112 = vpop.f32.mrf.mxu0
      %v7113 = vadd.f32 %v7024, %v7112
      %v7114 = vpop.f32.mrf.mxu0
      %v7115 = vadd.f32 %v7026, %v7114
      %7116 = vmatmul.bf16.gmra.mxu0 %v6379
      %v7117 = vpop.f32.mrf.mxu0
      %v7118 = vadd.f32 %v7029, %v7117
      %v7119 = vpop.f32.mrf.mxu0
      %v7120 = vadd.f32 %v7031, %v7119
      %7121 = vmatmul.bf16.gmra.mxu0 %v6381
      %v7122 = vpop.f32.mrf.mxu0
      %v7123 = vadd.f32 %v7034, %v7122
      %v7124 = vpop.f32.mrf.mxu0
      %v7125 = vadd.f32 %v7036, %v7124
      %7126 = vmatmul.bf16.gmra.mxu0 %v6383
      %v7127 = vpop.f32.mrf.mxu0
      %v7128 = vadd.f32 %v7039, %v7127
      %v7129 = vpop.f32.mrf.mxu0
      %v7130 = vadd.f32 %v7041, %v7129
      %7131 = vmatmul.bf16.gmra.mxu0 %v6385
      %v7132 = vpop.f32.mrf.mxu0
      %v7133 = vadd.f32 %v7044, %v7132
      %v7134 = vpop.f32.mrf.mxu0
      %v7135 = vadd.f32 %v7046, %v7134
      %7136 = vmatmul.bf16.gmra.mxu0 %v6387
      %v7137 = vpop.f32.mrf.mxu0
      %v7138 = vadd.f32 %v7049, %v7137
      %v7139 = vpop.f32.mrf.mxu0
      %v7140 = vadd.f32 %v7051, %v7139
      %7141 = vdwg.mxu0
      %7158 = vrot.lane.b32.xlu0 %v5104, 96
      %v7159 = vpop.permute.xlu0 %7158
      %7160 = vrot.lane.b32.xlu0 %v5105, 96
      %v7161 = vpop.permute.xlu0 %7160
      %7162 = vrot.lane.b32.xlu0 %v5106, 96
      %v7163 = vpop.permute.xlu0 %7162
      %7164 = vrot.lane.b32.xlu0 %v5107, 96
      %v7165 = vpop.permute.xlu0 %7164
      %7166 = vrot.lane.b32.xlu0 %v5108, 96
      %v7167 = vpop.permute.xlu0 %7166
      %7168 = vrot.lane.b32.xlu0 %v5109, 96
      %v7169 = vpop.permute.xlu0 %7168
      %7170 = vrot.lane.b32.xlu0 %v5110, 96
      %v7171 = vpop.permute.xlu0 %7170
      %7172 = vrot.lane.b32.xlu0 %v5111, 96
      %v7173 = vpop.permute.xlu0 %7172
      %7174 = vrot.lane.b32.xlu0 %v5112, 96
      %v7175 = vpop.permute.xlu0 %7174
      %7176 = vrot.lane.b32.xlu0 %v5113, 96
      %v7177 = vpop.permute.xlu0 %7176
      %7178 = vrot.lane.b32.xlu0 %v5114, 96
      %v7179 = vpop.permute.xlu0 %7178
      %7180 = vrot.lane.b32.xlu0 %v5115, 96
      %v7181 = vpop.permute.xlu0 %7180
      %7182 = vrot.lane.b32.xlu0 %v5116, 96
      %v7183 = vpop.permute.xlu0 %7182
      %7184 = vrot.lane.b32.xlu0 %v5117, 96
      %v7185 = vpop.permute.xlu0 %7184
      %7186 = vrot.lane.b32.xlu0 %v5118, 96
      %v7187 = vpop.permute.xlu0 %7186
      %7188 = vrot.lane.b32.xlu0 %v5119, 96
      %v7189 = vpop.permute.xlu0 %7188
      %7206 = vmatpush.bf16.msra.mxu0 %v7173
      %7207 = vmatpush.bf16.msra.mxu0 %v7171
      %7208 = vmatpush.bf16.msra.mxu0 %v7169
      %7209 = vmatpush.bf16.msra.mxu0 %v7167
      %7210 = vmatpush.bf16.msra.mxu0 %v7165
      %7211 = vmatpush.bf16.msra.mxu0 %v7163
      %7212 = vmatpush.bf16.msra.mxu0 %v7161
      %7213 = vmatpush.bf16.msra.mxu0 %v7159
      %7214 = vmatmul.bf16.gmra.mxu0 %v6868
      %v7215 = vpop.f32.mrf.mxu0
      %v7216 = vadd.f32 0.0, %v7215
      %v7217 = vpop.f32.mrf.mxu0
      %v7218 = vadd.f32 0.0, %v7217
      %7219 = vmatmul.bf16.gmra.mxu0 %v6870
      %v7220 = vpop.f32.mrf.mxu0
      %v7221 = vadd.f32 0.0, %v7220
      %v7222 = vpop.f32.mrf.mxu0
      %v7223 = vadd.f32 0.0, %v7222
      %7224 = vmatmul.bf16.gmra.mxu0 %v6872
      %v7225 = vpop.f32.mrf.mxu0
      %v7226 = vadd.f32 0.0, %v7225
      %v7227 = vpop.f32.mrf.mxu0
      %v7228 = vadd.f32 0.0, %v7227
      %7229 = vmatmul.bf16.gmra.mxu0 %v6874
      %v7230 = vpop.f32.mrf.mxu0
      %v7231 = vadd.f32 0.0, %v7230
      %v7232 = vpop.f32.mrf.mxu0
      %v7233 = vadd.f32 0.0, %v7232
      %7234 = vmatmul.bf16.gmra.mxu0 %v6876
      %v7235 = vpop.f32.mrf.mxu0
      %v7236 = vadd.f32 0.0, %v7235
      %v7237 = vpop.f32.mrf.mxu0
      %v7238 = vadd.f32 0.0, %v7237
      %7239 = vmatmul.bf16.gmra.mxu0 %v6878
      %v7240 = vpop.f32.mrf.mxu0
      %v7241 = vadd.f32 0.0, %v7240
      %v7242 = vpop.f32.mrf.mxu0
      %v7243 = vadd.f32 0.0, %v7242
      %7244 = vmatmul.bf16.gmra.mxu0 %v6880
      %v7245 = vpop.f32.mrf.mxu0
      %v7246 = vadd.f32 0.0, %v7245
      %v7247 = vpop.f32.mrf.mxu0
      %v7248 = vadd.f32 0.0, %v7247
      %7249 = vmatmul.bf16.gmra.mxu0 %v6882
      %v7250 = vpop.f32.mrf.mxu0
      %v7251 = vadd.f32 0.0, %v7250
      %v7252 = vpop.f32.mrf.mxu0
      %v7253 = vadd.f32 0.0, %v7252
      %7254 = vmatmul.bf16.gmra.mxu0 %v6884
      %v7255 = vpop.f32.mrf.mxu0
      %v7256 = vadd.f32 0.0, %v7255
      %v7257 = vpop.f32.mrf.mxu0
      %v7258 = vadd.f32 0.0, %v7257
      %7259 = vmatmul.bf16.gmra.mxu0 %v6886
      %v7260 = vpop.f32.mrf.mxu0
      %v7261 = vadd.f32 0.0, %v7260
      %v7262 = vpop.f32.mrf.mxu0
      %v7263 = vadd.f32 0.0, %v7262
      %7264 = vmatmul.bf16.gmra.mxu0 %v6888
      %v7265 = vpop.f32.mrf.mxu0
      %v7266 = vadd.f32 0.0, %v7265
      %v7267 = vpop.f32.mrf.mxu0
      %v7268 = vadd.f32 0.0, %v7267
      %7269 = vmatmul.bf16.gmra.mxu0 %v6890
      %v7270 = vpop.f32.mrf.mxu0
      %v7271 = vadd.f32 0.0, %v7270
      %v7272 = vpop.f32.mrf.mxu0
      %v7273 = vadd.f32 0.0, %v7272
      %7274 = vmatmul.bf16.gmra.mxu0 %v6892
      %v7275 = vpop.f32.mrf.mxu0
      %v7276 = vadd.f32 0.0, %v7275
      %v7277 = vpop.f32.mrf.mxu0
      %v7278 = vadd.f32 0.0, %v7277
      %7279 = vmatmul.bf16.gmra.mxu0 %v6894
      %v7280 = vpop.f32.mrf.mxu0
      %v7281 = vadd.f32 0.0, %v7280
      %v7282 = vpop.f32.mrf.mxu0
      %v7283 = vadd.f32 0.0, %v7282
      %7284 = vmatmul.bf16.gmra.mxu0 %v6896
      %v7285 = vpop.f32.mrf.mxu0
      %v7286 = vadd.f32 0.0, %v7285
      %v7287 = vpop.f32.mrf.mxu0
      %v7288 = vadd.f32 0.0, %v7287
      %7289 = vmatmul.bf16.gmra.mxu0 %v6898
      %v7290 = vpop.f32.mrf.mxu0
      %v7291 = vadd.f32 0.0, %v7290
      %v7292 = vpop.f32.mrf.mxu0
      %v7293 = vadd.f32 0.0, %v7292
      %7294 = vdwg.mxu0
      %7295 = vmatpush.bf16.msra.mxu0 %v7189
      %7296 = vmatpush.bf16.msra.mxu0 %v7187
      %7297 = vmatpush.bf16.msra.mxu0 %v7185
      %7298 = vmatpush.bf16.msra.mxu0 %v7183
      %7299 = vmatpush.bf16.msra.mxu0 %v7181
      %7300 = vmatpush.bf16.msra.mxu0 %v7179
      %7301 = vmatpush.bf16.msra.mxu0 %v7177
      %7302 = vmatpush.bf16.msra.mxu0 %v7175
      %7303 = vmatmul.bf16.gmra.mxu0 %v6869
      %v7304 = vpop.f32.mrf.mxu0
      %v7305 = vadd.f32 %v7216, %v7304
      %v7306 = vpop.f32.mrf.mxu0
      %v7307 = vadd.f32 %v7218, %v7306
      %7308 = vmatmul.bf16.gmra.mxu0 %v6871
      %v7309 = vpop.f32.mrf.mxu0
      %v7310 = vadd.f32 %v7221, %v7309
      %v7311 = vpop.f32.mrf.mxu0
      %v7312 = vadd.f32 %v7223, %v7311
      %7313 = vmatmul.bf16.gmra.mxu0 %v6873
      %v7314 = vpop.f32.mrf.mxu0
      %v7315 = vadd.f32 %v7226, %v7314
      %v7316 = vpop.f32.mrf.mxu0
      %v7317 = vadd.f32 %v7228, %v7316
      %7318 = vmatmul.bf16.gmra.mxu0 %v6875
      %v7319 = vpop.f32.mrf.mxu0
      %v7320 = vadd.f32 %v7231, %v7319
      %v7321 = vpop.f32.mrf.mxu0
      %v7322 = vadd.f32 %v7233, %v7321
      %7323 = vmatmul.bf16.gmra.mxu0 %v6877
      %v7324 = vpop.f32.mrf.mxu0
      %v7325 = vadd.f32 %v7236, %v7324
      %v7326 = vpop.f32.mrf.mxu0
      %v7327 = vadd.f32 %v7238, %v7326
      %7328 = vmatmul.bf16.gmra.mxu0 %v6879
      %v7329 = vpop.f32.mrf.mxu0
      %v7330 = vadd.f32 %v7241, %v7329
      %v7331 = vpop.f32.mrf.mxu0
      %v7332 = vadd.f32 %v7243, %v7331
      %7333 = vmatmul.bf16.gmra.mxu0 %v6881
      %v7334 = vpop.f32.mrf.mxu0
      %v7335 = vadd.f32 %v7246, %v7334
      %v7336 = vpop.f32.mrf.mxu0
      %v7337 = vadd.f32 %v7248, %v7336
      %7338 = vmatmul.bf16.gmra.mxu0 %v6883
      %v7339 = vpop.f32.mrf.mxu0
      %v7340 = vadd.f32 %v7251, %v7339
      %v7341 = vpop.f32.mrf.mxu0
      %v7342 = vadd.f32 %v7253, %v7341
      %7343 = vmatmul.bf16.gmra.mxu0 %v6885
      %v7344 = vpop.f32.mrf.mxu0
      %v7345 = vadd.f32 %v7256, %v7344
      %v7346 = vpop.f32.mrf.mxu0
      %v7347 = vadd.f32 %v7258, %v7346
      %7348 = vmatmul.bf16.gmra.mxu0 %v6887
      %v7349 = vpop.f32.mrf.mxu0
      %v7350 = vadd.f32 %v7261, %v7349
      %v7351 = vpop.f32.mrf.mxu0
      %v7352 = vadd.f32 %v7263, %v7351
      %7353 = vmatmul.bf16.gmra.mxu0 %v6889
      %v7354 = vpop.f32.mrf.mxu0
      %v7355 = vadd.f32 %v7266, %v7354
      %v7356 = vpop.f32.mrf.mxu0
      %v7357 = vadd.f32 %v7268, %v7356
      %7358 = vmatmul.bf16.gmra.mxu0 %v6891
      %v7359 = vpop.f32.mrf.mxu0
      %v7360 = vadd.f32 %v7271, %v7359
      %v7361 = vpop.f32.mrf.mxu0
      %v7362 = vadd.f32 %v7273, %v7361
      %7363 = vmatmul.bf16.gmra.mxu0 %v6893
      %v7364 = vpop.f32.mrf.mxu0
      %v7365 = vadd.f32 %v7276, %v7364
      %v7366 = vpop.f32.mrf.mxu0
      %v7367 = vadd.f32 %v7278, %v7366
      %7368 = vmatmul.bf16.gmra.mxu0 %v6895
      %v7369 = vpop.f32.mrf.mxu0
      %v7370 = vadd.f32 %v7281, %v7369
      %v7371 = vpop.f32.mrf.mxu0
      %v7372 = vadd.f32 %v7283, %v7371
      %7373 = vmatmul.bf16.gmra.mxu0 %v6897
      %v7374 = vpop.f32.mrf.mxu0
      %v7375 = vadd.f32 %v7286, %v7374
      %v7376 = vpop.f32.mrf.mxu0
      %v7377 = vadd.f32 %v7288, %v7376
      %7378 = vmatmul.bf16.gmra.mxu0 %v6899
      %v7379 = vpop.f32.mrf.mxu0
      %v7380 = vadd.f32 %v7291, %v7379
      %v7381 = vpop.f32.mrf.mxu0
      %v7382 = vadd.f32 %v7293, %v7381
      %7383 = vdwg.mxu0
      %v7384 = vpack.c.bf16 %v7065, %v7063
      %v7385 = vpack.c.bf16 %v7070, %v7068
      %v7386 = vpack.c.bf16 %v7075, %v7073
      %v7387 = vpack.c.bf16 %v7080, %v7078
      %v7388 = vpack.c.bf16 %v7085, %v7083
      %v7389 = vpack.c.bf16 %v7090, %v7088
      %v7390 = vpack.c.bf16 %v7095, %v7093
      %v7391 = vpack.c.bf16 %v7100, %v7098
      %v7392 = vpack.c.bf16 %v7105, %v7103
      %v7393 = vpack.c.bf16 %v7110, %v7108
      %v7394 = vpack.c.bf16 %v7115, %v7113
      %v7395 = vpack.c.bf16 %v7120, %v7118
      %v7396 = vpack.c.bf16 %v7125, %v7123
      %v7397 = vpack.c.bf16 %v7130, %v7128
      %v7398 = vpack.c.bf16 %v7135, %v7133
      %v7399 = vpack.c.bf16 %v7140, %v7138
      %v7400 = vld [vmem:[%s11] sm:$0xf]
      %v7401 = vld [vmem:[%s11 + $0x4] sm:$0xf]
      %v7402 = vld [vmem:[%s11 + $0x8] sm:$0xf]
      %v7403 = vld [vmem:[%s11 + $0xc] sm:$0xf]
      %v7404 = vpack.c.bf16 %v7307, %v7305
      %v7405 = vpack.c.bf16 %v7312, %v7310
      %v7406 = vpack.c.bf16 %v7317, %v7315
      %v7407 = vpack.c.bf16 %v7322, %v7320
      %v7408 = vpack.c.bf16 %v7327, %v7325
      %v7409 = vpack.c.bf16 %v7332, %v7330
      %v7410 = vpack.c.bf16 %v7337, %v7335
      %v7411 = vpack.c.bf16 %v7342, %v7340
      %v7412 = vpack.c.bf16 %v7347, %v7345
      %v7413 = vpack.c.bf16 %v7352, %v7350
      %v7414 = vpack.c.bf16 %v7357, %v7355
      %v7415 = vpack.c.bf16 %v7362, %v7360
      %v7416 = vpack.c.bf16 %v7367, %v7365
      %v7417 = vpack.c.bf16 %v7372, %v7370
      %v7418 = vpack.c.bf16 %v7377, %v7375
      %v7419 = vpack.c.bf16 %v7382, %v7380
      %v7420 = vld [vmem:[%s12] sm:$0xf]
      %v7421 = vld [vmem:[%s12 + $0x4] sm:$0xf]
      %v7422 = vld [vmem:[%s12 + $0x8] sm:$0xf]
      %v7423 = vld [vmem:[%s12 + $0xc] sm:$0xf]
      %v7428 = vunpack.c.l.b16 %v7420
      %v7429 = vunpack.c.l.b16 %v7421
      %v7430 = vunpack.c.l.b16 %v7422
      %v7431 = vunpack.c.l.b16 %v7423
      %v7432 = vpack.c.b16 %v7429, %v7428
      %v7433 = vpack.c.b16 %v7431, %v7430
      %v7437 = vsel %vm4729, %v7404, 0
      %v7440 = vsel %vm4729, %v7405, 0
      %v7443 = vsel %vm4729, %v7406, 0
      %v7446 = vsel %vm4729, %v7407, 0
      %v7449 = vsel %vm4729, %v7408, 0
      %v7452 = vsel %vm4729, %v7409, 0
      %v7455 = vsel %vm4729, %v7410, 0
      %v7458 = vsel %vm4729, %v7411, 0
      %v7461 = vsel %vm4729, %v7412, 0
      %v7464 = vsel %vm4729, %v7413, 0
      %v7467 = vsel %vm4729, %v7414, 0
      %v7470 = vsel %vm4729, %v7415, 0
      %v7473 = vsel %vm4729, %v7416, 0
      %v7476 = vsel %vm4729, %v7417, 0
      %v7479 = vsel %vm4729, %v7418, 0
      %v7482 = vsel %vm4729, %v7419, 0
      %7484 = vmatpush.bf16.msra.mxu0 0
      %7485 = vmatpush.bf16.msra.mxu0 0
      %7486 = vmatpush.bf16.msra.mxu0 0
      %7487 = vmatpush.bf16.msra.mxu0 0
      %7488 = vmatpush.bf16.msra.mxu0 0
      %7489 = vmatpush.bf16.msra.mxu0 0
      %7490 = vmatpush.bf16.msra.mxu0 %v7433
      %7491 = vmatpush.bf16.msra.mxu0 %v7432
      %7492 = vmatmul.bf16.gmra.mxu0 %v7437
      %v7493 = vpop.f32.mrf.mxu0
      %v7494 = vadd.f32 0.0, %v7493
      %v7495 = vpop.f32.mrf.mxu0
      %v7496 = vadd.f32 0.0, %v7495
      %7497 = vmatmul.bf16.gmra.mxu0 %v7440
      %v7498 = vpop.f32.mrf.mxu0
      %v7499 = vadd.f32 0.0, %v7498
      %v7500 = vpop.f32.mrf.mxu0
      %v7501 = vadd.f32 0.0, %v7500
      %7502 = vmatmul.bf16.gmra.mxu0 %v7443
      %v7503 = vpop.f32.mrf.mxu0
      %v7504 = vadd.f32 0.0, %v7503
      %v7505 = vpop.f32.mrf.mxu0
      %v7506 = vadd.f32 0.0, %v7505
      %7507 = vmatmul.bf16.gmra.mxu0 %v7446
      %v7508 = vpop.f32.mrf.mxu0
      %v7509 = vadd.f32 0.0, %v7508
      %v7510 = vpop.f32.mrf.mxu0
      %v7511 = vadd.f32 0.0, %v7510
      %7512 = vmatmul.bf16.gmra.mxu0 %v7449
      %v7513 = vpop.f32.mrf.mxu0
      %v7514 = vadd.f32 0.0, %v7513
      %v7515 = vpop.f32.mrf.mxu0
      %v7516 = vadd.f32 0.0, %v7515
      %7517 = vmatmul.bf16.gmra.mxu0 %v7452
      %v7518 = vpop.f32.mrf.mxu0
      %v7519 = vadd.f32 0.0, %v7518
      %v7520 = vpop.f32.mrf.mxu0
      %v7521 = vadd.f32 0.0, %v7520
      %7522 = vmatmul.bf16.gmra.mxu0 %v7455
      %v7523 = vpop.f32.mrf.mxu0
      %v7524 = vadd.f32 0.0, %v7523
      %v7525 = vpop.f32.mrf.mxu0
      %v7526 = vadd.f32 0.0, %v7525
      %7527 = vmatmul.bf16.gmra.mxu0 %v7458
      %v7528 = vpop.f32.mrf.mxu0
      %v7529 = vadd.f32 0.0, %v7528
      %v7530 = vpop.f32.mrf.mxu0
      %v7531 = vadd.f32 0.0, %v7530
      %7532 = vmatmul.bf16.gmra.mxu0 %v7461
      %v7533 = vpop.f32.mrf.mxu0
      %v7534 = vadd.f32 0.0, %v7533
      %v7535 = vpop.f32.mrf.mxu0
      %v7536 = vadd.f32 0.0, %v7535
      %7537 = vmatmul.bf16.gmra.mxu0 %v7464
      %v7538 = vpop.f32.mrf.mxu0
      %v7539 = vadd.f32 0.0, %v7538
      %v7540 = vpop.f32.mrf.mxu0
      %v7541 = vadd.f32 0.0, %v7540
      %7542 = vmatmul.bf16.gmra.mxu0 %v7467
      %v7543 = vpop.f32.mrf.mxu0
      %v7544 = vadd.f32 0.0, %v7543
      %v7545 = vpop.f32.mrf.mxu0
      %v7546 = vadd.f32 0.0, %v7545
      %7547 = vmatmul.bf16.gmra.mxu0 %v7470
      %v7548 = vpop.f32.mrf.mxu0
      %v7549 = vadd.f32 0.0, %v7548
      %v7550 = vpop.f32.mrf.mxu0
      %v7551 = vadd.f32 0.0, %v7550
      %7552 = vmatmul.bf16.gmra.mxu0 %v7473
      %v7553 = vpop.f32.mrf.mxu0
      %v7554 = vadd.f32 0.0, %v7553
      %v7555 = vpop.f32.mrf.mxu0
      %v7556 = vadd.f32 0.0, %v7555
      %7557 = vmatmul.bf16.gmra.mxu0 %v7476
      %v7558 = vpop.f32.mrf.mxu0
      %v7559 = vadd.f32 0.0, %v7558
      %v7560 = vpop.f32.mrf.mxu0
      %v7561 = vadd.f32 0.0, %v7560
      %7562 = vmatmul.bf16.gmra.mxu0 %v7479
      %v7563 = vpop.f32.mrf.mxu0
      %v7564 = vadd.f32 0.0, %v7563
      %v7565 = vpop.f32.mrf.mxu0
      %v7566 = vadd.f32 0.0, %v7565
      %7567 = vmatmul.bf16.gmra.mxu0 %v7482
      %v7568 = vpop.f32.mrf.mxu0
      %v7569 = vadd.f32 0.0, %v7568
      %v7570 = vpop.f32.mrf.mxu0
      %v7571 = vadd.f32 0.0, %v7570
      %7572 = vdwg.mxu0
      %v7577 = vunpack.c.l.b16 %v7400
      %v7578 = vunpack.c.l.b16 %v7401
      %v7579 = vunpack.c.l.b16 %v7402
      %v7580 = vunpack.c.l.b16 %v7403
      %v7581 = vpack.c.b16 %v7578, %v7577
      %v7582 = vpack.c.b16 %v7580, %v7579
      %v7586 = vsel %vm4729, %v7384, 0
      %v7589 = vsel %vm4729, %v7385, 0
      %v7592 = vsel %vm4729, %v7386, 0
      %v7595 = vsel %vm4729, %v7387, 0
      %v7598 = vsel %vm4729, %v7388, 0
      %v7601 = vsel %vm4729, %v7389, 0
      %v7604 = vsel %vm4729, %v7390, 0
      %v7607 = vsel %vm4729, %v7391, 0
      %v7610 = vsel %vm4729, %v7392, 0
      %v7613 = vsel %vm4729, %v7393, 0
      %v7616 = vsel %vm4729, %v7394, 0
      %v7619 = vsel %vm4729, %v7395, 0
      %v7622 = vsel %vm4729, %v7396, 0
      %v7625 = vsel %vm4729, %v7397, 0
      %v7628 = vsel %vm4729, %v7398, 0
      %v7631 = vsel %vm4729, %v7399, 0
      %7633 = vmatpush.bf16.msra.mxu0 0
      %7634 = vmatpush.bf16.msra.mxu0 0
      %7635 = vmatpush.bf16.msra.mxu0 0
      %7636 = vmatpush.bf16.msra.mxu0 0
      %7637 = vmatpush.bf16.msra.mxu0 0
      %7638 = vmatpush.bf16.msra.mxu0 0
      %7639 = vmatpush.bf16.msra.mxu0 %v7582
      %7640 = vmatpush.bf16.msra.mxu0 %v7581
      %7641 = vmatmul.bf16.gmra.mxu0 %v7586
      %v7642 = vpop.f32.mrf.mxu0
      %v7643 = vadd.f32 %v7494, %v7642
      %v7644 = vpop.f32.mrf.mxu0
      %v7645 = vadd.f32 %v7496, %v7644
      %7646 = vmatmul.bf16.gmra.mxu0 %v7589
      %v7647 = vpop.f32.mrf.mxu0
      %v7648 = vadd.f32 %v7499, %v7647
      %v7649 = vpop.f32.mrf.mxu0
      %v7650 = vadd.f32 %v7501, %v7649
      %7651 = vmatmul.bf16.gmra.mxu0 %v7592
      %v7652 = vpop.f32.mrf.mxu0
      %v7653 = vadd.f32 %v7504, %v7652
      %v7654 = vpop.f32.mrf.mxu0
      %v7655 = vadd.f32 %v7506, %v7654
      %7656 = vmatmul.bf16.gmra.mxu0 %v7595
      %v7657 = vpop.f32.mrf.mxu0
      %v7658 = vadd.f32 %v7509, %v7657
      %v7659 = vpop.f32.mrf.mxu0
      %v7660 = vadd.f32 %v7511, %v7659
      %7661 = vmatmul.bf16.gmra.mxu0 %v7598
      %v7662 = vpop.f32.mrf.mxu0
      %v7663 = vadd.f32 %v7514, %v7662
      %v7664 = vpop.f32.mrf.mxu0
      %v7665 = vadd.f32 %v7516, %v7664
      %7666 = vmatmul.bf16.gmra.mxu0 %v7601
      %v7667 = vpop.f32.mrf.mxu0
      %v7668 = vadd.f32 %v7519, %v7667
      %v7669 = vpop.f32.mrf.mxu0
      %v7670 = vadd.f32 %v7521, %v7669
      %7671 = vmatmul.bf16.gmra.mxu0 %v7604
      %v7672 = vpop.f32.mrf.mxu0
      %v7673 = vadd.f32 %v7524, %v7672
      %v7674 = vpop.f32.mrf.mxu0
      %v7675 = vadd.f32 %v7526, %v7674
      %7676 = vmatmul.bf16.gmra.mxu0 %v7607
      %v7677 = vpop.f32.mrf.mxu0
      %v7678 = vadd.f32 %v7529, %v7677
      %v7679 = vpop.f32.mrf.mxu0
      %v7680 = vadd.f32 %v7531, %v7679
      %7681 = vmatmul.bf16.gmra.mxu0 %v7610
      %v7682 = vpop.f32.mrf.mxu0
      %v7683 = vadd.f32 %v7534, %v7682
      %v7684 = vpop.f32.mrf.mxu0
      %v7685 = vadd.f32 %v7536, %v7684
      %7686 = vmatmul.bf16.gmra.mxu0 %v7613
      %v7687 = vpop.f32.mrf.mxu0
      %v7688 = vadd.f32 %v7539, %v7687
      %v7689 = vpop.f32.mrf.mxu0
      %v7690 = vadd.f32 %v7541, %v7689
      %7691 = vmatmul.bf16.gmra.mxu0 %v7616
      %v7692 = vpop.f32.mrf.mxu0
      %v7693 = vadd.f32 %v7544, %v7692
      %v7694 = vpop.f32.mrf.mxu0
      %v7695 = vadd.f32 %v7546, %v7694
      %7696 = vmatmul.bf16.gmra.mxu0 %v7619
      %v7697 = vpop.f32.mrf.mxu0
      %v7698 = vadd.f32 %v7549, %v7697
      %v7699 = vpop.f32.mrf.mxu0
      %v7700 = vadd.f32 %v7551, %v7699
      %7701 = vmatmul.bf16.gmra.mxu0 %v7622
      %v7702 = vpop.f32.mrf.mxu0
      %v7703 = vadd.f32 %v7554, %v7702
      %v7704 = vpop.f32.mrf.mxu0
      %v7705 = vadd.f32 %v7556, %v7704
      %7706 = vmatmul.bf16.gmra.mxu0 %v7625
      %v7707 = vpop.f32.mrf.mxu0
      %v7708 = vadd.f32 %v7559, %v7707
      %v7709 = vpop.f32.mrf.mxu0
      %v7710 = vadd.f32 %v7561, %v7709
      %7711 = vmatmul.bf16.gmra.mxu0 %v7628
      %v7712 = vpop.f32.mrf.mxu0
      %v7713 = vadd.f32 %v7564, %v7712
      %v7714 = vpop.f32.mrf.mxu0
      %v7715 = vadd.f32 %v7566, %v7714
      %7716 = vmatmul.bf16.gmra.mxu0 %v7631
      %v7717 = vpop.f32.mrf.mxu0
      %v7718 = vadd.f32 %v7569, %v7717
      %v7719 = vpop.f32.mrf.mxu0
      %v7720 = vadd.f32 %v7571, %v7719
      %7721 = vdwg.mxu0
      %v7722 = vld [vmem:[%s13] sm:$0x1]
      %v7724 = vperm.slane %v7722, 0
      %v7726 = vadd.f32 %v7643, %v7724
      %v7727 = vadd.f32 %v7645, %v7724
      %v7728 = vadd.f32 %v7648, %v7724
      %v7729 = vadd.f32 %v7650, %v7724
      %v7730 = vadd.f32 %v7653, %v7724
      %v7731 = vadd.f32 %v7655, %v7724
      %v7732 = vadd.f32 %v7658, %v7724
      %v7733 = vadd.f32 %v7660, %v7724
      %v7734 = vadd.f32 %v7663, %v7724
      %v7735 = vadd.f32 %v7665, %v7724
      %v7736 = vadd.f32 %v7668, %v7724
      %v7737 = vadd.f32 %v7670, %v7724
      %v7738 = vadd.f32 %v7673, %v7724
      %v7739 = vadd.f32 %v7675, %v7724
      %v7740 = vadd.f32 %v7678, %v7724
      %v7741 = vadd.f32 %v7680, %v7724
      %v7742 = vadd.f32 %v7683, %v7724
      %v7743 = vadd.f32 %v7685, %v7724
      %v7744 = vadd.f32 %v7688, %v7724
      %v7745 = vadd.f32 %v7690, %v7724
      %v7746 = vadd.f32 %v7693, %v7724
      %v7747 = vadd.f32 %v7695, %v7724
      %v7748 = vadd.f32 %v7698, %v7724
      %v7749 = vadd.f32 %v7700, %v7724
      %v7750 = vadd.f32 %v7703, %v7724
      %v7751 = vadd.f32 %v7705, %v7724
      %v7752 = vadd.f32 %v7708, %v7724
      %v7753 = vadd.f32 %v7710, %v7724
      %v7754 = vadd.f32 %v7713, %v7724
      %v7755 = vadd.f32 %v7715, %v7724
      %v7756 = vadd.f32 %v7718, %v7724
      %v7757 = vadd.f32 %v7720, %v7724
      %v7758 = vpack.c.bf16 %v7727, %v7726
      %v7759 = vpack.c.bf16 %v7729, %v7728
      %v7760 = vpack.c.bf16 %v7731, %v7730
      %v7761 = vpack.c.bf16 %v7733, %v7732
      %v7762 = vpack.c.bf16 %v7735, %v7734
      %v7763 = vpack.c.bf16 %v7737, %v7736
      %v7764 = vpack.c.bf16 %v7739, %v7738
      %v7765 = vpack.c.bf16 %v7741, %v7740
      %v7766 = vpack.c.bf16 %v7743, %v7742
      %v7767 = vpack.c.bf16 %v7745, %v7744
      %v7768 = vpack.c.bf16 %v7747, %v7746
      %v7769 = vpack.c.bf16 %v7749, %v7748
      %v7770 = vpack.c.bf16 %v7751, %v7750
      %v7771 = vpack.c.bf16 %v7753, %v7752
      %v7772 = vpack.c.bf16 %v7755, %v7754
      %v7773 = vpack.c.bf16 %v7757, %v7756
      %v7774 = vld [vmem:[%s14] sm:$0xf]
      %v7775 = vld [vmem:[%s14 + $0x4] sm:$0xf]
      %v7776 = vld [vmem:[%s14 + $0x8] sm:$0xf]
      %v7777 = vld [vmem:[%s14 + $0xc] sm:$0xf]
      %v7778 = vld [vmem:[%s14 + $0x10] sm:$0xf]
      %v7779 = vld [vmem:[%s14 + $0x14] sm:$0xf]
      %v7780 = vld [vmem:[%s14 + $0x18] sm:$0xf]
      %v7781 = vld [vmem:[%s14 + $0x1c] sm:$0xf]
      %v7782 = vld [vmem:[%s15] sm:$0xf]
      %v7783 = vld [vmem:[%s15 + $0x4] sm:$0xf]
      %v7784 = vld [vmem:[%s15 + $0x8] sm:$0xf]
      %v7785 = vld [vmem:[%s15 + $0xc] sm:$0xf]
      %v7790 = vunpack.c.l.b16 %v7782
      %v7791 = vunpack.c.l.b16 %v7783
      %v7792 = vunpack.c.l.b16 %v7784
      %v7793 = vunpack.c.l.b16 %v7785
      %v7794 = vpack.c.b16 %v7791, %v7790
      %v7795 = vpack.c.b16 %v7793, %v7792
      %7798 = vmatpush.bf16.msra.mxu0 0
      %7799 = vmatpush.bf16.msra.mxu0 0
      %7800 = vmatpush.bf16.msra.mxu0 0
      %7801 = vmatpush.bf16.msra.mxu0 0
      %7802 = vmatpush.bf16.msra.mxu0 0
      %7803 = vmatpush.bf16.msra.mxu0 0
      %7804 = vmatpush.bf16.msra.mxu0 %v7795
      %7805 = vmatpush.bf16.msra.mxu0 %v7794
      %7806 = vmatmul.bf16.gmra.mxu0 %v4731
      %v7807 = vpop.f32.mrf.mxu0
      %v7808 = vadd.f32 0.0, %v7807
      %v7809 = vpop.f32.mrf.mxu0
      %v7810 = vadd.f32 0.0, %v7809
      %7811 = vmatmul.bf16.gmra.mxu0 %v4734
      %v7812 = vpop.f32.mrf.mxu0
      %v7813 = vadd.f32 0.0, %v7812
      %v7814 = vpop.f32.mrf.mxu0
      %v7815 = vadd.f32 0.0, %v7814
      %7816 = vmatmul.bf16.gmra.mxu0 %v4737
      %v7817 = vpop.f32.mrf.mxu0
      %v7818 = vadd.f32 0.0, %v7817
      %v7819 = vpop.f32.mrf.mxu0
      %v7820 = vadd.f32 0.0, %v7819
      %7821 = vmatmul.bf16.gmra.mxu0 %v4740
      %v7822 = vpop.f32.mrf.mxu0
      %v7823 = vadd.f32 0.0, %v7822
      %v7824 = vpop.f32.mrf.mxu0
      %v7825 = vadd.f32 0.0, %v7824
      %7826 = vmatmul.bf16.gmra.mxu0 %v4743
      %v7827 = vpop.f32.mrf.mxu0
      %v7828 = vadd.f32 0.0, %v7827
      %v7829 = vpop.f32.mrf.mxu0
      %v7830 = vadd.f32 0.0, %v7829
      %7831 = vmatmul.bf16.gmra.mxu0 %v4746
      %v7832 = vpop.f32.mrf.mxu0
      %v7833 = vadd.f32 0.0, %v7832
      %v7834 = vpop.f32.mrf.mxu0
      %v7835 = vadd.f32 0.0, %v7834
      %7836 = vmatmul.bf16.gmra.mxu0 %v4749
      %v7837 = vpop.f32.mrf.mxu0
      %v7838 = vadd.f32 0.0, %v7837
      %v7839 = vpop.f32.mrf.mxu0
      %v7840 = vadd.f32 0.0, %v7839
      %7841 = vmatmul.bf16.gmra.mxu0 %v4752
      %v7842 = vpop.f32.mrf.mxu0
      %v7843 = vadd.f32 0.0, %v7842
      %v7844 = vpop.f32.mrf.mxu0
      %v7845 = vadd.f32 0.0, %v7844
      %7846 = vmatmul.bf16.gmra.mxu0 %v4755
      %v7847 = vpop.f32.mrf.mxu0
      %v7848 = vadd.f32 0.0, %v7847
      %v7849 = vpop.f32.mrf.mxu0
      %v7850 = vadd.f32 0.0, %v7849
      %7851 = vmatmul.bf16.gmra.mxu0 %v4758
      %v7852 = vpop.f32.mrf.mxu0
      %v7853 = vadd.f32 0.0, %v7852
      %v7854 = vpop.f32.mrf.mxu0
      %v7855 = vadd.f32 0.0, %v7854
      %7856 = vmatmul.bf16.gmra.mxu0 %v4761
      %v7857 = vpop.f32.mrf.mxu0
      %v7858 = vadd.f32 0.0, %v7857
      %v7859 = vpop.f32.mrf.mxu0
      %v7860 = vadd.f32 0.0, %v7859
      %7861 = vmatmul.bf16.gmra.mxu0 %v4764
      %v7862 = vpop.f32.mrf.mxu0
      %v7863 = vadd.f32 0.0, %v7862
      %v7864 = vpop.f32.mrf.mxu0
      %v7865 = vadd.f32 0.0, %v7864
      %7866 = vmatmul.bf16.gmra.mxu0 %v4767
      %v7867 = vpop.f32.mrf.mxu0
      %v7868 = vadd.f32 0.0, %v7867
      %v7869 = vpop.f32.mrf.mxu0
      %v7870 = vadd.f32 0.0, %v7869
      %7871 = vmatmul.bf16.gmra.mxu0 %v4770
      %v7872 = vpop.f32.mrf.mxu0
      %v7873 = vadd.f32 0.0, %v7872
      %v7874 = vpop.f32.mrf.mxu0
      %v7875 = vadd.f32 0.0, %v7874
      %7876 = vmatmul.bf16.gmra.mxu0 %v4773
      %v7877 = vpop.f32.mrf.mxu0
      %v7878 = vadd.f32 0.0, %v7877
      %v7879 = vpop.f32.mrf.mxu0
      %v7880 = vadd.f32 0.0, %v7879
      %7881 = vmatmul.bf16.gmra.mxu0 %v4776
      %v7882 = vpop.f32.mrf.mxu0
      %v7883 = vadd.f32 0.0, %v7882
      %v7884 = vpop.f32.mrf.mxu0
      %v7885 = vadd.f32 0.0, %v7884
      %7886 = vdwg.mxu0
      %v7895 = vunpack.c.l.b16 %v7774
      %v7896 = vunpack.c.l.b16 %v7775
      %v7897 = vunpack.c.l.b16 %v7776
      %v7898 = vunpack.c.l.b16 %v7777
      %v7899 = vunpack.c.l.b16 %v7778
      %v7900 = vunpack.c.l.b16 %v7779
      %v7901 = vunpack.c.l.b16 %v7780
      %v7902 = vunpack.c.l.b16 %v7781
      %v7903 = vpack.c.b16 %v7896, %v7895
      %v7904 = vpack.c.b16 %v7898, %v7897
      %v7905 = vpack.c.b16 %v7900, %v7899
      %v7906 = vpack.c.b16 %v7902, %v7901
      %vm7911 = vcmask 523264
      %v7913 = vsel %vm7911, %v7758, 0
      %v7916 = vsel %vm7911, %v7759, 0
      %v7919 = vsel %vm7911, %v7760, 0
      %v7922 = vsel %vm7911, %v7761, 0
      %v7925 = vsel %vm7911, %v7762, 0
      %v7928 = vsel %vm7911, %v7763, 0
      %v7931 = vsel %vm7911, %v7764, 0
      %v7934 = vsel %vm7911, %v7765, 0
      %v7937 = vsel %vm7911, %v7766, 0
      %v7940 = vsel %vm7911, %v7767, 0
      %v7943 = vsel %vm7911, %v7768, 0
      %v7946 = vsel %vm7911, %v7769, 0
      %v7949 = vsel %vm7911, %v7770, 0
      %v7952 = vsel %vm7911, %v7771, 0
      %v7955 = vsel %vm7911, %v7772, 0
      %v7958 = vsel %vm7911, %v7773, 0
      %7960 = vmatpush.bf16.msra.mxu0 0
      %7961 = vmatpush.bf16.msra.mxu0 0
      %7962 = vmatpush.bf16.msra.mxu0 0
      %7963 = vmatpush.bf16.msra.mxu0 0
      %7964 = vmatpush.bf16.msra.mxu0 %v7906
      %7965 = vmatpush.bf16.msra.mxu0 %v7905
      %7966 = vmatpush.bf16.msra.mxu0 %v7904
      %7967 = vmatpush.bf16.msra.mxu0 %v7903
      %7968 = vmatmul.bf16.gmra.mxu0 %v7913
      %v7969 = vpop.f32.mrf.mxu0
      %v7970 = vadd.f32 %v7808, %v7969
      %v7971 = vpop.f32.mrf.mxu0
      %v7972 = vadd.f32 %v7810, %v7971
      %7973 = vmatmul.bf16.gmra.mxu0 %v7916
      %v7974 = vpop.f32.mrf.mxu0
      %v7975 = vadd.f32 %v7813, %v7974
      %v7976 = vpop.f32.mrf.mxu0
      %v7977 = vadd.f32 %v7815, %v7976
      %7978 = vmatmul.bf16.gmra.mxu0 %v7919
      %v7979 = vpop.f32.mrf.mxu0
      %v7980 = vadd.f32 %v7818, %v7979
      %v7981 = vpop.f32.mrf.mxu0
      %v7982 = vadd.f32 %v7820, %v7981
      %7983 = vmatmul.bf16.gmra.mxu0 %v7922
      %v7984 = vpop.f32.mrf.mxu0
      %v7985 = vadd.f32 %v7823, %v7984
      %v7986 = vpop.f32.mrf.mxu0
      %v7987 = vadd.f32 %v7825, %v7986
      %7988 = vmatmul.bf16.gmra.mxu0 %v7925
      %v7989 = vpop.f32.mrf.mxu0
      %v7990 = vadd.f32 %v7828, %v7989
      %v7991 = vpop.f32.mrf.mxu0
      %v7992 = vadd.f32 %v7830, %v7991
      %7993 = vmatmul.bf16.gmra.mxu0 %v7928
      %v7994 = vpop.f32.mrf.mxu0
      %v7995 = vadd.f32 %v7833, %v7994
      %v7996 = vpop.f32.mrf.mxu0
      %v7997 = vadd.f32 %v7835, %v7996
      %7998 = vmatmul.bf16.gmra.mxu0 %v7931
      %v7999 = vpop.f32.mrf.mxu0
      %v8000 = vadd.f32 %v7838, %v7999
      %v8001 = vpop.f32.mrf.mxu0
      %v8002 = vadd.f32 %v7840, %v8001
      %8003 = vmatmul.bf16.gmra.mxu0 %v7934
      %v8004 = vpop.f32.mrf.mxu0
      %v8005 = vadd.f32 %v7843, %v8004
      %v8006 = vpop.f32.mrf.mxu0
      %v8007 = vadd.f32 %v7845, %v8006
      %8008 = vmatmul.bf16.gmra.mxu0 %v7937
      %v8009 = vpop.f32.mrf.mxu0
      %v8010 = vadd.f32 %v7848, %v8009
      %v8011 = vpop.f32.mrf.mxu0
      %v8012 = vadd.f32 %v7850, %v8011
      %8013 = vmatmul.bf16.gmra.mxu0 %v7940
      %v8014 = vpop.f32.mrf.mxu0
      %v8015 = vadd.f32 %v7853, %v8014
      %v8016 = vpop.f32.mrf.mxu0
      %v8017 = vadd.f32 %v7855, %v8016
      %8018 = vmatmul.bf16.gmra.mxu0 %v7943
      %v8019 = vpop.f32.mrf.mxu0
      %v8020 = vadd.f32 %v7858, %v8019
      %v8021 = vpop.f32.mrf.mxu0
      %v8022 = vadd.f32 %v7860, %v8021
      %8023 = vmatmul.bf16.gmra.mxu0 %v7946
      %v8024 = vpop.f32.mrf.mxu0
      %v8025 = vadd.f32 %v7863, %v8024
      %v8026 = vpop.f32.mrf.mxu0
      %v8027 = vadd.f32 %v7865, %v8026
      %8028 = vmatmul.bf16.gmra.mxu0 %v7949
      %v8029 = vpop.f32.mrf.mxu0
      %v8030 = vadd.f32 %v7868, %v8029
      %v8031 = vpop.f32.mrf.mxu0
      %v8032 = vadd.f32 %v7870, %v8031
      %8033 = vmatmul.bf16.gmra.mxu0 %v7952
      %v8034 = vpop.f32.mrf.mxu0
      %v8035 = vadd.f32 %v7873, %v8034
      %v8036 = vpop.f32.mrf.mxu0
      %v8037 = vadd.f32 %v7875, %v8036
      %8038 = vmatmul.bf16.gmra.mxu0 %v7955
      %v8039 = vpop.f32.mrf.mxu0
      %v8040 = vadd.f32 %v7878, %v8039
      %v8041 = vpop.f32.mrf.mxu0
      %v8042 = vadd.f32 %v7880, %v8041
      %8043 = vmatmul.bf16.gmra.mxu0 %v7958
      %v8044 = vpop.f32.mrf.mxu0
      %v8045 = vadd.f32 %v7883, %v8044
      %v8046 = vpop.f32.mrf.mxu0
      %v8047 = vadd.f32 %v7885, %v8046
      %8048 = vdwg.mxu0
      %v8049 = vld [vmem:[%s16] sm:$0x1]
      %v8051 = vperm.slane %v8049, 0
      %v8053 = vadd.f32 %v7970, %v8051
      %v8054 = vadd.f32 %v7972, %v8051
      %v8055 = vadd.f32 %v7975, %v8051
      %v8056 = vadd.f32 %v7977, %v8051
      %v8057 = vadd.f32 %v7980, %v8051
      %v8058 = vadd.f32 %v7982, %v8051
      %v8059 = vadd.f32 %v7985, %v8051
      %v8060 = vadd.f32 %v7987, %v8051
      %v8061 = vadd.f32 %v7990, %v8051
      %v8062 = vadd.f32 %v7992, %v8051
      %v8063 = vadd.f32 %v7995, %v8051
      %v8064 = vadd.f32 %v7997, %v8051
      %v8065 = vadd.f32 %v8000, %v8051
      %v8066 = vadd.f32 %v8002, %v8051
      %v8067 = vadd.f32 %v8005, %v8051
      %v8068 = vadd.f32 %v8007, %v8051
      %v8069 = vadd.f32 %v8010, %v8051
      %v8070 = vadd.f32 %v8012, %v8051
      %v8071 = vadd.f32 %v8015, %v8051
      %v8072 = vadd.f32 %v8017, %v8051
      %v8073 = vadd.f32 %v8020, %v8051
      %v8074 = vadd.f32 %v8022, %v8051
      %v8075 = vadd.f32 %v8025, %v8051
      %v8076 = vadd.f32 %v8027, %v8051
      %v8077 = vadd.f32 %v8030, %v8051
      %v8078 = vadd.f32 %v8032, %v8051
      %v8079 = vadd.f32 %v8035, %v8051
      %v8080 = vadd.f32 %v8037, %v8051
      %v8081 = vadd.f32 %v8040, %v8051
      %v8082 = vadd.f32 %v8042, %v8051
      %v8083 = vadd.f32 %v8045, %v8051
      %v8084 = vadd.f32 %v8047, %v8051
      %vm8085 = vcmp.ge.s32.totalorder %v3283, 32
      %vm8086 = vcmp.lt.s32.totalorder %v3283, 64
      %vm8087 = vmand %vm8085, %vm8086
      %v8088 = vtanh.pop %v8053
      %v8089 = vtanh.pop %v8054
      %v8090 = vtanh.pop %v8055
      %v8091 = vtanh.pop %v8056
      %v8092 = vtanh.pop %v8057
      %v8093 = vtanh.pop %v8058
      %v8094 = vtanh.pop %v8059
      %v8095 = vtanh.pop %v8060
      %v8096 = vtanh.pop %v8061
      %v8097 = vtanh.pop %v8062
      %v8098 = vtanh.pop %v8063
      %v8099 = vtanh.pop %v8064
      %v8100 = vtanh.pop %v8065
      %v8101 = vtanh.pop %v8066
      %v8102 = vtanh.pop %v8067
      %v8103 = vtanh.pop %v8068
      %v8104 = vtanh.pop %v8069
      %v8105 = vtanh.pop %v8070
      %v8106 = vtanh.pop %v8071
      %v8107 = vtanh.pop %v8072
      %v8108 = vtanh.pop %v8073
      %v8109 = vtanh.pop %v8074
      %v8110 = vtanh.pop %v8075
      %v8111 = vtanh.pop %v8076
      %v8112 = vtanh.pop %v8077
      %v8113 = vtanh.pop %v8078
      %v8114 = vtanh.pop %v8079
      %v8115 = vtanh.pop %v8080
      %v8116 = vtanh.pop %v8081
      %v8117 = vtanh.pop %v8082
      %v8118 = vtanh.pop %v8083
      %v8119 = vtanh.pop %v8084
      %v8120 = vxor.u32 %v8053, 2147483648
      %v8121 = vxor.u32 %v8054, 2147483648
      %v8122 = vxor.u32 %v8055, 2147483648
      %v8123 = vxor.u32 %v8056, 2147483648
      %v8124 = vxor.u32 %v8057, 2147483648
      %v8125 = vxor.u32 %v8058, 2147483648
      %v8126 = vxor.u32 %v8059, 2147483648
      %v8127 = vxor.u32 %v8060, 2147483648
      %v8128 = vxor.u32 %v8061, 2147483648
      %v8129 = vxor.u32 %v8062, 2147483648
      %v8130 = vxor.u32 %v8063, 2147483648
      %v8131 = vxor.u32 %v8064, 2147483648
      %v8132 = vxor.u32 %v8065, 2147483648
      %v8133 = vxor.u32 %v8066, 2147483648
      %v8134 = vxor.u32 %v8067, 2147483648
      %v8135 = vxor.u32 %v8068, 2147483648
      %v8136 = vxor.u32 %v8069, 2147483648
      %v8137 = vxor.u32 %v8070, 2147483648
      %v8138 = vxor.u32 %v8071, 2147483648
      %v8139 = vxor.u32 %v8072, 2147483648
      %v8140 = vxor.u32 %v8073, 2147483648
      %v8141 = vxor.u32 %v8074, 2147483648
      %v8142 = vxor.u32 %v8075, 2147483648
      %v8143 = vxor.u32 %v8076, 2147483648
      %v8144 = vxor.u32 %v8077, 2147483648
      %v8145 = vxor.u32 %v8078, 2147483648
      %v8146 = vxor.u32 %v8079, 2147483648
      %v8147 = vxor.u32 %v8080, 2147483648
      %v8148 = vxor.u32 %v8081, 2147483648
      %v8149 = vxor.u32 %v8082, 2147483648
      %v8150 = vxor.u32 %v8083, 2147483648
      %v8151 = vxor.u32 %v8084, 2147483648
      %v8152 = vmul.f32 %v8120, 1.442695
      %v8153 = vpow.pop %v8152
      %v8154 = vmul.f32 %v8121, 1.442695
      %v8155 = vpow.pop %v8154
      %v8156 = vmul.f32 %v8122, 1.442695
      %v8157 = vpow.pop %v8156
      %v8158 = vmul.f32 %v8123, 1.442695
      %v8159 = vpow.pop %v8158
      %v8160 = vmul.f32 %v8124, 1.442695
      %v8161 = vpow.pop %v8160
      %v8162 = vmul.f32 %v8125, 1.442695
      %v8163 = vpow.pop %v8162
      %v8164 = vmul.f32 %v8126, 1.442695
      %v8165 = vpow.pop %v8164
      %v8166 = vmul.f32 %v8127, 1.442695
      %v8167 = vpow.pop %v8166
      %v8168 = vmul.f32 %v8128, 1.442695
      %v8169 = vpow.pop %v8168
      %v8170 = vmul.f32 %v8129, 1.442695
      %v8171 = vpow.pop %v8170
      %v8172 = vmul.f32 %v8130, 1.442695
      %v8173 = vpow.pop %v8172
      %v8174 = vmul.f32 %v8131, 1.442695
      %v8175 = vpow.pop %v8174
      %v8176 = vmul.f32 %v8132, 1.442695
      %v8177 = vpow.pop %v8176
      %v8178 = vmul.f32 %v8133, 1.442695
      %v8179 = vpow.pop %v8178
      %v8180 = vmul.f32 %v8134, 1.442695
      %v8181 = vpow.pop %v8180
      %v8182 = vmul.f32 %v8135, 1.442695
      %v8183 = vpow.pop %v8182
      %v8184 = vmul.f32 %v8136, 1.442695
      %v8185 = vpow.pop %v8184
      %v8186 = vmul.f32 %v8137, 1.442695
      %v8187 = vpow.pop %v8186
      %v8188 = vmul.f32 %v8138, 1.442695
      %v8189 = vpow.pop %v8188
      %v8190 = vmul.f32 %v8139, 1.442695
      %v8191 = vpow.pop %v8190
      %v8192 = vmul.f32 %v8140, 1.442695
      %v8193 = vpow.pop %v8192
      %v8194 = vmul.f32 %v8141, 1.442695
      %v8195 = vpow.pop %v8194
      %v8196 = vmul.f32 %v8142, 1.442695
      %v8197 = vpow.pop %v8196
      %v8198 = vmul.f32 %v8143, 1.442695
      %v8199 = vpow.pop %v8198
      %v8200 = vmul.f32 %v8144, 1.442695
      %v8201 = vpow.pop %v8200
      %v8202 = vmul.f32 %v8145, 1.442695
      %v8203 = vpow.pop %v8202
      %v8204 = vmul.f32 %v8146, 1.442695
      %v8205 = vpow.pop %v8204
      %v8206 = vmul.f32 %v8147, 1.442695
      %v8207 = vpow.pop %v8206
      %v8208 = vmul.f32 %v8148, 1.442695
      %v8209 = vpow.pop %v8208
      %v8210 = vmul.f32 %v8149, 1.442695
      %v8211 = vpow.pop %v8210
      %v8212 = vmul.f32 %v8150, 1.442695
      %v8213 = vpow.pop %v8212
      %v8214 = vmul.f32 %v8151, 1.442695
      %v8215 = vpow.pop %v8214
      %v8216 = vadd.f32 %v8153, 1.0
      %v8217 = vadd.f32 %v8155, 1.0
      %v8218 = vadd.f32 %v8157, 1.0
      %v8219 = vadd.f32 %v8159, 1.0
      %v8220 = vadd.f32 %v8161, 1.0
      %v8221 = vadd.f32 %v8163, 1.0
      %v8222 = vadd.f32 %v8165, 1.0
      %v8223 = vadd.f32 %v8167, 1.0
      %v8224 = vadd.f32 %v8169, 1.0
      %v8225 = vadd.f32 %v8171, 1.0
      %v8226 = vadd.f32 %v8173, 1.0
      %v8227 = vadd.f32 %v8175, 1.0
      %v8228 = vadd.f32 %v8177, 1.0
      %v8229 = vadd.f32 %v8179, 1.0
      %v8230 = vadd.f32 %v8181, 1.0
      %v8231 = vadd.f32 %v8183, 1.0
      %v8232 = vadd.f32 %v8185, 1.0
      %v8233 = vadd.f32 %v8187, 1.0
      %v8234 = vadd.f32 %v8189, 1.0
      %v8235 = vadd.f32 %v8191, 1.0
      %v8236 = vadd.f32 %v8193, 1.0
      %v8237 = vadd.f32 %v8195, 1.0
      %v8238 = vadd.f32 %v8197, 1.0
      %v8239 = vadd.f32 %v8199, 1.0
      %v8240 = vadd.f32 %v8201, 1.0
      %v8241 = vadd.f32 %v8203, 1.0
      %v8242 = vadd.f32 %v8205, 1.0
      %v8243 = vadd.f32 %v8207, 1.0
      %v8244 = vadd.f32 %v8209, 1.0
      %v8245 = vadd.f32 %v8211, 1.0
      %v8246 = vadd.f32 %v8213, 1.0
      %v8247 = vadd.f32 %v8215, 1.0
      %v8248 = vrcp.pop %v8216
      %v8249 = vmul.f32 %v8216, %v8248
      %v8250 = vsub.f32 1.0, %v8249
      %v8251 = vmul.f32 %v8248, %v8250
      %v8252 = vadd.f32 %v8248, %v8251
      %vm8253 = vweird.f32 %v8216
      %vm8254 = vweird.f32 %v8248
      %vm8255 = vmor %vm8253, %vm8254
      %v8256 = vsel %vm8255, %v8248, %v8252
      %v8257 = vand.u32 2147483647, %v8216
      %vm8258 = vcmp.eq.f32.partialorder %v8257, 8.507059e+37
      %v8259 = vand.u32 %v8216, 2147483648
      %v8260 = vor.u32 1.1754944e-38, %v8259
      %v8261 = vsel %vm8258, %v8260, %v8256
      %v8262 = vmul.f32 1.0, %v8261
      %v8263 = vrcp.pop %v8217
      %v8264 = vmul.f32 %v8217, %v8263
      %v8265 = vsub.f32 1.0, %v8264
      %v8266 = vmul.f32 %v8263, %v8265
      %v8267 = vadd.f32 %v8263, %v8266
      %vm8268 = vweird.f32 %v8217
      %vm8269 = vweird.f32 %v8263
      %vm8270 = vmor %vm8268, %vm8269
      %v8271 = vsel %vm8270, %v8263, %v8267
      %v8272 = vand.u32 2147483647, %v8217
      %vm8273 = vcmp.eq.f32.partialorder %v8272, 8.507059e+37
      %v8274 = vand.u32 %v8217, 2147483648
      %v8275 = vor.u32 1.1754944e-38, %v8274
      %v8276 = vsel %vm8273, %v8275, %v8271
      %v8277 = vmul.f32 1.0, %v8276
      %v8278 = vrcp.pop %v8218
      %v8279 = vmul.f32 %v8218, %v8278
      %v8280 = vsub.f32 1.0, %v8279
      %v8281 = vmul.f32 %v8278, %v8280
      %v8282 = vadd.f32 %v8278, %v8281
      %vm8283 = vweird.f32 %v8218
      %vm8284 = vweird.f32 %v8278
      %vm8285 = vmor %vm8283, %vm8284
      %v8286 = vsel %vm8285, %v8278, %v8282
      %v8287 = vand.u32 2147483647, %v8218
      %vm8288 = vcmp.eq.f32.partialorder %v8287, 8.507059e+37
      %v8289 = vand.u32 %v8218, 2147483648
      %v8290 = vor.u32 1.1754944e-38, %v8289
      %v8291 = vsel %vm8288, %v8290, %v8286
      %v8292 = vmul.f32 1.0, %v8291
      %v8293 = vrcp.pop %v8219
      %v8294 = vmul.f32 %v8219, %v8293
      %v8295 = vsub.f32 1.0, %v8294
      %v8296 = vmul.f32 %v8293, %v8295
      %v8297 = vadd.f32 %v8293, %v8296
      %vm8298 = vweird.f32 %v8219
      %vm8299 = vweird.f32 %v8293
      %vm8300 = vmor %vm8298, %vm8299
      %v8301 = vsel %vm8300, %v8293, %v8297
      %v8302 = vand.u32 2147483647, %v8219
      %vm8303 = vcmp.eq.f32.partialorder %v8302, 8.507059e+37
      %v8304 = vand.u32 %v8219, 2147483648
      %v8305 = vor.u32 1.1754944e-38, %v8304
      %v8306 = vsel %vm8303, %v8305, %v8301
      %v8307 = vmul.f32 1.0, %v8306
      %v8308 = vrcp.pop %v8220
      %v8309 = vmul.f32 %v8220, %v8308
      %v8310 = vsub.f32 1.0, %v8309
      %v8311 = vmul.f32 %v8308, %v8310
      %v8312 = vadd.f32 %v8308, %v8311
      %vm8313 = vweird.f32 %v8220
      %vm8314 = vweird.f32 %v8308
      %vm8315 = vmor %vm8313, %vm8314
      %v8316 = vsel %vm8315, %v8308, %v8312
      %v8317 = vand.u32 2147483647, %v8220
      %vm8318 = vcmp.eq.f32.partialorder %v8317, 8.507059e+37
      %v8319 = vand.u32 %v8220, 2147483648
      %v8320 = vor.u32 1.1754944e-38, %v8319
      %v8321 = vsel %vm8318, %v8320, %v8316
      %v8322 = vmul.f32 1.0, %v8321
      %v8323 = vrcp.pop %v8221
      %v8324 = vmul.f32 %v8221, %v8323
      %v8325 = vsub.f32 1.0, %v8324
      %v8326 = vmul.f32 %v8323, %v8325
      %v8327 = vadd.f32 %v8323, %v8326
      %vm8328 = vweird.f32 %v8221
      %vm8329 = vweird.f32 %v8323
      %vm8330 = vmor %vm8328, %vm8329
      %v8331 = vsel %vm8330, %v8323, %v8327
      %v8332 = vand.u32 2147483647, %v8221
      %vm8333 = vcmp.eq.f32.partialorder %v8332, 8.507059e+37
      %v8334 = vand.u32 %v8221, 2147483648
      %v8335 = vor.u32 1.1754944e-38, %v8334
      %v8336 = vsel %vm8333, %v8335, %v8331
      %v8337 = vmul.f32 1.0, %v8336
      %v8338 = vrcp.pop %v8222
      %v8339 = vmul.f32 %v8222, %v8338
      %v8340 = vsub.f32 1.0, %v8339
      %v8341 = vmul.f32 %v8338, %v8340
      %v8342 = vadd.f32 %v8338, %v8341
      %vm8343 = vweird.f32 %v8222
      %vm8344 = vweird.f32 %v8338
      %vm8345 = vmor %vm8343, %vm8344
      %v8346 = vsel %vm8345, %v8338, %v8342
      %v8347 = vand.u32 2147483647, %v8222
      %vm8348 = vcmp.eq.f32.partialorder %v8347, 8.507059e+37
      %v8349 = vand.u32 %v8222, 2147483648
      %v8350 = vor.u32 1.1754944e-38, %v8349
      %v8351 = vsel %vm8348, %v8350, %v8346
      %v8352 = vmul.f32 1.0, %v8351
      %v8353 = vrcp.pop %v8223
      %v8354 = vmul.f32 %v8223, %v8353
      %v8355 = vsub.f32 1.0, %v8354
      %v8356 = vmul.f32 %v8353, %v8355
      %v8357 = vadd.f32 %v8353, %v8356
      %vm8358 = vweird.f32 %v8223
      %vm8359 = vweird.f32 %v8353
      %vm8360 = vmor %vm8358, %vm8359
      %v8361 = vsel %vm8360, %v8353, %v8357
      %v8362 = vand.u32 2147483647, %v8223
      %vm8363 = vcmp.eq.f32.partialorder %v8362, 8.507059e+37
      %v8364 = vand.u32 %v8223, 2147483648
      %v8365 = vor.u32 1.1754944e-38, %v8364
      %v8366 = vsel %vm8363, %v8365, %v8361
      %v8367 = vmul.f32 1.0, %v8366
      %v8368 = vrcp.pop %v8224
      %v8369 = vmul.f32 %v8224, %v8368
      %v8370 = vsub.f32 1.0, %v8369
      %v8371 = vmul.f32 %v8368, %v8370
      %v8372 = vadd.f32 %v8368, %v8371
      %vm8373 = vweird.f32 %v8224
      %vm8374 = vweird.f32 %v8368
      %vm8375 = vmor %vm8373, %vm8374
      %v8376 = vsel %vm8375, %v8368, %v8372
      %v8377 = vand.u32 2147483647, %v8224
      %vm8378 = vcmp.eq.f32.partialorder %v8377, 8.507059e+37
      %v8379 = vand.u32 %v8224, 2147483648
      %v8380 = vor.u32 1.1754944e-38, %v8379
      %v8381 = vsel %vm8378, %v8380, %v8376
      %v8382 = vmul.f32 1.0, %v8381
      %v8383 = vrcp.pop %v8225
      %v8384 = vmul.f32 %v8225, %v8383
      %v8385 = vsub.f32 1.0, %v8384
      %v8386 = vmul.f32 %v8383, %v8385
      %v8387 = vadd.f32 %v8383, %v8386
      %vm8388 = vweird.f32 %v8225
      %vm8389 = vweird.f32 %v8383
      %vm8390 = vmor %vm8388, %vm8389
      %v8391 = vsel %vm8390, %v8383, %v8387
      %v8392 = vand.u32 2147483647, %v8225
      %vm8393 = vcmp.eq.f32.partialorder %v8392, 8.507059e+37
      %v8394 = vand.u32 %v8225, 2147483648
      %v8395 = vor.u32 1.1754944e-38, %v8394
      %v8396 = vsel %vm8393, %v8395, %v8391
      %v8397 = vmul.f32 1.0, %v8396
      %v8398 = vrcp.pop %v8226
      %v8399 = vmul.f32 %v8226, %v8398
      %v8400 = vsub.f32 1.0, %v8399
      %v8401 = vmul.f32 %v8398, %v8400
      %v8402 = vadd.f32 %v8398, %v8401
      %vm8403 = vweird.f32 %v8226
      %vm8404 = vweird.f32 %v8398
      %vm8405 = vmor %vm8403, %vm8404
      %v8406 = vsel %vm8405, %v8398, %v8402
      %v8407 = vand.u32 2147483647, %v8226
      %vm8408 = vcmp.eq.f32.partialorder %v8407, 8.507059e+37
      %v8409 = vand.u32 %v8226, 2147483648
      %v8410 = vor.u32 1.1754944e-38, %v8409
      %v8411 = vsel %vm8408, %v8410, %v8406
      %v8412 = vmul.f32 1.0, %v8411
      %v8413 = vrcp.pop %v8227
      %v8414 = vmul.f32 %v8227, %v8413
      %v8415 = vsub.f32 1.0, %v8414
      %v8416 = vmul.f32 %v8413, %v8415
      %v8417 = vadd.f32 %v8413, %v8416
      %vm8418 = vweird.f32 %v8227
      %vm8419 = vweird.f32 %v8413
      %vm8420 = vmor %vm8418, %vm8419
      %v8421 = vsel %vm8420, %v8413, %v8417
      %v8422 = vand.u32 2147483647, %v8227
      %vm8423 = vcmp.eq.f32.partialorder %v8422, 8.507059e+37
      %v8424 = vand.u32 %v8227, 2147483648
      %v8425 = vor.u32 1.1754944e-38, %v8424
      %v8426 = vsel %vm8423, %v8425, %v8421
      %v8427 = vmul.f32 1.0, %v8426
      %v8428 = vrcp.pop %v8228
      %v8429 = vmul.f32 %v8228, %v8428
      %v8430 = vsub.f32 1.0, %v8429
      %v8431 = vmul.f32 %v8428, %v8430
      %v8432 = vadd.f32 %v8428, %v8431
      %vm8433 = vweird.f32 %v8228
      %vm8434 = vweird.f32 %v8428
      %vm8435 = vmor %vm8433, %vm8434
      %v8436 = vsel %vm8435, %v8428, %v8432
      %v8437 = vand.u32 2147483647, %v8228
      %vm8438 = vcmp.eq.f32.partialorder %v8437, 8.507059e+37
      %v8439 = vand.u32 %v8228, 2147483648
      %v8440 = vor.u32 1.1754944e-38, %v8439
      %v8441 = vsel %vm8438, %v8440, %v8436
      %v8442 = vmul.f32 1.0, %v8441
      %v8443 = vrcp.pop %v8229
      %v8444 = vmul.f32 %v8229, %v8443
      %v8445 = vsub.f32 1.0, %v8444
      %v8446 = vmul.f32 %v8443, %v8445
      %v8447 = vadd.f32 %v8443, %v8446
      %vm8448 = vweird.f32 %v8229
      %vm8449 = vweird.f32 %v8443
      %vm8450 = vmor %vm8448, %vm8449
      %v8451 = vsel %vm8450, %v8443, %v8447
      %v8452 = vand.u32 2147483647, %v8229
      %vm8453 = vcmp.eq.f32.partialorder %v8452, 8.507059e+37
      %v8454 = vand.u32 %v8229, 2147483648
      %v8455 = vor.u32 1.1754944e-38, %v8454
      %v8456 = vsel %vm8453, %v8455, %v8451
      %v8457 = vmul.f32 1.0, %v8456
      %v8458 = vrcp.pop %v8230
      %v8459 = vmul.f32 %v8230, %v8458
      %v8460 = vsub.f32 1.0, %v8459
      %v8461 = vmul.f32 %v8458, %v8460
      %v8462 = vadd.f32 %v8458, %v8461
      %vm8463 = vweird.f32 %v8230
      %vm8464 = vweird.f32 %v8458
      %vm8465 = vmor %vm8463, %vm8464
      %v8466 = vsel %vm8465, %v8458, %v8462
      %v8467 = vand.u32 2147483647, %v8230
      %vm8468 = vcmp.eq.f32.partialorder %v8467, 8.507059e+37
      %v8469 = vand.u32 %v8230, 2147483648
      %v8470 = vor.u32 1.1754944e-38, %v8469
      %v8471 = vsel %vm8468, %v8470, %v8466
      %v8472 = vmul.f32 1.0, %v8471
      %v8473 = vrcp.pop %v8231
      %v8474 = vmul.f32 %v8231, %v8473
      %v8475 = vsub.f32 1.0, %v8474
      %v8476 = vmul.f32 %v8473, %v8475
      %v8477 = vadd.f32 %v8473, %v8476
      %vm8478 = vweird.f32 %v8231
      %vm8479 = vweird.f32 %v8473
      %vm8480 = vmor %vm8478, %vm8479
      %v8481 = vsel %vm8480, %v8473, %v8477
      %v8482 = vand.u32 2147483647, %v8231
      %vm8483 = vcmp.eq.f32.partialorder %v8482, 8.507059e+37
      %v8484 = vand.u32 %v8231, 2147483648
      %v8485 = vor.u32 1.1754944e-38, %v8484
      %v8486 = vsel %vm8483, %v8485, %v8481
      %v8487 = vmul.f32 1.0, %v8486
      %v8488 = vrcp.pop %v8232
      %v8489 = vmul.f32 %v8232, %v8488
      %v8490 = vsub.f32 1.0, %v8489
      %v8491 = vmul.f32 %v8488, %v8490
      %v8492 = vadd.f32 %v8488, %v8491
      %vm8493 = vweird.f32 %v8232
      %vm8494 = vweird.f32 %v8488
      %vm8495 = vmor %vm8493, %vm8494
      %v8496 = vsel %vm8495, %v8488, %v8492
      %v8497 = vand.u32 2147483647, %v8232
      %vm8498 = vcmp.eq.f32.partialorder %v8497, 8.507059e+37
      %v8499 = vand.u32 %v8232, 2147483648
      %v8500 = vor.u32 1.1754944e-38, %v8499
      %v8501 = vsel %vm8498, %v8500, %v8496
      %v8502 = vmul.f32 1.0, %v8501
      %v8503 = vrcp.pop %v8233
      %v8504 = vmul.f32 %v8233, %v8503
      %v8505 = vsub.f32 1.0, %v8504
      %v8506 = vmul.f32 %v8503, %v8505
      %v8507 = vadd.f32 %v8503, %v8506
      %vm8508 = vweird.f32 %v8233
      %vm8509 = vweird.f32 %v8503
      %vm8510 = vmor %vm8508, %vm8509
      %v8511 = vsel %vm8510, %v8503, %v8507
      %v8512 = vand.u32 2147483647, %v8233
      %vm8513 = vcmp.eq.f32.partialorder %v8512, 8.507059e+37
      %v8514 = vand.u32 %v8233, 2147483648
      %v8515 = vor.u32 1.1754944e-38, %v8514
      %v8516 = vsel %vm8513, %v8515, %v8511
      %v8517 = vmul.f32 1.0, %v8516
      %v8518 = vrcp.pop %v8234
      %v8519 = vmul.f32 %v8234, %v8518
      %v8520 = vsub.f32 1.0, %v8519
      %v8521 = vmul.f32 %v8518, %v8520
      %v8522 = vadd.f32 %v8518, %v8521
      %vm8523 = vweird.f32 %v8234
      %vm8524 = vweird.f32 %v8518
      %vm8525 = vmor %vm8523, %vm8524
      %v8526 = vsel %vm8525, %v8518, %v8522
      %v8527 = vand.u32 2147483647, %v8234
      %vm8528 = vcmp.eq.f32.partialorder %v8527, 8.507059e+37
      %v8529 = vand.u32 %v8234, 2147483648
      %v8530 = vor.u32 1.1754944e-38, %v8529
      %v8531 = vsel %vm8528, %v8530, %v8526
      %v8532 = vmul.f32 1.0, %v8531
      %v8533 = vrcp.pop %v8235
      %v8534 = vmul.f32 %v8235, %v8533
      %v8535 = vsub.f32 1.0, %v8534
      %v8536 = vmul.f32 %v8533, %v8535
      %v8537 = vadd.f32 %v8533, %v8536
      %vm8538 = vweird.f32 %v8235
      %vm8539 = vweird.f32 %v8533
      %vm8540 = vmor %vm8538, %vm8539
      %v8541 = vsel %vm8540, %v8533, %v8537
      %v8542 = vand.u32 2147483647, %v8235
      %vm8543 = vcmp.eq.f32.partialorder %v8542, 8.507059e+37
      %v8544 = vand.u32 %v8235, 2147483648
      %v8545 = vor.u32 1.1754944e-38, %v8544
      %v8546 = vsel %vm8543, %v8545, %v8541
      %v8547 = vmul.f32 1.0, %v8546
      %v8548 = vrcp.pop %v8236
      %v8549 = vmul.f32 %v8236, %v8548
      %v8550 = vsub.f32 1.0, %v8549
      %v8551 = vmul.f32 %v8548, %v8550
      %v8552 = vadd.f32 %v8548, %v8551
      %vm8553 = vweird.f32 %v8236
      %vm8554 = vweird.f32 %v8548
      %vm8555 = vmor %vm8553, %vm8554
      %v8556 = vsel %vm8555, %v8548, %v8552
      %v8557 = vand.u32 2147483647, %v8236
      %vm8558 = vcmp.eq.f32.partialorder %v8557, 8.507059e+37
      %v8559 = vand.u32 %v8236, 2147483648
      %v8560 = vor.u32 1.1754944e-38, %v8559
      %v8561 = vsel %vm8558, %v8560, %v8556
      %v8562 = vmul.f32 1.0, %v8561
      %v8563 = vrcp.pop %v8237
      %v8564 = vmul.f32 %v8237, %v8563
      %v8565 = vsub.f32 1.0, %v8564
      %v8566 = vmul.f32 %v8563, %v8565
      %v8567 = vadd.f32 %v8563, %v8566
      %vm8568 = vweird.f32 %v8237
      %vm8569 = vweird.f32 %v8563
      %vm8570 = vmor %vm8568, %vm8569
      %v8571 = vsel %vm8570, %v8563, %v8567
      %v8572 = vand.u32 2147483647, %v8237
      %vm8573 = vcmp.eq.f32.partialorder %v8572, 8.507059e+37
      %v8574 = vand.u32 %v8237, 2147483648
      %v8575 = vor.u32 1.1754944e-38, %v8574
      %v8576 = vsel %vm8573, %v8575, %v8571
      %v8577 = vmul.f32 1.0, %v8576
      %v8578 = vrcp.pop %v8238
      %v8579 = vmul.f32 %v8238, %v8578
      %v8580 = vsub.f32 1.0, %v8579
      %v8581 = vmul.f32 %v8578, %v8580
      %v8582 = vadd.f32 %v8578, %v8581
      %vm8583 = vweird.f32 %v8238
      %vm8584 = vweird.f32 %v8578
      %vm8585 = vmor %vm8583, %vm8584
      %v8586 = vsel %vm8585, %v8578, %v8582
      %v8587 = vand.u32 2147483647, %v8238
      %vm8588 = vcmp.eq.f32.partialorder %v8587, 8.507059e+37
      %v8589 = vand.u32 %v8238, 2147483648
      %v8590 = vor.u32 1.1754944e-38, %v8589
      %v8591 = vsel %vm8588, %v8590, %v8586
      %v8592 = vmul.f32 1.0, %v8591
      %v8593 = vrcp.pop %v8239
      %v8594 = vmul.f32 %v8239, %v8593
      %v8595 = vsub.f32 1.0, %v8594
      %v8596 = vmul.f32 %v8593, %v8595
      %v8597 = vadd.f32 %v8593, %v8596
      %vm8598 = vweird.f32 %v8239
      %vm8599 = vweird.f32 %v8593
      %vm8600 = vmor %vm8598, %vm8599
      %v8601 = vsel %vm8600, %v8593, %v8597
      %v8602 = vand.u32 2147483647, %v8239
      %vm8603 = vcmp.eq.f32.partialorder %v8602, 8.507059e+37
      %v8604 = vand.u32 %v8239, 2147483648
      %v8605 = vor.u32 1.1754944e-38, %v8604
      %v8606 = vsel %vm8603, %v8605, %v8601
      %v8607 = vmul.f32 1.0, %v8606
      %v8608 = vrcp.pop %v8240
      %v8609 = vmul.f32 %v8240, %v8608
      %v8610 = vsub.f32 1.0, %v8609
      %v8611 = vmul.f32 %v8608, %v8610
      %v8612 = vadd.f32 %v8608, %v8611
      %vm8613 = vweird.f32 %v8240
      %vm8614 = vweird.f32 %v8608
      %vm8615 = vmor %vm8613, %vm8614
      %v8616 = vsel %vm8615, %v8608, %v8612
      %v8617 = vand.u32 2147483647, %v8240
      %vm8618 = vcmp.eq.f32.partialorder %v8617, 8.507059e+37
      %v8619 = vand.u32 %v8240, 2147483648
      %v8620 = vor.u32 1.1754944e-38, %v8619
      %v8621 = vsel %vm8618, %v8620, %v8616
      %v8622 = vmul.f32 1.0, %v8621
      %v8623 = vrcp.pop %v8241
      %v8624 = vmul.f32 %v8241, %v8623
      %v8625 = vsub.f32 1.0, %v8624
      %v8626 = vmul.f32 %v8623, %v8625
      %v8627 = vadd.f32 %v8623, %v8626
      %vm8628 = vweird.f32 %v8241
      %vm8629 = vweird.f32 %v8623
      %vm8630 = vmor %vm8628, %vm8629
      %v8631 = vsel %vm8630, %v8623, %v8627
      %v8632 = vand.u32 2147483647, %v8241
      %vm8633 = vcmp.eq.f32.partialorder %v8632, 8.507059e+37
      %v8634 = vand.u32 %v8241, 2147483648
      %v8635 = vor.u32 1.1754944e-38, %v8634
      %v8636 = vsel %vm8633, %v8635, %v8631
      %v8637 = vmul.f32 1.0, %v8636
      %v8638 = vrcp.pop %v8242
      %v8639 = vmul.f32 %v8242, %v8638
      %v8640 = vsub.f32 1.0, %v8639
      %v8641 = vmul.f32 %v8638, %v8640
      %v8642 = vadd.f32 %v8638, %v8641
      %vm8643 = vweird.f32 %v8242
      %vm8644 = vweird.f32 %v8638
      %vm8645 = vmor %vm8643, %vm8644
      %v8646 = vsel %vm8645, %v8638, %v8642
      %v8647 = vand.u32 2147483647, %v8242
      %vm8648 = vcmp.eq.f32.partialorder %v8647, 8.507059e+37
      %v8649 = vand.u32 %v8242, 2147483648
      %v8650 = vor.u32 1.1754944e-38, %v8649
      %v8651 = vsel %vm8648, %v8650, %v8646
      %v8652 = vmul.f32 1.0, %v8651
      %v8653 = vrcp.pop %v8243
      %v8654 = vmul.f32 %v8243, %v8653
      %v8655 = vsub.f32 1.0, %v8654
      %v8656 = vmul.f32 %v8653, %v8655
      %v8657 = vadd.f32 %v8653, %v8656
      %vm8658 = vweird.f32 %v8243
      %vm8659 = vweird.f32 %v8653
      %vm8660 = vmor %vm8658, %vm8659
      %v8661 = vsel %vm8660, %v8653, %v8657
      %v8662 = vand.u32 2147483647, %v8243
      %vm8663 = vcmp.eq.f32.partialorder %v8662, 8.507059e+37
      %v8664 = vand.u32 %v8243, 2147483648
      %v8665 = vor.u32 1.1754944e-38, %v8664
      %v8666 = vsel %vm8663, %v8665, %v8661
      %v8667 = vmul.f32 1.0, %v8666
      %v8668 = vrcp.pop %v8244
      %v8669 = vmul.f32 %v8244, %v8668
      %v8670 = vsub.f32 1.0, %v8669
      %v8671 = vmul.f32 %v8668, %v8670
      %v8672 = vadd.f32 %v8668, %v8671
      %vm8673 = vweird.f32 %v8244
      %vm8674 = vweird.f32 %v8668
      %vm8675 = vmor %vm8673, %vm8674
      %v8676 = vsel %vm8675, %v8668, %v8672
      %v8677 = vand.u32 2147483647, %v8244
      %vm8678 = vcmp.eq.f32.partialorder %v8677, 8.507059e+37
      %v8679 = vand.u32 %v8244, 2147483648
      %v8680 = vor.u32 1.1754944e-38, %v8679
      %v8681 = vsel %vm8678, %v8680, %v8676
      %v8682 = vmul.f32 1.0, %v8681
      %v8683 = vrcp.pop %v8245
      %v8684 = vmul.f32 %v8245, %v8683
      %v8685 = vsub.f32 1.0, %v8684
      %v8686 = vmul.f32 %v8683, %v8685
      %v8687 = vadd.f32 %v8683, %v8686
      %vm8688 = vweird.f32 %v8245
      %vm8689 = vweird.f32 %v8683
      %vm8690 = vmor %vm8688, %vm8689
      %v8691 = vsel %vm8690, %v8683, %v8687
      %v8692 = vand.u32 2147483647, %v8245
      %vm8693 = vcmp.eq.f32.partialorder %v8692, 8.507059e+37
      %v8694 = vand.u32 %v8245, 2147483648
      %v8695 = vor.u32 1.1754944e-38, %v8694
      %v8696 = vsel %vm8693, %v8695, %v8691
      %v8697 = vmul.f32 1.0, %v8696
      %v8698 = vrcp.pop %v8246
      %v8699 = vmul.f32 %v8246, %v8698
      %v8700 = vsub.f32 1.0, %v8699
      %v8701 = vmul.f32 %v8698, %v8700
      %v8702 = vadd.f32 %v8698, %v8701
      %vm8703 = vweird.f32 %v8246
      %vm8704 = vweird.f32 %v8698
      %vm8705 = vmor %vm8703, %vm8704
      %v8706 = vsel %vm8705, %v8698, %v8702
      %v8707 = vand.u32 2147483647, %v8246
      %vm8708 = vcmp.eq.f32.partialorder %v8707, 8.507059e+37
      %v8709 = vand.u32 %v8246, 2147483648
      %v8710 = vor.u32 1.1754944e-38, %v8709
      %v8711 = vsel %vm8708, %v8710, %v8706
      %v8712 = vmul.f32 1.0, %v8711
      %v8713 = vrcp.pop %v8247
      %v8714 = vmul.f32 %v8247, %v8713
      %v8715 = vsub.f32 1.0, %v8714
      %v8716 = vmul.f32 %v8713, %v8715
      %v8717 = vadd.f32 %v8713, %v8716
      %vm8718 = vweird.f32 %v8247
      %vm8719 = vweird.f32 %v8713
      %vm8720 = vmor %vm8718, %vm8719
      %v8721 = vsel %vm8720, %v8713, %v8717
      %v8722 = vand.u32 2147483647, %v8247
      %vm8723 = vcmp.eq.f32.partialorder %v8722, 8.507059e+37
      %v8724 = vand.u32 %v8247, 2147483648
      %v8725 = vor.u32 1.1754944e-38, %v8724
      %v8726 = vsel %vm8723, %v8725, %v8721
      %v8727 = vmul.f32 1.0, %v8726
      %v8728 = vsel %vm8087, %v8088, %v8262
      %v8729 = vsel %vm8087, %v8089, %v8277
      %v8730 = vsel %vm8087, %v8090, %v8292
      %v8731 = vsel %vm8087, %v8091, %v8307
      %v8732 = vsel %vm8087, %v8092, %v8322
      %v8733 = vsel %vm8087, %v8093, %v8337
      %v8734 = vsel %vm8087, %v8094, %v8352
      %v8735 = vsel %vm8087, %v8095, %v8367
      %v8736 = vsel %vm8087, %v8096, %v8382
      %v8737 = vsel %vm8087, %v8097, %v8397
      %v8738 = vsel %vm8087, %v8098, %v8412
      %v8739 = vsel %vm8087, %v8099, %v8427
      %v8740 = vsel %vm8087, %v8100, %v8442
      %v8741 = vsel %vm8087, %v8101, %v8457
      %v8742 = vsel %vm8087, %v8102, %v8472
      %v8743 = vsel %vm8087, %v8103, %v8487
      %v8744 = vsel %vm8087, %v8104, %v8502
      %v8745 = vsel %vm8087, %v8105, %v8517
      %v8746 = vsel %vm8087, %v8106, %v8532
      %v8747 = vsel %vm8087, %v8107, %v8547
      %v8748 = vsel %vm8087, %v8108, %v8562
      %v8749 = vsel %vm8087, %v8109, %v8577
      %v8750 = vsel %vm8087, %v8110, %v8592
      %v8751 = vsel %vm8087, %v8111, %v8607
      %v8752 = vsel %vm8087, %v8112, %v8622
      %v8753 = vsel %vm8087, %v8113, %v8637
      %v8754 = vsel %vm8087, %v8114, %v8652
      %v8755 = vsel %vm8087, %v8115, %v8667
      %v8756 = vsel %vm8087, %v8116, %v8682
      %v8757 = vsel %vm8087, %v8117, %v8697
      %v8758 = vsel %vm8087, %v8118, %v8712
      %v8759 = vsel %vm8087, %v8119, %v8727
      %v8760 = vsub.f32 1.0, %v8728
      %v8761 = vsub.f32 1.0, %v8729
      %v8762 = vsub.f32 1.0, %v8730
      %v8763 = vsub.f32 1.0, %v8731
      %v8764 = vsub.f32 1.0, %v8732
      %v8765 = vsub.f32 1.0, %v8733
      %v8766 = vsub.f32 1.0, %v8734
      %v8767 = vsub.f32 1.0, %v8735
      %v8768 = vsub.f32 1.0, %v8736
      %v8769 = vsub.f32 1.0, %v8737
      %v8770 = vsub.f32 1.0, %v8738
      %v8771 = vsub.f32 1.0, %v8739
      %v8772 = vsub.f32 1.0, %v8740
      %v8773 = vsub.f32 1.0, %v8741
      %v8774 = vsub.f32 1.0, %v8742
      %v8775 = vsub.f32 1.0, %v8743
      %v8776 = vsub.f32 1.0, %v8744
      %v8777 = vsub.f32 1.0, %v8745
      %v8778 = vsub.f32 1.0, %v8746
      %v8779 = vsub.f32 1.0, %v8747
      %v8780 = vsub.f32 1.0, %v8748
      %v8781 = vsub.f32 1.0, %v8749
      %v8782 = vsub.f32 1.0, %v8750
      %v8783 = vsub.f32 1.0, %v8751
      %v8784 = vsub.f32 1.0, %v8752
      %v8785 = vsub.f32 1.0, %v8753
      %v8786 = vsub.f32 1.0, %v8754
      %v8787 = vsub.f32 1.0, %v8755
      %v8788 = vsub.f32 1.0, %v8756
      %v8789 = vsub.f32 1.0, %v8757
      %v8790 = vsub.f32 1.0, %v8758
      %v8791 = vsub.f32 1.0, %v8759
      %8824 = vrot.lane.b32.xlu0 %v701, 64
      %v8825 = vpop.permute.xlu0 %8824
      %8826 = vrot.lane.b32.xlu0 %v702, 64
      %v8827 = vpop.permute.xlu0 %8826
      %8828 = vrot.lane.b32.xlu0 %v703, 64
      %v8829 = vpop.permute.xlu0 %8828
      %8830 = vrot.lane.b32.xlu0 %v704, 64
      %v8831 = vpop.permute.xlu0 %8830
      %8832 = vrot.lane.b32.xlu0 %v705, 64
      %v8833 = vpop.permute.xlu0 %8832
      %8834 = vrot.lane.b32.xlu0 %v706, 64
      %v8835 = vpop.permute.xlu0 %8834
      %8836 = vrot.lane.b32.xlu0 %v707, 64
      %v8837 = vpop.permute.xlu0 %8836
      %8838 = vrot.lane.b32.xlu0 %v708, 64
      %v8839 = vpop.permute.xlu0 %8838
      %8840 = vrot.lane.b32.xlu0 %v709, 64
      %v8841 = vpop.permute.xlu0 %8840
      %8842 = vrot.lane.b32.xlu0 %v710, 64
      %v8843 = vpop.permute.xlu0 %8842
      %8844 = vrot.lane.b32.xlu0 %v711, 64
      %v8845 = vpop.permute.xlu0 %8844
      %8846 = vrot.lane.b32.xlu0 %v712, 64
      %v8847 = vpop.permute.xlu0 %8846
      %8848 = vrot.lane.b32.xlu0 %v713, 64
      %v8849 = vpop.permute.xlu0 %8848
      %8850 = vrot.lane.b32.xlu0 %v714, 64
      %v8851 = vpop.permute.xlu0 %8850
      %8852 = vrot.lane.b32.xlu0 %v715, 64
      %v8853 = vpop.permute.xlu0 %8852
      %8854 = vrot.lane.b32.xlu0 %v716, 64
      %v8855 = vpop.permute.xlu0 %8854
      %8856 = vrot.lane.b32.xlu0 %v717, 64
      %v8857 = vpop.permute.xlu0 %8856
      %8858 = vrot.lane.b32.xlu0 %v718, 64
      %v8859 = vpop.permute.xlu0 %8858
      %8860 = vrot.lane.b32.xlu0 %v719, 64
      %v8861 = vpop.permute.xlu0 %8860
      %8862 = vrot.lane.b32.xlu0 %v720, 64
      %v8863 = vpop.permute.xlu0 %8862
      %8864 = vrot.lane.b32.xlu0 %v721, 64
      %v8865 = vpop.permute.xlu0 %8864
      %8866 = vrot.lane.b32.xlu0 %v722, 64
      %v8867 = vpop.permute.xlu0 %8866
      %8868 = vrot.lane.b32.xlu0 %v723, 64
      %v8869 = vpop.permute.xlu0 %8868
      %8870 = vrot.lane.b32.xlu0 %v724, 64
      %v8871 = vpop.permute.xlu0 %8870
      %8872 = vrot.lane.b32.xlu0 %v725, 64
      %v8873 = vpop.permute.xlu0 %8872
      %8874 = vrot.lane.b32.xlu0 %v726, 64
      %v8875 = vpop.permute.xlu0 %8874
      %8876 = vrot.lane.b32.xlu0 %v727, 64
      %v8877 = vpop.permute.xlu0 %8876
      %8878 = vrot.lane.b32.xlu0 %v728, 64
      %v8879 = vpop.permute.xlu0 %8878
      %8880 = vrot.lane.b32.xlu0 %v729, 64
      %v8881 = vpop.permute.xlu0 %8880
      %8882 = vrot.lane.b32.xlu0 %v730, 64
      %v8883 = vpop.permute.xlu0 %8882
      %8884 = vrot.lane.b32.xlu0 %v731, 64
      %v8885 = vpop.permute.xlu0 %8884
      %8886 = vrot.lane.b32.xlu0 %v732, 64
      %v8887 = vpop.permute.xlu0 %8886
      %v8920 = vmul.f32 %v8760, %v8825
      %v8921 = vmul.f32 %v8761, %v8827
      %v8922 = vmul.f32 %v8762, %v8829
      %v8923 = vmul.f32 %v8763, %v8831
      %v8924 = vmul.f32 %v8764, %v8833
      %v8925 = vmul.f32 %v8765, %v8835
      %v8926 = vmul.f32 %v8766, %v8837
      %v8927 = vmul.f32 %v8767, %v8839
      %v8928 = vmul.f32 %v8768, %v8841
      %v8929 = vmul.f32 %v8769, %v8843
      %v8930 = vmul.f32 %v8770, %v8845
      %v8931 = vmul.f32 %v8771, %v8847
      %v8932 = vmul.f32 %v8772, %v8849
      %v8933 = vmul.f32 %v8773, %v8851
      %v8934 = vmul.f32 %v8774, %v8853
      %v8935 = vmul.f32 %v8775, %v8855
      %v8936 = vmul.f32 %v8776, %v8857
      %v8937 = vmul.f32 %v8777, %v8859
      %v8938 = vmul.f32 %v8778, %v8861
      %v8939 = vmul.f32 %v8779, %v8863
      %v8940 = vmul.f32 %v8780, %v8865
      %v8941 = vmul.f32 %v8781, %v8867
      %v8942 = vmul.f32 %v8782, %v8869
      %v8943 = vmul.f32 %v8783, %v8871
      %v8944 = vmul.f32 %v8784, %v8873
      %v8945 = vmul.f32 %v8785, %v8875
      %v8946 = vmul.f32 %v8786, %v8877
      %v8947 = vmul.f32 %v8787, %v8879
      %v8948 = vmul.f32 %v8788, %v8881
      %v8949 = vmul.f32 %v8789, %v8883
      %v8950 = vmul.f32 %v8790, %v8885
      %v8951 = vmul.f32 %v8791, %v8887
      %8984 = vrot.lane.b32.xlu0 %v8728, 32
      %v8985 = vpop.permute.xlu0 %8984
      %8986 = vrot.lane.b32.xlu0 %v8729, 32
      %v8987 = vpop.permute.xlu0 %8986
      %8988 = vrot.lane.b32.xlu0 %v8730, 32
      %v8989 = vpop.permute.xlu0 %8988
      %8990 = vrot.lane.b32.xlu0 %v8731, 32
      %v8991 = vpop.permute.xlu0 %8990
      %8992 = vrot.lane.b32.xlu0 %v8732, 32
      %v8993 = vpop.permute.xlu0 %8992
      %8994 = vrot.lane.b32.xlu0 %v8733, 32
      %v8995 = vpop.permute.xlu0 %8994
      %8996 = vrot.lane.b32.xlu0 %v8734, 32
      %v8997 = vpop.permute.xlu0 %8996
      %8998 = vrot.lane.b32.xlu0 %v8735, 32
      %v8999 = vpop.permute.xlu0 %8998
      %9000 = vrot.lane.b32.xlu0 %v8736, 32
      %v9001 = vpop.permute.xlu0 %9000
      %9002 = vrot.lane.b32.xlu0 %v8737, 32
      %v9003 = vpop.permute.xlu0 %9002
      %9004 = vrot.lane.b32.xlu0 %v8738, 32
      %v9005 = vpop.permute.xlu0 %9004
      %9006 = vrot.lane.b32.xlu0 %v8739, 32
      %v9007 = vpop.permute.xlu0 %9006
      %9008 = vrot.lane.b32.xlu0 %v8740, 32
      %v9009 = vpop.permute.xlu0 %9008
      %9010 = vrot.lane.b32.xlu0 %v8741, 32
      %v9011 = vpop.permute.xlu0 %9010
      %9012 = vrot.lane.b32.xlu0 %v8742, 32
      %v9013 = vpop.permute.xlu0 %9012
      %9014 = vrot.lane.b32.xlu0 %v8743, 32
      %v9015 = vpop.permute.xlu0 %9014
      %9016 = vrot.lane.b32.xlu0 %v8744, 32
      %v9017 = vpop.permute.xlu0 %9016
      %9018 = vrot.lane.b32.xlu0 %v8745, 32
      %v9019 = vpop.permute.xlu0 %9018
      %9020 = vrot.lane.b32.xlu0 %v8746, 32
      %v9021 = vpop.permute.xlu0 %9020
      %9022 = vrot.lane.b32.xlu0 %v8747, 32
      %v9023 = vpop.permute.xlu0 %9022
      %9024 = vrot.lane.b32.xlu0 %v8748, 32
      %v9025 = vpop.permute.xlu0 %9024
      %9026 = vrot.lane.b32.xlu0 %v8749, 32
      %v9027 = vpop.permute.xlu0 %9026
      %9028 = vrot.lane.b32.xlu0 %v8750, 32
      %v9029 = vpop.permute.xlu0 %9028
      %9030 = vrot.lane.b32.xlu0 %v8751, 32
      %v9031 = vpop.permute.xlu0 %9030
      %9032 = vrot.lane.b32.xlu0 %v8752, 32
      %v9033 = vpop.permute.xlu0 %9032
      %9034 = vrot.lane.b32.xlu0 %v8753, 32
      %v9035 = vpop.permute.xlu0 %9034
      %9036 = vrot.lane.b32.xlu0 %v8754, 32
      %v9037 = vpop.permute.xlu0 %9036
      %9038 = vrot.lane.b32.xlu0 %v8755, 32
      %v9039 = vpop.permute.xlu0 %9038
      %9040 = vrot.lane.b32.xlu0 %v8756, 32
      %v9041 = vpop.permute.xlu0 %9040
      %9042 = vrot.lane.b32.xlu0 %v8757, 32
      %v9043 = vpop.permute.xlu0 %9042
      %9044 = vrot.lane.b32.xlu0 %v8758, 32
      %v9045 = vpop.permute.xlu0 %9044
      %9046 = vrot.lane.b32.xlu0 %v8759, 32
      %v9047 = vpop.permute.xlu0 %9046
      %v9080 = vmul.f32 %v8728, %v8985
      %v9081 = vmul.f32 %v8729, %v8987
      %v9082 = vmul.f32 %v8730, %v8989
      %v9083 = vmul.f32 %v8731, %v8991
      %v9084 = vmul.f32 %v8732, %v8993
      %v9085 = vmul.f32 %v8733, %v8995
      %v9086 = vmul.f32 %v8734, %v8997
      %v9087 = vmul.f32 %v8735, %v8999
      %v9088 = vmul.f32 %v8736, %v9001
      %v9089 = vmul.f32 %v8737, %v9003
      %v9090 = vmul.f32 %v8738, %v9005
      %v9091 = vmul.f32 %v8739, %v9007
      %v9092 = vmul.f32 %v8740, %v9009
      %v9093 = vmul.f32 %v8741, %v9011
      %v9094 = vmul.f32 %v8742, %v9013
      %v9095 = vmul.f32 %v8743, %v9015
      %v9096 = vmul.f32 %v8744, %v9017
      %v9097 = vmul.f32 %v8745, %v9019
      %v9098 = vmul.f32 %v8746, %v9021
      %v9099 = vmul.f32 %v8747, %v9023
      %v9100 = vmul.f32 %v8748, %v9025
      %v9101 = vmul.f32 %v8749, %v9027
      %v9102 = vmul.f32 %v8750, %v9029
      %v9103 = vmul.f32 %v8751, %v9031
      %v9104 = vmul.f32 %v8752, %v9033
      %v9105 = vmul.f32 %v8753, %v9035
      %v9106 = vmul.f32 %v8754, %v9037
      %v9107 = vmul.f32 %v8755, %v9039
      %v9108 = vmul.f32 %v8756, %v9041
      %v9109 = vmul.f32 %v8757, %v9043
      %v9110 = vmul.f32 %v8758, %v9045
      %v9111 = vmul.f32 %v8759, %v9047
      %v9112 = vadd.f32 %v8920, %v9080
      %v9113 = vadd.f32 %v8921, %v9081
      %v9114 = vadd.f32 %v8922, %v9082
      %v9115 = vadd.f32 %v8923, %v9083
      %v9116 = vadd.f32 %v8924, %v9084
      %v9117 = vadd.f32 %v8925, %v9085
      %v9118 = vadd.f32 %v8926, %v9086
      %v9119 = vadd.f32 %v8927, %v9087
      %v9120 = vadd.f32 %v8928, %v9088
      %v9121 = vadd.f32 %v8929, %v9089
      %v9122 = vadd.f32 %v8930, %v9090
      %v9123 = vadd.f32 %v8931, %v9091
      %v9124 = vadd.f32 %v8932, %v9092
      %v9125 = vadd.f32 %v8933, %v9093
      %v9126 = vadd.f32 %v8934, %v9094
      %v9127 = vadd.f32 %v8935, %v9095
      %v9128 = vadd.f32 %v8936, %v9096
      %v9129 = vadd.f32 %v8937, %v9097
      %v9130 = vadd.f32 %v8938, %v9098
      %v9131 = vadd.f32 %v8939, %v9099
      %v9132 = vadd.f32 %v8940, %v9100
      %v9133 = vadd.f32 %v8941, %v9101
      %v9134 = vadd.f32 %v8942, %v9102
      %v9135 = vadd.f32 %v8943, %v9103
      %v9136 = vadd.f32 %v8944, %v9104
      %v9137 = vadd.f32 %v8945, %v9105
      %v9138 = vadd.f32 %v8946, %v9106
      %v9139 = vadd.f32 %v8947, %v9107
      %v9140 = vadd.f32 %v8948, %v9108
      %v9141 = vadd.f32 %v8949, %v9109
      %v9142 = vadd.f32 %v8950, %v9110
      %v9143 = vadd.f32 %v8951, %v9111
      %9176 = vrot.lane.b32.xlu0 %v9112, 64
      %v9177 = vpop.permute.xlu0 %9176
      %9178 = vrot.lane.b32.xlu0 %v9113, 64
      %v9179 = vpop.permute.xlu0 %9178
      %9180 = vrot.lane.b32.xlu0 %v9114, 64
      %v9181 = vpop.permute.xlu0 %9180
      %9182 = vrot.lane.b32.xlu0 %v9115, 64
      %v9183 = vpop.permute.xlu0 %9182
      %9184 = vrot.lane.b32.xlu0 %v9116, 64
      %v9185 = vpop.permute.xlu0 %9184
      %9186 = vrot.lane.b32.xlu0 %v9117, 64
      %v9187 = vpop.permute.xlu0 %9186
      %9188 = vrot.lane.b32.xlu0 %v9118, 64
      %v9189 = vpop.permute.xlu0 %9188
      %9190 = vrot.lane.b32.xlu0 %v9119, 64
      %v9191 = vpop.permute.xlu0 %9190
      %9192 = vrot.lane.b32.xlu0 %v9120, 64
      %v9193 = vpop.permute.xlu0 %9192
      %9194 = vrot.lane.b32.xlu0 %v9121, 64
      %v9195 = vpop.permute.xlu0 %9194
      %9196 = vrot.lane.b32.xlu0 %v9122, 64
      %v9197 = vpop.permute.xlu0 %9196
      %9198 = vrot.lane.b32.xlu0 %v9123, 64
      %v9199 = vpop.permute.xlu0 %9198
      %9200 = vrot.lane.b32.xlu0 %v9124, 64
      %v9201 = vpop.permute.xlu0 %9200
      %9202 = vrot.lane.b32.xlu0 %v9125, 64
      %v9203 = vpop.permute.xlu0 %9202
      %9204 = vrot.lane.b32.xlu0 %v9126, 64
      %v9205 = vpop.permute.xlu0 %9204
      %9206 = vrot.lane.b32.xlu0 %v9127, 64
      %v9207 = vpop.permute.xlu0 %9206
      %9208 = vrot.lane.b32.xlu0 %v9128, 64
      %v9209 = vpop.permute.xlu0 %9208
      %9210 = vrot.lane.b32.xlu0 %v9129, 64
      %v9211 = vpop.permute.xlu0 %9210
      %9212 = vrot.lane.b32.xlu0 %v9130, 64
      %v9213 = vpop.permute.xlu0 %9212
      %9214 = vrot.lane.b32.xlu0 %v9131, 64
      %v9215 = vpop.permute.xlu0 %9214
      %9216 = vrot.lane.b32.xlu0 %v9132, 64
      %v9217 = vpop.permute.xlu0 %9216
      %9218 = vrot.lane.b32.xlu0 %v9133, 64
      %v9219 = vpop.permute.xlu0 %9218
      %9220 = vrot.lane.b32.xlu0 %v9134, 64
      %v9221 = vpop.permute.xlu0 %9220
      %9222 = vrot.lane.b32.xlu0 %v9135, 64
      %v9223 = vpop.permute.xlu0 %9222
      %9224 = vrot.lane.b32.xlu0 %v9136, 64
      %v9225 = vpop.permute.xlu0 %9224
      %9226 = vrot.lane.b32.xlu0 %v9137, 64
      %v9227 = vpop.permute.xlu0 %9226
      %9228 = vrot.lane.b32.xlu0 %v9138, 64
      %v9229 = vpop.permute.xlu0 %9228
      %9230 = vrot.lane.b32.xlu0 %v9139, 64
      %v9231 = vpop.permute.xlu0 %9230
      %9232 = vrot.lane.b32.xlu0 %v9140, 64
      %v9233 = vpop.permute.xlu0 %9232
      %9234 = vrot.lane.b32.xlu0 %v9141, 64
      %v9235 = vpop.permute.xlu0 %9234
      %9236 = vrot.lane.b32.xlu0 %v9142, 64
      %v9237 = vpop.permute.xlu0 %9236
      %9238 = vrot.lane.b32.xlu0 %v9143, 64
      %v9239 = vpop.permute.xlu0 %9238
      %v9272 = vmul.f32 %v8728, %v9177
      %v9273 = vmul.f32 %v8729, %v9179
      %v9274 = vmul.f32 %v8730, %v9181
      %v9275 = vmul.f32 %v8731, %v9183
      %v9276 = vmul.f32 %v8732, %v9185
      %v9277 = vmul.f32 %v8733, %v9187
      %v9278 = vmul.f32 %v8734, %v9189
      %v9279 = vmul.f32 %v8735, %v9191
      %v9280 = vmul.f32 %v8736, %v9193
      %v9281 = vmul.f32 %v8737, %v9195
      %v9282 = vmul.f32 %v8738, %v9197
      %v9283 = vmul.f32 %v8739, %v9199
      %v9284 = vmul.f32 %v8740, %v9201
      %v9285 = vmul.f32 %v8741, %v9203
      %v9286 = vmul.f32 %v8742, %v9205
      %v9287 = vmul.f32 %v8743, %v9207
      %v9288 = vmul.f32 %v8744, %v9209
      %v9289 = vmul.f32 %v8745, %v9211
      %v9290 = vmul.f32 %v8746, %v9213
      %v9291 = vmul.f32 %v8747, %v9215
      %v9292 = vmul.f32 %v8748, %v9217
      %v9293 = vmul.f32 %v8749, %v9219
      %v9294 = vmul.f32 %v8750, %v9221
      %v9295 = vmul.f32 %v8751, %v9223
      %v9296 = vmul.f32 %v8752, %v9225
      %v9297 = vmul.f32 %v8753, %v9227
      %v9298 = vmul.f32 %v8754, %v9229
      %v9299 = vmul.f32 %v8755, %v9231
      %v9300 = vmul.f32 %v8756, %v9233
      %v9301 = vmul.f32 %v8757, %v9235
      %v9302 = vmul.f32 %v8758, %v9237
      %v9303 = vmul.f32 %v8759, %v9239
      %9304 = vst.msk [vmem:[%s657] sm:$0xff] %vm4729, %v9272
      %9305 = vst.msk [vmem:[%s657 + $0x8] sm:$0xff] %vm4729, %v9273
      %9306 = vst.msk [vmem:[%s657 + $0x10] sm:$0xff] %vm4729, %v9274
      %9307 = vst.msk [vmem:[%s657 + $0x18] sm:$0xff] %vm4729, %v9275
      %9308 = vst.msk [vmem:[%s657 + $0x20] sm:$0xff] %vm4729, %v9276
      %9309 = vst.msk [vmem:[%s657 + $0x28] sm:$0xff] %vm4729, %v9277
      %9310 = vst.msk [vmem:[%s657 + $0x30] sm:$0xff] %vm4729, %v9278
      %9311 = vst.msk [vmem:[%s657 + $0x38] sm:$0xff] %vm4729, %v9279
      %9312 = vst.msk [vmem:[%s657 + $0x40] sm:$0xff] %vm4729, %v9280
      %9313 = vst.msk [vmem:[%s657 + $0x48] sm:$0xff] %vm4729, %v9281
      %9314 = vst.msk [vmem:[%s657 + $0x50] sm:$0xff] %vm4729, %v9282
      %9315 = vst.msk [vmem:[%s657 + $0x58] sm:$0xff] %vm4729, %v9283
      %9316 = vst.msk [vmem:[%s657 + $0x60] sm:$0xff] %vm4729, %v9284
      %9317 = vst.msk [vmem:[%s657 + $0x68] sm:$0xff] %vm4729, %v9285
      %9318 = vst.msk [vmem:[%s657 + $0x70] sm:$0xff] %vm4729, %v9286
      %9319 = vst.msk [vmem:[%s657 + $0x78] sm:$0xff] %vm4729, %v9287
      %9320 = vst.msk [vmem:[%s657 + $0x80] sm:$0xff] %vm4729, %v9288
      %9321 = vst.msk [vmem:[%s657 + $0x88] sm:$0xff] %vm4729, %v9289
      %9322 = vst.msk [vmem:[%s657 + $0x90] sm:$0xff] %vm4729, %v9290
      %9323 = vst.msk [vmem:[%s657 + $0x98] sm:$0xff] %vm4729, %v9291
      %9324 = vst.msk [vmem:[%s657 + $0xa0] sm:$0xff] %vm4729, %v9292
      %9325 = vst.msk [vmem:[%s657 + $0xa8] sm:$0xff] %vm4729, %v9293
      %9326 = vst.msk [vmem:[%s657 + $0xb0] sm:$0xff] %vm4729, %v9294
      %9327 = vst.msk [vmem:[%s657 + $0xb8] sm:$0xff] %vm4729, %v9295
      %9328 = vst.msk [vmem:[%s657 + $0xc0] sm:$0xff] %vm4729, %v9296
      %9329 = vst.msk [vmem:[%s657 + $0xc8] sm:$0xff] %vm4729, %v9297
      %9330 = vst.msk [vmem:[%s657 + $0xd0] sm:$0xff] %vm4729, %v9298
      %9331 = vst.msk [vmem:[%s657 + $0xd8] sm:$0xff] %vm4729, %v9299
      %9332 = vst.msk [vmem:[%s657 + $0xe0] sm:$0xff] %vm4729, %v9300
      %9333 = vst.msk [vmem:[%s657 + $0xe8] sm:$0xff] %vm4729, %v9301
      %9334 = vst.msk [vmem:[%s657 + $0xf0] sm:$0xff] %vm4729, %v9302
      %9335 = vst.msk [vmem:[%s657 + $0xf8] sm:$0xff] %vm4729, %v9303
      %9368 = vrot.lane.b32.xlu0 %v4405, 96
      %v9369 = vpop.permute.xlu0 %9368
      %9370 = vrot.lane.b32.xlu0 %v4406, 96
      %v9371 = vpop.permute.xlu0 %9370
      %9372 = vrot.lane.b32.xlu0 %v4407, 96
      %v9373 = vpop.permute.xlu0 %9372
      %9374 = vrot.lane.b32.xlu0 %v4408, 96
      %v9375 = vpop.permute.xlu0 %9374
      %9376 = vrot.lane.b32.xlu0 %v4409, 96
      %v9377 = vpop.permute.xlu0 %9376
      %9378 = vrot.lane.b32.xlu0 %v4410, 96
      %v9379 = vpop.permute.xlu0 %9378
      %9380 = vrot.lane.b32.xlu0 %v4411, 96
      %v9381 = vpop.permute.xlu0 %9380
      %9382 = vrot.lane.b32.xlu0 %v4412, 96
      %v9383 = vpop.permute.xlu0 %9382
      %9384 = vrot.lane.b32.xlu0 %v4413, 96
      %v9385 = vpop.permute.xlu0 %9384
      %9386 = vrot.lane.b32.xlu0 %v4414, 96
      %v9387 = vpop.permute.xlu0 %9386
      %9388 = vrot.lane.b32.xlu0 %v4415, 96
      %v9389 = vpop.permute.xlu0 %9388
      %9390 = vrot.lane.b32.xlu0 %v4416, 96
      %v9391 = vpop.permute.xlu0 %9390
      %9392 = vrot.lane.b32.xlu0 %v4417, 96
      %v9393 = vpop.permute.xlu0 %9392
      %9394 = vrot.lane.b32.xlu0 %v4418, 96
      %v9395 = vpop.permute.xlu0 %9394
      %9396 = vrot.lane.b32.xlu0 %v4419, 96
      %v9397 = vpop.permute.xlu0 %9396
      %9398 = vrot.lane.b32.xlu0 %v4420, 96
      %v9399 = vpop.permute.xlu0 %9398
      %9400 = vrot.lane.b32.xlu0 %v4421, 96
      %v9401 = vpop.permute.xlu0 %9400
      %9402 = vrot.lane.b32.xlu0 %v4422, 96
      %v9403 = vpop.permute.xlu0 %9402
      %9404 = vrot.lane.b32.xlu0 %v4423, 96
      %v9405 = vpop.permute.xlu0 %9404
      %9406 = vrot.lane.b32.xlu0 %v4424, 96
      %v9407 = vpop.permute.xlu0 %9406
      %9408 = vrot.lane.b32.xlu0 %v4425, 96
      %v9409 = vpop.permute.xlu0 %9408
      %9410 = vrot.lane.b32.xlu0 %v4426, 96
      %v9411 = vpop.permute.xlu0 %9410
      %9412 = vrot.lane.b32.xlu0 %v4427, 96
      %v9413 = vpop.permute.xlu0 %9412
      %9414 = vrot.lane.b32.xlu0 %v4428, 96
      %v9415 = vpop.permute.xlu0 %9414
      %9416 = vrot.lane.b32.xlu0 %v4429, 96
      %v9417 = vpop.permute.xlu0 %9416
      %9418 = vrot.lane.b32.xlu0 %v4430, 96
      %v9419 = vpop.permute.xlu0 %9418
      %9420 = vrot.lane.b32.xlu0 %v4431, 96
      %v9421 = vpop.permute.xlu0 %9420
      %9422 = vrot.lane.b32.xlu0 %v4432, 96
      %v9423 = vpop.permute.xlu0 %9422
      %9424 = vrot.lane.b32.xlu0 %v4433, 96
      %v9425 = vpop.permute.xlu0 %9424
      %9426 = vrot.lane.b32.xlu0 %v4434, 96
      %v9427 = vpop.permute.xlu0 %9426
      %9428 = vrot.lane.b32.xlu0 %v4435, 96
      %v9429 = vpop.permute.xlu0 %9428
      %9430 = vrot.lane.b32.xlu0 %v4436, 96
      %v9431 = vpop.permute.xlu0 %9430
      %9464 = vst.msk [vmem:[%s662] sm:$0xff] %vm4729, %v9369
      %9465 = vst.msk [vmem:[%s662 + $0x8] sm:$0xff] %vm4729, %v9371
      %9466 = vst.msk [vmem:[%s662 + $0x10] sm:$0xff] %vm4729, %v9373
      %9467 = vst.msk [vmem:[%s662 + $0x18] sm:$0xff] %vm4729, %v9375
      %9468 = vst.msk [vmem:[%s662 + $0x20] sm:$0xff] %vm4729, %v9377
      %9469 = vst.msk [vmem:[%s662 + $0x28] sm:$0xff] %vm4729, %v9379
      %9470 = vst.msk [vmem:[%s662 + $0x30] sm:$0xff] %vm4729, %v9381
      %9471 = vst.msk [vmem:[%s662 + $0x38] sm:$0xff] %vm4729, %v9383
      %9472 = vst.msk [vmem:[%s662 + $0x40] sm:$0xff] %vm4729, %v9385
      %9473 = vst.msk [vmem:[%s662 + $0x48] sm:$0xff] %vm4729, %v9387
      %9474 = vst.msk [vmem:[%s662 + $0x50] sm:$0xff] %vm4729, %v9389
      %9475 = vst.msk [vmem:[%s662 + $0x58] sm:$0xff] %vm4729, %v9391
      %9476 = vst.msk [vmem:[%s662 + $0x60] sm:$0xff] %vm4729, %v9393
      %9477 = vst.msk [vmem:[%s662 + $0x68] sm:$0xff] %vm4729, %v9395
      %9478 = vst.msk [vmem:[%s662 + $0x70] sm:$0xff] %vm4729, %v9397
      %9479 = vst.msk [vmem:[%s662 + $0x78] sm:$0xff] %vm4729, %v9399
      %9480 = vst.msk [vmem:[%s662 + $0x80] sm:$0xff] %vm4729, %v9401
      %9481 = vst.msk [vmem:[%s662 + $0x88] sm:$0xff] %vm4729, %v9403
      %9482 = vst.msk [vmem:[%s662 + $0x90] sm:$0xff] %vm4729, %v9405
      %9483 = vst.msk [vmem:[%s662 + $0x98] sm:$0xff] %vm4729, %v9407
      %9484 = vst.msk [vmem:[%s662 + $0xa0] sm:$0xff] %vm4729, %v9409
      %9485 = vst.msk [vmem:[%s662 + $0xa8] sm:$0xff] %vm4729, %v9411
      %9486 = vst.msk [vmem:[%s662 + $0xb0] sm:$0xff] %vm4729, %v9413
      %9487 = vst.msk [vmem:[%s662 + $0xb8] sm:$0xff] %vm4729, %v9415
      %9488 = vst.msk [vmem:[%s662 + $0xc0] sm:$0xff] %vm4729, %v9417
      %9489 = vst.msk [vmem:[%s662 + $0xc8] sm:$0xff] %vm4729, %v9419
      %9490 = vst.msk [vmem:[%s662 + $0xd0] sm:$0xff] %vm4729, %v9421
      %9491 = vst.msk [vmem:[%s662 + $0xd8] sm:$0xff] %vm4729, %v9423
      %9492 = vst.msk [vmem:[%s662 + $0xe0] sm:$0xff] %vm4729, %v9425
      %9493 = vst.msk [vmem:[%s662 + $0xe8] sm:$0xff] %vm4729, %v9427
      %9494 = vst.msk [vmem:[%s662 + $0xf0] sm:$0xff] %vm4729, %v9429
      %9495 = vst.msk [vmem:[%s662 + $0xf8] sm:$0xff] %vm4729, %v9431
      %9496 = vst.msk [vmem:[%s667] sm:$0xff] %vm4729, %v9177
      %9497 = vst.msk [vmem:[%s667 + $0x8] sm:$0xff] %vm4729, %v9179
      %9498 = vst.msk [vmem:[%s667 + $0x10] sm:$0xff] %vm4729, %v9181
      %9499 = vst.msk [vmem:[%s667 + $0x18] sm:$0xff] %vm4729, %v9183
      %9500 = vst.msk [vmem:[%s667 + $0x20] sm:$0xff] %vm4729, %v9185
      %9501 = vst.msk [vmem:[%s667 + $0x28] sm:$0xff] %vm4729, %v9187
      %9502 = vst.msk [vmem:[%s667 + $0x30] sm:$0xff] %vm4729, %v9189
      %9503 = vst.msk [vmem:[%s667 + $0x38] sm:$0xff] %vm4729, %v9191
      %9504 = vst.msk [vmem:[%s667 + $0x40] sm:$0xff] %vm4729, %v9193
      %9505 = vst.msk [vmem:[%s667 + $0x48] sm:$0xff] %vm4729, %v9195
      %9506 = vst.msk [vmem:[%s667 + $0x50] sm:$0xff] %vm4729, %v9197
      %9507 = vst.msk [vmem:[%s667 + $0x58] sm:$0xff] %vm4729, %v9199
      %9508 = vst.msk [vmem:[%s667 + $0x60] sm:$0xff] %vm4729, %v9201
      %9509 = vst.msk [vmem:[%s667 + $0x68] sm:$0xff] %vm4729, %v9203
      %9510 = vst.msk [vmem:[%s667 + $0x70] sm:$0xff] %vm4729, %v9205
      %9511 = vst.msk [vmem:[%s667 + $0x78] sm:$0xff] %vm4729, %v9207
      %9512 = vst.msk [vmem:[%s667 + $0x80] sm:$0xff] %vm4729, %v9209
      %9513 = vst.msk [vmem:[%s667 + $0x88] sm:$0xff] %vm4729, %v9211
      %9514 = vst.msk [vmem:[%s667 + $0x90] sm:$0xff] %vm4729, %v9213
      %9515 = vst.msk [vmem:[%s667 + $0x98] sm:$0xff] %vm4729, %v9215
      %9516 = vst.msk [vmem:[%s667 + $0xa0] sm:$0xff] %vm4729, %v9217
      %9517 = vst.msk [vmem:[%s667 + $0xa8] sm:$0xff] %vm4729, %v9219
      %9518 = vst.msk [vmem:[%s667 + $0xb0] sm:$0xff] %vm4729, %v9221
      %9519 = vst.msk [vmem:[%s667 + $0xb8] sm:$0xff] %vm4729, %v9223
      %9520 = vst.msk [vmem:[%s667 + $0xc0] sm:$0xff] %vm4729, %v9225
      %9521 = vst.msk [vmem:[%s667 + $0xc8] sm:$0xff] %vm4729, %v9227
      %9522 = vst.msk [vmem:[%s667 + $0xd0] sm:$0xff] %vm4729, %v9229
      %9523 = vst.msk [vmem:[%s667 + $0xd8] sm:$0xff] %vm4729, %v9231
      %9524 = vst.msk [vmem:[%s667 + $0xe0] sm:$0xff] %vm4729, %v9233
      %9525 = vst.msk [vmem:[%s667 + $0xe8] sm:$0xff] %vm4729, %v9235
      %9526 = vst.msk [vmem:[%s667 + $0xf0] sm:$0xff] %vm4729, %v9237
      %9527 = vst.msk [vmem:[%s667 + $0xf8] sm:$0xff] %vm4729, %v9239
      %p9528 = scmp.lt.s32.totalorder %s31, 1
      %s9529 = scalar_select %p9528, %s31, 1
      %s9530 = smul.addr %s9529, 32
      %s9531 = smul.addr %s9530, 8
      %s9532 = scalar_lea.vmem %s17, %s9531
      %p9533 = scmp.lt.s32.totalorder %s31, 1
      %s9534 = scalar_select %p9533, %s31, 1
      %s9535 = smul.addr %s9534, 32
      %s9536 = smul.addr %s9535, 8
      %s9537 = scalar_lea.vmem %s18, %s9536
      %p9538 = scmp.lt.s32.totalorder %s31, 1
      %s9539 = scalar_select %p9538, %s31, 1
      %s9540 = smul.addr %s9539, 32
      %s9541 = smul.addr %s9540, 8
      %s9542 = scalar_lea.vmem %s19, %s9541
      // Predicated region
      $region89: #{tpu_custom_call.1} parent=87 // pred_check
        %p9543 = pneg %p421
      $region90: #{tpu_custom_call.1} parent=87 // pred_check_branch
        %9545 = sbr.rel (%p9543) target = $region92
      $region91: #{tpu_custom_call.1} parent=87 // pred_region
        _
      $region92: #{tpu_custom_call.1} parent=87 // pred_fallthru
        _
      // Predicated region
      $region93: #{tpu_custom_call.1} parent=87 // pred_check
        %p9546 = pneg %p447
      $region94: #{tpu_custom_call.1} parent=87 // pred_check_branch
        %9548 = sbr.rel (%p9546) target = $region96
      $region95: #{tpu_custom_call.1} parent=87 // pred_region
        _
      $region96: #{tpu_custom_call.1} parent=87 // pred_fallthru
        _
      // Predicated region
      $region97: #{tpu_custom_call.1} parent=87 // pred_check
        %p9549 = pneg %p473
      $region98: #{tpu_custom_call.1} parent=87 // pred_check_branch
        %9551 = sbr.rel (%p9549) target = $region100
      $region99: #{tpu_custom_call.1} parent=87 // pred_region
        _
      $region100: #{tpu_custom_call.1} parent=87 // pred_fallthru
        _
    $region88: #{tpu_custom_call.1} parent=5 // pred_fallthru
      _
    %p9552 = scmp.le.s32.totalorder 2, %s26
    // Predicated region
    $region101: #{tpu_custom_call.1} parent=5 // pred_check
      %p9553 = pneg %p9552
    $region102: #{tpu_custom_call.1} parent=5 // pred_check_branch
      %9555 = sbr.rel (%p9553) target = $region104
    $region103: #{tpu_custom_call.1} parent=5 // pred_region
      %s9556 = ssub.s32 %s26, 2
      // Predicated region
      $region105: #{tpu_custom_call.1} parent=103 // pred_check
        %p9557 = pneg %p427
      $region106: #{tpu_custom_call.1} parent=103 // pred_check_branch
        %9559 = sbr.rel (%p9557) target = $region108
      $region107: #{tpu_custom_call.1} parent=103 // pred_region
        %p9560 = scmp.lt.s32.totalorder %s32, 1
        %s9561 = scalar_select %p9560, %s32, 1
        %s9562 = smul.addr %s9561, 32
        %s9563 = smul.addr %s9562, 8
        %s9564 = scalar_lea.vmem %s17, %s9563
      $region108: #{tpu_custom_call.1} parent=103 // pred_fallthru
        _
      // Predicated region
      $region109: #{tpu_custom_call.1} parent=103 // pred_check
        %p9565 = pneg %p453
      $region110: #{tpu_custom_call.1} parent=103 // pred_check_branch
        %9567 = sbr.rel (%p9565) target = $region112
      $region111: #{tpu_custom_call.1} parent=103 // pred_region
        %p9568 = scmp.lt.s32.totalorder %s32, 1
        %s9569 = scalar_select %p9568, %s32, 1
        %s9570 = smul.addr %s9569, 32
        %s9571 = smul.addr %s9570, 8
        %s9572 = scalar_lea.vmem %s18, %s9571
      $region112: #{tpu_custom_call.1} parent=103 // pred_fallthru
        _
      // Predicated region
      $region113: #{tpu_custom_call.1} parent=103 // pred_check
        %p9573 = pneg %p479
      $region114: #{tpu_custom_call.1} parent=103 // pred_check_branch
        %9575 = sbr.rel (%p9573) target = $region116
      $region115: #{tpu_custom_call.1} parent=103 // pred_region
        %p9576 = scmp.lt.s32.totalorder %s32, 1
        %s9577 = scalar_select %p9576, %s32, 1
        %s9578 = smul.addr %s9577, 32
        %s9579 = smul.addr %s9578, 8
        %s9580 = scalar_lea.vmem %s19, %s9579
      $region116: #{tpu_custom_call.1} parent=103 // pred_fallthru
        _
    $region104: #{tpu_custom_call.1} parent=5 // pred_fallthru
      _
  $region6: #{tpu_custom_call.1} parent=0 // loop_footer
    %s30 = sadd.s32 1, %s26
  $region7: #{tpu_custom_call.1} parent=0 // loop_footer_branch
    %25 = sbr.rel target = $region3
  $region8: #{tpu_custom_call.1} parent=0 // loop_exit
    _

</llo_original>
